<compile_context>
chip_gen: v7x
topology: tpu7x:2x2x1
jax: 0.10.0
libtpu: 0.0.40
codegen_flags: <defaults>
</compile_context>

<pallas_src>
import functools

import jax
import jax.numpy as jnp
import numpy as np
from jax.experimental import pallas as pl
from jax.experimental.pallas import tpu as pltpu


# ---------------------------------------------------------------------------
# Pallas kernel: one recurrent Nesterov-attention step for a tile of TB heads.
# ---------------------------------------------------------------------------
def _nesterov_kernel(t_ref, rep_ref, til_ref, red_ref,
                     q_ref, k_ref, v_ref, si_ref, zi_ref, pi_ref,
                     vout_ref, si_out_ref, zi_out_ref, pn_out_ref,
                     *, stepsize, eps):
    # New time index and Nesterov momentum coefficient (scalar path, SMEM).
    t = (t_ref[0] + 1).astype(jnp.float32)
    mu = (t - 1.0) / (t + 2.0)

    hi = jax.lax.Precision.HIGHEST
    f32 = jnp.float32

    q = q_ref[...]                                   # (TB, D)
    k = k_ref[...]                                   # (TB, D)
    v = v_ref[...]                                   # (TB, M)

    # elu(x) + 1 feature map:  x + 1 if x > 0 else exp(x)
    Q = jnp.where(q > 0, q + 1.0, jnp.exp(q))
    K = jnp.where(k > 0, k + 1.0, jnp.exp(k))

    # Normalizer state:  Zi <- Zi + K ;  Z = 1 / (Q . Zi + eps)
    Zi = zi_ref[...] + K
    zi_out_ref[...] = Zi
    Z = 1.0 / (jnp.sum(Q * Zi, axis=-1, keepdims=True) + eps)   # (TB, 1)

    # Lane-dense expansions via tiny MXU matmuls against 0/1 selector
    # matrices (exact to f32 with HIGHEST precision):
    #   K_rep[b, d*M+m] = K[b, d],  Q_rep likewise,  v_til[b, d*M+m] = v[b, m]
    rep = rep_ref[...]                               # (D, D*M)
    til = til_ref[...]                               # (M, D*M)
    K_rep = jnp.dot(K, rep, precision=hi, preferred_element_type=f32)
    Q_rep = jnp.dot(Q, rep, precision=hi, preferred_element_type=f32)
    v_til = jnp.dot(v, til, precision=hi, preferred_element_type=f32)

    # Nesterov update of the flattened numerator state, fully lane dense.
    Pnext = si_ref[...] + stepsize * (K_rep * v_til)             # (TB, D*M)
    Si = Pnext + mu * (Pnext - pi_ref[...])
    pn_out_ref[...] = Pnext
    si_out_ref[...] = Si

    # V[b, m] = Z[b] * sum_d Q[b, d] * Si[b, d*M+m]
    # (segmented lane reduction expressed as one MXU matmul vs a 0/1 matrix)
    Vnum = jnp.dot(Q_rep * Si, red_ref[...], precision=hi,
                   preferred_element_type=f32)                   # (TB, M)
    vout_ref[...] = Vnum * Z


def _pick_tb(B):
    # Largest head-tile that divides B, capped so double-buffered state tiles
    # + temporaries fit comfortably in scoped VMEM on v5e/v7x.
    for tb in (64, 32, 16, 8):
        if B % tb == 0:
            return tb
    return B


# ---------------------------------------------------------------------------
# Python wrapper (glue: reshapes, state init, pallas_call plumbing)
# ---------------------------------------------------------------------------
def recurrent_nesterov_attention(query, key, value, state=None,
                                 *, stepsize=0.5, eps=1e-6):
    N, H, D = query.shape
    M = value.shape[-1]
    B = N * H
    DM = D * M

    q = query.reshape(B, D).astype(jnp.float32)
    k = key.reshape(B, D).astype(jnp.float32)
    v = value.reshape(B, M).astype(jnp.float32)

    if state is None:
        si = jnp.zeros((B, DM), jnp.float32)
        zi = jnp.zeros((B, D), jnp.float32)
        pi = jnp.zeros((B, DM), jnp.float32)
        time_indx = 0
    else:
        Si, Zi, Pi, time_indx = state
        if Si.shape[0] != N:
            raise ValueError("The batch size changed during iteration")
        si = Si.reshape(B, DM).astype(jnp.float32)
        zi = Zi.reshape(B, D).astype(jnp.float32)
        pi = Pi.reshape(B, DM).astype(jnp.float32)

    # Time index as an int32 array (works with Python ints and traced arrays).
    t_arr = jnp.reshape(jnp.asarray(time_indx, jnp.int32), (1,))

    # Constant 0/1 selector matrices (host-built, treated as constants).
    rep = jnp.asarray(np.kron(np.eye(D, dtype=np.float32),
                              np.ones((1, M), np.float32)))          # (D, DM)
    til = jnp.asarray(np.tile(np.eye(M, dtype=np.float32), (1, D)))  # (M, DM)
    red = jnp.asarray(np.tile(np.eye(M, dtype=np.float32), (D, 1)))  # (DM, M)

    TB = _pick_tb(B)
    grid = (B // TB,)

    kern = functools.partial(_nesterov_kernel,
                             stepsize=float(stepsize), eps=float(eps))

    in_specs = [
        pl.BlockSpec(memory_space=pltpu.MemorySpace.SMEM),   # t (scalar)
        pl.BlockSpec((D, DM), lambda b: (0, 0)),             # rep (resident)
        pl.BlockSpec((M, DM), lambda b: (0, 0)),             # til (resident)
        pl.BlockSpec((DM, M), lambda b: (0, 0)),             # red (resident)
        pl.BlockSpec((TB, D), lambda b: (b, 0)),             # q
        pl.BlockSpec((TB, D), lambda b: (b, 0)),             # k
        pl.BlockSpec((TB, M), lambda b: (b, 0)),             # v
        pl.BlockSpec((TB, DM), lambda b: (b, 0)),            # si
        pl.BlockSpec((TB, D), lambda b: (b, 0)),             # zi
        pl.BlockSpec((TB, DM), lambda b: (b, 0)),            # pi
    ]
    out_specs = (
        pl.BlockSpec((TB, M), lambda b: (b, 0)),             # V
        pl.BlockSpec((TB, DM), lambda b: (b, 0)),            # Si
        pl.BlockSpec((TB, D), lambda b: (b, 0)),             # Zi
        pl.BlockSpec((TB, DM), lambda b: (b, 0)),            # Pnext
    )
    out_shapes = (
        jax.ShapeDtypeStruct((B, M), jnp.float32),
        jax.ShapeDtypeStruct((B, DM), jnp.float32),
        jax.ShapeDtypeStruct((B, D), jnp.float32),
        jax.ShapeDtypeStruct((B, DM), jnp.float32),
    )

    V, si_new, zi_new, pn_new = pl.pallas_call(
        kern,
        out_shape=out_shapes,
        grid=grid,
        in_specs=in_specs,
        out_specs=out_specs,
        # Donate the recurrent state buffers: si->Si, zi->Zi, pi->Pnext.
        input_output_aliases={7: 1, 8: 2, 9: 3},
        compiler_params=pltpu.CompilerParams(
            dimension_semantics=("parallel",)),
    )(t_arr, rep, til, red, q, k, v, si, zi, pi)

    V = V.reshape(N, H, M)
    Si_new = si_new.reshape(N, H, D, M)
    Zi_new = zi_new.reshape(N, H, D)
    Pnext = pn_new.reshape(N, H, D, M)
    return V, [Si_new, Zi_new, Pnext, time_indx + 1]


# ---------------------------------------------------------------------------
# Pure-JAX reference (mirrors the PyTorch forward) for correctness checking.
# ---------------------------------------------------------------------------
def _reference_step(query, key, value, state, *, stepsize=0.5, eps=1e-6):
    def fmap(x):
        return jnp.where(x > 0, x + 1.0, jnp.exp(x))

    Q, K = fmap(query), fmap(key)
    N, H, D = Q.shape
    M = value.shape[-1]
    if state is None:
        Si = jnp.zeros((N, H, D, M), jnp.float32)
        Zi = jnp.zeros((N, H, D), jnp.float32)
        Pi = jnp.zeros((N, H, D, M), jnp.float32)
        t = 0
    else:
        Si, Zi, Pi, t = state
    t = t + 1
    mu = (t - 1.0) / (t + 2.0)
    Zi = Zi + K
    Pnext = Si + stepsize * jnp.einsum('nhd,nhm->nhdm', K, value)
    Si = Pnext + mu * (Pnext - Pi)
    Z = 1.0 / (jnp.einsum('nhd,nhd->nh', Q, Zi) + eps)
    V = jnp.einsum('nhd,nhdm,nh->nhm', Q, Si, Z)
    return V, [Si, Zi, Pnext, t]


if __name__ == "__main__":
    N, H, D, M = 2, 4, 32, 32
    stepsize, eps = 0.5, 1e-6

    rng = jax.random.PRNGKey(0)
    k1, k2, k3, k4, k5, k6 = jax.random.split(rng, 6)
    # step-1 inputs
    q1 = jax.random.normal(k1, (N, H, D), jnp.float32)
    kk1 = jax.random.normal(k2, (N, H, D), jnp.float32)
    v1 = jax.random.normal(k3, (N, H, M), jnp.float32)
    # step-2 inputs (exercises non-zero state and mu > 0)
    q2 = jax.random.normal(k4, (N, H, D), jnp.float32)
    kk2 = jax.random.normal(k5, (N, H, D), jnp.float32)
    v2 = jax.random.normal(k6, (N, H, M), jnp.float32)

    # Pallas kernel, two recurrent steps
    V1, state1 = recurrent_nesterov_attention(q1, kk1, v1, None,
                                              stepsize=stepsize, eps=eps)
    V2, state2 = recurrent_nesterov_attention(q2, kk2, v2, state1,
                                              stepsize=stepsize, eps=eps)
    jax.block_until_ready((V1, V2, state2[0], state2[1], state2[2]))

    # Reference
    V1r, state1r = _reference_step(q1, kk1, v1, None, stepsize=stepsize, eps=eps)
    V2r, state2r = _reference_step(q2, kk2, v2, state1r, stepsize=stepsize, eps=eps)

    np.testing.assert_allclose(np.asarray(V1), np.asarray(V1r), rtol=1e-5, atol=1e-5)
    np.testing.assert_allclose(np.asarray(V2), np.asarray(V2r), rtol=1e-5, atol=1e-5)
    np.testing.assert_allclose(np.asarray(state2[0]), np.asarray(state2r[0]),
                               rtol=1e-5, atol=1e-5)
    np.testing.assert_allclose(np.asarray(state2[1]), np.asarray(state2r[1]),
                               rtol=1e-5, atol=1e-5)
    np.testing.assert_allclose(np.asarray(state2[2]), np.asarray(state2r[2]),
                               rtol=1e-5, atol=1e-5)
    assert state2[3] == 2

    print("KERNEL_OK")
</pallas_src>

<mosaic_0001>
module attributes {stable_mosaic.version = 11 : i64} {
  func.func @_nesterov_kernel(%arg0: i32, %arg1: memref<1xi32, #tpu.memory_space<smem>>, %arg2: memref<32x1024xf32, #tpu.memory_space<vmem>>, %arg3: memref<32x1024xf32, #tpu.memory_space<vmem>>, %arg4: memref<1024x32xf32, #tpu.memory_space<vmem>>, %arg5: memref<8x32xf32, #tpu.memory_space<vmem>>, %arg6: memref<8x32xf32, #tpu.memory_space<vmem>>, %arg7: memref<8x32xf32, #tpu.memory_space<vmem>>, %arg8: memref<8x1024xf32, #tpu.memory_space<vmem>>, %arg9: memref<8x32xf32, #tpu.memory_space<vmem>>, %arg10: memref<8x1024xf32, #tpu.memory_space<vmem>>, %arg11: memref<8x32xf32, #tpu.memory_space<vmem>>, %arg12: memref<8x1024xf32, #tpu.memory_space<vmem>>, %arg13: memref<8x32xf32, #tpu.memory_space<vmem>>, %arg14: memref<8x1024xf32, #tpu.memory_space<vmem>>) attributes {dimension_semantics = [#tpu.dimension_semantics<parallel>], iteration_bounds = array<i64: 1>, scalar_prefetch = 0 : i64, scratch_operands = 0 : i64, tpu.core_type = #tpu.core_type<tc>, window_params = [{transform_indices = @transform_0, window_bounds = array<i64: 1>}, {pipeline_mode = #tpu.pipeline_mode<synchronous>, transform_indices = @transform_1, window_bounds = array<i64: 32, 1024>}, {pipeline_mode = #tpu.pipeline_mode<synchronous>, transform_indices = @transform_2, window_bounds = array<i64: 32, 1024>}, {pipeline_mode = #tpu.pipeline_mode<synchronous>, transform_indices = @transform_3, window_bounds = array<i64: 1024, 32>}, {transform_indices = @transform_4, window_bounds = array<i64: 8, 32>}, {transform_indices = @transform_5, window_bounds = array<i64: 8, 32>}, {transform_indices = @transform_6, window_bounds = array<i64: 8, 32>}, {transform_indices = @transform_7, window_bounds = array<i64: 8, 1024>}, {transform_indices = @transform_8, window_bounds = array<i64: 8, 32>}, {transform_indices = @transform_9, window_bounds = array<i64: 8, 1024>}, {transform_indices = @transform_10, window_bounds = array<i64: 8, 32>}, {transform_indices = @transform_11, window_bounds = array<i64: 8, 1024>}, {transform_indices = @transform_12, window_bounds = array<i64: 8, 32>}, {transform_indices = @transform_13, window_bounds = array<i64: 8, 1024>}]} {
    %c0 = arith.constant 0 : index
    %0 = memref.load %arg1[%c0] : memref<1xi32, #tpu.memory_space<smem>>
    %c1_i32 = arith.constant 1 : i32
    %1 = arith.addi %0, %c1_i32 : i32
    %2 = arith.sitofp %1 : i32 to f32
    %cst = arith.constant 1.000000e+00 : f32
    %3 = arith.subf %2, %cst : f32
    %cst_0 = arith.constant 2.000000e+00 : f32
    %4 = arith.addf %2, %cst_0 : f32
    %5 = arith.divf %3, %4 : f32
    %c0_1 = arith.constant 0 : index
    %c0_2 = arith.constant 0 : index
    %6 = vector.load %arg5[%c0_1, %c0_2] : memref<8x32xf32, #tpu.memory_space<vmem>>, vector<8x32xf32>
    %c0_3 = arith.constant 0 : index
    %c0_4 = arith.constant 0 : index
    %7 = vector.load %arg6[%c0_3, %c0_4] : memref<8x32xf32, #tpu.memory_space<vmem>>, vector<8x32xf32>
    %c0_5 = arith.constant 0 : index
    %c0_6 = arith.constant 0 : index
    %8 = vector.load %arg7[%c0_5, %c0_6] : memref<8x32xf32, #tpu.memory_space<vmem>>, vector<8x32xf32>
    %cst_7 = arith.constant 0.000000e+00 : f32
    %9 = vector.broadcast %cst_7 : f32 to vector<8x32xf32>
    %10 = arith.cmpf ogt, %6, %9 : vector<8x32xf32>
    %cst_8 = arith.constant 1.000000e+00 : f32
    %11 = vector.broadcast %cst_8 : f32 to vector<8x32xf32>
    %12 = arith.addf %6, %11 : vector<8x32xf32>
    %13 = math.exp %6 : vector<8x32xf32>
    %14 = arith.select %10, %12, %13 : vector<8x32xi1>, vector<8x32xf32>
    %cst_9 = arith.constant 0.000000e+00 : f32
    %15 = vector.broadcast %cst_9 : f32 to vector<8x32xf32>
    %16 = arith.cmpf ogt, %7, %15 : vector<8x32xf32>
    %cst_10 = arith.constant 1.000000e+00 : f32
    %17 = vector.broadcast %cst_10 : f32 to vector<8x32xf32>
    %18 = arith.addf %7, %17 : vector<8x32xf32>
    %19 = math.exp %7 : vector<8x32xf32>
    %20 = arith.select %16, %18, %19 : vector<8x32xi1>, vector<8x32xf32>
    %c0_11 = arith.constant 0 : index
    %c0_12 = arith.constant 0 : index
    %21 = vector.load %arg9[%c0_11, %c0_12] : memref<8x32xf32, #tpu.memory_space<vmem>>, vector<8x32xf32>
    %22 = arith.addf %21, %20 : vector<8x32xf32>
    %c0_13 = arith.constant 0 : index
    %c0_14 = arith.constant 0 : index
    %23 = vector.load %arg13[%c0_13, %c0_14] : memref<8x32xf32, #tpu.memory_space<vmem>>, vector<8x32xf32>
    tpu.vector_store %arg13[%c0_13, %c0_14], %22 {strides = array<i32>} : memref<8x32xf32, #tpu.memory_space<vmem>>, vector<8x32xf32>,
    %24 = arith.mulf %14, %22 : vector<8x32xf32>
    %cst_15 = arith.constant dense<0.000000e+00> : vector<8xf32>
    %25 = vector.multi_reduction <add>, %24, %cst_15 [1] : vector<8x32xf32> to vector<8xf32>
    %26 = vector.shape_cast %25 : vector<8xf32> to vector<8x1xf32>
    %cst_16 = arith.constant 9.99999997E-7 : f32
    %27 = vector.broadcast %cst_16 : f32 to vector<8x1xf32>
    %28 = arith.addf %26, %27 : vector<8x1xf32>
    %cst_17 = arith.constant 1.000000e+00 : f32
    %29 = vector.broadcast %cst_17 : f32 to vector<8x1xf32>
    %30 = arith.divf %29, %28 : vector<8x1xf32>
    %c0_18 = arith.constant 0 : index
    %c0_19 = arith.constant 0 : index
    %31 = vector.load %arg2[%c0_18, %c0_19] : memref<32x1024xf32, #tpu.memory_space<vmem>>, vector<32x1024xf32>
    %c0_20 = arith.constant 0 : index
    %c0_21 = arith.constant 0 : index
    %32 = vector.load %arg3[%c0_20, %c0_21] : memref<32x1024xf32, #tpu.memory_space<vmem>>, vector<32x1024xf32>
    %cst_22 = arith.constant dense<0.000000e+00> : vector<8x1024xf32>
    %33 = tpu.matmul %20, %31, %cst_22 {dimension_numbers = #tpu.dot_dimension_numbers<[1], [0], [0], [1], [0, 0, 1, 1], [], []>, precision = #tpu.contract_precision<fp32>} : vector<8x32xf32>, vector<32x1024xf32>, vector<8x1024xf32> -> vector<8x1024xf32>
    %cst_23 = arith.constant dense<0.000000e+00> : vector<8x1024xf32>
    %34 = tpu.matmul %14, %31, %cst_23 {dimension_numbers = #tpu.dot_dimension_numbers<[1], [0], [0], [1], [0, 0, 1, 1], [], []>, precision = #tpu.contract_precision<fp32>} : vector<8x32xf32>, vector<32x1024xf32>, vector<8x1024xf32> -> vector<8x1024xf32>
    %cst_24 = arith.constant dense<0.000000e+00> : vector<8x1024xf32>
    %35 = tpu.matmul %8, %32, %cst_24 {dimension_numbers = #tpu.dot_dimension_numbers<[1], [0], [0], [1], [0, 0, 1, 1], [], []>, precision = #tpu.contract_precision<fp32>} : vector<8x32xf32>, vector<32x1024xf32>, vector<8x1024xf32> -> vector<8x1024xf32>
    %c0_25 = arith.constant 0 : index
    %c0_26 = arith.constant 0 : index
    %36 = vector.load %arg8[%c0_25, %c0_26] : memref<8x1024xf32, #tpu.memory_space<vmem>>, vector<8x1024xf32>
    %37 = arith.mulf %33, %35 : vector<8x1024xf32>
    %cst_27 = arith.constant 5.000000e-01 : f32
    %38 = vector.broadcast %cst_27 : f32 to vector<8x1024xf32>
    %39 = arith.mulf %38, %37 : vector<8x1024xf32>
    %40 = arith.addf %36, %39 : vector<8x1024xf32>
    %c0_28 = arith.constant 0 : index
    %c0_29 = arith.constant 0 : index
    %41 = vector.load %arg10[%c0_28, %c0_29] : memref<8x1024xf32, #tpu.memory_space<vmem>>, vector<8x1024xf32>
    %42 = arith.subf %40, %41 : vector<8x1024xf32>
    %43 = vector.broadcast %5 : f32 to vector<8x1024xf32>
    %44 = arith.mulf %43, %42 : vector<8x1024xf32>
    %45 = arith.addf %40, %44 : vector<8x1024xf32>
    %c0_30 = arith.constant 0 : index
    %c0_31 = arith.constant 0 : index
    %46 = vector.load %arg14[%c0_30, %c0_31] : memref<8x1024xf32, #tpu.memory_space<vmem>>, vector<8x1024xf32>
    tpu.vector_store %arg14[%c0_30, %c0_31], %40 {strides = array<i32>} : memref<8x1024xf32, #tpu.memory_space<vmem>>, vector<8x1024xf32>,
    %c0_32 = arith.constant 0 : index
    %c0_33 = arith.constant 0 : index
    %47 = vector.load %arg12[%c0_32, %c0_33] : memref<8x1024xf32, #tpu.memory_space<vmem>>, vector<8x1024xf32>
    tpu.vector_store %arg12[%c0_32, %c0_33], %45 {strides = array<i32>} : memref<8x1024xf32, #tpu.memory_space<vmem>>, vector<8x1024xf32>,
    %48 = arith.mulf %34, %45 : vector<8x1024xf32>
    %c0_34 = arith.constant 0 : index
    %c0_35 = arith.constant 0 : index
    %49 = vector.load %arg4[%c0_34, %c0_35] : memref<1024x32xf32, #tpu.memory_space<vmem>>, vector<1024x32xf32>
    %cst_36 = arith.constant dense<0.000000e+00> : vector<8x32xf32>
    %50 = tpu.matmul %48, %49, %cst_36 {dimension_numbers = #tpu.dot_dimension_numbers<[1], [0], [0], [1], [0, 0, 1, 1], [], []>, precision = #tpu.contract_precision<fp32>} : vector<8x1024xf32>, vector<1024x32xf32>, vector<8x32xf32> -> vector<8x32xf32>
    %51 = vector.broadcast %30 : vector<8x1xf32> to vector<8x32xf32>
    %52 = arith.mulf %50, %51 : vector<8x32xf32>
    %c0_37 = arith.constant 0 : index
    %c0_38 = arith.constant 0 : index
    %53 = vector.load %arg11[%c0_37, %c0_38] : memref<8x32xf32, #tpu.memory_space<vmem>>, vector<8x32xf32>
    tpu.vector_store %arg11[%c0_37, %c0_38], %52 {strides = array<i32>} : memref<8x32xf32, #tpu.memory_space<vmem>>, vector<8x32xf32>,
    return
  }
  func.func @transform_0(%arg0: i32) -> i32 {
    %c0_i32 = arith.constant 0 : i32
    %c0_i32_0 = arith.constant 0 : i32
    return %c0_i32 : i32
  }
  func.func @transform_1(%arg0: i32) -> (i32, i32) {
    %c0_i32 = arith.constant 0 : i32
    %c0_i32_0 = arith.constant 0 : i32
    %c0_i32_1 = arith.constant 0 : i32
    return %c0_i32, %c0_i32_0 : i32, i32
  }
  func.func @transform_2(%arg0: i32) -> (i32, i32) {
    %c0_i32 = arith.constant 0 : i32
    %c0_i32_0 = arith.constant 0 : i32
    %c0_i32_1 = arith.constant 0 : i32
    return %c0_i32, %c0_i32_0 : i32, i32
  }
  func.func @transform_3(%arg0: i32) -> (i32, i32) {
    %c0_i32 = arith.constant 0 : i32
    %c0_i32_0 = arith.constant 0 : i32
    %c0_i32_1 = arith.constant 0 : i32
    return %c0_i32, %c0_i32_0 : i32, i32
  }
  func.func @transform_4(%arg0: i32) -> (i32, i32) {
    %c0_i32 = arith.constant 0 : i32
    %c0_i32_0 = arith.constant 0 : i32
    return %arg0, %c0_i32 : i32, i32
  }
  func.func @transform_5(%arg0: i32) -> (i32, i32) {
    %c0_i32 = arith.constant 0 : i32
    %c0_i32_0 = arith.constant 0 : i32
    return %arg0, %c0_i32 : i32, i32
  }
  func.func @transform_6(%arg0: i32) -> (i32, i32) {
    %c0_i32 = arith.constant 0 : i32
    %c0_i32_0 = arith.constant 0 : i32
    return %arg0, %c0_i32 : i32, i32
  }
  func.func @transform_7(%arg0: i32) -> (i32, i32) {
    %c0_i32 = arith.constant 0 : i32
    %c0_i32_0 = arith.constant 0 : i32
    return %arg0, %c0_i32 : i32, i32
  }
  func.func @transform_8(%arg0: i32) -> (i32, i32) {
    %c0_i32 = arith.constant 0 : i32
    %c0_i32_0 = arith.constant 0 : i32
    return %arg0, %c0_i32 : i32, i32
  }
  func.func @transform_9(%arg0: i32) -> (i32, i32) {
    %c0_i32 = arith.constant 0 : i32
    %c0_i32_0 = arith.constant 0 : i32
    return %arg0, %c0_i32 : i32, i32
  }
  func.func @transform_10(%arg0: i32) -> (i32, i32) {
    %c0_i32 = arith.constant 0 : i32
    %c0_i32_0 = arith.constant 0 : i32
    return %arg0, %c0_i32 : i32, i32
  }
  func.func @transform_11(%arg0: i32) -> (i32, i32) {
    %c0_i32 = arith.constant 0 : i32
    %c0_i32_0 = arith.constant 0 : i32
    return %arg0, %c0_i32 : i32, i32
  }
  func.func @transform_12(%arg0: i32) -> (i32, i32) {
    %c0_i32 = arith.constant 0 : i32
    %c0_i32_0 = arith.constant 0 : i32
    return %arg0, %c0_i32 : i32, i32
  }
  func.func @transform_13(%arg0: i32) -> (i32, i32) {
    %c0_i32 = arith.constant 0 : i32
    %c0_i32_0 = arith.constant 0 : i32
    return %arg0, %c0_i32 : i32, i32
  }
}

</mosaic_0001>

<llo_original>
// kernel: tpu_custom_call.1
$region0: #{tpu_custom_call.1}
  #allocation0 [shape = 'u32[]', space=smem, size = 0x4, offset = 0x4, fixed_abs, tag = 'smem constant byte address 0x4 - core index']
  #allocation1 [shape = 'u32[144,128]{1,0:T(1,128)}', space=vmem, size = 0x12000, scoped, tag = 'internal scratch']
  #allocation2 [shape = 's32[1]{0:T(128)S(6)}', space=smem, size = 0x200, scoped, tag = 'scoped memory for tpu_custom_call.1']
  %s0 = inlined_call_operand.<no memory space> [shape: s32[1], index: 0, kind: input, shape index: {}]
  %s1 = inlined_call_operand.vmem [shape: f32[32,1024], index: 1, kind: input, shape index: {}]
  %s2 = inlined_call_operand.vmem [shape: f32[32,1024], index: 2, kind: input, shape index: {}]
  %s3 = inlined_call_operand.vmem [shape: f32[1024,32], index: 3, kind: input, shape index: {}]
  %s4 = inlined_call_operand.vmem [shape: f32[8,32], index: 4, kind: input, shape index: {}]
  %s5 = inlined_call_operand.vmem [shape: f32[8,32], index: 5, kind: input, shape index: {}]
  %s6 = inlined_call_operand.vmem [shape: f32[8,32], index: 6, kind: input, shape index: {}]
  %s7 = inlined_call_operand.hbm [shape: f32[8,1024], index: 7, kind: input, shape index: {}, may-alias: {7,11}]
  %s8 = inlined_call_operand.hbm [shape: f32[8,32], index: 8, kind: input, shape index: {}, may-alias: {8,12}]
  %s9 = inlined_call_operand.hbm [shape: f32[8,1024], index: 9, kind: input, shape index: {}, may-alias: {9,13}]
  %s10 = inlined_call_operand.hbm [shape: f32[8,32], index: 10, kind: output, shape index: {0}]
  %s11 = inlined_call_operand.hbm [shape: f32[8,1024], index: 11, kind: output, shape index: {1}, may-alias: {7,11}]
  %s12 = inlined_call_operand.hbm [shape: f32[8,32], index: 12, kind: output, shape index: {2}, may-alias: {8,12}]
  %s13 = inlined_call_operand.hbm [shape: f32[8,1024], index: 13, kind: output, shape index: {3}, may-alias: {9,13}]
  %14 = xla_tuple %s10, %s11, %s12, %s13
  %s15 = sld [smem:[#allocation0]]
  $region86: #{tpu_custom_call.1} parent=0
    _
  %s17 = ssub.s32 1, %s15
  %s18 = scalar_select 0, %s17, %s15
  %19 = sst [smem:[#allocation2]] %s0
  $region1: #{tpu_custom_call.1} parent=0
    #allocation3 [shape = 'u8[32768]{0}', space=vmem, size = 0x8000, scoped, tag = 'input window, operand 7, single buffered']
    #allocation4 [shape = 's32[1]{0}', space=sflag, size = 0x4, scoped, tag = 'scoped memory for tpu_custom_call.1']
    #allocation5 [shape = 's32[1]{0}', space=sflag, size = 0x4, scoped, tag = 'scoped memory for tpu_custom_call.1']
    #allocation6 [shape = 'u8[4096]{0}', space=vmem, size = 0x1000, scoped, tag = 'input window, operand 8, single buffered']
    #allocation7 [shape = 's32[1]{0}', space=sflag, size = 0x4, scoped, tag = 'scoped memory for tpu_custom_call.1']
    #allocation8 [shape = 'u8[32768]{0}', space=vmem, size = 0x8000, scoped, tag = 'input window, operand 9, single buffered']
    #allocation9 [shape = 'u8[4096]{0}', space=vmem, size = 0x1000, scoped, tag = 'output window, operand 0, single buffered']
    #allocation10 [shape = 'u8[32768]{0}', space=vmem, size = 0x8000, scoped, tag = 'output window, operand 1, single buffered']
    #allocation11 [shape = 's32[1]{0}', space=sflag, size = 0x4, scoped, tag = 'scoped memory for tpu_custom_call.1']
    #allocation12 [shape = 'u8[4096]{0}', space=vmem, size = 0x1000, scoped, tag = 'output window, operand 2, single buffered']
    #allocation13 [shape = 'u8[32768]{0}', space=vmem, size = 0x8000, scoped, tag = 'output window, operand 3, single buffered']
    #allocation14 [shape = 's32[1]{0}', space=sflag, size = 0x4, scoped, tag = 'scoped memory for tpu_custom_call.1']
    %20 = vsyncpa [#allocation4], 0
    %21 = vsyncpa [#allocation7], 0
    %22 = vsyncpa [#allocation5], 0
    %23 = vsyncpa [#allocation11], 0
    %24 = vsyncpa [#allocation14], 0
    // Predicated region
    $region2: #{tpu_custom_call.1} parent=1 // pred_check
      _
    $region3: #{tpu_custom_call.1} parent=1 // pred_check_branch
      %26 = sbr.rel (0) target = $region5
    $region4: #{tpu_custom_call.1} parent=1 // pred_region
      _
    $region5: #{tpu_custom_call.1} parent=1 // pred_fallthru
      _
    // Predicated region
    $region6: #{tpu_custom_call.1} parent=1 // pred_check
      _
    $region7: #{tpu_custom_call.1} parent=1 // pred_check_branch
      %28 = sbr.rel (0) target = $region9
    $region8: #{tpu_custom_call.1} parent=1 // pred_region
      _
    $region9: #{tpu_custom_call.1} parent=1 // pred_fallthru
      _
    // Predicated region
    $region10: #{tpu_custom_call.1} parent=1 // pred_check
      _
    $region11: #{tpu_custom_call.1} parent=1 // pred_check_branch
      %30 = sbr.rel (0) target = $region13
    $region12: #{tpu_custom_call.1} parent=1 // pred_region
      _
    $region13: #{tpu_custom_call.1} parent=1 // pred_fallthru
      _
    // Predicated region
    $region14: #{tpu_custom_call.1} parent=1 // pred_check
      _
    $region15: #{tpu_custom_call.1} parent=1 // pred_check_branch
      %32 = sbr.rel (0) target = $region17
    $region16: #{tpu_custom_call.1} parent=1 // pred_region
      _
    $region17: #{tpu_custom_call.1} parent=1 // pred_fallthru
      _
    // Predicated region
    $region18: #{tpu_custom_call.1} parent=1 // pred_check
      _
    $region19: #{tpu_custom_call.1} parent=1 // pred_check_branch
      %34 = sbr.rel (0) target = $region21
    $region20: #{tpu_custom_call.1} parent=1 // pred_region
      _
    $region21: #{tpu_custom_call.1} parent=1 // pred_fallthru
      _
    // Predicated region
    $region22: #{tpu_custom_call.1} parent=1 // pred_check
      _
    $region23: #{tpu_custom_call.1} parent=1 // pred_check_branch
      %36 = sbr.rel (0) target = $region25
    $region24: #{tpu_custom_call.1} parent=1 // pred_region
      _
    $region25: #{tpu_custom_call.1} parent=1 // pred_fallthru
      _
    // Predicated region
    $region26: #{tpu_custom_call.1} parent=1 // pred_check
      _
    $region27: #{tpu_custom_call.1} parent=1 // pred_check_branch
      %38 = sbr.rel (0) target = $region29
    $region28: #{tpu_custom_call.1} parent=1 // pred_region
      _
    $region29: #{tpu_custom_call.1} parent=1 // pred_fallthru
      _
    // Predicated region
    $region30: #{tpu_custom_call.1} parent=1 // pred_check
      _
    $region31: #{tpu_custom_call.1} parent=1 // pred_check_branch
      %40 = sbr.rel (0) target = $region33
    $region32: #{tpu_custom_call.1} parent=1 // pred_region
      %s42 = ssub.s32 1024, 1024
      %43 = vsyncadd [#allocation4], %s42
      %s45 = sshll.u32 [#allocation3], 4
      %s46 = int_to_ptr.vmem [resolvable:$true] %s45
      %48 = dma.hbm_to_vmem [thread:$0]  %s7, 1024, %s46, [#allocation4]
    $region33: #{tpu_custom_call.1} parent=1 // pred_fallthru
      _
    // Predicated region
    $region34: #{tpu_custom_call.1} parent=1 // pred_check
      _
    $region35: #{tpu_custom_call.1} parent=1 // pred_check_branch
      %50 = sbr.rel (0) target = $region37
    $region36: #{tpu_custom_call.1} parent=1 // pred_region
      %s52 = ssub.s32 128, 128
      %53 = vsyncadd [#allocation7], %s52
      %s55 = sshll.u32 [#allocation6], 4
      %s56 = int_to_ptr.vmem [resolvable:$true] %s55
      %58 = dma.hbm_to_vmem [thread:$0]  %s8, 128, %s56, [#allocation7]
    $region37: #{tpu_custom_call.1} parent=1 // pred_fallthru
      _
    // Predicated region
    $region38: #{tpu_custom_call.1} parent=1 // pred_check
      _
    $region39: #{tpu_custom_call.1} parent=1 // pred_check_branch
      %60 = sbr.rel (0) target = $region41
    $region40: #{tpu_custom_call.1} parent=1 // pred_region
      %s62 = ssub.s32 1024, 1024
      %63 = vsyncadd [#allocation7], %s62
      %s65 = sshll.u32 [#allocation8], 4
      %s66 = int_to_ptr.vmem [resolvable:$true] %s65
      %68 = dma.hbm_to_vmem [thread:$0]  %s9, 1024, %s66, [#allocation7]
    $region41: #{tpu_custom_call.1} parent=1 // pred_fallthru
      _
    // Predicated region
    $region42: #{tpu_custom_call.1} parent=1 // pred_check
      _
    $region43: #{tpu_custom_call.1} parent=1 // pred_check_branch
      %70 = sbr.rel (0) target = $region45
    $region44: #{tpu_custom_call.1} parent=1 // pred_region
      %71 = dma.done [#allocation4], 1024
    $region45: #{tpu_custom_call.1} parent=1 // pred_fallthru
      _
    // Predicated region
    $region46: #{tpu_custom_call.1} parent=1 // pred_check
      _
    $region47: #{tpu_custom_call.1} parent=1 // pred_check_branch
      %73 = sbr.rel (0) target = $region49
    $region48: #{tpu_custom_call.1} parent=1 // pred_region
      %74 = dma.done [#allocation7], 128
    $region49: #{tpu_custom_call.1} parent=1 // pred_fallthru
      _
    // Predicated region
    $region50: #{tpu_custom_call.1} parent=1 // pred_check
      _
    $region51: #{tpu_custom_call.1} parent=1 // pred_check_branch
      %76 = sbr.rel (0) target = $region53
    $region52: #{tpu_custom_call.1} parent=1 // pred_region
      %77 = dma.done [#allocation7], 1024
    $region53: #{tpu_custom_call.1} parent=1 // pred_fallthru
      _
    %s78 = sld [smem:[#allocation2]]
    %s79 = sadd.s32 %s78, 1
    %s80 = scvt.s32.f32 %s79
    %s81 = ssub.f32 %s80, 1.0
    %s82 = sadd.f32 %s80, 2.0
    %v83 = vstv %s82
    %v84 = vrcp.pop %v83
    %s85 = vtos %v84
    %s86 = smul.f32 %s81, %s85
    %v87 = vld [vmem:[%s4] sm:$0xff]
    %v88 = vld [vmem:[%s5] sm:$0xff]
    %v89 = vld [vmem:[%s6] sm:$0xff]
    %vm90 = vcmp.gt.f32.partialorder %v87, 0.0
    %v91 = vadd.f32 %v87, 1.0
    %v92 = vmul.f32 %v87, 1.442695
    %v93 = vpow.pop %v92
    %v94 = vsel %vm90, %v91, %v93
    %vm95 = vcmp.gt.f32.partialorder %v88, 0.0
    %v96 = vadd.f32 %v88, 1.0
    %v97 = vmul.f32 %v88, 1.442695
    %v98 = vpow.pop %v97
    %v99 = vsel %vm95, %v96, %v98
    %v100 = vld [vmem:[#allocation6] sm:$0xff]
    %v101 = vadd.f32 %v100, %v99
    %vm102 = vcmask 261120
    %103 = vst.msk [vmem:[#allocation12] sm:$0xff] %vm102, %v101
    %v104 = vmul.f32 %v94, %v101
    %v105 = vsel %vm102, %v104, 0.0
    %106 = vadd.xlane.f32.xlu0 %v105
    %v107 = vpop.xlane.xlu0 %106
    %v108 = vadd.f32 %v107, 1e-06
    %v109 = vrcp.pop %v108
    %v110 = vmul.f32 1.0, %v109
    %v111 = vld [vmem:[%s1] sm:$0xff]
    %v112 = vld [vmem:[%s1 + $0x8] sm:$0xff]
    %v113 = vld [vmem:[%s1 + $0x10] sm:$0xff]
    %v114 = vld [vmem:[%s1 + $0x18] sm:$0xff]
    %v115 = vld [vmem:[%s1 + $0x20] sm:$0xff]
    %v116 = vld [vmem:[%s1 + $0x28] sm:$0xff]
    %v117 = vld [vmem:[%s1 + $0x30] sm:$0xff]
    %v118 = vld [vmem:[%s1 + $0x38] sm:$0xff]
    %v119 = vld [vmem:[%s1 + $0x40] sm:$0xff]
    %v120 = vld [vmem:[%s1 + $0x48] sm:$0xff]
    %v121 = vld [vmem:[%s1 + $0x50] sm:$0xff]
    %v122 = vld [vmem:[%s1 + $0x58] sm:$0xff]
    %v123 = vld [vmem:[%s1 + $0x60] sm:$0xff]
    %v124 = vld [vmem:[%s1 + $0x68] sm:$0xff]
    %v125 = vld [vmem:[%s1 + $0x70] sm:$0xff]
    %v126 = vld [vmem:[%s1 + $0x78] sm:$0xff]
    %v127 = vld [vmem:[%s1 + $0x80] sm:$0xff]
    %v128 = vld [vmem:[%s1 + $0x88] sm:$0xff]
    %v129 = vld [vmem:[%s1 + $0x90] sm:$0xff]
    %v130 = vld [vmem:[%s1 + $0x98] sm:$0xff]
    %v131 = vld [vmem:[%s1 + $0xa0] sm:$0xff]
    %v132 = vld [vmem:[%s1 + $0xa8] sm:$0xff]
    %v133 = vld [vmem:[%s1 + $0xb0] sm:$0xff]
    %v134 = vld [vmem:[%s1 + $0xb8] sm:$0xff]
    %v135 = vld [vmem:[%s1 + $0xc0] sm:$0xff]
    %v136 = vld [vmem:[%s1 + $0xc8] sm:$0xff]
    %v137 = vld [vmem:[%s1 + $0xd0] sm:$0xff]
    %v138 = vld [vmem:[%s1 + $0xd8] sm:$0xff]
    %v139 = vld [vmem:[%s1 + $0xe0] sm:$0xff]
    %v140 = vld [vmem:[%s1 + $0xe8] sm:$0xff]
    %v141 = vld [vmem:[%s1 + $0xf0] sm:$0xff]
    %v142 = vld [vmem:[%s1 + $0xf8] sm:$0xff]
    %v143 = vld [vmem:[%s2] sm:$0xff]
    %v144 = vld [vmem:[%s2 + $0x8] sm:$0xff]
    %v145 = vld [vmem:[%s2 + $0x10] sm:$0xff]
    %v146 = vld [vmem:[%s2 + $0x18] sm:$0xff]
    %v147 = vld [vmem:[%s2 + $0x20] sm:$0xff]
    %v148 = vld [vmem:[%s2 + $0x28] sm:$0xff]
    %v149 = vld [vmem:[%s2 + $0x30] sm:$0xff]
    %v150 = vld [vmem:[%s2 + $0x38] sm:$0xff]
    %v151 = vld [vmem:[%s2 + $0x40] sm:$0xff]
    %v152 = vld [vmem:[%s2 + $0x48] sm:$0xff]
    %v153 = vld [vmem:[%s2 + $0x50] sm:$0xff]
    %v154 = vld [vmem:[%s2 + $0x58] sm:$0xff]
    %v155 = vld [vmem:[%s2 + $0x60] sm:$0xff]
    %v156 = vld [vmem:[%s2 + $0x68] sm:$0xff]
    %v157 = vld [vmem:[%s2 + $0x70] sm:$0xff]
    %v158 = vld [vmem:[%s2 + $0x78] sm:$0xff]
    %v159 = vld [vmem:[%s2 + $0x80] sm:$0xff]
    %v160 = vld [vmem:[%s2 + $0x88] sm:$0xff]
    %v161 = vld [vmem:[%s2 + $0x90] sm:$0xff]
    %v162 = vld [vmem:[%s2 + $0x98] sm:$0xff]
    %v163 = vld [vmem:[%s2 + $0xa0] sm:$0xff]
    %v164 = vld [vmem:[%s2 + $0xa8] sm:$0xff]
    %v165 = vld [vmem:[%s2 + $0xb0] sm:$0xff]
    %v166 = vld [vmem:[%s2 + $0xb8] sm:$0xff]
    %v167 = vld [vmem:[%s2 + $0xc0] sm:$0xff]
    %v168 = vld [vmem:[%s2 + $0xc8] sm:$0xff]
    %v169 = vld [vmem:[%s2 + $0xd0] sm:$0xff]
    %v170 = vld [vmem:[%s2 + $0xd8] sm:$0xff]
    %v171 = vld [vmem:[%s2 + $0xe0] sm:$0xff]
    %v172 = vld [vmem:[%s2 + $0xe8] sm:$0xff]
    %v173 = vld [vmem:[%s2 + $0xf0] sm:$0xff]
    %v174 = vld [vmem:[%s2 + $0xf8] sm:$0xff]
    %v176 = vsel %vm102, %v99, 0
    %v178 = vand.u32 %v112, 4294901760
    %179 = vmatprep.subr.mxu0 %v178
    %v180 = vand.u32 %v111, 4294901760
    %181 = vmatpush1.msra.mxu0 %v180
    %v182 = vand.u32 %v120, 4294901760
    %183 = vmatprep.subr.mxu0 %v182
    %v184 = vand.u32 %v119, 4294901760
    %185 = vmatpush1.msra.mxu0 %v184
    %v186 = vand.u32 %v128, 4294901760
    %187 = vmatprep.subr.mxu0 %v186
    %v188 = vand.u32 %v127, 4294901760
    %189 = vmatpush1.msra.mxu0 %v188
    %v190 = vand.u32 %v136, 4294901760
    %191 = vmatprep.subr.mxu0 %v190
    %v192 = vand.u32 %v135, 4294901760
    %193 = vmatpush1.msra.mxu0 %v192
    %194 = vmatprep.subr.mxu0 0.0
    %195 = vmatpush1.msra.mxu0 0.0
    %196 = vmatprep.subr.mxu0 0.0
    %197 = vmatpush1.msra.mxu0 0.0
    %198 = vmatprep.subr.mxu0 0.0
    %199 = vmatpush1.msra.mxu0 0.0
    %200 = vmatprep.subr.mxu0 0.0
    %201 = vmatpush1.msra.mxu0 0.0
    %202 = vmatprep.subr.mxu0 0.0
    %203 = vmatpush1.msra.mxu0 0.0
    %204 = vmatprep.subr.mxu0 0.0
    %205 = vmatpush1.msra.mxu0 0.0
    %206 = vmatprep.subr.mxu0 0.0
    %207 = vmatpush1.msra.mxu0 0.0
    %208 = vmatprep.subr.mxu0 0.0
    %209 = vmatpush1.msra.mxu0 0.0
    %210 = vmatprep.subr.mxu0 0.0
    %211 = vmatpush1.msra.mxu0 0.0
    %212 = vmatprep.subr.mxu0 0.0
    %213 = vmatpush1.msra.mxu0 0.0
    %214 = vmatprep.subr.mxu0 0.0
    %215 = vmatpush1.msra.mxu0 0.0
    %216 = vmatprep.subr.mxu0 0.0
    %217 = vmatpush1.msra.mxu0 0.0
    %218 = vmatprep.subr.mxu0 0.0
    %219 = vmatpush1.msra.mxu0 0.0
    %220 = vmatprep.subr.mxu0 0.0
    %221 = vmatpush1.msra.mxu0 0.0
    %222 = vmatprep.subr.mxu0 0.0
    %223 = vmatpush1.msra.mxu0 0.0
    %224 = vmatprep.subr.mxu0 0.0
    %225 = vmatpush1.msra.mxu0 0.0
    %226 = vmatprep.subr.mxu0 0.0
    %227 = vmatpush1.msra.mxu0 0.0
    %228 = vmatprep.subr.mxu0 0.0
    %229 = vmatpush1.msra.mxu0 0.0
    %230 = vmatprep.subr.mxu0 0.0
    %231 = vmatpush1.msra.mxu0 0.0
    %232 = vmatprep.subr.mxu0 0.0
    %233 = vmatpush1.msra.mxu0 0.0
    %234 = vmatprep.subr.mxu0 0.0
    %235 = vmatpush1.msra.mxu0 0.0
    %236 = vmatprep.subr.mxu0 0.0
    %237 = vmatpush1.msra.mxu0 0.0
    %238 = vmatprep.subr.mxu0 0.0
    %239 = vmatpush1.msra.mxu0 0.0
    %240 = vmatprep.subr.mxu0 0.0
    %241 = vmatpush1.msra.mxu0 0.0
    %242 = vmatprep.subr.mxu0 0.0
    %243 = vmatpush1.msra.mxu0 0.0
    %244 = vmatprep.subr.mxu0 0.0
    %245 = vmatpush1.msra.mxu0 0.0
    %246 = vmatprep.subr.mxu0 0.0
    %247 = vmatpush1.msra.mxu0 0.0
    %248 = vmatprep.subr.mxu0 0.0
    %249 = vmatpush1.msra.mxu0 0.0
    %250 = vmatprep.mubr.f32.mxu0 0.0
    %v251 = vand.u32 %v176, 4294901760
    %v252 = vsub.f32 %v176, %v251
    %v253 = vand.u32 %v252, 4294901760
    %v254 = vsub.f32 %v252, %v253
    %v255 = vand.u32 %v254, 4294901760
    %256 = vmatmul.mubr.f32.gmra.mrb[0].mxu0 %v255
    %v257 = vpop.f32.mrb[0].mxu0
    %v258 = vadd.f32 0.0, %v257
    %v259 = vpop.f32.mrb[0].mxu0
    %v260 = vadd.f32 0.0, %v259
    %261 = vdwg.mxu0
    %v262 = vand.u32 %v112, 4294901760
    %v263 = vsub.f32 %v112, %v262
    %v264 = vand.u32 %v263, 4294901760
    %v265 = vsub.f32 %v263, %v264
    %v266 = vand.u32 %v265, 4294901760
    %267 = vmatprep.subr.mxu0 %v266
    %v268 = vand.u32 %v111, 4294901760
    %v269 = vsub.f32 %v111, %v268
    %v270 = vand.u32 %v269, 4294901760
    %v271 = vsub.f32 %v269, %v270
    %v272 = vand.u32 %v271, 4294901760
    %273 = vmatpush1.msra.mxu0 %v272
    %v274 = vand.u32 %v120, 4294901760
    %v275 = vsub.f32 %v120, %v274
    %v276 = vand.u32 %v275, 4294901760
    %v277 = vsub.f32 %v275, %v276
    %v278 = vand.u32 %v277, 4294901760
    %279 = vmatprep.subr.mxu0 %v278
    %v280 = vand.u32 %v119, 4294901760
    %v281 = vsub.f32 %v119, %v280
    %v282 = vand.u32 %v281, 4294901760
    %v283 = vsub.f32 %v281, %v282
    %v284 = vand.u32 %v283, 4294901760
    %285 = vmatpush1.msra.mxu0 %v284
    %v286 = vand.u32 %v128, 4294901760
    %v287 = vsub.f32 %v128, %v286
    %v288 = vand.u32 %v287, 4294901760
    %v289 = vsub.f32 %v287, %v288
    %v290 = vand.u32 %v289, 4294901760
    %291 = vmatprep.subr.mxu0 %v290
    %v292 = vand.u32 %v127, 4294901760
    %v293 = vsub.f32 %v127, %v292
    %v294 = vand.u32 %v293, 4294901760
    %v295 = vsub.f32 %v293, %v294
    %v296 = vand.u32 %v295, 4294901760
    %297 = vmatpush1.msra.mxu0 %v296
    %v298 = vand.u32 %v136, 4294901760
    %v299 = vsub.f32 %v136, %v298
    %v300 = vand.u32 %v299, 4294901760
    %v301 = vsub.f32 %v299, %v300
    %v302 = vand.u32 %v301, 4294901760
    %303 = vmatprep.subr.mxu0 %v302
    %v304 = vand.u32 %v135, 4294901760
    %v305 = vsub.f32 %v135, %v304
    %v306 = vand.u32 %v305, 4294901760
    %v307 = vsub.f32 %v305, %v306
    %v308 = vand.u32 %v307, 4294901760
    %309 = vmatpush1.msra.mxu0 %v308
    %310 = vmatprep.subr.mxu0 0.0
    %311 = vmatpush1.msra.mxu0 0.0
    %312 = vmatprep.subr.mxu0 0.0
    %313 = vmatpush1.msra.mxu0 0.0
    %314 = vmatprep.subr.mxu0 0.0
    %315 = vmatpush1.msra.mxu0 0.0
    %316 = vmatprep.subr.mxu0 0.0
    %317 = vmatpush1.msra.mxu0 0.0
    %318 = vmatprep.subr.mxu0 0.0
    %319 = vmatpush1.msra.mxu0 0.0
    %320 = vmatprep.subr.mxu0 0.0
    %321 = vmatpush1.msra.mxu0 0.0
    %322 = vmatprep.subr.mxu0 0.0
    %323 = vmatpush1.msra.mxu0 0.0
    %324 = vmatprep.subr.mxu0 0.0
    %325 = vmatpush1.msra.mxu0 0.0
    %326 = vmatprep.subr.mxu0 0.0
    %327 = vmatpush1.msra.mxu0 0.0
    %328 = vmatprep.subr.mxu0 0.0
    %329 = vmatpush1.msra.mxu0 0.0
    %330 = vmatprep.subr.mxu0 0.0
    %331 = vmatpush1.msra.mxu0 0.0
    %332 = vmatprep.subr.mxu0 0.0
    %333 = vmatpush1.msra.mxu0 0.0
    %334 = vmatprep.subr.mxu0 0.0
    %335 = vmatpush1.msra.mxu0 0.0
    %336 = vmatprep.subr.mxu0 0.0
    %337 = vmatpush1.msra.mxu0 0.0
    %338 = vmatprep.subr.mxu0 0.0
    %339 = vmatpush1.msra.mxu0 0.0
    %340 = vmatprep.subr.mxu0 0.0
    %341 = vmatpush1.msra.mxu0 0.0
    %342 = vmatprep.subr.mxu0 0.0
    %343 = vmatpush1.msra.mxu0 0.0
    %344 = vmatprep.subr.mxu0 0.0
    %345 = vmatpush1.msra.mxu0 0.0
    %346 = vmatprep.subr.mxu0 0.0
    %347 = vmatpush1.msra.mxu0 0.0
    %348 = vmatprep.subr.mxu0 0.0
    %349 = vmatpush1.msra.mxu0 0.0
    %350 = vmatprep.subr.mxu0 0.0
    %351 = vmatpush1.msra.mxu0 0.0
    %352 = vmatprep.subr.mxu0 0.0
    %353 = vmatpush1.msra.mxu0 0.0
    %354 = vmatprep.subr.mxu0 0.0
    %355 = vmatpush1.msra.mxu0 0.0
    %356 = vmatprep.subr.mxu0 0.0
    %357 = vmatpush1.msra.mxu0 0.0
    %358 = vmatprep.subr.mxu0 0.0
    %359 = vmatpush1.msra.mxu0 0.0
    %360 = vmatprep.subr.mxu0 0.0
    %361 = vmatpush1.msra.mxu0 0.0
    %362 = vmatprep.subr.mxu0 0.0
    %363 = vmatpush1.msra.mxu0 0.0
    %364 = vmatprep.subr.mxu0 0.0
    %365 = vmatpush1.msra.mxu0 0.0
    %366 = vmatprep.mubr.f32.mxu0 0.0
    %v367 = vand.u32 %v176, 4294901760
    %368 = vmatmul.mubr.f32.gmra.mrb[0].mxu0 %v367
    %v369 = vpop.f32.mrb[0].mxu0
    %v370 = vadd.f32 %v258, %v369
    %v371 = vpop.f32.mrb[0].mxu0
    %v372 = vadd.f32 %v260, %v371
    %373 = vdwg.mxu0
    %v374 = vand.u32 %v112, 4294901760
    %v375 = vsub.f32 %v112, %v374
    %376 = vmatprep.subr.mxu0 %v375
    %v377 = vand.u32 %v111, 4294901760
    %v378 = vsub.f32 %v111, %v377
    %379 = vmatpush1.msra.mxu0 %v378
    %v380 = vand.u32 %v120, 4294901760
    %v381 = vsub.f32 %v120, %v380
    %382 = vmatprep.subr.mxu0 %v381
    %v383 = vand.u32 %v119, 4294901760
    %v384 = vsub.f32 %v119, %v383
    %385 = vmatpush1.msra.mxu0 %v384
    %v386 = vand.u32 %v128, 4294901760
    %v387 = vsub.f32 %v128, %v386
    %388 = vmatprep.subr.mxu0 %v387
    %v389 = vand.u32 %v127, 4294901760
    %v390 = vsub.f32 %v127, %v389
    %391 = vmatpush1.msra.mxu0 %v390
    %v392 = vand.u32 %v136, 4294901760
    %v393 = vsub.f32 %v136, %v392
    %394 = vmatprep.subr.mxu0 %v393
    %v395 = vand.u32 %v135, 4294901760
    %v396 = vsub.f32 %v135, %v395
    %397 = vmatpush1.msra.mxu0 %v396
    %398 = vmatprep.subr.mxu0 0.0
    %399 = vmatpush1.msra.mxu0 0.0
    %400 = vmatprep.subr.mxu0 0.0
    %401 = vmatpush1.msra.mxu0 0.0
    %402 = vmatprep.subr.mxu0 0.0
    %403 = vmatpush1.msra.mxu0 0.0
    %404 = vmatprep.subr.mxu0 0.0
    %405 = vmatpush1.msra.mxu0 0.0
    %406 = vmatprep.subr.mxu0 0.0
    %407 = vmatpush1.msra.mxu0 0.0
    %408 = vmatprep.subr.mxu0 0.0
    %409 = vmatpush1.msra.mxu0 0.0
    %410 = vmatprep.subr.mxu0 0.0
    %411 = vmatpush1.msra.mxu0 0.0
    %412 = vmatprep.subr.mxu0 0.0
    %413 = vmatpush1.msra.mxu0 0.0
    %414 = vmatprep.subr.mxu0 0.0
    %415 = vmatpush1.msra.mxu0 0.0
    %416 = vmatprep.subr.mxu0 0.0
    %417 = vmatpush1.msra.mxu0 0.0
    %418 = vmatprep.subr.mxu0 0.0
    %419 = vmatpush1.msra.mxu0 0.0
    %420 = vmatprep.subr.mxu0 0.0
    %421 = vmatpush1.msra.mxu0 0.0
    %422 = vmatprep.subr.mxu0 0.0
    %423 = vmatpush1.msra.mxu0 0.0
    %424 = vmatprep.subr.mxu0 0.0
    %425 = vmatpush1.msra.mxu0 0.0
    %426 = vmatprep.subr.mxu0 0.0
    %427 = vmatpush1.msra.mxu0 0.0
    %428 = vmatprep.subr.mxu0 0.0
    %429 = vmatpush1.msra.mxu0 0.0
    %430 = vmatprep.subr.mxu0 0.0
    %431 = vmatpush1.msra.mxu0 0.0
    %432 = vmatprep.subr.mxu0 0.0
    %433 = vmatpush1.msra.mxu0 0.0
    %434 = vmatprep.subr.mxu0 0.0
    %435 = vmatpush1.msra.mxu0 0.0
    %436 = vmatprep.subr.mxu0 0.0
    %437 = vmatpush1.msra.mxu0 0.0
    %438 = vmatprep.subr.mxu0 0.0
    %439 = vmatpush1.msra.mxu0 0.0
    %440 = vmatprep.subr.mxu0 0.0
    %441 = vmatpush1.msra.mxu0 0.0
    %442 = vmatprep.subr.mxu0 0.0
    %443 = vmatpush1.msra.mxu0 0.0
    %444 = vmatprep.subr.mxu0 0.0
    %445 = vmatpush1.msra.mxu0 0.0
    %446 = vmatprep.subr.mxu0 0.0
    %447 = vmatpush1.msra.mxu0 0.0
    %448 = vmatprep.subr.mxu0 0.0
    %449 = vmatpush1.msra.mxu0 0.0
    %450 = vmatprep.subr.mxu0 0.0
    %451 = vmatpush1.msra.mxu0 0.0
    %452 = vmatprep.subr.mxu0 0.0
    %453 = vmatpush1.msra.mxu0 0.0
    %454 = vmatprep.mubr.f32.mxu0 0.0
    %v455 = vand.u32 %v176, 4294901760
    %v456 = vsub.f32 %v176, %v455
    %457 = vmatmul.mubr.f32.gmra.mrb[0].mxu0 %v456
    %v458 = vpop.f32.mrb[0].mxu0
    %v459 = vadd.f32 %v370, %v458
    %v460 = vpop.f32.mrb[0].mxu0
    %v461 = vadd.f32 %v372, %v460
    %462 = vdwg.mxu0
    %v463 = vand.u32 %v112, 4294901760
    %464 = vmatprep.subr.mxu0 %v463
    %v465 = vand.u32 %v111, 4294901760
    %466 = vmatpush1.msra.mxu0 %v465
    %v467 = vand.u32 %v120, 4294901760
    %468 = vmatprep.subr.mxu0 %v467
    %v469 = vand.u32 %v119, 4294901760
    %470 = vmatpush1.msra.mxu0 %v469
    %v471 = vand.u32 %v128, 4294901760
    %472 = vmatprep.subr.mxu0 %v471
    %v473 = vand.u32 %v127, 4294901760
    %474 = vmatpush1.msra.mxu0 %v473
    %v475 = vand.u32 %v136, 4294901760
    %476 = vmatprep.subr.mxu0 %v475
    %v477 = vand.u32 %v135, 4294901760
    %478 = vmatpush1.msra.mxu0 %v477
    %479 = vmatprep.subr.mxu0 0.0
    %480 = vmatpush1.msra.mxu0 0.0
    %481 = vmatprep.subr.mxu0 0.0
    %482 = vmatpush1.msra.mxu0 0.0
    %483 = vmatprep.subr.mxu0 0.0
    %484 = vmatpush1.msra.mxu0 0.0
    %485 = vmatprep.subr.mxu0 0.0
    %486 = vmatpush1.msra.mxu0 0.0
    %487 = vmatprep.subr.mxu0 0.0
    %488 = vmatpush1.msra.mxu0 0.0
    %489 = vmatprep.subr.mxu0 0.0
    %490 = vmatpush1.msra.mxu0 0.0
    %491 = vmatprep.subr.mxu0 0.0
    %492 = vmatpush1.msra.mxu0 0.0
    %493 = vmatprep.subr.mxu0 0.0
    %494 = vmatpush1.msra.mxu0 0.0
    %495 = vmatprep.subr.mxu0 0.0
    %496 = vmatpush1.msra.mxu0 0.0
    %497 = vmatprep.subr.mxu0 0.0
    %498 = vmatpush1.msra.mxu0 0.0
    %499 = vmatprep.subr.mxu0 0.0
    %500 = vmatpush1.msra.mxu0 0.0
    %501 = vmatprep.subr.mxu0 0.0
    %502 = vmatpush1.msra.mxu0 0.0
    %503 = vmatprep.subr.mxu0 0.0
    %504 = vmatpush1.msra.mxu0 0.0
    %505 = vmatprep.subr.mxu0 0.0
    %506 = vmatpush1.msra.mxu0 0.0
    %507 = vmatprep.subr.mxu0 0.0
    %508 = vmatpush1.msra.mxu0 0.0
    %509 = vmatprep.subr.mxu0 0.0
    %510 = vmatpush1.msra.mxu0 0.0
    %511 = vmatprep.subr.mxu0 0.0
    %512 = vmatpush1.msra.mxu0 0.0
    %513 = vmatprep.subr.mxu0 0.0
    %514 = vmatpush1.msra.mxu0 0.0
    %515 = vmatprep.subr.mxu0 0.0
    %516 = vmatpush1.msra.mxu0 0.0
    %517 = vmatprep.subr.mxu0 0.0
    %518 = vmatpush1.msra.mxu0 0.0
    %519 = vmatprep.subr.mxu0 0.0
    %520 = vmatpush1.msra.mxu0 0.0
    %521 = vmatprep.subr.mxu0 0.0
    %522 = vmatpush1.msra.mxu0 0.0
    %523 = vmatprep.subr.mxu0 0.0
    %524 = vmatpush1.msra.mxu0 0.0
    %525 = vmatprep.subr.mxu0 0.0
    %526 = vmatpush1.msra.mxu0 0.0
    %527 = vmatprep.subr.mxu0 0.0
    %528 = vmatpush1.msra.mxu0 0.0
    %529 = vmatprep.subr.mxu0 0.0
    %530 = vmatpush1.msra.mxu0 0.0
    %531 = vmatprep.subr.mxu0 0.0
    %532 = vmatpush1.msra.mxu0 0.0
    %533 = vmatprep.subr.mxu0 0.0
    %534 = vmatpush1.msra.mxu0 0.0
    %535 = vmatprep.mubr.f32.mxu0 0.0
    %v536 = vand.u32 %v176, 4294901760
    %v537 = vsub.f32 %v176, %v536
    %v538 = vand.u32 %v537, 4294901760
    %539 = vmatmul.mubr.f32.gmra.mrb[0].mxu0 %v538
    %v540 = vpop.f32.mrb[0].mxu0
    %v541 = vadd.f32 %v459, %v540
    %v542 = vpop.f32.mrb[0].mxu0
    %v543 = vadd.f32 %v461, %v542
    %544 = vdwg.mxu0
    %v545 = vand.u32 %v112, 4294901760
    %v546 = vsub.f32 %v112, %v545
    %v547 = vand.u32 %v546, 4294901760
    %548 = vmatprep.subr.mxu0 %v547
    %v549 = vand.u32 %v111, 4294901760
    %v550 = vsub.f32 %v111, %v549
    %v551 = vand.u32 %v550, 4294901760
    %552 = vmatpush1.msra.mxu0 %v551
    %v553 = vand.u32 %v120, 4294901760
    %v554 = vsub.f32 %v120, %v553
    %v555 = vand.u32 %v554, 4294901760
    %556 = vmatprep.subr.mxu0 %v555
    %v557 = vand.u32 %v119, 4294901760
    %v558 = vsub.f32 %v119, %v557
    %v559 = vand.u32 %v558, 4294901760
    %560 = vmatpush1.msra.mxu0 %v559
    %v561 = vand.u32 %v128, 4294901760
    %v562 = vsub.f32 %v128, %v561
    %v563 = vand.u32 %v562, 4294901760
    %564 = vmatprep.subr.mxu0 %v563
    %v565 = vand.u32 %v127, 4294901760
    %v566 = vsub.f32 %v127, %v565
    %v567 = vand.u32 %v566, 4294901760
    %568 = vmatpush1.msra.mxu0 %v567
    %v569 = vand.u32 %v136, 4294901760
    %v570 = vsub.f32 %v136, %v569
    %v571 = vand.u32 %v570, 4294901760
    %572 = vmatprep.subr.mxu0 %v571
    %v573 = vand.u32 %v135, 4294901760
    %v574 = vsub.f32 %v135, %v573
    %v575 = vand.u32 %v574, 4294901760
    %576 = vmatpush1.msra.mxu0 %v575
    %577 = vmatprep.subr.mxu0 0.0
    %578 = vmatpush1.msra.mxu0 0.0
    %579 = vmatprep.subr.mxu0 0.0
    %580 = vmatpush1.msra.mxu0 0.0
    %581 = vmatprep.subr.mxu0 0.0
    %582 = vmatpush1.msra.mxu0 0.0
    %583 = vmatprep.subr.mxu0 0.0
    %584 = vmatpush1.msra.mxu0 0.0
    %585 = vmatprep.subr.mxu0 0.0
    %586 = vmatpush1.msra.mxu0 0.0
    %587 = vmatprep.subr.mxu0 0.0
    %588 = vmatpush1.msra.mxu0 0.0
    %589 = vmatprep.subr.mxu0 0.0
    %590 = vmatpush1.msra.mxu0 0.0
    %591 = vmatprep.subr.mxu0 0.0
    %592 = vmatpush1.msra.mxu0 0.0
    %593 = vmatprep.subr.mxu0 0.0
    %594 = vmatpush1.msra.mxu0 0.0
    %595 = vmatprep.subr.mxu0 0.0
    %596 = vmatpush1.msra.mxu0 0.0
    %597 = vmatprep.subr.mxu0 0.0
    %598 = vmatpush1.msra.mxu0 0.0
    %599 = vmatprep.subr.mxu0 0.0
    %600 = vmatpush1.msra.mxu0 0.0
    %601 = vmatprep.subr.mxu0 0.0
    %602 = vmatpush1.msra.mxu0 0.0
    %603 = vmatprep.subr.mxu0 0.0
    %604 = vmatpush1.msra.mxu0 0.0
    %605 = vmatprep.subr.mxu0 0.0
    %606 = vmatpush1.msra.mxu0 0.0
    %607 = vmatprep.subr.mxu0 0.0
    %608 = vmatpush1.msra.mxu0 0.0
    %609 = vmatprep.subr.mxu0 0.0
    %610 = vmatpush1.msra.mxu0 0.0
    %611 = vmatprep.subr.mxu0 0.0
    %612 = vmatpush1.msra.mxu0 0.0
    %613 = vmatprep.subr.mxu0 0.0
    %614 = vmatpush1.msra.mxu0 0.0
    %615 = vmatprep.subr.mxu0 0.0
    %616 = vmatpush1.msra.mxu0 0.0
    %617 = vmatprep.subr.mxu0 0.0
    %618 = vmatpush1.msra.mxu0 0.0
    %619 = vmatprep.subr.mxu0 0.0
    %620 = vmatpush1.msra.mxu0 0.0
    %621 = vmatprep.subr.mxu0 0.0
    %622 = vmatpush1.msra.mxu0 0.0
    %623 = vmatprep.subr.mxu0 0.0
    %624 = vmatpush1.msra.mxu0 0.0
    %625 = vmatprep.subr.mxu0 0.0
    %626 = vmatpush1.msra.mxu0 0.0
    %627 = vmatprep.subr.mxu0 0.0
    %628 = vmatpush1.msra.mxu0 0.0
    %629 = vmatprep.subr.mxu0 0.0
    %630 = vmatpush1.msra.mxu0 0.0
    %631 = vmatprep.subr.mxu0 0.0
    %632 = vmatpush1.msra.mxu0 0.0
    %633 = vmatprep.mubr.f32.mxu0 0.0
    %v634 = vand.u32 %v176, 4294901760
    %635 = vmatmul.mubr.f32.gmra.mrb[0].mxu0 %v634
    %v636 = vpop.f32.mrb[0].mxu0
    %v637 = vadd.f32 %v541, %v636
    %v638 = vpop.f32.mrb[0].mxu0
    %v639 = vadd.f32 %v543, %v638
    %640 = vdwg.mxu0
    %v641 = vand.u32 %v112, 4294901760
    %642 = vmatprep.subr.mxu0 %v641
    %v643 = vand.u32 %v111, 4294901760
    %644 = vmatpush1.msra.mxu0 %v643
    %v645 = vand.u32 %v120, 4294901760
    %646 = vmatprep.subr.mxu0 %v645
    %v647 = vand.u32 %v119, 4294901760
    %648 = vmatpush1.msra.mxu0 %v647
    %v649 = vand.u32 %v128, 4294901760
    %650 = vmatprep.subr.mxu0 %v649
    %v651 = vand.u32 %v127, 4294901760
    %652 = vmatpush1.msra.mxu0 %v651
    %v653 = vand.u32 %v136, 4294901760
    %654 = vmatprep.subr.mxu0 %v653
    %v655 = vand.u32 %v135, 4294901760
    %656 = vmatpush1.msra.mxu0 %v655
    %657 = vmatprep.subr.mxu0 0.0
    %658 = vmatpush1.msra.mxu0 0.0
    %659 = vmatprep.subr.mxu0 0.0
    %660 = vmatpush1.msra.mxu0 0.0
    %661 = vmatprep.subr.mxu0 0.0
    %662 = vmatpush1.msra.mxu0 0.0
    %663 = vmatprep.subr.mxu0 0.0
    %664 = vmatpush1.msra.mxu0 0.0
    %665 = vmatprep.subr.mxu0 0.0
    %666 = vmatpush1.msra.mxu0 0.0
    %667 = vmatprep.subr.mxu0 0.0
    %668 = vmatpush1.msra.mxu0 0.0
    %669 = vmatprep.subr.mxu0 0.0
    %670 = vmatpush1.msra.mxu0 0.0
    %671 = vmatprep.subr.mxu0 0.0
    %672 = vmatpush1.msra.mxu0 0.0
    %673 = vmatprep.subr.mxu0 0.0
    %674 = vmatpush1.msra.mxu0 0.0
    %675 = vmatprep.subr.mxu0 0.0
    %676 = vmatpush1.msra.mxu0 0.0
    %677 = vmatprep.subr.mxu0 0.0
    %678 = vmatpush1.msra.mxu0 0.0
    %679 = vmatprep.subr.mxu0 0.0
    %680 = vmatpush1.msra.mxu0 0.0
    %681 = vmatprep.subr.mxu0 0.0
    %682 = vmatpush1.msra.mxu0 0.0
    %683 = vmatprep.subr.mxu0 0.0
    %684 = vmatpush1.msra.mxu0 0.0
    %685 = vmatprep.subr.mxu0 0.0
    %686 = vmatpush1.msra.mxu0 0.0
    %687 = vmatprep.subr.mxu0 0.0
    %688 = vmatpush1.msra.mxu0 0.0
    %689 = vmatprep.subr.mxu0 0.0
    %690 = vmatpush1.msra.mxu0 0.0
    %691 = vmatprep.subr.mxu0 0.0
    %692 = vmatpush1.msra.mxu0 0.0
    %693 = vmatprep.subr.mxu0 0.0
    %694 = vmatpush1.msra.mxu0 0.0
    %695 = vmatprep.subr.mxu0 0.0
    %696 = vmatpush1.msra.mxu0 0.0
    %697 = vmatprep.subr.mxu0 0.0
    %698 = vmatpush1.msra.mxu0 0.0
    %699 = vmatprep.subr.mxu0 0.0
    %700 = vmatpush1.msra.mxu0 0.0
    %701 = vmatprep.subr.mxu0 0.0
    %702 = vmatpush1.msra.mxu0 0.0
    %703 = vmatprep.subr.mxu0 0.0
    %704 = vmatpush1.msra.mxu0 0.0
    %705 = vmatprep.subr.mxu0 0.0
    %706 = vmatpush1.msra.mxu0 0.0
    %707 = vmatprep.subr.mxu0 0.0
    %708 = vmatpush1.msra.mxu0 0.0
    %709 = vmatprep.subr.mxu0 0.0
    %710 = vmatpush1.msra.mxu0 0.0
    %711 = vmatprep.subr.mxu0 0.0
    %712 = vmatpush1.msra.mxu0 0.0
    %713 = vmatprep.mubr.f32.mxu0 0.0
    %v714 = vand.u32 %v176, 4294901760
    %715 = vmatmul.mubr.f32.gmra.mrb[0].mxu0 %v714
    %v716 = vpop.f32.mrb[0].mxu0
    %v717 = vadd.f32 %v637, %v716
    %v718 = vpop.f32.mrb[0].mxu0
    %v719 = vadd.f32 %v639, %v718
    %720 = vdwg.mxu0
    %v721 = vand.u32 %v114, 4294901760
    %722 = vmatprep.subr.mxu0 %v721
    %v723 = vand.u32 %v113, 4294901760
    %724 = vmatpush1.msra.mxu0 %v723
    %v725 = vand.u32 %v122, 4294901760
    %726 = vmatprep.subr.mxu0 %v725
    %v727 = vand.u32 %v121, 4294901760
    %728 = vmatpush1.msra.mxu0 %v727
    %v729 = vand.u32 %v130, 4294901760
    %730 = vmatprep.subr.mxu0 %v729
    %v731 = vand.u32 %v129, 4294901760
    %732 = vmatpush1.msra.mxu0 %v731
    %v733 = vand.u32 %v138, 4294901760
    %734 = vmatprep.subr.mxu0 %v733
    %v735 = vand.u32 %v137, 4294901760
    %736 = vmatpush1.msra.mxu0 %v735
    %737 = vmatprep.subr.mxu0 0.0
    %738 = vmatpush1.msra.mxu0 0.0
    %739 = vmatprep.subr.mxu0 0.0
    %740 = vmatpush1.msra.mxu0 0.0
    %741 = vmatprep.subr.mxu0 0.0
    %742 = vmatpush1.msra.mxu0 0.0
    %743 = vmatprep.subr.mxu0 0.0
    %744 = vmatpush1.msra.mxu0 0.0
    %745 = vmatprep.subr.mxu0 0.0
    %746 = vmatpush1.msra.mxu0 0.0
    %747 = vmatprep.subr.mxu0 0.0
    %748 = vmatpush1.msra.mxu0 0.0
    %749 = vmatprep.subr.mxu0 0.0
    %750 = vmatpush1.msra.mxu0 0.0
    %751 = vmatprep.subr.mxu0 0.0
    %752 = vmatpush1.msra.mxu0 0.0
    %753 = vmatprep.subr.mxu0 0.0
    %754 = vmatpush1.msra.mxu0 0.0
    %755 = vmatprep.subr.mxu0 0.0
    %756 = vmatpush1.msra.mxu0 0.0
    %757 = vmatprep.subr.mxu0 0.0
    %758 = vmatpush1.msra.mxu0 0.0
    %759 = vmatprep.subr.mxu0 0.0
    %760 = vmatpush1.msra.mxu0 0.0
    %761 = vmatprep.subr.mxu0 0.0
    %762 = vmatpush1.msra.mxu0 0.0
    %763 = vmatprep.subr.mxu0 0.0
    %764 = vmatpush1.msra.mxu0 0.0
    %765 = vmatprep.subr.mxu0 0.0
    %766 = vmatpush1.msra.mxu0 0.0
    %767 = vmatprep.subr.mxu0 0.0
    %768 = vmatpush1.msra.mxu0 0.0
    %769 = vmatprep.subr.mxu0 0.0
    %770 = vmatpush1.msra.mxu0 0.0
    %771 = vmatprep.subr.mxu0 0.0
    %772 = vmatpush1.msra.mxu0 0.0
    %773 = vmatprep.subr.mxu0 0.0
    %774 = vmatpush1.msra.mxu0 0.0
    %775 = vmatprep.subr.mxu0 0.0
    %776 = vmatpush1.msra.mxu0 0.0
    %777 = vmatprep.subr.mxu0 0.0
    %778 = vmatpush1.msra.mxu0 0.0
    %779 = vmatprep.subr.mxu0 0.0
    %780 = vmatpush1.msra.mxu0 0.0
    %781 = vmatprep.subr.mxu0 0.0
    %782 = vmatpush1.msra.mxu0 0.0
    %783 = vmatprep.subr.mxu0 0.0
    %784 = vmatpush1.msra.mxu0 0.0
    %785 = vmatprep.subr.mxu0 0.0
    %786 = vmatpush1.msra.mxu0 0.0
    %787 = vmatprep.subr.mxu0 0.0
    %788 = vmatpush1.msra.mxu0 0.0
    %789 = vmatprep.subr.mxu0 0.0
    %790 = vmatpush1.msra.mxu0 0.0
    %791 = vmatprep.subr.mxu0 0.0
    %792 = vmatpush1.msra.mxu0 0.0
    %793 = vmatprep.mubr.f32.mxu0 0.0
    %v794 = vand.u32 %v176, 4294901760
    %v795 = vsub.f32 %v176, %v794
    %v796 = vand.u32 %v795, 4294901760
    %v797 = vsub.f32 %v795, %v796
    %v798 = vand.u32 %v797, 4294901760
    %799 = vmatmul.mubr.f32.gmra.mrb[0].mxu0 %v798
    %v800 = vpop.f32.mrb[0].mxu0
    %v801 = vadd.f32 0.0, %v800
    %v802 = vpop.f32.mrb[0].mxu0
    %v803 = vadd.f32 0.0, %v802
    %804 = vdwg.mxu0
    %v805 = vand.u32 %v114, 4294901760
    %v806 = vsub.f32 %v114, %v805
    %v807 = vand.u32 %v806, 4294901760
    %v808 = vsub.f32 %v806, %v807
    %v809 = vand.u32 %v808, 4294901760
    %810 = vmatprep.subr.mxu0 %v809
    %v811 = vand.u32 %v113, 4294901760
    %v812 = vsub.f32 %v113, %v811
    %v813 = vand.u32 %v812, 4294901760
    %v814 = vsub.f32 %v812, %v813
    %v815 = vand.u32 %v814, 4294901760
    %816 = vmatpush1.msra.mxu0 %v815
    %v817 = vand.u32 %v122, 4294901760
    %v818 = vsub.f32 %v122, %v817
    %v819 = vand.u32 %v818, 4294901760
    %v820 = vsub.f32 %v818, %v819
    %v821 = vand.u32 %v820, 4294901760
    %822 = vmatprep.subr.mxu0 %v821
    %v823 = vand.u32 %v121, 4294901760
    %v824 = vsub.f32 %v121, %v823
    %v825 = vand.u32 %v824, 4294901760
    %v826 = vsub.f32 %v824, %v825
    %v827 = vand.u32 %v826, 4294901760
    %828 = vmatpush1.msra.mxu0 %v827
    %v829 = vand.u32 %v130, 4294901760
    %v830 = vsub.f32 %v130, %v829
    %v831 = vand.u32 %v830, 4294901760
    %v832 = vsub.f32 %v830, %v831
    %v833 = vand.u32 %v832, 4294901760
    %834 = vmatprep.subr.mxu0 %v833
    %v835 = vand.u32 %v129, 4294901760
    %v836 = vsub.f32 %v129, %v835
    %v837 = vand.u32 %v836, 4294901760
    %v838 = vsub.f32 %v836, %v837
    %v839 = vand.u32 %v838, 4294901760
    %840 = vmatpush1.msra.mxu0 %v839
    %v841 = vand.u32 %v138, 4294901760
    %v842 = vsub.f32 %v138, %v841
    %v843 = vand.u32 %v842, 4294901760
    %v844 = vsub.f32 %v842, %v843
    %v845 = vand.u32 %v844, 4294901760
    %846 = vmatprep.subr.mxu0 %v845
    %v847 = vand.u32 %v137, 4294901760
    %v848 = vsub.f32 %v137, %v847
    %v849 = vand.u32 %v848, 4294901760
    %v850 = vsub.f32 %v848, %v849
    %v851 = vand.u32 %v850, 4294901760
    %852 = vmatpush1.msra.mxu0 %v851
    %853 = vmatprep.subr.mxu0 0.0
    %854 = vmatpush1.msra.mxu0 0.0
    %855 = vmatprep.subr.mxu0 0.0
    %856 = vmatpush1.msra.mxu0 0.0
    %857 = vmatprep.subr.mxu0 0.0
    %858 = vmatpush1.msra.mxu0 0.0
    %859 = vmatprep.subr.mxu0 0.0
    %860 = vmatpush1.msra.mxu0 0.0
    %861 = vmatprep.subr.mxu0 0.0
    %862 = vmatpush1.msra.mxu0 0.0
    %863 = vmatprep.subr.mxu0 0.0
    %864 = vmatpush1.msra.mxu0 0.0
    %865 = vmatprep.subr.mxu0 0.0
    %866 = vmatpush1.msra.mxu0 0.0
    %867 = vmatprep.subr.mxu0 0.0
    %868 = vmatpush1.msra.mxu0 0.0
    %869 = vmatprep.subr.mxu0 0.0
    %870 = vmatpush1.msra.mxu0 0.0
    %871 = vmatprep.subr.mxu0 0.0
    %872 = vmatpush1.msra.mxu0 0.0
    %873 = vmatprep.subr.mxu0 0.0
    %874 = vmatpush1.msra.mxu0 0.0
    %875 = vmatprep.subr.mxu0 0.0
    %876 = vmatpush1.msra.mxu0 0.0
    %877 = vmatprep.subr.mxu0 0.0
    %878 = vmatpush1.msra.mxu0 0.0
    %879 = vmatprep.subr.mxu0 0.0
    %880 = vmatpush1.msra.mxu0 0.0
    %881 = vmatprep.subr.mxu0 0.0
    %882 = vmatpush1.msra.mxu0 0.0
    %883 = vmatprep.subr.mxu0 0.0
    %884 = vmatpush1.msra.mxu0 0.0
    %885 = vmatprep.subr.mxu0 0.0
    %886 = vmatpush1.msra.mxu0 0.0
    %887 = vmatprep.subr.mxu0 0.0
    %888 = vmatpush1.msra.mxu0 0.0
    %889 = vmatprep.subr.mxu0 0.0
    %890 = vmatpush1.msra.mxu0 0.0
    %891 = vmatprep.subr.mxu0 0.0
    %892 = vmatpush1.msra.mxu0 0.0
    %893 = vmatprep.subr.mxu0 0.0
    %894 = vmatpush1.msra.mxu0 0.0
    %895 = vmatprep.subr.mxu0 0.0
    %896 = vmatpush1.msra.mxu0 0.0
    %897 = vmatprep.subr.mxu0 0.0
    %898 = vmatpush1.msra.mxu0 0.0
    %899 = vmatprep.subr.mxu0 0.0
    %900 = vmatpush1.msra.mxu0 0.0
    %901 = vmatprep.subr.mxu0 0.0
    %902 = vmatpush1.msra.mxu0 0.0
    %903 = vmatprep.subr.mxu0 0.0
    %904 = vmatpush1.msra.mxu0 0.0
    %905 = vmatprep.subr.mxu0 0.0
    %906 = vmatpush1.msra.mxu0 0.0
    %907 = vmatprep.subr.mxu0 0.0
    %908 = vmatpush1.msra.mxu0 0.0
    %909 = vmatprep.mubr.f32.mxu0 0.0
    %v910 = vand.u32 %v176, 4294901760
    %911 = vmatmul.mubr.f32.gmra.mrb[0].mxu0 %v910
    %v912 = vpop.f32.mrb[0].mxu0
    %v913 = vadd.f32 %v801, %v912
    %v914 = vpop.f32.mrb[0].mxu0
    %v915 = vadd.f32 %v803, %v914
    %916 = vdwg.mxu0
    %v917 = vand.u32 %v114, 4294901760
    %v918 = vsub.f32 %v114, %v917
    %919 = vmatprep.subr.mxu0 %v918
    %v920 = vand.u32 %v113, 4294901760
    %v921 = vsub.f32 %v113, %v920
    %922 = vmatpush1.msra.mxu0 %v921
    %v923 = vand.u32 %v122, 4294901760
    %v924 = vsub.f32 %v122, %v923
    %925 = vmatprep.subr.mxu0 %v924
    %v926 = vand.u32 %v121, 4294901760
    %v927 = vsub.f32 %v121, %v926
    %928 = vmatpush1.msra.mxu0 %v927
    %v929 = vand.u32 %v130, 4294901760
    %v930 = vsub.f32 %v130, %v929
    %931 = vmatprep.subr.mxu0 %v930
    %v932 = vand.u32 %v129, 4294901760
    %v933 = vsub.f32 %v129, %v932
    %934 = vmatpush1.msra.mxu0 %v933
    %v935 = vand.u32 %v138, 4294901760
    %v936 = vsub.f32 %v138, %v935
    %937 = vmatprep.subr.mxu0 %v936
    %v938 = vand.u32 %v137, 4294901760
    %v939 = vsub.f32 %v137, %v938
    %940 = vmatpush1.msra.mxu0 %v939
    %941 = vmatprep.subr.mxu0 0.0
    %942 = vmatpush1.msra.mxu0 0.0
    %943 = vmatprep.subr.mxu0 0.0
    %944 = vmatpush1.msra.mxu0 0.0
    %945 = vmatprep.subr.mxu0 0.0
    %946 = vmatpush1.msra.mxu0 0.0
    %947 = vmatprep.subr.mxu0 0.0
    %948 = vmatpush1.msra.mxu0 0.0
    %949 = vmatprep.subr.mxu0 0.0
    %950 = vmatpush1.msra.mxu0 0.0
    %951 = vmatprep.subr.mxu0 0.0
    %952 = vmatpush1.msra.mxu0 0.0
    %953 = vmatprep.subr.mxu0 0.0
    %954 = vmatpush1.msra.mxu0 0.0
    %955 = vmatprep.subr.mxu0 0.0
    %956 = vmatpush1.msra.mxu0 0.0
    %957 = vmatprep.subr.mxu0 0.0
    %958 = vmatpush1.msra.mxu0 0.0
    %959 = vmatprep.subr.mxu0 0.0
    %960 = vmatpush1.msra.mxu0 0.0
    %961 = vmatprep.subr.mxu0 0.0
    %962 = vmatpush1.msra.mxu0 0.0
    %963 = vmatprep.subr.mxu0 0.0
    %964 = vmatpush1.msra.mxu0 0.0
    %965 = vmatprep.subr.mxu0 0.0
    %966 = vmatpush1.msra.mxu0 0.0
    %967 = vmatprep.subr.mxu0 0.0
    %968 = vmatpush1.msra.mxu0 0.0
    %969 = vmatprep.subr.mxu0 0.0
    %970 = vmatpush1.msra.mxu0 0.0
    %971 = vmatprep.subr.mxu0 0.0
    %972 = vmatpush1.msra.mxu0 0.0
    %973 = vmatprep.subr.mxu0 0.0
    %974 = vmatpush1.msra.mxu0 0.0
    %975 = vmatprep.subr.mxu0 0.0
    %976 = vmatpush1.msra.mxu0 0.0
    %977 = vmatprep.subr.mxu0 0.0
    %978 = vmatpush1.msra.mxu0 0.0
    %979 = vmatprep.subr.mxu0 0.0
    %980 = vmatpush1.msra.mxu0 0.0
    %981 = vmatprep.subr.mxu0 0.0
    %982 = vmatpush1.msra.mxu0 0.0
    %983 = vmatprep.subr.mxu0 0.0
    %984 = vmatpush1.msra.mxu0 0.0
    %985 = vmatprep.subr.mxu0 0.0
    %986 = vmatpush1.msra.mxu0 0.0
    %987 = vmatprep.subr.mxu0 0.0
    %988 = vmatpush1.msra.mxu0 0.0
    %989 = vmatprep.subr.mxu0 0.0
    %990 = vmatpush1.msra.mxu0 0.0
    %991 = vmatprep.subr.mxu0 0.0
    %992 = vmatpush1.msra.mxu0 0.0
    %993 = vmatprep.subr.mxu0 0.0
    %994 = vmatpush1.msra.mxu0 0.0
    %995 = vmatprep.subr.mxu0 0.0
    %996 = vmatpush1.msra.mxu0 0.0
    %997 = vmatprep.mubr.f32.mxu0 0.0
    %v998 = vand.u32 %v176, 4294901760
    %v999 = vsub.f32 %v176, %v998
    %1000 = vmatmul.mubr.f32.gmra.mrb[0].mxu0 %v999
    %v1001 = vpop.f32.mrb[0].mxu0
    %v1002 = vadd.f32 %v913, %v1001
    %v1003 = vpop.f32.mrb[0].mxu0
    %v1004 = vadd.f32 %v915, %v1003
    %1005 = vdwg.mxu0
    %v1006 = vand.u32 %v114, 4294901760
    %1007 = vmatprep.subr.mxu0 %v1006
    %v1008 = vand.u32 %v113, 4294901760
    %1009 = vmatpush1.msra.mxu0 %v1008
    %v1010 = vand.u32 %v122, 4294901760
    %1011 = vmatprep.subr.mxu0 %v1010
    %v1012 = vand.u32 %v121, 4294901760
    %1013 = vmatpush1.msra.mxu0 %v1012
    %v1014 = vand.u32 %v130, 4294901760
    %1015 = vmatprep.subr.mxu0 %v1014
    %v1016 = vand.u32 %v129, 4294901760
    %1017 = vmatpush1.msra.mxu0 %v1016
    %v1018 = vand.u32 %v138, 4294901760
    %1019 = vmatprep.subr.mxu0 %v1018
    %v1020 = vand.u32 %v137, 4294901760
    %1021 = vmatpush1.msra.mxu0 %v1020
    %1022 = vmatprep.subr.mxu0 0.0
    %1023 = vmatpush1.msra.mxu0 0.0
    %1024 = vmatprep.subr.mxu0 0.0
    %1025 = vmatpush1.msra.mxu0 0.0
    %1026 = vmatprep.subr.mxu0 0.0
    %1027 = vmatpush1.msra.mxu0 0.0
    %1028 = vmatprep.subr.mxu0 0.0
    %1029 = vmatpush1.msra.mxu0 0.0
    %1030 = vmatprep.subr.mxu0 0.0
    %1031 = vmatpush1.msra.mxu0 0.0
    %1032 = vmatprep.subr.mxu0 0.0
    %1033 = vmatpush1.msra.mxu0 0.0
    %1034 = vmatprep.subr.mxu0 0.0
    %1035 = vmatpush1.msra.mxu0 0.0
    %1036 = vmatprep.subr.mxu0 0.0
    %1037 = vmatpush1.msra.mxu0 0.0
    %1038 = vmatprep.subr.mxu0 0.0
    %1039 = vmatpush1.msra.mxu0 0.0
    %1040 = vmatprep.subr.mxu0 0.0
    %1041 = vmatpush1.msra.mxu0 0.0
    %1042 = vmatprep.subr.mxu0 0.0
    %1043 = vmatpush1.msra.mxu0 0.0
    %1044 = vmatprep.subr.mxu0 0.0
    %1045 = vmatpush1.msra.mxu0 0.0
    %1046 = vmatprep.subr.mxu0 0.0
    %1047 = vmatpush1.msra.mxu0 0.0
    %1048 = vmatprep.subr.mxu0 0.0
    %1049 = vmatpush1.msra.mxu0 0.0
    %1050 = vmatprep.subr.mxu0 0.0
    %1051 = vmatpush1.msra.mxu0 0.0
    %1052 = vmatprep.subr.mxu0 0.0
    %1053 = vmatpush1.msra.mxu0 0.0
    %1054 = vmatprep.subr.mxu0 0.0
    %1055 = vmatpush1.msra.mxu0 0.0
    %1056 = vmatprep.subr.mxu0 0.0
    %1057 = vmatpush1.msra.mxu0 0.0
    %1058 = vmatprep.subr.mxu0 0.0
    %1059 = vmatpush1.msra.mxu0 0.0
    %1060 = vmatprep.subr.mxu0 0.0
    %1061 = vmatpush1.msra.mxu0 0.0
    %1062 = vmatprep.subr.mxu0 0.0
    %1063 = vmatpush1.msra.mxu0 0.0
    %1064 = vmatprep.subr.mxu0 0.0
    %1065 = vmatpush1.msra.mxu0 0.0
    %1066 = vmatprep.subr.mxu0 0.0
    %1067 = vmatpush1.msra.mxu0 0.0
    %1068 = vmatprep.subr.mxu0 0.0
    %1069 = vmatpush1.msra.mxu0 0.0
    %1070 = vmatprep.subr.mxu0 0.0
    %1071 = vmatpush1.msra.mxu0 0.0
    %1072 = vmatprep.subr.mxu0 0.0
    %1073 = vmatpush1.msra.mxu0 0.0
    %1074 = vmatprep.subr.mxu0 0.0
    %1075 = vmatpush1.msra.mxu0 0.0
    %1076 = vmatprep.subr.mxu0 0.0
    %1077 = vmatpush1.msra.mxu0 0.0
    %1078 = vmatprep.mubr.f32.mxu0 0.0
    %v1079 = vand.u32 %v176, 4294901760
    %v1080 = vsub.f32 %v176, %v1079
    %v1081 = vand.u32 %v1080, 4294901760
    %1082 = vmatmul.mubr.f32.gmra.mrb[0].mxu0 %v1081
    %v1083 = vpop.f32.mrb[0].mxu0
    %v1084 = vadd.f32 %v1002, %v1083
    %v1085 = vpop.f32.mrb[0].mxu0
    %v1086 = vadd.f32 %v1004, %v1085
    %1087 = vdwg.mxu0
    %v1088 = vand.u32 %v114, 4294901760
    %v1089 = vsub.f32 %v114, %v1088
    %v1090 = vand.u32 %v1089, 4294901760
    %1091 = vmatprep.subr.mxu0 %v1090
    %v1092 = vand.u32 %v113, 4294901760
    %v1093 = vsub.f32 %v113, %v1092
    %v1094 = vand.u32 %v1093, 4294901760
    %1095 = vmatpush1.msra.mxu0 %v1094
    %v1096 = vand.u32 %v122, 4294901760
    %v1097 = vsub.f32 %v122, %v1096
    %v1098 = vand.u32 %v1097, 4294901760
    %1099 = vmatprep.subr.mxu0 %v1098
    %v1100 = vand.u32 %v121, 4294901760
    %v1101 = vsub.f32 %v121, %v1100
    %v1102 = vand.u32 %v1101, 4294901760
    %1103 = vmatpush1.msra.mxu0 %v1102
    %v1104 = vand.u32 %v130, 4294901760
    %v1105 = vsub.f32 %v130, %v1104
    %v1106 = vand.u32 %v1105, 4294901760
    %1107 = vmatprep.subr.mxu0 %v1106
    %v1108 = vand.u32 %v129, 4294901760
    %v1109 = vsub.f32 %v129, %v1108
    %v1110 = vand.u32 %v1109, 4294901760
    %1111 = vmatpush1.msra.mxu0 %v1110
    %v1112 = vand.u32 %v138, 4294901760
    %v1113 = vsub.f32 %v138, %v1112
    %v1114 = vand.u32 %v1113, 4294901760
    %1115 = vmatprep.subr.mxu0 %v1114
    %v1116 = vand.u32 %v137, 4294901760
    %v1117 = vsub.f32 %v137, %v1116
    %v1118 = vand.u32 %v1117, 4294901760
    %1119 = vmatpush1.msra.mxu0 %v1118
    %1120 = vmatprep.subr.mxu0 0.0
    %1121 = vmatpush1.msra.mxu0 0.0
    %1122 = vmatprep.subr.mxu0 0.0
    %1123 = vmatpush1.msra.mxu0 0.0
    %1124 = vmatprep.subr.mxu0 0.0
    %1125 = vmatpush1.msra.mxu0 0.0
    %1126 = vmatprep.subr.mxu0 0.0
    %1127 = vmatpush1.msra.mxu0 0.0
    %1128 = vmatprep.subr.mxu0 0.0
    %1129 = vmatpush1.msra.mxu0 0.0
    %1130 = vmatprep.subr.mxu0 0.0
    %1131 = vmatpush1.msra.mxu0 0.0
    %1132 = vmatprep.subr.mxu0 0.0
    %1133 = vmatpush1.msra.mxu0 0.0
    %1134 = vmatprep.subr.mxu0 0.0
    %1135 = vmatpush1.msra.mxu0 0.0
    %1136 = vmatprep.subr.mxu0 0.0
    %1137 = vmatpush1.msra.mxu0 0.0
    %1138 = vmatprep.subr.mxu0 0.0
    %1139 = vmatpush1.msra.mxu0 0.0
    %1140 = vmatprep.subr.mxu0 0.0
    %1141 = vmatpush1.msra.mxu0 0.0
    %1142 = vmatprep.subr.mxu0 0.0
    %1143 = vmatpush1.msra.mxu0 0.0
    %1144 = vmatprep.subr.mxu0 0.0
    %1145 = vmatpush1.msra.mxu0 0.0
    %1146 = vmatprep.subr.mxu0 0.0
    %1147 = vmatpush1.msra.mxu0 0.0
    %1148 = vmatprep.subr.mxu0 0.0
    %1149 = vmatpush1.msra.mxu0 0.0
    %1150 = vmatprep.subr.mxu0 0.0
    %1151 = vmatpush1.msra.mxu0 0.0
    %1152 = vmatprep.subr.mxu0 0.0
    %1153 = vmatpush1.msra.mxu0 0.0
    %1154 = vmatprep.subr.mxu0 0.0
    %1155 = vmatpush1.msra.mxu0 0.0
    %1156 = vmatprep.subr.mxu0 0.0
    %1157 = vmatpush1.msra.mxu0 0.0
    %1158 = vmatprep.subr.mxu0 0.0
    %1159 = vmatpush1.msra.mxu0 0.0
    %1160 = vmatprep.subr.mxu0 0.0
    %1161 = vmatpush1.msra.mxu0 0.0
    %1162 = vmatprep.subr.mxu0 0.0
    %1163 = vmatpush1.msra.mxu0 0.0
    %1164 = vmatprep.subr.mxu0 0.0
    %1165 = vmatpush1.msra.mxu0 0.0
    %1166 = vmatprep.subr.mxu0 0.0
    %1167 = vmatpush1.msra.mxu0 0.0
    %1168 = vmatprep.subr.mxu0 0.0
    %1169 = vmatpush1.msra.mxu0 0.0
    %1170 = vmatprep.subr.mxu0 0.0
    %1171 = vmatpush1.msra.mxu0 0.0
    %1172 = vmatprep.subr.mxu0 0.0
    %1173 = vmatpush1.msra.mxu0 0.0
    %1174 = vmatprep.subr.mxu0 0.0
    %1175 = vmatpush1.msra.mxu0 0.0
    %1176 = vmatprep.mubr.f32.mxu0 0.0
    %v1177 = vand.u32 %v176, 4294901760
    %1178 = vmatmul.mubr.f32.gmra.mrb[0].mxu0 %v1177
    %v1179 = vpop.f32.mrb[0].mxu0
    %v1180 = vadd.f32 %v1084, %v1179
    %v1181 = vpop.f32.mrb[0].mxu0
    %v1182 = vadd.f32 %v1086, %v1181
    %1183 = vdwg.mxu0
    %v1184 = vand.u32 %v114, 4294901760
    %1185 = vmatprep.subr.mxu0 %v1184
    %v1186 = vand.u32 %v113, 4294901760
    %1187 = vmatpush1.msra.mxu0 %v1186
    %v1188 = vand.u32 %v122, 4294901760
    %1189 = vmatprep.subr.mxu0 %v1188
    %v1190 = vand.u32 %v121, 4294901760
    %1191 = vmatpush1.msra.mxu0 %v1190
    %v1192 = vand.u32 %v130, 4294901760
    %1193 = vmatprep.subr.mxu0 %v1192
    %v1194 = vand.u32 %v129, 4294901760
    %1195 = vmatpush1.msra.mxu0 %v1194
    %v1196 = vand.u32 %v138, 4294901760
    %1197 = vmatprep.subr.mxu0 %v1196
    %v1198 = vand.u32 %v137, 4294901760
    %1199 = vmatpush1.msra.mxu0 %v1198
    %1200 = vmatprep.subr.mxu0 0.0
    %1201 = vmatpush1.msra.mxu0 0.0
    %1202 = vmatprep.subr.mxu0 0.0
    %1203 = vmatpush1.msra.mxu0 0.0
    %1204 = vmatprep.subr.mxu0 0.0
    %1205 = vmatpush1.msra.mxu0 0.0
    %1206 = vmatprep.subr.mxu0 0.0
    %1207 = vmatpush1.msra.mxu0 0.0
    %1208 = vmatprep.subr.mxu0 0.0
    %1209 = vmatpush1.msra.mxu0 0.0
    %1210 = vmatprep.subr.mxu0 0.0
    %1211 = vmatpush1.msra.mxu0 0.0
    %1212 = vmatprep.subr.mxu0 0.0
    %1213 = vmatpush1.msra.mxu0 0.0
    %1214 = vmatprep.subr.mxu0 0.0
    %1215 = vmatpush1.msra.mxu0 0.0
    %1216 = vmatprep.subr.mxu0 0.0
    %1217 = vmatpush1.msra.mxu0 0.0
    %1218 = vmatprep.subr.mxu0 0.0
    %1219 = vmatpush1.msra.mxu0 0.0
    %1220 = vmatprep.subr.mxu0 0.0
    %1221 = vmatpush1.msra.mxu0 0.0
    %1222 = vmatprep.subr.mxu0 0.0
    %1223 = vmatpush1.msra.mxu0 0.0
    %1224 = vmatprep.subr.mxu0 0.0
    %1225 = vmatpush1.msra.mxu0 0.0
    %1226 = vmatprep.subr.mxu0 0.0
    %1227 = vmatpush1.msra.mxu0 0.0
    %1228 = vmatprep.subr.mxu0 0.0
    %1229 = vmatpush1.msra.mxu0 0.0
    %1230 = vmatprep.subr.mxu0 0.0
    %1231 = vmatpush1.msra.mxu0 0.0
    %1232 = vmatprep.subr.mxu0 0.0
    %1233 = vmatpush1.msra.mxu0 0.0
    %1234 = vmatprep.subr.mxu0 0.0
    %1235 = vmatpush1.msra.mxu0 0.0
    %1236 = vmatprep.subr.mxu0 0.0
    %1237 = vmatpush1.msra.mxu0 0.0
    %1238 = vmatprep.subr.mxu0 0.0
    %1239 = vmatpush1.msra.mxu0 0.0
    %1240 = vmatprep.subr.mxu0 0.0
    %1241 = vmatpush1.msra.mxu0 0.0
    %1242 = vmatprep.subr.mxu0 0.0
    %1243 = vmatpush1.msra.mxu0 0.0
    %1244 = vmatprep.subr.mxu0 0.0
    %1245 = vmatpush1.msra.mxu0 0.0
    %1246 = vmatprep.subr.mxu0 0.0
    %1247 = vmatpush1.msra.mxu0 0.0
    %1248 = vmatprep.subr.mxu0 0.0
    %1249 = vmatpush1.msra.mxu0 0.0
    %1250 = vmatprep.subr.mxu0 0.0
    %1251 = vmatpush1.msra.mxu0 0.0
    %1252 = vmatprep.subr.mxu0 0.0
    %1253 = vmatpush1.msra.mxu0 0.0
    %1254 = vmatprep.subr.mxu0 0.0
    %1255 = vmatpush1.msra.mxu0 0.0
    %1256 = vmatprep.mubr.f32.mxu0 0.0
    %v1257 = vand.u32 %v176, 4294901760
    %1258 = vmatmul.mubr.f32.gmra.mrb[0].mxu0 %v1257
    %v1259 = vpop.f32.mrb[0].mxu0
    %v1260 = vadd.f32 %v1180, %v1259
    %v1261 = vpop.f32.mrb[0].mxu0
    %v1262 = vadd.f32 %v1182, %v1261
    %1263 = vdwg.mxu0
    %v1264 = vand.u32 %v116, 4294901760
    %1265 = vmatprep.subr.mxu0 %v1264
    %v1266 = vand.u32 %v115, 4294901760
    %1267 = vmatpush1.msra.mxu0 %v1266
    %v1268 = vand.u32 %v124, 4294901760
    %1269 = vmatprep.subr.mxu0 %v1268
    %v1270 = vand.u32 %v123, 4294901760
    %1271 = vmatpush1.msra.mxu0 %v1270
    %v1272 = vand.u32 %v132, 4294901760
    %1273 = vmatprep.subr.mxu0 %v1272
    %v1274 = vand.u32 %v131, 4294901760
    %1275 = vmatpush1.msra.mxu0 %v1274
    %v1276 = vand.u32 %v140, 4294901760
    %1277 = vmatprep.subr.mxu0 %v1276
    %v1278 = vand.u32 %v139, 4294901760
    %1279 = vmatpush1.msra.mxu0 %v1278
    %1280 = vmatprep.subr.mxu0 0.0
    %1281 = vmatpush1.msra.mxu0 0.0
    %1282 = vmatprep.subr.mxu0 0.0
    %1283 = vmatpush1.msra.mxu0 0.0
    %1284 = vmatprep.subr.mxu0 0.0
    %1285 = vmatpush1.msra.mxu0 0.0
    %1286 = vmatprep.subr.mxu0 0.0
    %1287 = vmatpush1.msra.mxu0 0.0
    %1288 = vmatprep.subr.mxu0 0.0
    %1289 = vmatpush1.msra.mxu0 0.0
    %1290 = vmatprep.subr.mxu0 0.0
    %1291 = vmatpush1.msra.mxu0 0.0
    %1292 = vmatprep.subr.mxu0 0.0
    %1293 = vmatpush1.msra.mxu0 0.0
    %1294 = vmatprep.subr.mxu0 0.0
    %1295 = vmatpush1.msra.mxu0 0.0
    %1296 = vmatprep.subr.mxu0 0.0
    %1297 = vmatpush1.msra.mxu0 0.0
    %1298 = vmatprep.subr.mxu0 0.0
    %1299 = vmatpush1.msra.mxu0 0.0
    %1300 = vmatprep.subr.mxu0 0.0
    %1301 = vmatpush1.msra.mxu0 0.0
    %1302 = vmatprep.subr.mxu0 0.0
    %1303 = vmatpush1.msra.mxu0 0.0
    %1304 = vmatprep.subr.mxu0 0.0
    %1305 = vmatpush1.msra.mxu0 0.0
    %1306 = vmatprep.subr.mxu0 0.0
    %1307 = vmatpush1.msra.mxu0 0.0
    %1308 = vmatprep.subr.mxu0 0.0
    %1309 = vmatpush1.msra.mxu0 0.0
    %1310 = vmatprep.subr.mxu0 0.0
    %1311 = vmatpush1.msra.mxu0 0.0
    %1312 = vmatprep.subr.mxu0 0.0
    %1313 = vmatpush1.msra.mxu0 0.0
    %1314 = vmatprep.subr.mxu0 0.0
    %1315 = vmatpush1.msra.mxu0 0.0
    %1316 = vmatprep.subr.mxu0 0.0
    %1317 = vmatpush1.msra.mxu0 0.0
    %1318 = vmatprep.subr.mxu0 0.0
    %1319 = vmatpush1.msra.mxu0 0.0
    %1320 = vmatprep.subr.mxu0 0.0
    %1321 = vmatpush1.msra.mxu0 0.0
    %1322 = vmatprep.subr.mxu0 0.0
    %1323 = vmatpush1.msra.mxu0 0.0
    %1324 = vmatprep.subr.mxu0 0.0
    %1325 = vmatpush1.msra.mxu0 0.0
    %1326 = vmatprep.subr.mxu0 0.0
    %1327 = vmatpush1.msra.mxu0 0.0
    %1328 = vmatprep.subr.mxu0 0.0
    %1329 = vmatpush1.msra.mxu0 0.0
    %1330 = vmatprep.subr.mxu0 0.0
    %1331 = vmatpush1.msra.mxu0 0.0
    %1332 = vmatprep.subr.mxu0 0.0
    %1333 = vmatpush1.msra.mxu0 0.0
    %1334 = vmatprep.subr.mxu0 0.0
    %1335 = vmatpush1.msra.mxu0 0.0
    %1336 = vmatprep.mubr.f32.mxu0 0.0
    %v1337 = vand.u32 %v176, 4294901760
    %v1338 = vsub.f32 %v176, %v1337
    %v1339 = vand.u32 %v1338, 4294901760
    %v1340 = vsub.f32 %v1338, %v1339
    %v1341 = vand.u32 %v1340, 4294901760
    %1342 = vmatmul.mubr.f32.gmra.mrb[0].mxu0 %v1341
    %v1343 = vpop.f32.mrb[0].mxu0
    %v1344 = vadd.f32 0.0, %v1343
    %v1345 = vpop.f32.mrb[0].mxu0
    %v1346 = vadd.f32 0.0, %v1345
    %1347 = vdwg.mxu0
    %v1348 = vand.u32 %v116, 4294901760
    %v1349 = vsub.f32 %v116, %v1348
    %v1350 = vand.u32 %v1349, 4294901760
    %v1351 = vsub.f32 %v1349, %v1350
    %v1352 = vand.u32 %v1351, 4294901760
    %1353 = vmatprep.subr.mxu0 %v1352
    %v1354 = vand.u32 %v115, 4294901760
    %v1355 = vsub.f32 %v115, %v1354
    %v1356 = vand.u32 %v1355, 4294901760
    %v1357 = vsub.f32 %v1355, %v1356
    %v1358 = vand.u32 %v1357, 4294901760
    %1359 = vmatpush1.msra.mxu0 %v1358
    %v1360 = vand.u32 %v124, 4294901760
    %v1361 = vsub.f32 %v124, %v1360
    %v1362 = vand.u32 %v1361, 4294901760
    %v1363 = vsub.f32 %v1361, %v1362
    %v1364 = vand.u32 %v1363, 4294901760
    %1365 = vmatprep.subr.mxu0 %v1364
    %v1366 = vand.u32 %v123, 4294901760
    %v1367 = vsub.f32 %v123, %v1366
    %v1368 = vand.u32 %v1367, 4294901760
    %v1369 = vsub.f32 %v1367, %v1368
    %v1370 = vand.u32 %v1369, 4294901760
    %1371 = vmatpush1.msra.mxu0 %v1370
    %v1372 = vand.u32 %v132, 4294901760
    %v1373 = vsub.f32 %v132, %v1372
    %v1374 = vand.u32 %v1373, 4294901760
    %v1375 = vsub.f32 %v1373, %v1374
    %v1376 = vand.u32 %v1375, 4294901760
    %1377 = vmatprep.subr.mxu0 %v1376
    %v1378 = vand.u32 %v131, 4294901760
    %v1379 = vsub.f32 %v131, %v1378
    %v1380 = vand.u32 %v1379, 4294901760
    %v1381 = vsub.f32 %v1379, %v1380
    %v1382 = vand.u32 %v1381, 4294901760
    %1383 = vmatpush1.msra.mxu0 %v1382
    %v1384 = vand.u32 %v140, 4294901760
    %v1385 = vsub.f32 %v140, %v1384
    %v1386 = vand.u32 %v1385, 4294901760
    %v1387 = vsub.f32 %v1385, %v1386
    %v1388 = vand.u32 %v1387, 4294901760
    %1389 = vmatprep.subr.mxu0 %v1388
    %v1390 = vand.u32 %v139, 4294901760
    %v1391 = vsub.f32 %v139, %v1390
    %v1392 = vand.u32 %v1391, 4294901760
    %v1393 = vsub.f32 %v1391, %v1392
    %v1394 = vand.u32 %v1393, 4294901760
    %1395 = vmatpush1.msra.mxu0 %v1394
    %1396 = vmatprep.subr.mxu0 0.0
    %1397 = vmatpush1.msra.mxu0 0.0
    %1398 = vmatprep.subr.mxu0 0.0
    %1399 = vmatpush1.msra.mxu0 0.0
    %1400 = vmatprep.subr.mxu0 0.0
    %1401 = vmatpush1.msra.mxu0 0.0
    %1402 = vmatprep.subr.mxu0 0.0
    %1403 = vmatpush1.msra.mxu0 0.0
    %1404 = vmatprep.subr.mxu0 0.0
    %1405 = vmatpush1.msra.mxu0 0.0
    %1406 = vmatprep.subr.mxu0 0.0
    %1407 = vmatpush1.msra.mxu0 0.0
    %1408 = vmatprep.subr.mxu0 0.0
    %1409 = vmatpush1.msra.mxu0 0.0
    %1410 = vmatprep.subr.mxu0 0.0
    %1411 = vmatpush1.msra.mxu0 0.0
    %1412 = vmatprep.subr.mxu0 0.0
    %1413 = vmatpush1.msra.mxu0 0.0
    %1414 = vmatprep.subr.mxu0 0.0
    %1415 = vmatpush1.msra.mxu0 0.0
    %1416 = vmatprep.subr.mxu0 0.0
    %1417 = vmatpush1.msra.mxu0 0.0
    %1418 = vmatprep.subr.mxu0 0.0
    %1419 = vmatpush1.msra.mxu0 0.0
    %1420 = vmatprep.subr.mxu0 0.0
    %1421 = vmatpush1.msra.mxu0 0.0
    %1422 = vmatprep.subr.mxu0 0.0
    %1423 = vmatpush1.msra.mxu0 0.0
    %1424 = vmatprep.subr.mxu0 0.0
    %1425 = vmatpush1.msra.mxu0 0.0
    %1426 = vmatprep.subr.mxu0 0.0
    %1427 = vmatpush1.msra.mxu0 0.0
    %1428 = vmatprep.subr.mxu0 0.0
    %1429 = vmatpush1.msra.mxu0 0.0
    %1430 = vmatprep.subr.mxu0 0.0
    %1431 = vmatpush1.msra.mxu0 0.0
    %1432 = vmatprep.subr.mxu0 0.0
    %1433 = vmatpush1.msra.mxu0 0.0
    %1434 = vmatprep.subr.mxu0 0.0
    %1435 = vmatpush1.msra.mxu0 0.0
    %1436 = vmatprep.subr.mxu0 0.0
    %1437 = vmatpush1.msra.mxu0 0.0
    %1438 = vmatprep.subr.mxu0 0.0
    %1439 = vmatpush1.msra.mxu0 0.0
    %1440 = vmatprep.subr.mxu0 0.0
    %1441 = vmatpush1.msra.mxu0 0.0
    %1442 = vmatprep.subr.mxu0 0.0
    %1443 = vmatpush1.msra.mxu0 0.0
    %1444 = vmatprep.subr.mxu0 0.0
    %1445 = vmatpush1.msra.mxu0 0.0
    %1446 = vmatprep.subr.mxu0 0.0
    %1447 = vmatpush1.msra.mxu0 0.0
    %1448 = vmatprep.subr.mxu0 0.0
    %1449 = vmatpush1.msra.mxu0 0.0
    %1450 = vmatprep.subr.mxu0 0.0
    %1451 = vmatpush1.msra.mxu0 0.0
    %1452 = vmatprep.mubr.f32.mxu0 0.0
    %v1453 = vand.u32 %v176, 4294901760
    %1454 = vmatmul.mubr.f32.gmra.mrb[0].mxu0 %v1453
    %v1455 = vpop.f32.mrb[0].mxu0
    %v1456 = vadd.f32 %v1344, %v1455
    %v1457 = vpop.f32.mrb[0].mxu0
    %v1458 = vadd.f32 %v1346, %v1457
    %1459 = vdwg.mxu0
    %v1460 = vand.u32 %v116, 4294901760
    %v1461 = vsub.f32 %v116, %v1460
    %1462 = vmatprep.subr.mxu0 %v1461
    %v1463 = vand.u32 %v115, 4294901760
    %v1464 = vsub.f32 %v115, %v1463
    %1465 = vmatpush1.msra.mxu0 %v1464
    %v1466 = vand.u32 %v124, 4294901760
    %v1467 = vsub.f32 %v124, %v1466
    %1468 = vmatprep.subr.mxu0 %v1467
    %v1469 = vand.u32 %v123, 4294901760
    %v1470 = vsub.f32 %v123, %v1469
    %1471 = vmatpush1.msra.mxu0 %v1470
    %v1472 = vand.u32 %v132, 4294901760
    %v1473 = vsub.f32 %v132, %v1472
    %1474 = vmatprep.subr.mxu0 %v1473
    %v1475 = vand.u32 %v131, 4294901760
    %v1476 = vsub.f32 %v131, %v1475
    %1477 = vmatpush1.msra.mxu0 %v1476
    %v1478 = vand.u32 %v140, 4294901760
    %v1479 = vsub.f32 %v140, %v1478
    %1480 = vmatprep.subr.mxu0 %v1479
    %v1481 = vand.u32 %v139, 4294901760
    %v1482 = vsub.f32 %v139, %v1481
    %1483 = vmatpush1.msra.mxu0 %v1482
    %1484 = vmatprep.subr.mxu0 0.0
    %1485 = vmatpush1.msra.mxu0 0.0
    %1486 = vmatprep.subr.mxu0 0.0
    %1487 = vmatpush1.msra.mxu0 0.0
    %1488 = vmatprep.subr.mxu0 0.0
    %1489 = vmatpush1.msra.mxu0 0.0
    %1490 = vmatprep.subr.mxu0 0.0
    %1491 = vmatpush1.msra.mxu0 0.0
    %1492 = vmatprep.subr.mxu0 0.0
    %1493 = vmatpush1.msra.mxu0 0.0
    %1494 = vmatprep.subr.mxu0 0.0
    %1495 = vmatpush1.msra.mxu0 0.0
    %1496 = vmatprep.subr.mxu0 0.0
    %1497 = vmatpush1.msra.mxu0 0.0
    %1498 = vmatprep.subr.mxu0 0.0
    %1499 = vmatpush1.msra.mxu0 0.0
    %1500 = vmatprep.subr.mxu0 0.0
    %1501 = vmatpush1.msra.mxu0 0.0
    %1502 = vmatprep.subr.mxu0 0.0
    %1503 = vmatpush1.msra.mxu0 0.0
    %1504 = vmatprep.subr.mxu0 0.0
    %1505 = vmatpush1.msra.mxu0 0.0
    %1506 = vmatprep.subr.mxu0 0.0
    %1507 = vmatpush1.msra.mxu0 0.0
    %1508 = vmatprep.subr.mxu0 0.0
    %1509 = vmatpush1.msra.mxu0 0.0
    %1510 = vmatprep.subr.mxu0 0.0
    %1511 = vmatpush1.msra.mxu0 0.0
    %1512 = vmatprep.subr.mxu0 0.0
    %1513 = vmatpush1.msra.mxu0 0.0
    %1514 = vmatprep.subr.mxu0 0.0
    %1515 = vmatpush1.msra.mxu0 0.0
    %1516 = vmatprep.subr.mxu0 0.0
    %1517 = vmatpush1.msra.mxu0 0.0
    %1518 = vmatprep.subr.mxu0 0.0
    %1519 = vmatpush1.msra.mxu0 0.0
    %1520 = vmatprep.subr.mxu0 0.0
    %1521 = vmatpush1.msra.mxu0 0.0
    %1522 = vmatprep.subr.mxu0 0.0
    %1523 = vmatpush1.msra.mxu0 0.0
    %1524 = vmatprep.subr.mxu0 0.0
    %1525 = vmatpush1.msra.mxu0 0.0
    %1526 = vmatprep.subr.mxu0 0.0
    %1527 = vmatpush1.msra.mxu0 0.0
    %1528 = vmatprep.subr.mxu0 0.0
    %1529 = vmatpush1.msra.mxu0 0.0
    %1530 = vmatprep.subr.mxu0 0.0
    %1531 = vmatpush1.msra.mxu0 0.0
    %1532 = vmatprep.subr.mxu0 0.0
    %1533 = vmatpush1.msra.mxu0 0.0
    %1534 = vmatprep.subr.mxu0 0.0
    %1535 = vmatpush1.msra.mxu0 0.0
    %1536 = vmatprep.subr.mxu0 0.0
    %1537 = vmatpush1.msra.mxu0 0.0
    %1538 = vmatprep.subr.mxu0 0.0
    %1539 = vmatpush1.msra.mxu0 0.0
    %1540 = vmatprep.mubr.f32.mxu0 0.0
    %v1541 = vand.u32 %v176, 4294901760
    %v1542 = vsub.f32 %v176, %v1541
    %1543 = vmatmul.mubr.f32.gmra.mrb[0].mxu0 %v1542
    %v1544 = vpop.f32.mrb[0].mxu0
    %v1545 = vadd.f32 %v1456, %v1544
    %v1546 = vpop.f32.mrb[0].mxu0
    %v1547 = vadd.f32 %v1458, %v1546
    %1548 = vdwg.mxu0
    %v1549 = vand.u32 %v116, 4294901760
    %1550 = vmatprep.subr.mxu0 %v1549
    %v1551 = vand.u32 %v115, 4294901760
    %1552 = vmatpush1.msra.mxu0 %v1551
    %v1553 = vand.u32 %v124, 4294901760
    %1554 = vmatprep.subr.mxu0 %v1553
    %v1555 = vand.u32 %v123, 4294901760
    %1556 = vmatpush1.msra.mxu0 %v1555
    %v1557 = vand.u32 %v132, 4294901760
    %1558 = vmatprep.subr.mxu0 %v1557
    %v1559 = vand.u32 %v131, 4294901760
    %1560 = vmatpush1.msra.mxu0 %v1559
    %v1561 = vand.u32 %v140, 4294901760
    %1562 = vmatprep.subr.mxu0 %v1561
    %v1563 = vand.u32 %v139, 4294901760
    %1564 = vmatpush1.msra.mxu0 %v1563
    %1565 = vmatprep.subr.mxu0 0.0
    %1566 = vmatpush1.msra.mxu0 0.0
    %1567 = vmatprep.subr.mxu0 0.0
    %1568 = vmatpush1.msra.mxu0 0.0
    %1569 = vmatprep.subr.mxu0 0.0
    %1570 = vmatpush1.msra.mxu0 0.0
    %1571 = vmatprep.subr.mxu0 0.0
    %1572 = vmatpush1.msra.mxu0 0.0
    %1573 = vmatprep.subr.mxu0 0.0
    %1574 = vmatpush1.msra.mxu0 0.0
    %1575 = vmatprep.subr.mxu0 0.0
    %1576 = vmatpush1.msra.mxu0 0.0
    %1577 = vmatprep.subr.mxu0 0.0
    %1578 = vmatpush1.msra.mxu0 0.0
    %1579 = vmatprep.subr.mxu0 0.0
    %1580 = vmatpush1.msra.mxu0 0.0
    %1581 = vmatprep.subr.mxu0 0.0
    %1582 = vmatpush1.msra.mxu0 0.0
    %1583 = vmatprep.subr.mxu0 0.0
    %1584 = vmatpush1.msra.mxu0 0.0
    %1585 = vmatprep.subr.mxu0 0.0
    %1586 = vmatpush1.msra.mxu0 0.0
    %1587 = vmatprep.subr.mxu0 0.0
    %1588 = vmatpush1.msra.mxu0 0.0
    %1589 = vmatprep.subr.mxu0 0.0
    %1590 = vmatpush1.msra.mxu0 0.0
    %1591 = vmatprep.subr.mxu0 0.0
    %1592 = vmatpush1.msra.mxu0 0.0
    %1593 = vmatprep.subr.mxu0 0.0
    %1594 = vmatpush1.msra.mxu0 0.0
    %1595 = vmatprep.subr.mxu0 0.0
    %1596 = vmatpush1.msra.mxu0 0.0
    %1597 = vmatprep.subr.mxu0 0.0
    %1598 = vmatpush1.msra.mxu0 0.0
    %1599 = vmatprep.subr.mxu0 0.0
    %1600 = vmatpush1.msra.mxu0 0.0
    %1601 = vmatprep.subr.mxu0 0.0
    %1602 = vmatpush1.msra.mxu0 0.0
    %1603 = vmatprep.subr.mxu0 0.0
    %1604 = vmatpush1.msra.mxu0 0.0
    %1605 = vmatprep.subr.mxu0 0.0
    %1606 = vmatpush1.msra.mxu0 0.0
    %1607 = vmatprep.subr.mxu0 0.0
    %1608 = vmatpush1.msra.mxu0 0.0
    %1609 = vmatprep.subr.mxu0 0.0
    %1610 = vmatpush1.msra.mxu0 0.0
    %1611 = vmatprep.subr.mxu0 0.0
    %1612 = vmatpush1.msra.mxu0 0.0
    %1613 = vmatprep.subr.mxu0 0.0
    %1614 = vmatpush1.msra.mxu0 0.0
    %1615 = vmatprep.subr.mxu0 0.0
    %1616 = vmatpush1.msra.mxu0 0.0
    %1617 = vmatprep.subr.mxu0 0.0
    %1618 = vmatpush1.msra.mxu0 0.0
    %1619 = vmatprep.subr.mxu0 0.0
    %1620 = vmatpush1.msra.mxu0 0.0
    %1621 = vmatprep.mubr.f32.mxu0 0.0
    %v1622 = vand.u32 %v176, 4294901760
    %v1623 = vsub.f32 %v176, %v1622
    %v1624 = vand.u32 %v1623, 4294901760
    %1625 = vmatmul.mubr.f32.gmra.mrb[0].mxu0 %v1624
    %v1626 = vpop.f32.mrb[0].mxu0
    %v1627 = vadd.f32 %v1545, %v1626
    %v1628 = vpop.f32.mrb[0].mxu0
    %v1629 = vadd.f32 %v1547, %v1628
    %1630 = vdwg.mxu0
    %v1631 = vand.u32 %v116, 4294901760
    %v1632 = vsub.f32 %v116, %v1631
    %v1633 = vand.u32 %v1632, 4294901760
    %1634 = vmatprep.subr.mxu0 %v1633
    %v1635 = vand.u32 %v115, 4294901760
    %v1636 = vsub.f32 %v115, %v1635
    %v1637 = vand.u32 %v1636, 4294901760
    %1638 = vmatpush1.msra.mxu0 %v1637
    %v1639 = vand.u32 %v124, 4294901760
    %v1640 = vsub.f32 %v124, %v1639
    %v1641 = vand.u32 %v1640, 4294901760
    %1642 = vmatprep.subr.mxu0 %v1641
    %v1643 = vand.u32 %v123, 4294901760
    %v1644 = vsub.f32 %v123, %v1643
    %v1645 = vand.u32 %v1644, 4294901760
    %1646 = vmatpush1.msra.mxu0 %v1645
    %v1647 = vand.u32 %v132, 4294901760
    %v1648 = vsub.f32 %v132, %v1647
    %v1649 = vand.u32 %v1648, 4294901760
    %1650 = vmatprep.subr.mxu0 %v1649
    %v1651 = vand.u32 %v131, 4294901760
    %v1652 = vsub.f32 %v131, %v1651
    %v1653 = vand.u32 %v1652, 4294901760
    %1654 = vmatpush1.msra.mxu0 %v1653
    %v1655 = vand.u32 %v140, 4294901760
    %v1656 = vsub.f32 %v140, %v1655
    %v1657 = vand.u32 %v1656, 4294901760
    %1658 = vmatprep.subr.mxu0 %v1657
    %v1659 = vand.u32 %v139, 4294901760
    %v1660 = vsub.f32 %v139, %v1659
    %v1661 = vand.u32 %v1660, 4294901760
    %1662 = vmatpush1.msra.mxu0 %v1661
    %1663 = vmatprep.subr.mxu0 0.0
    %1664 = vmatpush1.msra.mxu0 0.0
    %1665 = vmatprep.subr.mxu0 0.0
    %1666 = vmatpush1.msra.mxu0 0.0
    %1667 = vmatprep.subr.mxu0 0.0
    %1668 = vmatpush1.msra.mxu0 0.0
    %1669 = vmatprep.subr.mxu0 0.0
    %1670 = vmatpush1.msra.mxu0 0.0
    %1671 = vmatprep.subr.mxu0 0.0
    %1672 = vmatpush1.msra.mxu0 0.0
    %1673 = vmatprep.subr.mxu0 0.0
    %1674 = vmatpush1.msra.mxu0 0.0
    %1675 = vmatprep.subr.mxu0 0.0
    %1676 = vmatpush1.msra.mxu0 0.0
    %1677 = vmatprep.subr.mxu0 0.0
    %1678 = vmatpush1.msra.mxu0 0.0
    %1679 = vmatprep.subr.mxu0 0.0
    %1680 = vmatpush1.msra.mxu0 0.0
    %1681 = vmatprep.subr.mxu0 0.0
    %1682 = vmatpush1.msra.mxu0 0.0
    %1683 = vmatprep.subr.mxu0 0.0
    %1684 = vmatpush1.msra.mxu0 0.0
    %1685 = vmatprep.subr.mxu0 0.0
    %1686 = vmatpush1.msra.mxu0 0.0
    %1687 = vmatprep.subr.mxu0 0.0
    %1688 = vmatpush1.msra.mxu0 0.0
    %1689 = vmatprep.subr.mxu0 0.0
    %1690 = vmatpush1.msra.mxu0 0.0
    %1691 = vmatprep.subr.mxu0 0.0
    %1692 = vmatpush1.msra.mxu0 0.0
    %1693 = vmatprep.subr.mxu0 0.0
    %1694 = vmatpush1.msra.mxu0 0.0
    %1695 = vmatprep.subr.mxu0 0.0
    %1696 = vmatpush1.msra.mxu0 0.0
    %1697 = vmatprep.subr.mxu0 0.0
    %1698 = vmatpush1.msra.mxu0 0.0
    %1699 = vmatprep.subr.mxu0 0.0
    %1700 = vmatpush1.msra.mxu0 0.0
    %1701 = vmatprep.subr.mxu0 0.0
    %1702 = vmatpush1.msra.mxu0 0.0
    %1703 = vmatprep.subr.mxu0 0.0
    %1704 = vmatpush1.msra.mxu0 0.0
    %1705 = vmatprep.subr.mxu0 0.0
    %1706 = vmatpush1.msra.mxu0 0.0
    %1707 = vmatprep.subr.mxu0 0.0
    %1708 = vmatpush1.msra.mxu0 0.0
    %1709 = vmatprep.subr.mxu0 0.0
    %1710 = vmatpush1.msra.mxu0 0.0
    %1711 = vmatprep.subr.mxu0 0.0
    %1712 = vmatpush1.msra.mxu0 0.0
    %1713 = vmatprep.subr.mxu0 0.0
    %1714 = vmatpush1.msra.mxu0 0.0
    %1715 = vmatprep.subr.mxu0 0.0
    %1716 = vmatpush1.msra.mxu0 0.0
    %1717 = vmatprep.subr.mxu0 0.0
    %1718 = vmatpush1.msra.mxu0 0.0
    %1719 = vmatprep.mubr.f32.mxu0 0.0
    %v1720 = vand.u32 %v176, 4294901760
    %1721 = vmatmul.mubr.f32.gmra.mrb[0].mxu0 %v1720
    %v1722 = vpop.f32.mrb[0].mxu0
    %v1723 = vadd.f32 %v1627, %v1722
    %v1724 = vpop.f32.mrb[0].mxu0
    %v1725 = vadd.f32 %v1629, %v1724
    %1726 = vdwg.mxu0
    %v1727 = vand.u32 %v116, 4294901760
    %1728 = vmatprep.subr.mxu0 %v1727
    %v1729 = vand.u32 %v115, 4294901760
    %1730 = vmatpush1.msra.mxu0 %v1729
    %v1731 = vand.u32 %v124, 4294901760
    %1732 = vmatprep.subr.mxu0 %v1731
    %v1733 = vand.u32 %v123, 4294901760
    %1734 = vmatpush1.msra.mxu0 %v1733
    %v1735 = vand.u32 %v132, 4294901760
    %1736 = vmatprep.subr.mxu0 %v1735
    %v1737 = vand.u32 %v131, 4294901760
    %1738 = vmatpush1.msra.mxu0 %v1737
    %v1739 = vand.u32 %v140, 4294901760
    %1740 = vmatprep.subr.mxu0 %v1739
    %v1741 = vand.u32 %v139, 4294901760
    %1742 = vmatpush1.msra.mxu0 %v1741
    %1743 = vmatprep.subr.mxu0 0.0
    %1744 = vmatpush1.msra.mxu0 0.0
    %1745 = vmatprep.subr.mxu0 0.0
    %1746 = vmatpush1.msra.mxu0 0.0
    %1747 = vmatprep.subr.mxu0 0.0
    %1748 = vmatpush1.msra.mxu0 0.0
    %1749 = vmatprep.subr.mxu0 0.0
    %1750 = vmatpush1.msra.mxu0 0.0
    %1751 = vmatprep.subr.mxu0 0.0
    %1752 = vmatpush1.msra.mxu0 0.0
    %1753 = vmatprep.subr.mxu0 0.0
    %1754 = vmatpush1.msra.mxu0 0.0
    %1755 = vmatprep.subr.mxu0 0.0
    %1756 = vmatpush1.msra.mxu0 0.0
    %1757 = vmatprep.subr.mxu0 0.0
    %1758 = vmatpush1.msra.mxu0 0.0
    %1759 = vmatprep.subr.mxu0 0.0
    %1760 = vmatpush1.msra.mxu0 0.0
    %1761 = vmatprep.subr.mxu0 0.0
    %1762 = vmatpush1.msra.mxu0 0.0
    %1763 = vmatprep.subr.mxu0 0.0
    %1764 = vmatpush1.msra.mxu0 0.0
    %1765 = vmatprep.subr.mxu0 0.0
    %1766 = vmatpush1.msra.mxu0 0.0
    %1767 = vmatprep.subr.mxu0 0.0
    %1768 = vmatpush1.msra.mxu0 0.0
    %1769 = vmatprep.subr.mxu0 0.0
    %1770 = vmatpush1.msra.mxu0 0.0
    %1771 = vmatprep.subr.mxu0 0.0
    %1772 = vmatpush1.msra.mxu0 0.0
    %1773 = vmatprep.subr.mxu0 0.0
    %1774 = vmatpush1.msra.mxu0 0.0
    %1775 = vmatprep.subr.mxu0 0.0
    %1776 = vmatpush1.msra.mxu0 0.0
    %1777 = vmatprep.subr.mxu0 0.0
    %1778 = vmatpush1.msra.mxu0 0.0
    %1779 = vmatprep.subr.mxu0 0.0
    %1780 = vmatpush1.msra.mxu0 0.0
    %1781 = vmatprep.subr.mxu0 0.0
    %1782 = vmatpush1.msra.mxu0 0.0
    %1783 = vmatprep.subr.mxu0 0.0
    %1784 = vmatpush1.msra.mxu0 0.0
    %1785 = vmatprep.subr.mxu0 0.0
    %1786 = vmatpush1.msra.mxu0 0.0
    %1787 = vmatprep.subr.mxu0 0.0
    %1788 = vmatpush1.msra.mxu0 0.0
    %1789 = vmatprep.subr.mxu0 0.0
    %1790 = vmatpush1.msra.mxu0 0.0
    %1791 = vmatprep.subr.mxu0 0.0
    %1792 = vmatpush1.msra.mxu0 0.0
    %1793 = vmatprep.subr.mxu0 0.0
    %1794 = vmatpush1.msra.mxu0 0.0
    %1795 = vmatprep.subr.mxu0 0.0
    %1796 = vmatpush1.msra.mxu0 0.0
    %1797 = vmatprep.subr.mxu0 0.0
    %1798 = vmatpush1.msra.mxu0 0.0
    %1799 = vmatprep.mubr.f32.mxu0 0.0
    %v1800 = vand.u32 %v176, 4294901760
    %1801 = vmatmul.mubr.f32.gmra.mrb[0].mxu0 %v1800
    %v1802 = vpop.f32.mrb[0].mxu0
    %v1803 = vadd.f32 %v1723, %v1802
    %v1804 = vpop.f32.mrb[0].mxu0
    %v1805 = vadd.f32 %v1725, %v1804
    %1806 = vdwg.mxu0
    %v1807 = vand.u32 %v118, 4294901760
    %1808 = vmatprep.subr.mxu0 %v1807
    %v1809 = vand.u32 %v117, 4294901760
    %1810 = vmatpush1.msra.mxu0 %v1809
    %v1811 = vand.u32 %v126, 4294901760
    %1812 = vmatprep.subr.mxu0 %v1811
    %v1813 = vand.u32 %v125, 4294901760
    %1814 = vmatpush1.msra.mxu0 %v1813
    %v1815 = vand.u32 %v134, 4294901760
    %1816 = vmatprep.subr.mxu0 %v1815
    %v1817 = vand.u32 %v133, 4294901760
    %1818 = vmatpush1.msra.mxu0 %v1817
    %v1819 = vand.u32 %v142, 4294901760
    %1820 = vmatprep.subr.mxu0 %v1819
    %v1821 = vand.u32 %v141, 4294901760
    %1822 = vmatpush1.msra.mxu0 %v1821
    %1823 = vmatprep.subr.mxu0 0.0
    %1824 = vmatpush1.msra.mxu0 0.0
    %1825 = vmatprep.subr.mxu0 0.0
    %1826 = vmatpush1.msra.mxu0 0.0
    %1827 = vmatprep.subr.mxu0 0.0
    %1828 = vmatpush1.msra.mxu0 0.0
    %1829 = vmatprep.subr.mxu0 0.0
    %1830 = vmatpush1.msra.mxu0 0.0
    %1831 = vmatprep.subr.mxu0 0.0
    %1832 = vmatpush1.msra.mxu0 0.0
    %1833 = vmatprep.subr.mxu0 0.0
    %1834 = vmatpush1.msra.mxu0 0.0
    %1835 = vmatprep.subr.mxu0 0.0
    %1836 = vmatpush1.msra.mxu0 0.0
    %1837 = vmatprep.subr.mxu0 0.0
    %1838 = vmatpush1.msra.mxu0 0.0
    %1839 = vmatprep.subr.mxu0 0.0
    %1840 = vmatpush1.msra.mxu0 0.0
    %1841 = vmatprep.subr.mxu0 0.0
    %1842 = vmatpush1.msra.mxu0 0.0
    %1843 = vmatprep.subr.mxu0 0.0
    %1844 = vmatpush1.msra.mxu0 0.0
    %1845 = vmatprep.subr.mxu0 0.0
    %1846 = vmatpush1.msra.mxu0 0.0
    %1847 = vmatprep.subr.mxu0 0.0
    %1848 = vmatpush1.msra.mxu0 0.0
    %1849 = vmatprep.subr.mxu0 0.0
    %1850 = vmatpush1.msra.mxu0 0.0
    %1851 = vmatprep.subr.mxu0 0.0
    %1852 = vmatpush1.msra.mxu0 0.0
    %1853 = vmatprep.subr.mxu0 0.0
    %1854 = vmatpush1.msra.mxu0 0.0
    %1855 = vmatprep.subr.mxu0 0.0
    %1856 = vmatpush1.msra.mxu0 0.0
    %1857 = vmatprep.subr.mxu0 0.0
    %1858 = vmatpush1.msra.mxu0 0.0
    %1859 = vmatprep.subr.mxu0 0.0
    %1860 = vmatpush1.msra.mxu0 0.0
    %1861 = vmatprep.subr.mxu0 0.0
    %1862 = vmatpush1.msra.mxu0 0.0
    %1863 = vmatprep.subr.mxu0 0.0
    %1864 = vmatpush1.msra.mxu0 0.0
    %1865 = vmatprep.subr.mxu0 0.0
    %1866 = vmatpush1.msra.mxu0 0.0
    %1867 = vmatprep.subr.mxu0 0.0
    %1868 = vmatpush1.msra.mxu0 0.0
    %1869 = vmatprep.subr.mxu0 0.0
    %1870 = vmatpush1.msra.mxu0 0.0
    %1871 = vmatprep.subr.mxu0 0.0
    %1872 = vmatpush1.msra.mxu0 0.0
    %1873 = vmatprep.subr.mxu0 0.0
    %1874 = vmatpush1.msra.mxu0 0.0
    %1875 = vmatprep.subr.mxu0 0.0
    %1876 = vmatpush1.msra.mxu0 0.0
    %1877 = vmatprep.subr.mxu0 0.0
    %1878 = vmatpush1.msra.mxu0 0.0
    %1879 = vmatprep.mubr.f32.mxu0 0.0
    %v1880 = vand.u32 %v176, 4294901760
    %v1881 = vsub.f32 %v176, %v1880
    %v1882 = vand.u32 %v1881, 4294901760
    %v1883 = vsub.f32 %v1881, %v1882
    %v1884 = vand.u32 %v1883, 4294901760
    %1885 = vmatmul.mubr.f32.gmra.mrb[0].mxu0 %v1884
    %v1886 = vpop.f32.mrb[0].mxu0
    %v1887 = vadd.f32 0.0, %v1886
    %v1888 = vpop.f32.mrb[0].mxu0
    %v1889 = vadd.f32 0.0, %v1888
    %1890 = vdwg.mxu0
    %v1891 = vand.u32 %v118, 4294901760
    %v1892 = vsub.f32 %v118, %v1891
    %v1893 = vand.u32 %v1892, 4294901760
    %v1894 = vsub.f32 %v1892, %v1893
    %v1895 = vand.u32 %v1894, 4294901760
    %1896 = vmatprep.subr.mxu0 %v1895
    %v1897 = vand.u32 %v117, 4294901760
    %v1898 = vsub.f32 %v117, %v1897
    %v1899 = vand.u32 %v1898, 4294901760
    %v1900 = vsub.f32 %v1898, %v1899
    %v1901 = vand.u32 %v1900, 4294901760
    %1902 = vmatpush1.msra.mxu0 %v1901
    %v1903 = vand.u32 %v126, 4294901760
    %v1904 = vsub.f32 %v126, %v1903
    %v1905 = vand.u32 %v1904, 4294901760
    %v1906 = vsub.f32 %v1904, %v1905
    %v1907 = vand.u32 %v1906, 4294901760
    %1908 = vmatprep.subr.mxu0 %v1907
    %v1909 = vand.u32 %v125, 4294901760
    %v1910 = vsub.f32 %v125, %v1909
    %v1911 = vand.u32 %v1910, 4294901760
    %v1912 = vsub.f32 %v1910, %v1911
    %v1913 = vand.u32 %v1912, 4294901760
    %1914 = vmatpush1.msra.mxu0 %v1913
    %v1915 = vand.u32 %v134, 4294901760
    %v1916 = vsub.f32 %v134, %v1915
    %v1917 = vand.u32 %v1916, 4294901760
    %v1918 = vsub.f32 %v1916, %v1917
    %v1919 = vand.u32 %v1918, 4294901760
    %1920 = vmatprep.subr.mxu0 %v1919
    %v1921 = vand.u32 %v133, 4294901760
    %v1922 = vsub.f32 %v133, %v1921
    %v1923 = vand.u32 %v1922, 4294901760
    %v1924 = vsub.f32 %v1922, %v1923
    %v1925 = vand.u32 %v1924, 4294901760
    %1926 = vmatpush1.msra.mxu0 %v1925
    %v1927 = vand.u32 %v142, 4294901760
    %v1928 = vsub.f32 %v142, %v1927
    %v1929 = vand.u32 %v1928, 4294901760
    %v1930 = vsub.f32 %v1928, %v1929
    %v1931 = vand.u32 %v1930, 4294901760
    %1932 = vmatprep.subr.mxu0 %v1931
    %v1933 = vand.u32 %v141, 4294901760
    %v1934 = vsub.f32 %v141, %v1933
    %v1935 = vand.u32 %v1934, 4294901760
    %v1936 = vsub.f32 %v1934, %v1935
    %v1937 = vand.u32 %v1936, 4294901760
    %1938 = vmatpush1.msra.mxu0 %v1937
    %1939 = vmatprep.subr.mxu0 0.0
    %1940 = vmatpush1.msra.mxu0 0.0
    %1941 = vmatprep.subr.mxu0 0.0
    %1942 = vmatpush1.msra.mxu0 0.0
    %1943 = vmatprep.subr.mxu0 0.0
    %1944 = vmatpush1.msra.mxu0 0.0
    %1945 = vmatprep.subr.mxu0 0.0
    %1946 = vmatpush1.msra.mxu0 0.0
    %1947 = vmatprep.subr.mxu0 0.0
    %1948 = vmatpush1.msra.mxu0 0.0
    %1949 = vmatprep.subr.mxu0 0.0
    %1950 = vmatpush1.msra.mxu0 0.0
    %1951 = vmatprep.subr.mxu0 0.0
    %1952 = vmatpush1.msra.mxu0 0.0
    %1953 = vmatprep.subr.mxu0 0.0
    %1954 = vmatpush1.msra.mxu0 0.0
    %1955 = vmatprep.subr.mxu0 0.0
    %1956 = vmatpush1.msra.mxu0 0.0
    %1957 = vmatprep.subr.mxu0 0.0
    %1958 = vmatpush1.msra.mxu0 0.0
    %1959 = vmatprep.subr.mxu0 0.0
    %1960 = vmatpush1.msra.mxu0 0.0
    %1961 = vmatprep.subr.mxu0 0.0
    %1962 = vmatpush1.msra.mxu0 0.0
    %1963 = vmatprep.subr.mxu0 0.0
    %1964 = vmatpush1.msra.mxu0 0.0
    %1965 = vmatprep.subr.mxu0 0.0
    %1966 = vmatpush1.msra.mxu0 0.0
    %1967 = vmatprep.subr.mxu0 0.0
    %1968 = vmatpush1.msra.mxu0 0.0
    %1969 = vmatprep.subr.mxu0 0.0
    %1970 = vmatpush1.msra.mxu0 0.0
    %1971 = vmatprep.subr.mxu0 0.0
    %1972 = vmatpush1.msra.mxu0 0.0
    %1973 = vmatprep.subr.mxu0 0.0
    %1974 = vmatpush1.msra.mxu0 0.0
    %1975 = vmatprep.subr.mxu0 0.0
    %1976 = vmatpush1.msra.mxu0 0.0
    %1977 = vmatprep.subr.mxu0 0.0
    %1978 = vmatpush1.msra.mxu0 0.0
    %1979 = vmatprep.subr.mxu0 0.0
    %1980 = vmatpush1.msra.mxu0 0.0
    %1981 = vmatprep.subr.mxu0 0.0
    %1982 = vmatpush1.msra.mxu0 0.0
    %1983 = vmatprep.subr.mxu0 0.0
    %1984 = vmatpush1.msra.mxu0 0.0
    %1985 = vmatprep.subr.mxu0 0.0
    %1986 = vmatpush1.msra.mxu0 0.0
    %1987 = vmatprep.subr.mxu0 0.0
    %1988 = vmatpush1.msra.mxu0 0.0
    %1989 = vmatprep.subr.mxu0 0.0
    %1990 = vmatpush1.msra.mxu0 0.0
    %1991 = vmatprep.subr.mxu0 0.0
    %1992 = vmatpush1.msra.mxu0 0.0
    %1993 = vmatprep.subr.mxu0 0.0
    %1994 = vmatpush1.msra.mxu0 0.0
    %1995 = vmatprep.mubr.f32.mxu0 0.0
    %v1996 = vand.u32 %v176, 4294901760
    %1997 = vmatmul.mubr.f32.gmra.mrb[0].mxu0 %v1996
    %v1998 = vpop.f32.mrb[0].mxu0
    %v1999 = vadd.f32 %v1887, %v1998
    %v2000 = vpop.f32.mrb[0].mxu0
    %v2001 = vadd.f32 %v1889, %v2000
    %2002 = vdwg.mxu0
    %v2003 = vand.u32 %v118, 4294901760
    %v2004 = vsub.f32 %v118, %v2003
    %2005 = vmatprep.subr.mxu0 %v2004
    %v2006 = vand.u32 %v117, 4294901760
    %v2007 = vsub.f32 %v117, %v2006
    %2008 = vmatpush1.msra.mxu0 %v2007
    %v2009 = vand.u32 %v126, 4294901760
    %v2010 = vsub.f32 %v126, %v2009
    %2011 = vmatprep.subr.mxu0 %v2010
    %v2012 = vand.u32 %v125, 4294901760
    %v2013 = vsub.f32 %v125, %v2012
    %2014 = vmatpush1.msra.mxu0 %v2013
    %v2015 = vand.u32 %v134, 4294901760
    %v2016 = vsub.f32 %v134, %v2015
    %2017 = vmatprep.subr.mxu0 %v2016
    %v2018 = vand.u32 %v133, 4294901760
    %v2019 = vsub.f32 %v133, %v2018
    %2020 = vmatpush1.msra.mxu0 %v2019
    %v2021 = vand.u32 %v142, 4294901760
    %v2022 = vsub.f32 %v142, %v2021
    %2023 = vmatprep.subr.mxu0 %v2022
    %v2024 = vand.u32 %v141, 4294901760
    %v2025 = vsub.f32 %v141, %v2024
    %2026 = vmatpush1.msra.mxu0 %v2025
    %2027 = vmatprep.subr.mxu0 0.0
    %2028 = vmatpush1.msra.mxu0 0.0
    %2029 = vmatprep.subr.mxu0 0.0
    %2030 = vmatpush1.msra.mxu0 0.0
    %2031 = vmatprep.subr.mxu0 0.0
    %2032 = vmatpush1.msra.mxu0 0.0
    %2033 = vmatprep.subr.mxu0 0.0
    %2034 = vmatpush1.msra.mxu0 0.0
    %2035 = vmatprep.subr.mxu0 0.0
    %2036 = vmatpush1.msra.mxu0 0.0
    %2037 = vmatprep.subr.mxu0 0.0
    %2038 = vmatpush1.msra.mxu0 0.0
    %2039 = vmatprep.subr.mxu0 0.0
    %2040 = vmatpush1.msra.mxu0 0.0
    %2041 = vmatprep.subr.mxu0 0.0
    %2042 = vmatpush1.msra.mxu0 0.0
    %2043 = vmatprep.subr.mxu0 0.0
    %2044 = vmatpush1.msra.mxu0 0.0
    %2045 = vmatprep.subr.mxu0 0.0
    %2046 = vmatpush1.msra.mxu0 0.0
    %2047 = vmatprep.subr.mxu0 0.0
    %2048 = vmatpush1.msra.mxu0 0.0
    %2049 = vmatprep.subr.mxu0 0.0
    %2050 = vmatpush1.msra.mxu0 0.0
    %2051 = vmatprep.subr.mxu0 0.0
    %2052 = vmatpush1.msra.mxu0 0.0
    %2053 = vmatprep.subr.mxu0 0.0
    %2054 = vmatpush1.msra.mxu0 0.0
    %2055 = vmatprep.subr.mxu0 0.0
    %2056 = vmatpush1.msra.mxu0 0.0
    %2057 = vmatprep.subr.mxu0 0.0
    %2058 = vmatpush1.msra.mxu0 0.0
    %2059 = vmatprep.subr.mxu0 0.0
    %2060 = vmatpush1.msra.mxu0 0.0
    %2061 = vmatprep.subr.mxu0 0.0
    %2062 = vmatpush1.msra.mxu0 0.0
    %2063 = vmatprep.subr.mxu0 0.0
    %2064 = vmatpush1.msra.mxu0 0.0
    %2065 = vmatprep.subr.mxu0 0.0
    %2066 = vmatpush1.msra.mxu0 0.0
    %2067 = vmatprep.subr.mxu0 0.0
    %2068 = vmatpush1.msra.mxu0 0.0
    %2069 = vmatprep.subr.mxu0 0.0
    %2070 = vmatpush1.msra.mxu0 0.0
    %2071 = vmatprep.subr.mxu0 0.0
    %2072 = vmatpush1.msra.mxu0 0.0
    %2073 = vmatprep.subr.mxu0 0.0
    %2074 = vmatpush1.msra.mxu0 0.0
    %2075 = vmatprep.subr.mxu0 0.0
    %2076 = vmatpush1.msra.mxu0 0.0
    %2077 = vmatprep.subr.mxu0 0.0
    %2078 = vmatpush1.msra.mxu0 0.0
    %2079 = vmatprep.subr.mxu0 0.0
    %2080 = vmatpush1.msra.mxu0 0.0
    %2081 = vmatprep.subr.mxu0 0.0
    %2082 = vmatpush1.msra.mxu0 0.0
    %2083 = vmatprep.mubr.f32.mxu0 0.0
    %v2084 = vand.u32 %v176, 4294901760
    %v2085 = vsub.f32 %v176, %v2084
    %2086 = vmatmul.mubr.f32.gmra.mrb[0].mxu0 %v2085
    %v2087 = vpop.f32.mrb[0].mxu0
    %v2088 = vadd.f32 %v1999, %v2087
    %v2089 = vpop.f32.mrb[0].mxu0
    %v2090 = vadd.f32 %v2001, %v2089
    %2091 = vdwg.mxu0
    %v2092 = vand.u32 %v118, 4294901760
    %2093 = vmatprep.subr.mxu0 %v2092
    %v2094 = vand.u32 %v117, 4294901760
    %2095 = vmatpush1.msra.mxu0 %v2094
    %v2096 = vand.u32 %v126, 4294901760
    %2097 = vmatprep.subr.mxu0 %v2096
    %v2098 = vand.u32 %v125, 4294901760
    %2099 = vmatpush1.msra.mxu0 %v2098
    %v2100 = vand.u32 %v134, 4294901760
    %2101 = vmatprep.subr.mxu0 %v2100
    %v2102 = vand.u32 %v133, 4294901760
    %2103 = vmatpush1.msra.mxu0 %v2102
    %v2104 = vand.u32 %v142, 4294901760
    %2105 = vmatprep.subr.mxu0 %v2104
    %v2106 = vand.u32 %v141, 4294901760
    %2107 = vmatpush1.msra.mxu0 %v2106
    %2108 = vmatprep.subr.mxu0 0.0
    %2109 = vmatpush1.msra.mxu0 0.0
    %2110 = vmatprep.subr.mxu0 0.0
    %2111 = vmatpush1.msra.mxu0 0.0
    %2112 = vmatprep.subr.mxu0 0.0
    %2113 = vmatpush1.msra.mxu0 0.0
    %2114 = vmatprep.subr.mxu0 0.0
    %2115 = vmatpush1.msra.mxu0 0.0
    %2116 = vmatprep.subr.mxu0 0.0
    %2117 = vmatpush1.msra.mxu0 0.0
    %2118 = vmatprep.subr.mxu0 0.0
    %2119 = vmatpush1.msra.mxu0 0.0
    %2120 = vmatprep.subr.mxu0 0.0
    %2121 = vmatpush1.msra.mxu0 0.0
    %2122 = vmatprep.subr.mxu0 0.0
    %2123 = vmatpush1.msra.mxu0 0.0
    %2124 = vmatprep.subr.mxu0 0.0
    %2125 = vmatpush1.msra.mxu0 0.0
    %2126 = vmatprep.subr.mxu0 0.0
    %2127 = vmatpush1.msra.mxu0 0.0
    %2128 = vmatprep.subr.mxu0 0.0
    %2129 = vmatpush1.msra.mxu0 0.0
    %2130 = vmatprep.subr.mxu0 0.0
    %2131 = vmatpush1.msra.mxu0 0.0
    %2132 = vmatprep.subr.mxu0 0.0
    %2133 = vmatpush1.msra.mxu0 0.0
    %2134 = vmatprep.subr.mxu0 0.0
    %2135 = vmatpush1.msra.mxu0 0.0
    %2136 = vmatprep.subr.mxu0 0.0
    %2137 = vmatpush1.msra.mxu0 0.0
    %2138 = vmatprep.subr.mxu0 0.0
    %2139 = vmatpush1.msra.mxu0 0.0
    %2140 = vmatprep.subr.mxu0 0.0
    %2141 = vmatpush1.msra.mxu0 0.0
    %2142 = vmatprep.subr.mxu0 0.0
    %2143 = vmatpush1.msra.mxu0 0.0
    %2144 = vmatprep.subr.mxu0 0.0
    %2145 = vmatpush1.msra.mxu0 0.0
    %2146 = vmatprep.subr.mxu0 0.0
    %2147 = vmatpush1.msra.mxu0 0.0
    %2148 = vmatprep.subr.mxu0 0.0
    %2149 = vmatpush1.msra.mxu0 0.0
    %2150 = vmatprep.subr.mxu0 0.0
    %2151 = vmatpush1.msra.mxu0 0.0
    %2152 = vmatprep.subr.mxu0 0.0
    %2153 = vmatpush1.msra.mxu0 0.0
    %2154 = vmatprep.subr.mxu0 0.0
    %2155 = vmatpush1.msra.mxu0 0.0
    %2156 = vmatprep.subr.mxu0 0.0
    %2157 = vmatpush1.msra.mxu0 0.0
    %2158 = vmatprep.subr.mxu0 0.0
    %2159 = vmatpush1.msra.mxu0 0.0
    %2160 = vmatprep.subr.mxu0 0.0
    %2161 = vmatpush1.msra.mxu0 0.0
    %2162 = vmatprep.subr.mxu0 0.0
    %2163 = vmatpush1.msra.mxu0 0.0
    %2164 = vmatprep.mubr.f32.mxu0 0.0
    %v2165 = vand.u32 %v176, 4294901760
    %v2166 = vsub.f32 %v176, %v2165
    %v2167 = vand.u32 %v2166, 4294901760
    %2168 = vmatmul.mubr.f32.gmra.mrb[0].mxu0 %v2167
    %v2169 = vpop.f32.mrb[0].mxu0
    %v2170 = vadd.f32 %v2088, %v2169
    %v2171 = vpop.f32.mrb[0].mxu0
    %v2172 = vadd.f32 %v2090, %v2171
    %2173 = vdwg.mxu0
    %v2174 = vand.u32 %v118, 4294901760
    %v2175 = vsub.f32 %v118, %v2174
    %v2176 = vand.u32 %v2175, 4294901760
    %2177 = vmatprep.subr.mxu0 %v2176
    %v2178 = vand.u32 %v117, 4294901760
    %v2179 = vsub.f32 %v117, %v2178
    %v2180 = vand.u32 %v2179, 4294901760
    %2181 = vmatpush1.msra.mxu0 %v2180
    %v2182 = vand.u32 %v126, 4294901760
    %v2183 = vsub.f32 %v126, %v2182
    %v2184 = vand.u32 %v2183, 4294901760
    %2185 = vmatprep.subr.mxu0 %v2184
    %v2186 = vand.u32 %v125, 4294901760
    %v2187 = vsub.f32 %v125, %v2186
    %v2188 = vand.u32 %v2187, 4294901760
    %2189 = vmatpush1.msra.mxu0 %v2188
    %v2190 = vand.u32 %v134, 4294901760
    %v2191 = vsub.f32 %v134, %v2190
    %v2192 = vand.u32 %v2191, 4294901760
    %2193 = vmatprep.subr.mxu0 %v2192
    %v2194 = vand.u32 %v133, 4294901760
    %v2195 = vsub.f32 %v133, %v2194
    %v2196 = vand.u32 %v2195, 4294901760
    %2197 = vmatpush1.msra.mxu0 %v2196
    %v2198 = vand.u32 %v142, 4294901760
    %v2199 = vsub.f32 %v142, %v2198
    %v2200 = vand.u32 %v2199, 4294901760
    %2201 = vmatprep.subr.mxu0 %v2200
    %v2202 = vand.u32 %v141, 4294901760
    %v2203 = vsub.f32 %v141, %v2202
    %v2204 = vand.u32 %v2203, 4294901760
    %2205 = vmatpush1.msra.mxu0 %v2204
    %2206 = vmatprep.subr.mxu0 0.0
    %2207 = vmatpush1.msra.mxu0 0.0
    %2208 = vmatprep.subr.mxu0 0.0
    %2209 = vmatpush1.msra.mxu0 0.0
    %2210 = vmatprep.subr.mxu0 0.0
    %2211 = vmatpush1.msra.mxu0 0.0
    %2212 = vmatprep.subr.mxu0 0.0
    %2213 = vmatpush1.msra.mxu0 0.0
    %2214 = vmatprep.subr.mxu0 0.0
    %2215 = vmatpush1.msra.mxu0 0.0
    %2216 = vmatprep.subr.mxu0 0.0
    %2217 = vmatpush1.msra.mxu0 0.0
    %2218 = vmatprep.subr.mxu0 0.0
    %2219 = vmatpush1.msra.mxu0 0.0
    %2220 = vmatprep.subr.mxu0 0.0
    %2221 = vmatpush1.msra.mxu0 0.0
    %2222 = vmatprep.subr.mxu0 0.0
    %2223 = vmatpush1.msra.mxu0 0.0
    %2224 = vmatprep.subr.mxu0 0.0
    %2225 = vmatpush1.msra.mxu0 0.0
    %2226 = vmatprep.subr.mxu0 0.0
    %2227 = vmatpush1.msra.mxu0 0.0
    %2228 = vmatprep.subr.mxu0 0.0
    %2229 = vmatpush1.msra.mxu0 0.0
    %2230 = vmatprep.subr.mxu0 0.0
    %2231 = vmatpush1.msra.mxu0 0.0
    %2232 = vmatprep.subr.mxu0 0.0
    %2233 = vmatpush1.msra.mxu0 0.0
    %2234 = vmatprep.subr.mxu0 0.0
    %2235 = vmatpush1.msra.mxu0 0.0
    %2236 = vmatprep.subr.mxu0 0.0
    %2237 = vmatpush1.msra.mxu0 0.0
    %2238 = vmatprep.subr.mxu0 0.0
    %2239 = vmatpush1.msra.mxu0 0.0
    %2240 = vmatprep.subr.mxu0 0.0
    %2241 = vmatpush1.msra.mxu0 0.0
    %2242 = vmatprep.subr.mxu0 0.0
    %2243 = vmatpush1.msra.mxu0 0.0
    %2244 = vmatprep.subr.mxu0 0.0
    %2245 = vmatpush1.msra.mxu0 0.0
    %2246 = vmatprep.subr.mxu0 0.0
    %2247 = vmatpush1.msra.mxu0 0.0
    %2248 = vmatprep.subr.mxu0 0.0
    %2249 = vmatpush1.msra.mxu0 0.0
    %2250 = vmatprep.subr.mxu0 0.0
    %2251 = vmatpush1.msra.mxu0 0.0
    %2252 = vmatprep.subr.mxu0 0.0
    %2253 = vmatpush1.msra.mxu0 0.0
    %2254 = vmatprep.subr.mxu0 0.0
    %2255 = vmatpush1.msra.mxu0 0.0
    %2256 = vmatprep.subr.mxu0 0.0
    %2257 = vmatpush1.msra.mxu0 0.0
    %2258 = vmatprep.subr.mxu0 0.0
    %2259 = vmatpush1.msra.mxu0 0.0
    %2260 = vmatprep.subr.mxu0 0.0
    %2261 = vmatpush1.msra.mxu0 0.0
    %2262 = vmatprep.mubr.f32.mxu0 0.0
    %v2263 = vand.u32 %v176, 4294901760
    %2264 = vmatmul.mubr.f32.gmra.mrb[0].mxu0 %v2263
    %v2265 = vpop.f32.mrb[0].mxu0
    %v2266 = vadd.f32 %v2170, %v2265
    %v2267 = vpop.f32.mrb[0].mxu0
    %v2268 = vadd.f32 %v2172, %v2267
    %2269 = vdwg.mxu0
    %v2270 = vand.u32 %v118, 4294901760
    %2271 = vmatprep.subr.mxu0 %v2270
    %v2272 = vand.u32 %v117, 4294901760
    %2273 = vmatpush1.msra.mxu0 %v2272
    %v2274 = vand.u32 %v126, 4294901760
    %2275 = vmatprep.subr.mxu0 %v2274
    %v2276 = vand.u32 %v125, 4294901760
    %2277 = vmatpush1.msra.mxu0 %v2276
    %v2278 = vand.u32 %v134, 4294901760
    %2279 = vmatprep.subr.mxu0 %v2278
    %v2280 = vand.u32 %v133, 4294901760
    %2281 = vmatpush1.msra.mxu0 %v2280
    %v2282 = vand.u32 %v142, 4294901760
    %2283 = vmatprep.subr.mxu0 %v2282
    %v2284 = vand.u32 %v141, 4294901760
    %2285 = vmatpush1.msra.mxu0 %v2284
    %2286 = vmatprep.subr.mxu0 0.0
    %2287 = vmatpush1.msra.mxu0 0.0
    %2288 = vmatprep.subr.mxu0 0.0
    %2289 = vmatpush1.msra.mxu0 0.0
    %2290 = vmatprep.subr.mxu0 0.0
    %2291 = vmatpush1.msra.mxu0 0.0
    %2292 = vmatprep.subr.mxu0 0.0
    %2293 = vmatpush1.msra.mxu0 0.0
    %2294 = vmatprep.subr.mxu0 0.0
    %2295 = vmatpush1.msra.mxu0 0.0
    %2296 = vmatprep.subr.mxu0 0.0
    %2297 = vmatpush1.msra.mxu0 0.0
    %2298 = vmatprep.subr.mxu0 0.0
    %2299 = vmatpush1.msra.mxu0 0.0
    %2300 = vmatprep.subr.mxu0 0.0
    %2301 = vmatpush1.msra.mxu0 0.0
    %2302 = vmatprep.subr.mxu0 0.0
    %2303 = vmatpush1.msra.mxu0 0.0
    %2304 = vmatprep.subr.mxu0 0.0
    %2305 = vmatpush1.msra.mxu0 0.0
    %2306 = vmatprep.subr.mxu0 0.0
    %2307 = vmatpush1.msra.mxu0 0.0
    %2308 = vmatprep.subr.mxu0 0.0
    %2309 = vmatpush1.msra.mxu0 0.0
    %2310 = vmatprep.subr.mxu0 0.0
    %2311 = vmatpush1.msra.mxu0 0.0
    %2312 = vmatprep.subr.mxu0 0.0
    %2313 = vmatpush1.msra.mxu0 0.0
    %2314 = vmatprep.subr.mxu0 0.0
    %2315 = vmatpush1.msra.mxu0 0.0
    %2316 = vmatprep.subr.mxu0 0.0
    %2317 = vmatpush1.msra.mxu0 0.0
    %2318 = vmatprep.subr.mxu0 0.0
    %2319 = vmatpush1.msra.mxu0 0.0
    %2320 = vmatprep.subr.mxu0 0.0
    %2321 = vmatpush1.msra.mxu0 0.0
    %2322 = vmatprep.subr.mxu0 0.0
    %2323 = vmatpush1.msra.mxu0 0.0
    %2324 = vmatprep.subr.mxu0 0.0
    %2325 = vmatpush1.msra.mxu0 0.0
    %2326 = vmatprep.subr.mxu0 0.0
    %2327 = vmatpush1.msra.mxu0 0.0
    %2328 = vmatprep.subr.mxu0 0.0
    %2329 = vmatpush1.msra.mxu0 0.0
    %2330 = vmatprep.subr.mxu0 0.0
    %2331 = vmatpush1.msra.mxu0 0.0
    %2332 = vmatprep.subr.mxu0 0.0
    %2333 = vmatpush1.msra.mxu0 0.0
    %2334 = vmatprep.subr.mxu0 0.0
    %2335 = vmatpush1.msra.mxu0 0.0
    %2336 = vmatprep.subr.mxu0 0.0
    %2337 = vmatpush1.msra.mxu0 0.0
    %2338 = vmatprep.subr.mxu0 0.0
    %2339 = vmatpush1.msra.mxu0 0.0
    %2340 = vmatprep.subr.mxu0 0.0
    %2341 = vmatpush1.msra.mxu0 0.0
    %2342 = vmatprep.mubr.f32.mxu0 0.0
    %v2343 = vand.u32 %v176, 4294901760
    %2344 = vmatmul.mubr.f32.gmra.mrb[0].mxu0 %v2343
    %v2345 = vpop.f32.mrb[0].mxu0
    %v2346 = vadd.f32 %v2266, %v2345
    %v2347 = vpop.f32.mrb[0].mxu0
    %v2348 = vadd.f32 %v2268, %v2347
    %2349 = vdwg.mxu0
    %v2351 = vsel %vm102, %v94, 0
    %v2353 = vand.u32 %v112, 4294901760
    %2354 = vmatprep.subr.mxu0 %v2353
    %v2355 = vand.u32 %v111, 4294901760
    %2356 = vmatpush1.msra.mxu0 %v2355
    %v2357 = vand.u32 %v120, 4294901760
    %2358 = vmatprep.subr.mxu0 %v2357
    %v2359 = vand.u32 %v119, 4294901760
    %2360 = vmatpush1.msra.mxu0 %v2359
    %v2361 = vand.u32 %v128, 4294901760
    %2362 = vmatprep.subr.mxu0 %v2361
    %v2363 = vand.u32 %v127, 4294901760
    %2364 = vmatpush1.msra.mxu0 %v2363
    %v2365 = vand.u32 %v136, 4294901760
    %2366 = vmatprep.subr.mxu0 %v2365
    %v2367 = vand.u32 %v135, 4294901760
    %2368 = vmatpush1.msra.mxu0 %v2367
    %2369 = vmatprep.subr.mxu0 0.0
    %2370 = vmatpush1.msra.mxu0 0.0
    %2371 = vmatprep.subr.mxu0 0.0
    %2372 = vmatpush1.msra.mxu0 0.0
    %2373 = vmatprep.subr.mxu0 0.0
    %2374 = vmatpush1.msra.mxu0 0.0
    %2375 = vmatprep.subr.mxu0 0.0
    %2376 = vmatpush1.msra.mxu0 0.0
    %2377 = vmatprep.subr.mxu0 0.0
    %2378 = vmatpush1.msra.mxu0 0.0
    %2379 = vmatprep.subr.mxu0 0.0
    %2380 = vmatpush1.msra.mxu0 0.0
    %2381 = vmatprep.subr.mxu0 0.0
    %2382 = vmatpush1.msra.mxu0 0.0
    %2383 = vmatprep.subr.mxu0 0.0
    %2384 = vmatpush1.msra.mxu0 0.0
    %2385 = vmatprep.subr.mxu0 0.0
    %2386 = vmatpush1.msra.mxu0 0.0
    %2387 = vmatprep.subr.mxu0 0.0
    %2388 = vmatpush1.msra.mxu0 0.0
    %2389 = vmatprep.subr.mxu0 0.0
    %2390 = vmatpush1.msra.mxu0 0.0
    %2391 = vmatprep.subr.mxu0 0.0
    %2392 = vmatpush1.msra.mxu0 0.0
    %2393 = vmatprep.subr.mxu0 0.0
    %2394 = vmatpush1.msra.mxu0 0.0
    %2395 = vmatprep.subr.mxu0 0.0
    %2396 = vmatpush1.msra.mxu0 0.0
    %2397 = vmatprep.subr.mxu0 0.0
    %2398 = vmatpush1.msra.mxu0 0.0
    %2399 = vmatprep.subr.mxu0 0.0
    %2400 = vmatpush1.msra.mxu0 0.0
    %2401 = vmatprep.subr.mxu0 0.0
    %2402 = vmatpush1.msra.mxu0 0.0
    %2403 = vmatprep.subr.mxu0 0.0
    %2404 = vmatpush1.msra.mxu0 0.0
    %2405 = vmatprep.subr.mxu0 0.0
    %2406 = vmatpush1.msra.mxu0 0.0
    %2407 = vmatprep.subr.mxu0 0.0
    %2408 = vmatpush1.msra.mxu0 0.0
    %2409 = vmatprep.subr.mxu0 0.0
    %2410 = vmatpush1.msra.mxu0 0.0
    %2411 = vmatprep.subr.mxu0 0.0
    %2412 = vmatpush1.msra.mxu0 0.0
    %2413 = vmatprep.subr.mxu0 0.0
    %2414 = vmatpush1.msra.mxu0 0.0
    %2415 = vmatprep.subr.mxu0 0.0
    %2416 = vmatpush1.msra.mxu0 0.0
    %2417 = vmatprep.subr.mxu0 0.0
    %2418 = vmatpush1.msra.mxu0 0.0
    %2419 = vmatprep.subr.mxu0 0.0
    %2420 = vmatpush1.msra.mxu0 0.0
    %2421 = vmatprep.subr.mxu0 0.0
    %2422 = vmatpush1.msra.mxu0 0.0
    %2423 = vmatprep.subr.mxu0 0.0
    %2424 = vmatpush1.msra.mxu0 0.0
    %2425 = vmatprep.mubr.f32.mxu0 0.0
    %v2426 = vand.u32 %v2351, 4294901760
    %v2427 = vsub.f32 %v2351, %v2426
    %v2428 = vand.u32 %v2427, 4294901760
    %v2429 = vsub.f32 %v2427, %v2428
    %v2430 = vand.u32 %v2429, 4294901760
    %2431 = vmatmul.mubr.f32.gmra.mrb[0].mxu0 %v2430
    %v2432 = vpop.f32.mrb[0].mxu0
    %v2433 = vadd.f32 0.0, %v2432
    %v2434 = vpop.f32.mrb[0].mxu0
    %v2435 = vadd.f32 0.0, %v2434
    %2436 = vdwg.mxu0
    %v2437 = vand.u32 %v112, 4294901760
    %v2438 = vsub.f32 %v112, %v2437
    %v2439 = vand.u32 %v2438, 4294901760
    %v2440 = vsub.f32 %v2438, %v2439
    %v2441 = vand.u32 %v2440, 4294901760
    %2442 = vmatprep.subr.mxu0 %v2441
    %v2443 = vand.u32 %v111, 4294901760
    %v2444 = vsub.f32 %v111, %v2443
    %v2445 = vand.u32 %v2444, 4294901760
    %v2446 = vsub.f32 %v2444, %v2445
    %v2447 = vand.u32 %v2446, 4294901760
    %2448 = vmatpush1.msra.mxu0 %v2447
    %v2449 = vand.u32 %v120, 4294901760
    %v2450 = vsub.f32 %v120, %v2449
    %v2451 = vand.u32 %v2450, 4294901760
    %v2452 = vsub.f32 %v2450, %v2451
    %v2453 = vand.u32 %v2452, 4294901760
    %2454 = vmatprep.subr.mxu0 %v2453
    %v2455 = vand.u32 %v119, 4294901760
    %v2456 = vsub.f32 %v119, %v2455
    %v2457 = vand.u32 %v2456, 4294901760
    %v2458 = vsub.f32 %v2456, %v2457
    %v2459 = vand.u32 %v2458, 4294901760
    %2460 = vmatpush1.msra.mxu0 %v2459
    %v2461 = vand.u32 %v128, 4294901760
    %v2462 = vsub.f32 %v128, %v2461
    %v2463 = vand.u32 %v2462, 4294901760
    %v2464 = vsub.f32 %v2462, %v2463
    %v2465 = vand.u32 %v2464, 4294901760
    %2466 = vmatprep.subr.mxu0 %v2465
    %v2467 = vand.u32 %v127, 4294901760
    %v2468 = vsub.f32 %v127, %v2467
    %v2469 = vand.u32 %v2468, 4294901760
    %v2470 = vsub.f32 %v2468, %v2469
    %v2471 = vand.u32 %v2470, 4294901760
    %2472 = vmatpush1.msra.mxu0 %v2471
    %v2473 = vand.u32 %v136, 4294901760
    %v2474 = vsub.f32 %v136, %v2473
    %v2475 = vand.u32 %v2474, 4294901760
    %v2476 = vsub.f32 %v2474, %v2475
    %v2477 = vand.u32 %v2476, 4294901760
    %2478 = vmatprep.subr.mxu0 %v2477
    %v2479 = vand.u32 %v135, 4294901760
    %v2480 = vsub.f32 %v135, %v2479
    %v2481 = vand.u32 %v2480, 4294901760
    %v2482 = vsub.f32 %v2480, %v2481
    %v2483 = vand.u32 %v2482, 4294901760
    %2484 = vmatpush1.msra.mxu0 %v2483
    %2485 = vmatprep.subr.mxu0 0.0
    %2486 = vmatpush1.msra.mxu0 0.0
    %2487 = vmatprep.subr.mxu0 0.0
    %2488 = vmatpush1.msra.mxu0 0.0
    %2489 = vmatprep.subr.mxu0 0.0
    %2490 = vmatpush1.msra.mxu0 0.0
    %2491 = vmatprep.subr.mxu0 0.0
    %2492 = vmatpush1.msra.mxu0 0.0
    %2493 = vmatprep.subr.mxu0 0.0
    %2494 = vmatpush1.msra.mxu0 0.0
    %2495 = vmatprep.subr.mxu0 0.0
    %2496 = vmatpush1.msra.mxu0 0.0
    %2497 = vmatprep.subr.mxu0 0.0
    %2498 = vmatpush1.msra.mxu0 0.0
    %2499 = vmatprep.subr.mxu0 0.0
    %2500 = vmatpush1.msra.mxu0 0.0
    %2501 = vmatprep.subr.mxu0 0.0
    %2502 = vmatpush1.msra.mxu0 0.0
    %2503 = vmatprep.subr.mxu0 0.0
    %2504 = vmatpush1.msra.mxu0 0.0
    %2505 = vmatprep.subr.mxu0 0.0
    %2506 = vmatpush1.msra.mxu0 0.0
    %2507 = vmatprep.subr.mxu0 0.0
    %2508 = vmatpush1.msra.mxu0 0.0
    %2509 = vmatprep.subr.mxu0 0.0
    %2510 = vmatpush1.msra.mxu0 0.0
    %2511 = vmatprep.subr.mxu0 0.0
    %2512 = vmatpush1.msra.mxu0 0.0
    %2513 = vmatprep.subr.mxu0 0.0
    %2514 = vmatpush1.msra.mxu0 0.0
    %2515 = vmatprep.subr.mxu0 0.0
    %2516 = vmatpush1.msra.mxu0 0.0
    %2517 = vmatprep.subr.mxu0 0.0
    %2518 = vmatpush1.msra.mxu0 0.0
    %2519 = vmatprep.subr.mxu0 0.0
    %2520 = vmatpush1.msra.mxu0 0.0
    %2521 = vmatprep.subr.mxu0 0.0
    %2522 = vmatpush1.msra.mxu0 0.0
    %2523 = vmatprep.subr.mxu0 0.0
    %2524 = vmatpush1.msra.mxu0 0.0
    %2525 = vmatprep.subr.mxu0 0.0
    %2526 = vmatpush1.msra.mxu0 0.0
    %2527 = vmatprep.subr.mxu0 0.0
    %2528 = vmatpush1.msra.mxu0 0.0
    %2529 = vmatprep.subr.mxu0 0.0
    %2530 = vmatpush1.msra.mxu0 0.0
    %2531 = vmatprep.subr.mxu0 0.0
    %2532 = vmatpush1.msra.mxu0 0.0
    %2533 = vmatprep.subr.mxu0 0.0
    %2534 = vmatpush1.msra.mxu0 0.0
    %2535 = vmatprep.subr.mxu0 0.0
    %2536 = vmatpush1.msra.mxu0 0.0
    %2537 = vmatprep.subr.mxu0 0.0
    %2538 = vmatpush1.msra.mxu0 0.0
    %2539 = vmatprep.subr.mxu0 0.0
    %2540 = vmatpush1.msra.mxu0 0.0
    %2541 = vmatprep.mubr.f32.mxu0 0.0
    %v2542 = vand.u32 %v2351, 4294901760
    %2543 = vmatmul.mubr.f32.gmra.mrb[0].mxu0 %v2542
    %v2544 = vpop.f32.mrb[0].mxu0
    %v2545 = vadd.f32 %v2433, %v2544
    %v2546 = vpop.f32.mrb[0].mxu0
    %v2547 = vadd.f32 %v2435, %v2546
    %2548 = vdwg.mxu0
    %v2549 = vand.u32 %v112, 4294901760
    %v2550 = vsub.f32 %v112, %v2549
    %2551 = vmatprep.subr.mxu0 %v2550
    %v2552 = vand.u32 %v111, 4294901760
    %v2553 = vsub.f32 %v111, %v2552
    %2554 = vmatpush1.msra.mxu0 %v2553
    %v2555 = vand.u32 %v120, 4294901760
    %v2556 = vsub.f32 %v120, %v2555
    %2557 = vmatprep.subr.mxu0 %v2556
    %v2558 = vand.u32 %v119, 4294901760
    %v2559 = vsub.f32 %v119, %v2558
    %2560 = vmatpush1.msra.mxu0 %v2559
    %v2561 = vand.u32 %v128, 4294901760
    %v2562 = vsub.f32 %v128, %v2561
    %2563 = vmatprep.subr.mxu0 %v2562
    %v2564 = vand.u32 %v127, 4294901760
    %v2565 = vsub.f32 %v127, %v2564
    %2566 = vmatpush1.msra.mxu0 %v2565
    %v2567 = vand.u32 %v136, 4294901760
    %v2568 = vsub.f32 %v136, %v2567
    %2569 = vmatprep.subr.mxu0 %v2568
    %v2570 = vand.u32 %v135, 4294901760
    %v2571 = vsub.f32 %v135, %v2570
    %2572 = vmatpush1.msra.mxu0 %v2571
    %2573 = vmatprep.subr.mxu0 0.0
    %2574 = vmatpush1.msra.mxu0 0.0
    %2575 = vmatprep.subr.mxu0 0.0
    %2576 = vmatpush1.msra.mxu0 0.0
    %2577 = vmatprep.subr.mxu0 0.0
    %2578 = vmatpush1.msra.mxu0 0.0
    %2579 = vmatprep.subr.mxu0 0.0
    %2580 = vmatpush1.msra.mxu0 0.0
    %2581 = vmatprep.subr.mxu0 0.0
    %2582 = vmatpush1.msra.mxu0 0.0
    %2583 = vmatprep.subr.mxu0 0.0
    %2584 = vmatpush1.msra.mxu0 0.0
    %2585 = vmatprep.subr.mxu0 0.0
    %2586 = vmatpush1.msra.mxu0 0.0
    %2587 = vmatprep.subr.mxu0 0.0
    %2588 = vmatpush1.msra.mxu0 0.0
    %2589 = vmatprep.subr.mxu0 0.0
    %2590 = vmatpush1.msra.mxu0 0.0
    %2591 = vmatprep.subr.mxu0 0.0
    %2592 = vmatpush1.msra.mxu0 0.0
    %2593 = vmatprep.subr.mxu0 0.0
    %2594 = vmatpush1.msra.mxu0 0.0
    %2595 = vmatprep.subr.mxu0 0.0
    %2596 = vmatpush1.msra.mxu0 0.0
    %2597 = vmatprep.subr.mxu0 0.0
    %2598 = vmatpush1.msra.mxu0 0.0
    %2599 = vmatprep.subr.mxu0 0.0
    %2600 = vmatpush1.msra.mxu0 0.0
    %2601 = vmatprep.subr.mxu0 0.0
    %2602 = vmatpush1.msra.mxu0 0.0
    %2603 = vmatprep.subr.mxu0 0.0
    %2604 = vmatpush1.msra.mxu0 0.0
    %2605 = vmatprep.subr.mxu0 0.0
    %2606 = vmatpush1.msra.mxu0 0.0
    %2607 = vmatprep.subr.mxu0 0.0
    %2608 = vmatpush1.msra.mxu0 0.0
    %2609 = vmatprep.subr.mxu0 0.0
    %2610 = vmatpush1.msra.mxu0 0.0
    %2611 = vmatprep.subr.mxu0 0.0
    %2612 = vmatpush1.msra.mxu0 0.0
    %2613 = vmatprep.subr.mxu0 0.0
    %2614 = vmatpush1.msra.mxu0 0.0
    %2615 = vmatprep.subr.mxu0 0.0
    %2616 = vmatpush1.msra.mxu0 0.0
    %2617 = vmatprep.subr.mxu0 0.0
    %2618 = vmatpush1.msra.mxu0 0.0
    %2619 = vmatprep.subr.mxu0 0.0
    %2620 = vmatpush1.msra.mxu0 0.0
    %2621 = vmatprep.subr.mxu0 0.0
    %2622 = vmatpush1.msra.mxu0 0.0
    %2623 = vmatprep.subr.mxu0 0.0
    %2624 = vmatpush1.msra.mxu0 0.0
    %2625 = vmatprep.subr.mxu0 0.0
    %2626 = vmatpush1.msra.mxu0 0.0
    %2627 = vmatprep.subr.mxu0 0.0
    %2628 = vmatpush1.msra.mxu0 0.0
    %2629 = vmatprep.mubr.f32.mxu0 0.0
    %v2630 = vand.u32 %v2351, 4294901760
    %v2631 = vsub.f32 %v2351, %v2630
    %2632 = vmatmul.mubr.f32.gmra.mrb[0].mxu0 %v2631
    %v2633 = vpop.f32.mrb[0].mxu0
    %v2634 = vadd.f32 %v2545, %v2633
    %v2635 = vpop.f32.mrb[0].mxu0
    %v2636 = vadd.f32 %v2547, %v2635
    %2637 = vdwg.mxu0
    %v2638 = vand.u32 %v112, 4294901760
    %2639 = vmatprep.subr.mxu0 %v2638
    %v2640 = vand.u32 %v111, 4294901760
    %2641 = vmatpush1.msra.mxu0 %v2640
    %v2642 = vand.u32 %v120, 4294901760
    %2643 = vmatprep.subr.mxu0 %v2642
    %v2644 = vand.u32 %v119, 4294901760
    %2645 = vmatpush1.msra.mxu0 %v2644
    %v2646 = vand.u32 %v128, 4294901760
    %2647 = vmatprep.subr.mxu0 %v2646
    %v2648 = vand.u32 %v127, 4294901760
    %2649 = vmatpush1.msra.mxu0 %v2648
    %v2650 = vand.u32 %v136, 4294901760
    %2651 = vmatprep.subr.mxu0 %v2650
    %v2652 = vand.u32 %v135, 4294901760
    %2653 = vmatpush1.msra.mxu0 %v2652
    %2654 = vmatprep.subr.mxu0 0.0
    %2655 = vmatpush1.msra.mxu0 0.0
    %2656 = vmatprep.subr.mxu0 0.0
    %2657 = vmatpush1.msra.mxu0 0.0
    %2658 = vmatprep.subr.mxu0 0.0
    %2659 = vmatpush1.msra.mxu0 0.0
    %2660 = vmatprep.subr.mxu0 0.0
    %2661 = vmatpush1.msra.mxu0 0.0
    %2662 = vmatprep.subr.mxu0 0.0
    %2663 = vmatpush1.msra.mxu0 0.0
    %2664 = vmatprep.subr.mxu0 0.0
    %2665 = vmatpush1.msra.mxu0 0.0
    %2666 = vmatprep.subr.mxu0 0.0
    %2667 = vmatpush1.msra.mxu0 0.0
    %2668 = vmatprep.subr.mxu0 0.0
    %2669 = vmatpush1.msra.mxu0 0.0
    %2670 = vmatprep.subr.mxu0 0.0
    %2671 = vmatpush1.msra.mxu0 0.0
    %2672 = vmatprep.subr.mxu0 0.0
    %2673 = vmatpush1.msra.mxu0 0.0
    %2674 = vmatprep.subr.mxu0 0.0
    %2675 = vmatpush1.msra.mxu0 0.0
    %2676 = vmatprep.subr.mxu0 0.0
    %2677 = vmatpush1.msra.mxu0 0.0
    %2678 = vmatprep.subr.mxu0 0.0
    %2679 = vmatpush1.msra.mxu0 0.0
    %2680 = vmatprep.subr.mxu0 0.0
    %2681 = vmatpush1.msra.mxu0 0.0
    %2682 = vmatprep.subr.mxu0 0.0
    %2683 = vmatpush1.msra.mxu0 0.0
    %2684 = vmatprep.subr.mxu0 0.0
    %2685 = vmatpush1.msra.mxu0 0.0
    %2686 = vmatprep.subr.mxu0 0.0
    %2687 = vmatpush1.msra.mxu0 0.0
    %2688 = vmatprep.subr.mxu0 0.0
    %2689 = vmatpush1.msra.mxu0 0.0
    %2690 = vmatprep.subr.mxu0 0.0
    %2691 = vmatpush1.msra.mxu0 0.0
    %2692 = vmatprep.subr.mxu0 0.0
    %2693 = vmatpush1.msra.mxu0 0.0
    %2694 = vmatprep.subr.mxu0 0.0
    %2695 = vmatpush1.msra.mxu0 0.0
    %2696 = vmatprep.subr.mxu0 0.0
    %2697 = vmatpush1.msra.mxu0 0.0
    %2698 = vmatprep.subr.mxu0 0.0
    %2699 = vmatpush1.msra.mxu0 0.0
    %2700 = vmatprep.subr.mxu0 0.0
    %2701 = vmatpush1.msra.mxu0 0.0
    %2702 = vmatprep.subr.mxu0 0.0
    %2703 = vmatpush1.msra.mxu0 0.0
    %2704 = vmatprep.subr.mxu0 0.0
    %2705 = vmatpush1.msra.mxu0 0.0
    %2706 = vmatprep.subr.mxu0 0.0
    %2707 = vmatpush1.msra.mxu0 0.0
    %2708 = vmatprep.subr.mxu0 0.0
    %2709 = vmatpush1.msra.mxu0 0.0
    %2710 = vmatprep.mubr.f32.mxu0 0.0
    %v2711 = vand.u32 %v2351, 4294901760
    %v2712 = vsub.f32 %v2351, %v2711
    %v2713 = vand.u32 %v2712, 4294901760
    %2714 = vmatmul.mubr.f32.gmra.mrb[0].mxu0 %v2713
    %v2715 = vpop.f32.mrb[0].mxu0
    %v2716 = vadd.f32 %v2634, %v2715
    %v2717 = vpop.f32.mrb[0].mxu0
    %v2718 = vadd.f32 %v2636, %v2717
    %2719 = vdwg.mxu0
    %v2720 = vand.u32 %v112, 4294901760
    %v2721 = vsub.f32 %v112, %v2720
    %v2722 = vand.u32 %v2721, 4294901760
    %2723 = vmatprep.subr.mxu0 %v2722
    %v2724 = vand.u32 %v111, 4294901760
    %v2725 = vsub.f32 %v111, %v2724
    %v2726 = vand.u32 %v2725, 4294901760
    %2727 = vmatpush1.msra.mxu0 %v2726
    %v2728 = vand.u32 %v120, 4294901760
    %v2729 = vsub.f32 %v120, %v2728
    %v2730 = vand.u32 %v2729, 4294901760
    %2731 = vmatprep.subr.mxu0 %v2730
    %v2732 = vand.u32 %v119, 4294901760
    %v2733 = vsub.f32 %v119, %v2732
    %v2734 = vand.u32 %v2733, 4294901760
    %2735 = vmatpush1.msra.mxu0 %v2734
    %v2736 = vand.u32 %v128, 4294901760
    %v2737 = vsub.f32 %v128, %v2736
    %v2738 = vand.u32 %v2737, 4294901760
    %2739 = vmatprep.subr.mxu0 %v2738
    %v2740 = vand.u32 %v127, 4294901760
    %v2741 = vsub.f32 %v127, %v2740
    %v2742 = vand.u32 %v2741, 4294901760
    %2743 = vmatpush1.msra.mxu0 %v2742
    %v2744 = vand.u32 %v136, 4294901760
    %v2745 = vsub.f32 %v136, %v2744
    %v2746 = vand.u32 %v2745, 4294901760
    %2747 = vmatprep.subr.mxu0 %v2746
    %v2748 = vand.u32 %v135, 4294901760
    %v2749 = vsub.f32 %v135, %v2748
    %v2750 = vand.u32 %v2749, 4294901760
    %2751 = vmatpush1.msra.mxu0 %v2750
    %2752 = vmatprep.subr.mxu0 0.0
    %2753 = vmatpush1.msra.mxu0 0.0
    %2754 = vmatprep.subr.mxu0 0.0
    %2755 = vmatpush1.msra.mxu0 0.0
    %2756 = vmatprep.subr.mxu0 0.0
    %2757 = vmatpush1.msra.mxu0 0.0
    %2758 = vmatprep.subr.mxu0 0.0
    %2759 = vmatpush1.msra.mxu0 0.0
    %2760 = vmatprep.subr.mxu0 0.0
    %2761 = vmatpush1.msra.mxu0 0.0
    %2762 = vmatprep.subr.mxu0 0.0
    %2763 = vmatpush1.msra.mxu0 0.0
    %2764 = vmatprep.subr.mxu0 0.0
    %2765 = vmatpush1.msra.mxu0 0.0
    %2766 = vmatprep.subr.mxu0 0.0
    %2767 = vmatpush1.msra.mxu0 0.0
    %2768 = vmatprep.subr.mxu0 0.0
    %2769 = vmatpush1.msra.mxu0 0.0
    %2770 = vmatprep.subr.mxu0 0.0
    %2771 = vmatpush1.msra.mxu0 0.0
    %2772 = vmatprep.subr.mxu0 0.0
    %2773 = vmatpush1.msra.mxu0 0.0
    %2774 = vmatprep.subr.mxu0 0.0
    %2775 = vmatpush1.msra.mxu0 0.0
    %2776 = vmatprep.subr.mxu0 0.0
    %2777 = vmatpush1.msra.mxu0 0.0
    %2778 = vmatprep.subr.mxu0 0.0
    %2779 = vmatpush1.msra.mxu0 0.0
    %2780 = vmatprep.subr.mxu0 0.0
    %2781 = vmatpush1.msra.mxu0 0.0
    %2782 = vmatprep.subr.mxu0 0.0
    %2783 = vmatpush1.msra.mxu0 0.0
    %2784 = vmatprep.subr.mxu0 0.0
    %2785 = vmatpush1.msra.mxu0 0.0
    %2786 = vmatprep.subr.mxu0 0.0
    %2787 = vmatpush1.msra.mxu0 0.0
    %2788 = vmatprep.subr.mxu0 0.0
    %2789 = vmatpush1.msra.mxu0 0.0
    %2790 = vmatprep.subr.mxu0 0.0
    %2791 = vmatpush1.msra.mxu0 0.0
    %2792 = vmatprep.subr.mxu0 0.0
    %2793 = vmatpush1.msra.mxu0 0.0
    %2794 = vmatprep.subr.mxu0 0.0
    %2795 = vmatpush1.msra.mxu0 0.0
    %2796 = vmatprep.subr.mxu0 0.0
    %2797 = vmatpush1.msra.mxu0 0.0
    %2798 = vmatprep.subr.mxu0 0.0
    %2799 = vmatpush1.msra.mxu0 0.0
    %2800 = vmatprep.subr.mxu0 0.0
    %2801 = vmatpush1.msra.mxu0 0.0
    %2802 = vmatprep.subr.mxu0 0.0
    %2803 = vmatpush1.msra.mxu0 0.0
    %2804 = vmatprep.subr.mxu0 0.0
    %2805 = vmatpush1.msra.mxu0 0.0
    %2806 = vmatprep.subr.mxu0 0.0
    %2807 = vmatpush1.msra.mxu0 0.0
    %2808 = vmatprep.mubr.f32.mxu0 0.0
    %v2809 = vand.u32 %v2351, 4294901760
    %2810 = vmatmul.mubr.f32.gmra.mrb[0].mxu0 %v2809
    %v2811 = vpop.f32.mrb[0].mxu0
    %v2812 = vadd.f32 %v2716, %v2811
    %v2813 = vpop.f32.mrb[0].mxu0
    %v2814 = vadd.f32 %v2718, %v2813
    %2815 = vdwg.mxu0
    %v2816 = vand.u32 %v112, 4294901760
    %2817 = vmatprep.subr.mxu0 %v2816
    %v2818 = vand.u32 %v111, 4294901760
    %2819 = vmatpush1.msra.mxu0 %v2818
    %v2820 = vand.u32 %v120, 4294901760
    %2821 = vmatprep.subr.mxu0 %v2820
    %v2822 = vand.u32 %v119, 4294901760
    %2823 = vmatpush1.msra.mxu0 %v2822
    %v2824 = vand.u32 %v128, 4294901760
    %2825 = vmatprep.subr.mxu0 %v2824
    %v2826 = vand.u32 %v127, 4294901760
    %2827 = vmatpush1.msra.mxu0 %v2826
    %v2828 = vand.u32 %v136, 4294901760
    %2829 = vmatprep.subr.mxu0 %v2828
    %v2830 = vand.u32 %v135, 4294901760
    %2831 = vmatpush1.msra.mxu0 %v2830
    %2832 = vmatprep.subr.mxu0 0.0
    %2833 = vmatpush1.msra.mxu0 0.0
    %2834 = vmatprep.subr.mxu0 0.0
    %2835 = vmatpush1.msra.mxu0 0.0
    %2836 = vmatprep.subr.mxu0 0.0
    %2837 = vmatpush1.msra.mxu0 0.0
    %2838 = vmatprep.subr.mxu0 0.0
    %2839 = vmatpush1.msra.mxu0 0.0
    %2840 = vmatprep.subr.mxu0 0.0
    %2841 = vmatpush1.msra.mxu0 0.0
    %2842 = vmatprep.subr.mxu0 0.0
    %2843 = vmatpush1.msra.mxu0 0.0
    %2844 = vmatprep.subr.mxu0 0.0
    %2845 = vmatpush1.msra.mxu0 0.0
    %2846 = vmatprep.subr.mxu0 0.0
    %2847 = vmatpush1.msra.mxu0 0.0
    %2848 = vmatprep.subr.mxu0 0.0
    %2849 = vmatpush1.msra.mxu0 0.0
    %2850 = vmatprep.subr.mxu0 0.0
    %2851 = vmatpush1.msra.mxu0 0.0
    %2852 = vmatprep.subr.mxu0 0.0
    %2853 = vmatpush1.msra.mxu0 0.0
    %2854 = vmatprep.subr.mxu0 0.0
    %2855 = vmatpush1.msra.mxu0 0.0
    %2856 = vmatprep.subr.mxu0 0.0
    %2857 = vmatpush1.msra.mxu0 0.0
    %2858 = vmatprep.subr.mxu0 0.0
    %2859 = vmatpush1.msra.mxu0 0.0
    %2860 = vmatprep.subr.mxu0 0.0
    %2861 = vmatpush1.msra.mxu0 0.0
    %2862 = vmatprep.subr.mxu0 0.0
    %2863 = vmatpush1.msra.mxu0 0.0
    %2864 = vmatprep.subr.mxu0 0.0
    %2865 = vmatpush1.msra.mxu0 0.0
    %2866 = vmatprep.subr.mxu0 0.0
    %2867 = vmatpush1.msra.mxu0 0.0
    %2868 = vmatprep.subr.mxu0 0.0
    %2869 = vmatpush1.msra.mxu0 0.0
    %2870 = vmatprep.subr.mxu0 0.0
    %2871 = vmatpush1.msra.mxu0 0.0
    %2872 = vmatprep.subr.mxu0 0.0
    %2873 = vmatpush1.msra.mxu0 0.0
    %2874 = vmatprep.subr.mxu0 0.0
    %2875 = vmatpush1.msra.mxu0 0.0
    %2876 = vmatprep.subr.mxu0 0.0
    %2877 = vmatpush1.msra.mxu0 0.0
    %2878 = vmatprep.subr.mxu0 0.0
    %2879 = vmatpush1.msra.mxu0 0.0
    %2880 = vmatprep.subr.mxu0 0.0
    %2881 = vmatpush1.msra.mxu0 0.0
    %2882 = vmatprep.subr.mxu0 0.0
    %2883 = vmatpush1.msra.mxu0 0.0
    %2884 = vmatprep.subr.mxu0 0.0
    %2885 = vmatpush1.msra.mxu0 0.0
    %2886 = vmatprep.subr.mxu0 0.0
    %2887 = vmatpush1.msra.mxu0 0.0
    %2888 = vmatprep.mubr.f32.mxu0 0.0
    %v2889 = vand.u32 %v2351, 4294901760
    %2890 = vmatmul.mubr.f32.gmra.mrb[0].mxu0 %v2889
    %v2891 = vpop.f32.mrb[0].mxu0
    %v2892 = vadd.f32 %v2812, %v2891
    %v2893 = vpop.f32.mrb[0].mxu0
    %v2894 = vadd.f32 %v2814, %v2893
    %2895 = vdwg.mxu0
    %v2896 = vand.u32 %v114, 4294901760
    %2897 = vmatprep.subr.mxu0 %v2896
    %v2898 = vand.u32 %v113, 4294901760
    %2899 = vmatpush1.msra.mxu0 %v2898
    %v2900 = vand.u32 %v122, 4294901760
    %2901 = vmatprep.subr.mxu0 %v2900
    %v2902 = vand.u32 %v121, 4294901760
    %2903 = vmatpush1.msra.mxu0 %v2902
    %v2904 = vand.u32 %v130, 4294901760
    %2905 = vmatprep.subr.mxu0 %v2904
    %v2906 = vand.u32 %v129, 4294901760
    %2907 = vmatpush1.msra.mxu0 %v2906
    %v2908 = vand.u32 %v138, 4294901760
    %2909 = vmatprep.subr.mxu0 %v2908
    %v2910 = vand.u32 %v137, 4294901760
    %2911 = vmatpush1.msra.mxu0 %v2910
    %2912 = vmatprep.subr.mxu0 0.0
    %2913 = vmatpush1.msra.mxu0 0.0
    %2914 = vmatprep.subr.mxu0 0.0
    %2915 = vmatpush1.msra.mxu0 0.0
    %2916 = vmatprep.subr.mxu0 0.0
    %2917 = vmatpush1.msra.mxu0 0.0
    %2918 = vmatprep.subr.mxu0 0.0
    %2919 = vmatpush1.msra.mxu0 0.0
    %2920 = vmatprep.subr.mxu0 0.0
    %2921 = vmatpush1.msra.mxu0 0.0
    %2922 = vmatprep.subr.mxu0 0.0
    %2923 = vmatpush1.msra.mxu0 0.0
    %2924 = vmatprep.subr.mxu0 0.0
    %2925 = vmatpush1.msra.mxu0 0.0
    %2926 = vmatprep.subr.mxu0 0.0
    %2927 = vmatpush1.msra.mxu0 0.0
    %2928 = vmatprep.subr.mxu0 0.0
    %2929 = vmatpush1.msra.mxu0 0.0
    %2930 = vmatprep.subr.mxu0 0.0
    %2931 = vmatpush1.msra.mxu0 0.0
    %2932 = vmatprep.subr.mxu0 0.0
    %2933 = vmatpush1.msra.mxu0 0.0
    %2934 = vmatprep.subr.mxu0 0.0
    %2935 = vmatpush1.msra.mxu0 0.0
    %2936 = vmatprep.subr.mxu0 0.0
    %2937 = vmatpush1.msra.mxu0 0.0
    %2938 = vmatprep.subr.mxu0 0.0
    %2939 = vmatpush1.msra.mxu0 0.0
    %2940 = vmatprep.subr.mxu0 0.0
    %2941 = vmatpush1.msra.mxu0 0.0
    %2942 = vmatprep.subr.mxu0 0.0
    %2943 = vmatpush1.msra.mxu0 0.0
    %2944 = vmatprep.subr.mxu0 0.0
    %2945 = vmatpush1.msra.mxu0 0.0
    %2946 = vmatprep.subr.mxu0 0.0
    %2947 = vmatpush1.msra.mxu0 0.0
    %2948 = vmatprep.subr.mxu0 0.0
    %2949 = vmatpush1.msra.mxu0 0.0
    %2950 = vmatprep.subr.mxu0 0.0
    %2951 = vmatpush1.msra.mxu0 0.0
    %2952 = vmatprep.subr.mxu0 0.0
    %2953 = vmatpush1.msra.mxu0 0.0
    %2954 = vmatprep.subr.mxu0 0.0
    %2955 = vmatpush1.msra.mxu0 0.0
    %2956 = vmatprep.subr.mxu0 0.0
    %2957 = vmatpush1.msra.mxu0 0.0
    %2958 = vmatprep.subr.mxu0 0.0
    %2959 = vmatpush1.msra.mxu0 0.0
    %2960 = vmatprep.subr.mxu0 0.0
    %2961 = vmatpush1.msra.mxu0 0.0
    %2962 = vmatprep.subr.mxu0 0.0
    %2963 = vmatpush1.msra.mxu0 0.0
    %2964 = vmatprep.subr.mxu0 0.0
    %2965 = vmatpush1.msra.mxu0 0.0
    %2966 = vmatprep.subr.mxu0 0.0
    %2967 = vmatpush1.msra.mxu0 0.0
    %2968 = vmatprep.mubr.f32.mxu0 0.0
    %v2969 = vand.u32 %v2351, 4294901760
    %v2970 = vsub.f32 %v2351, %v2969
    %v2971 = vand.u32 %v2970, 4294901760
    %v2972 = vsub.f32 %v2970, %v2971
    %v2973 = vand.u32 %v2972, 4294901760
    %2974 = vmatmul.mubr.f32.gmra.mrb[0].mxu0 %v2973
    %v2975 = vpop.f32.mrb[0].mxu0
    %v2976 = vadd.f32 0.0, %v2975
    %v2977 = vpop.f32.mrb[0].mxu0
    %v2978 = vadd.f32 0.0, %v2977
    %2979 = vdwg.mxu0
    %v2980 = vand.u32 %v114, 4294901760
    %v2981 = vsub.f32 %v114, %v2980
    %v2982 = vand.u32 %v2981, 4294901760
    %v2983 = vsub.f32 %v2981, %v2982
    %v2984 = vand.u32 %v2983, 4294901760
    %2985 = vmatprep.subr.mxu0 %v2984
    %v2986 = vand.u32 %v113, 4294901760
    %v2987 = vsub.f32 %v113, %v2986
    %v2988 = vand.u32 %v2987, 4294901760
    %v2989 = vsub.f32 %v2987, %v2988
    %v2990 = vand.u32 %v2989, 4294901760
    %2991 = vmatpush1.msra.mxu0 %v2990
    %v2992 = vand.u32 %v122, 4294901760
    %v2993 = vsub.f32 %v122, %v2992
    %v2994 = vand.u32 %v2993, 4294901760
    %v2995 = vsub.f32 %v2993, %v2994
    %v2996 = vand.u32 %v2995, 4294901760
    %2997 = vmatprep.subr.mxu0 %v2996
    %v2998 = vand.u32 %v121, 4294901760
    %v2999 = vsub.f32 %v121, %v2998
    %v3000 = vand.u32 %v2999, 4294901760
    %v3001 = vsub.f32 %v2999, %v3000
    %v3002 = vand.u32 %v3001, 4294901760
    %3003 = vmatpush1.msra.mxu0 %v3002
    %v3004 = vand.u32 %v130, 4294901760
    %v3005 = vsub.f32 %v130, %v3004
    %v3006 = vand.u32 %v3005, 4294901760
    %v3007 = vsub.f32 %v3005, %v3006
    %v3008 = vand.u32 %v3007, 4294901760
    %3009 = vmatprep.subr.mxu0 %v3008
    %v3010 = vand.u32 %v129, 4294901760
    %v3011 = vsub.f32 %v129, %v3010
    %v3012 = vand.u32 %v3011, 4294901760
    %v3013 = vsub.f32 %v3011, %v3012
    %v3014 = vand.u32 %v3013, 4294901760
    %3015 = vmatpush1.msra.mxu0 %v3014
    %v3016 = vand.u32 %v138, 4294901760
    %v3017 = vsub.f32 %v138, %v3016
    %v3018 = vand.u32 %v3017, 4294901760
    %v3019 = vsub.f32 %v3017, %v3018
    %v3020 = vand.u32 %v3019, 4294901760
    %3021 = vmatprep.subr.mxu0 %v3020
    %v3022 = vand.u32 %v137, 4294901760
    %v3023 = vsub.f32 %v137, %v3022
    %v3024 = vand.u32 %v3023, 4294901760
    %v3025 = vsub.f32 %v3023, %v3024
    %v3026 = vand.u32 %v3025, 4294901760
    %3027 = vmatpush1.msra.mxu0 %v3026
    %3028 = vmatprep.subr.mxu0 0.0
    %3029 = vmatpush1.msra.mxu0 0.0
    %3030 = vmatprep.subr.mxu0 0.0
    %3031 = vmatpush1.msra.mxu0 0.0
    %3032 = vmatprep.subr.mxu0 0.0
    %3033 = vmatpush1.msra.mxu0 0.0
    %3034 = vmatprep.subr.mxu0 0.0
    %3035 = vmatpush1.msra.mxu0 0.0
    %3036 = vmatprep.subr.mxu0 0.0
    %3037 = vmatpush1.msra.mxu0 0.0
    %3038 = vmatprep.subr.mxu0 0.0
    %3039 = vmatpush1.msra.mxu0 0.0
    %3040 = vmatprep.subr.mxu0 0.0
    %3041 = vmatpush1.msra.mxu0 0.0
    %3042 = vmatprep.subr.mxu0 0.0
    %3043 = vmatpush1.msra.mxu0 0.0
    %3044 = vmatprep.subr.mxu0 0.0
    %3045 = vmatpush1.msra.mxu0 0.0
    %3046 = vmatprep.subr.mxu0 0.0
    %3047 = vmatpush1.msra.mxu0 0.0
    %3048 = vmatprep.subr.mxu0 0.0
    %3049 = vmatpush1.msra.mxu0 0.0
    %3050 = vmatprep.subr.mxu0 0.0
    %3051 = vmatpush1.msra.mxu0 0.0
    %3052 = vmatprep.subr.mxu0 0.0
    %3053 = vmatpush1.msra.mxu0 0.0
    %3054 = vmatprep.subr.mxu0 0.0
    %3055 = vmatpush1.msra.mxu0 0.0
    %3056 = vmatprep.subr.mxu0 0.0
    %3057 = vmatpush1.msra.mxu0 0.0
    %3058 = vmatprep.subr.mxu0 0.0
    %3059 = vmatpush1.msra.mxu0 0.0
    %3060 = vmatprep.subr.mxu0 0.0
    %3061 = vmatpush1.msra.mxu0 0.0
    %3062 = vmatprep.subr.mxu0 0.0
    %3063 = vmatpush1.msra.mxu0 0.0
    %3064 = vmatprep.subr.mxu0 0.0
    %3065 = vmatpush1.msra.mxu0 0.0
    %3066 = vmatprep.subr.mxu0 0.0
    %3067 = vmatpush1.msra.mxu0 0.0
    %3068 = vmatprep.subr.mxu0 0.0
    %3069 = vmatpush1.msra.mxu0 0.0
    %3070 = vmatprep.subr.mxu0 0.0
    %3071 = vmatpush1.msra.mxu0 0.0
    %3072 = vmatprep.subr.mxu0 0.0
    %3073 = vmatpush1.msra.mxu0 0.0
    %3074 = vmatprep.subr.mxu0 0.0
    %3075 = vmatpush1.msra.mxu0 0.0
    %3076 = vmatprep.subr.mxu0 0.0
    %3077 = vmatpush1.msra.mxu0 0.0
    %3078 = vmatprep.subr.mxu0 0.0
    %3079 = vmatpush1.msra.mxu0 0.0
    %3080 = vmatprep.subr.mxu0 0.0
    %3081 = vmatpush1.msra.mxu0 0.0
    %3082 = vmatprep.subr.mxu0 0.0
    %3083 = vmatpush1.msra.mxu0 0.0
    %3084 = vmatprep.mubr.f32.mxu0 0.0
    %v3085 = vand.u32 %v2351, 4294901760
    %3086 = vmatmul.mubr.f32.gmra.mrb[0].mxu0 %v3085
    %v3087 = vpop.f32.mrb[0].mxu0
    %v3088 = vadd.f32 %v2976, %v3087
    %v3089 = vpop.f32.mrb[0].mxu0
    %v3090 = vadd.f32 %v2978, %v3089
    %3091 = vdwg.mxu0
    %v3092 = vand.u32 %v114, 4294901760
    %v3093 = vsub.f32 %v114, %v3092
    %3094 = vmatprep.subr.mxu0 %v3093
    %v3095 = vand.u32 %v113, 4294901760
    %v3096 = vsub.f32 %v113, %v3095
    %3097 = vmatpush1.msra.mxu0 %v3096
    %v3098 = vand.u32 %v122, 4294901760
    %v3099 = vsub.f32 %v122, %v3098
    %3100 = vmatprep.subr.mxu0 %v3099
    %v3101 = vand.u32 %v121, 4294901760
    %v3102 = vsub.f32 %v121, %v3101
    %3103 = vmatpush1.msra.mxu0 %v3102
    %v3104 = vand.u32 %v130, 4294901760
    %v3105 = vsub.f32 %v130, %v3104
    %3106 = vmatprep.subr.mxu0 %v3105
    %v3107 = vand.u32 %v129, 4294901760
    %v3108 = vsub.f32 %v129, %v3107
    %3109 = vmatpush1.msra.mxu0 %v3108
    %v3110 = vand.u32 %v138, 4294901760
    %v3111 = vsub.f32 %v138, %v3110
    %3112 = vmatprep.subr.mxu0 %v3111
    %v3113 = vand.u32 %v137, 4294901760
    %v3114 = vsub.f32 %v137, %v3113
    %3115 = vmatpush1.msra.mxu0 %v3114
    %3116 = vmatprep.subr.mxu0 0.0
    %3117 = vmatpush1.msra.mxu0 0.0
    %3118 = vmatprep.subr.mxu0 0.0
    %3119 = vmatpush1.msra.mxu0 0.0
    %3120 = vmatprep.subr.mxu0 0.0
    %3121 = vmatpush1.msra.mxu0 0.0
    %3122 = vmatprep.subr.mxu0 0.0
    %3123 = vmatpush1.msra.mxu0 0.0
    %3124 = vmatprep.subr.mxu0 0.0
    %3125 = vmatpush1.msra.mxu0 0.0
    %3126 = vmatprep.subr.mxu0 0.0
    %3127 = vmatpush1.msra.mxu0 0.0
    %3128 = vmatprep.subr.mxu0 0.0
    %3129 = vmatpush1.msra.mxu0 0.0
    %3130 = vmatprep.subr.mxu0 0.0
    %3131 = vmatpush1.msra.mxu0 0.0
    %3132 = vmatprep.subr.mxu0 0.0
    %3133 = vmatpush1.msra.mxu0 0.0
    %3134 = vmatprep.subr.mxu0 0.0
    %3135 = vmatpush1.msra.mxu0 0.0
    %3136 = vmatprep.subr.mxu0 0.0
    %3137 = vmatpush1.msra.mxu0 0.0
    %3138 = vmatprep.subr.mxu0 0.0
    %3139 = vmatpush1.msra.mxu0 0.0
    %3140 = vmatprep.subr.mxu0 0.0
    %3141 = vmatpush1.msra.mxu0 0.0
    %3142 = vmatprep.subr.mxu0 0.0
    %3143 = vmatpush1.msra.mxu0 0.0
    %3144 = vmatprep.subr.mxu0 0.0
    %3145 = vmatpush1.msra.mxu0 0.0
    %3146 = vmatprep.subr.mxu0 0.0
    %3147 = vmatpush1.msra.mxu0 0.0
    %3148 = vmatprep.subr.mxu0 0.0
    %3149 = vmatpush1.msra.mxu0 0.0
    %3150 = vmatprep.subr.mxu0 0.0
    %3151 = vmatpush1.msra.mxu0 0.0
    %3152 = vmatprep.subr.mxu0 0.0
    %3153 = vmatpush1.msra.mxu0 0.0
    %3154 = vmatprep.subr.mxu0 0.0
    %3155 = vmatpush1.msra.mxu0 0.0
    %3156 = vmatprep.subr.mxu0 0.0
    %3157 = vmatpush1.msra.mxu0 0.0
    %3158 = vmatprep.subr.mxu0 0.0
    %3159 = vmatpush1.msra.mxu0 0.0
    %3160 = vmatprep.subr.mxu0 0.0
    %3161 = vmatpush1.msra.mxu0 0.0
    %3162 = vmatprep.subr.mxu0 0.0
    %3163 = vmatpush1.msra.mxu0 0.0
    %3164 = vmatprep.subr.mxu0 0.0
    %3165 = vmatpush1.msra.mxu0 0.0
    %3166 = vmatprep.subr.mxu0 0.0
    %3167 = vmatpush1.msra.mxu0 0.0
    %3168 = vmatprep.subr.mxu0 0.0
    %3169 = vmatpush1.msra.mxu0 0.0
    %3170 = vmatprep.subr.mxu0 0.0
    %3171 = vmatpush1.msra.mxu0 0.0
    %3172 = vmatprep.mubr.f32.mxu0 0.0
    %v3173 = vand.u32 %v2351, 4294901760
    %v3174 = vsub.f32 %v2351, %v3173
    %3175 = vmatmul.mubr.f32.gmra.mrb[0].mxu0 %v3174
    %v3176 = vpop.f32.mrb[0].mxu0
    %v3177 = vadd.f32 %v3088, %v3176
    %v3178 = vpop.f32.mrb[0].mxu0
    %v3179 = vadd.f32 %v3090, %v3178
    %3180 = vdwg.mxu0
    %v3181 = vand.u32 %v114, 4294901760
    %3182 = vmatprep.subr.mxu0 %v3181
    %v3183 = vand.u32 %v113, 4294901760
    %3184 = vmatpush1.msra.mxu0 %v3183
    %v3185 = vand.u32 %v122, 4294901760
    %3186 = vmatprep.subr.mxu0 %v3185
    %v3187 = vand.u32 %v121, 4294901760
    %3188 = vmatpush1.msra.mxu0 %v3187
    %v3189 = vand.u32 %v130, 4294901760
    %3190 = vmatprep.subr.mxu0 %v3189
    %v3191 = vand.u32 %v129, 4294901760
    %3192 = vmatpush1.msra.mxu0 %v3191
    %v3193 = vand.u32 %v138, 4294901760
    %3194 = vmatprep.subr.mxu0 %v3193
    %v3195 = vand.u32 %v137, 4294901760
    %3196 = vmatpush1.msra.mxu0 %v3195
    %3197 = vmatprep.subr.mxu0 0.0
    %3198 = vmatpush1.msra.mxu0 0.0
    %3199 = vmatprep.subr.mxu0 0.0
    %3200 = vmatpush1.msra.mxu0 0.0
    %3201 = vmatprep.subr.mxu0 0.0
    %3202 = vmatpush1.msra.mxu0 0.0
    %3203 = vmatprep.subr.mxu0 0.0
    %3204 = vmatpush1.msra.mxu0 0.0
    %3205 = vmatprep.subr.mxu0 0.0
    %3206 = vmatpush1.msra.mxu0 0.0
    %3207 = vmatprep.subr.mxu0 0.0
    %3208 = vmatpush1.msra.mxu0 0.0
    %3209 = vmatprep.subr.mxu0 0.0
    %3210 = vmatpush1.msra.mxu0 0.0
    %3211 = vmatprep.subr.mxu0 0.0
    %3212 = vmatpush1.msra.mxu0 0.0
    %3213 = vmatprep.subr.mxu0 0.0
    %3214 = vmatpush1.msra.mxu0 0.0
    %3215 = vmatprep.subr.mxu0 0.0
    %3216 = vmatpush1.msra.mxu0 0.0
    %3217 = vmatprep.subr.mxu0 0.0
    %3218 = vmatpush1.msra.mxu0 0.0
    %3219 = vmatprep.subr.mxu0 0.0
    %3220 = vmatpush1.msra.mxu0 0.0
    %3221 = vmatprep.subr.mxu0 0.0
    %3222 = vmatpush1.msra.mxu0 0.0
    %3223 = vmatprep.subr.mxu0 0.0
    %3224 = vmatpush1.msra.mxu0 0.0
    %3225 = vmatprep.subr.mxu0 0.0
    %3226 = vmatpush1.msra.mxu0 0.0
    %3227 = vmatprep.subr.mxu0 0.0
    %3228 = vmatpush1.msra.mxu0 0.0
    %3229 = vmatprep.subr.mxu0 0.0
    %3230 = vmatpush1.msra.mxu0 0.0
    %3231 = vmatprep.subr.mxu0 0.0
    %3232 = vmatpush1.msra.mxu0 0.0
    %3233 = vmatprep.subr.mxu0 0.0
    %3234 = vmatpush1.msra.mxu0 0.0
    %3235 = vmatprep.subr.mxu0 0.0
    %3236 = vmatpush1.msra.mxu0 0.0
    %3237 = vmatprep.subr.mxu0 0.0
    %3238 = vmatpush1.msra.mxu0 0.0
    %3239 = vmatprep.subr.mxu0 0.0
    %3240 = vmatpush1.msra.mxu0 0.0
    %3241 = vmatprep.subr.mxu0 0.0
    %3242 = vmatpush1.msra.mxu0 0.0
    %3243 = vmatprep.subr.mxu0 0.0
    %3244 = vmatpush1.msra.mxu0 0.0
    %3245 = vmatprep.subr.mxu0 0.0
    %3246 = vmatpush1.msra.mxu0 0.0
    %3247 = vmatprep.subr.mxu0 0.0
    %3248 = vmatpush1.msra.mxu0 0.0
    %3249 = vmatprep.subr.mxu0 0.0
    %3250 = vmatpush1.msra.mxu0 0.0
    %3251 = vmatprep.subr.mxu0 0.0
    %3252 = vmatpush1.msra.mxu0 0.0
    %3253 = vmatprep.mubr.f32.mxu0 0.0
    %v3254 = vand.u32 %v2351, 4294901760
    %v3255 = vsub.f32 %v2351, %v3254
    %v3256 = vand.u32 %v3255, 4294901760
    %3257 = vmatmul.mubr.f32.gmra.mrb[0].mxu0 %v3256
    %v3258 = vpop.f32.mrb[0].mxu0
    %v3259 = vadd.f32 %v3177, %v3258
    %v3260 = vpop.f32.mrb[0].mxu0
    %v3261 = vadd.f32 %v3179, %v3260
    %3262 = vdwg.mxu0
    %v3263 = vand.u32 %v114, 4294901760
    %v3264 = vsub.f32 %v114, %v3263
    %v3265 = vand.u32 %v3264, 4294901760
    %3266 = vmatprep.subr.mxu0 %v3265
    %v3267 = vand.u32 %v113, 4294901760
    %v3268 = vsub.f32 %v113, %v3267
    %v3269 = vand.u32 %v3268, 4294901760
    %3270 = vmatpush1.msra.mxu0 %v3269
    %v3271 = vand.u32 %v122, 4294901760
    %v3272 = vsub.f32 %v122, %v3271
    %v3273 = vand.u32 %v3272, 4294901760
    %3274 = vmatprep.subr.mxu0 %v3273
    %v3275 = vand.u32 %v121, 4294901760
    %v3276 = vsub.f32 %v121, %v3275
    %v3277 = vand.u32 %v3276, 4294901760
    %3278 = vmatpush1.msra.mxu0 %v3277
    %v3279 = vand.u32 %v130, 4294901760
    %v3280 = vsub.f32 %v130, %v3279
    %v3281 = vand.u32 %v3280, 4294901760
    %3282 = vmatprep.subr.mxu0 %v3281
    %v3283 = vand.u32 %v129, 4294901760
    %v3284 = vsub.f32 %v129, %v3283
    %v3285 = vand.u32 %v3284, 4294901760
    %3286 = vmatpush1.msra.mxu0 %v3285
    %v3287 = vand.u32 %v138, 4294901760
    %v3288 = vsub.f32 %v138, %v3287
    %v3289 = vand.u32 %v3288, 4294901760
    %3290 = vmatprep.subr.mxu0 %v3289
    %v3291 = vand.u32 %v137, 4294901760
    %v3292 = vsub.f32 %v137, %v3291
    %v3293 = vand.u32 %v3292, 4294901760
    %3294 = vmatpush1.msra.mxu0 %v3293
    %3295 = vmatprep.subr.mxu0 0.0
    %3296 = vmatpush1.msra.mxu0 0.0
    %3297 = vmatprep.subr.mxu0 0.0
    %3298 = vmatpush1.msra.mxu0 0.0
    %3299 = vmatprep.subr.mxu0 0.0
    %3300 = vmatpush1.msra.mxu0 0.0
    %3301 = vmatprep.subr.mxu0 0.0
    %3302 = vmatpush1.msra.mxu0 0.0
    %3303 = vmatprep.subr.mxu0 0.0
    %3304 = vmatpush1.msra.mxu0 0.0
    %3305 = vmatprep.subr.mxu0 0.0
    %3306 = vmatpush1.msra.mxu0 0.0
    %3307 = vmatprep.subr.mxu0 0.0
    %3308 = vmatpush1.msra.mxu0 0.0
    %3309 = vmatprep.subr.mxu0 0.0
    %3310 = vmatpush1.msra.mxu0 0.0
    %3311 = vmatprep.subr.mxu0 0.0
    %3312 = vmatpush1.msra.mxu0 0.0
    %3313 = vmatprep.subr.mxu0 0.0
    %3314 = vmatpush1.msra.mxu0 0.0
    %3315 = vmatprep.subr.mxu0 0.0
    %3316 = vmatpush1.msra.mxu0 0.0
    %3317 = vmatprep.subr.mxu0 0.0
    %3318 = vmatpush1.msra.mxu0 0.0
    %3319 = vmatprep.subr.mxu0 0.0
    %3320 = vmatpush1.msra.mxu0 0.0
    %3321 = vmatprep.subr.mxu0 0.0
    %3322 = vmatpush1.msra.mxu0 0.0
    %3323 = vmatprep.subr.mxu0 0.0
    %3324 = vmatpush1.msra.mxu0 0.0
    %3325 = vmatprep.subr.mxu0 0.0
    %3326 = vmatpush1.msra.mxu0 0.0
    %3327 = vmatprep.subr.mxu0 0.0
    %3328 = vmatpush1.msra.mxu0 0.0
    %3329 = vmatprep.subr.mxu0 0.0
    %3330 = vmatpush1.msra.mxu0 0.0
    %3331 = vmatprep.subr.mxu0 0.0
    %3332 = vmatpush1.msra.mxu0 0.0
    %3333 = vmatprep.subr.mxu0 0.0
    %3334 = vmatpush1.msra.mxu0 0.0
    %3335 = vmatprep.subr.mxu0 0.0
    %3336 = vmatpush1.msra.mxu0 0.0
    %3337 = vmatprep.subr.mxu0 0.0
    %3338 = vmatpush1.msra.mxu0 0.0
    %3339 = vmatprep.subr.mxu0 0.0
    %3340 = vmatpush1.msra.mxu0 0.0
    %3341 = vmatprep.subr.mxu0 0.0
    %3342 = vmatpush1.msra.mxu0 0.0
    %3343 = vmatprep.subr.mxu0 0.0
    %3344 = vmatpush1.msra.mxu0 0.0
    %3345 = vmatprep.subr.mxu0 0.0
    %3346 = vmatpush1.msra.mxu0 0.0
    %3347 = vmatprep.subr.mxu0 0.0
    %3348 = vmatpush1.msra.mxu0 0.0
    %3349 = vmatprep.subr.mxu0 0.0
    %3350 = vmatpush1.msra.mxu0 0.0
    %3351 = vmatprep.mubr.f32.mxu0 0.0
    %v3352 = vand.u32 %v2351, 4294901760
    %3353 = vmatmul.mubr.f32.gmra.mrb[0].mxu0 %v3352
    %v3354 = vpop.f32.mrb[0].mxu0
    %v3355 = vadd.f32 %v3259, %v3354
    %v3356 = vpop.f32.mrb[0].mxu0
    %v3357 = vadd.f32 %v3261, %v3356
    %3358 = vdwg.mxu0
    %v3359 = vand.u32 %v114, 4294901760
    %3360 = vmatprep.subr.mxu0 %v3359
    %v3361 = vand.u32 %v113, 4294901760
    %3362 = vmatpush1.msra.mxu0 %v3361
    %v3363 = vand.u32 %v122, 4294901760
    %3364 = vmatprep.subr.mxu0 %v3363
    %v3365 = vand.u32 %v121, 4294901760
    %3366 = vmatpush1.msra.mxu0 %v3365
    %v3367 = vand.u32 %v130, 4294901760
    %3368 = vmatprep.subr.mxu0 %v3367
    %v3369 = vand.u32 %v129, 4294901760
    %3370 = vmatpush1.msra.mxu0 %v3369
    %v3371 = vand.u32 %v138, 4294901760
    %3372 = vmatprep.subr.mxu0 %v3371
    %v3373 = vand.u32 %v137, 4294901760
    %3374 = vmatpush1.msra.mxu0 %v3373
    %3375 = vmatprep.subr.mxu0 0.0
    %3376 = vmatpush1.msra.mxu0 0.0
    %3377 = vmatprep.subr.mxu0 0.0
    %3378 = vmatpush1.msra.mxu0 0.0
    %3379 = vmatprep.subr.mxu0 0.0
    %3380 = vmatpush1.msra.mxu0 0.0
    %3381 = vmatprep.subr.mxu0 0.0
    %3382 = vmatpush1.msra.mxu0 0.0
    %3383 = vmatprep.subr.mxu0 0.0
    %3384 = vmatpush1.msra.mxu0 0.0
    %3385 = vmatprep.subr.mxu0 0.0
    %3386 = vmatpush1.msra.mxu0 0.0
    %3387 = vmatprep.subr.mxu0 0.0
    %3388 = vmatpush1.msra.mxu0 0.0
    %3389 = vmatprep.subr.mxu0 0.0
    %3390 = vmatpush1.msra.mxu0 0.0
    %3391 = vmatprep.subr.mxu0 0.0
    %3392 = vmatpush1.msra.mxu0 0.0
    %3393 = vmatprep.subr.mxu0 0.0
    %3394 = vmatpush1.msra.mxu0 0.0
    %3395 = vmatprep.subr.mxu0 0.0
    %3396 = vmatpush1.msra.mxu0 0.0
    %3397 = vmatprep.subr.mxu0 0.0
    %3398 = vmatpush1.msra.mxu0 0.0
    %3399 = vmatprep.subr.mxu0 0.0
    %3400 = vmatpush1.msra.mxu0 0.0
    %3401 = vmatprep.subr.mxu0 0.0
    %3402 = vmatpush1.msra.mxu0 0.0
    %3403 = vmatprep.subr.mxu0 0.0
    %3404 = vmatpush1.msra.mxu0 0.0
    %3405 = vmatprep.subr.mxu0 0.0
    %3406 = vmatpush1.msra.mxu0 0.0
    %3407 = vmatprep.subr.mxu0 0.0
    %3408 = vmatpush1.msra.mxu0 0.0
    %3409 = vmatprep.subr.mxu0 0.0
    %3410 = vmatpush1.msra.mxu0 0.0
    %3411 = vmatprep.subr.mxu0 0.0
    %3412 = vmatpush1.msra.mxu0 0.0
    %3413 = vmatprep.subr.mxu0 0.0
    %3414 = vmatpush1.msra.mxu0 0.0
    %3415 = vmatprep.subr.mxu0 0.0
    %3416 = vmatpush1.msra.mxu0 0.0
    %3417 = vmatprep.subr.mxu0 0.0
    %3418 = vmatpush1.msra.mxu0 0.0
    %3419 = vmatprep.subr.mxu0 0.0
    %3420 = vmatpush1.msra.mxu0 0.0
    %3421 = vmatprep.subr.mxu0 0.0
    %3422 = vmatpush1.msra.mxu0 0.0
    %3423 = vmatprep.subr.mxu0 0.0
    %3424 = vmatpush1.msra.mxu0 0.0
    %3425 = vmatprep.subr.mxu0 0.0
    %3426 = vmatpush1.msra.mxu0 0.0
    %3427 = vmatprep.subr.mxu0 0.0
    %3428 = vmatpush1.msra.mxu0 0.0
    %3429 = vmatprep.subr.mxu0 0.0
    %3430 = vmatpush1.msra.mxu0 0.0
    %3431 = vmatprep.mubr.f32.mxu0 0.0
    %v3432 = vand.u32 %v2351, 4294901760
    %3433 = vmatmul.mubr.f32.gmra.mrb[0].mxu0 %v3432
    %v3434 = vpop.f32.mrb[0].mxu0
    %v3435 = vadd.f32 %v3355, %v3434
    %v3436 = vpop.f32.mrb[0].mxu0
    %v3437 = vadd.f32 %v3357, %v3436
    %3438 = vdwg.mxu0
    %v3439 = vand.u32 %v116, 4294901760
    %3440 = vmatprep.subr.mxu0 %v3439
    %v3441 = vand.u32 %v115, 4294901760
    %3442 = vmatpush1.msra.mxu0 %v3441
    %v3443 = vand.u32 %v124, 4294901760
    %3444 = vmatprep.subr.mxu0 %v3443
    %v3445 = vand.u32 %v123, 4294901760
    %3446 = vmatpush1.msra.mxu0 %v3445
    %v3447 = vand.u32 %v132, 4294901760
    %3448 = vmatprep.subr.mxu0 %v3447
    %v3449 = vand.u32 %v131, 4294901760
    %3450 = vmatpush1.msra.mxu0 %v3449
    %v3451 = vand.u32 %v140, 4294901760
    %3452 = vmatprep.subr.mxu0 %v3451
    %v3453 = vand.u32 %v139, 4294901760
    %3454 = vmatpush1.msra.mxu0 %v3453
    %3455 = vmatprep.subr.mxu0 0.0
    %3456 = vmatpush1.msra.mxu0 0.0
    %3457 = vmatprep.subr.mxu0 0.0
    %3458 = vmatpush1.msra.mxu0 0.0
    %3459 = vmatprep.subr.mxu0 0.0
    %3460 = vmatpush1.msra.mxu0 0.0
    %3461 = vmatprep.subr.mxu0 0.0
    %3462 = vmatpush1.msra.mxu0 0.0
    %3463 = vmatprep.subr.mxu0 0.0
    %3464 = vmatpush1.msra.mxu0 0.0
    %3465 = vmatprep.subr.mxu0 0.0
    %3466 = vmatpush1.msra.mxu0 0.0
    %3467 = vmatprep.subr.mxu0 0.0
    %3468 = vmatpush1.msra.mxu0 0.0
    %3469 = vmatprep.subr.mxu0 0.0
    %3470 = vmatpush1.msra.mxu0 0.0
    %3471 = vmatprep.subr.mxu0 0.0
    %3472 = vmatpush1.msra.mxu0 0.0
    %3473 = vmatprep.subr.mxu0 0.0
    %3474 = vmatpush1.msra.mxu0 0.0
    %3475 = vmatprep.subr.mxu0 0.0
    %3476 = vmatpush1.msra.mxu0 0.0
    %3477 = vmatprep.subr.mxu0 0.0
    %3478 = vmatpush1.msra.mxu0 0.0
    %3479 = vmatprep.subr.mxu0 0.0
    %3480 = vmatpush1.msra.mxu0 0.0
    %3481 = vmatprep.subr.mxu0 0.0
    %3482 = vmatpush1.msra.mxu0 0.0
    %3483 = vmatprep.subr.mxu0 0.0
    %3484 = vmatpush1.msra.mxu0 0.0
    %3485 = vmatprep.subr.mxu0 0.0
    %3486 = vmatpush1.msra.mxu0 0.0
    %3487 = vmatprep.subr.mxu0 0.0
    %3488 = vmatpush1.msra.mxu0 0.0
    %3489 = vmatprep.subr.mxu0 0.0
    %3490 = vmatpush1.msra.mxu0 0.0
    %3491 = vmatprep.subr.mxu0 0.0
    %3492 = vmatpush1.msra.mxu0 0.0
    %3493 = vmatprep.subr.mxu0 0.0
    %3494 = vmatpush1.msra.mxu0 0.0
    %3495 = vmatprep.subr.mxu0 0.0
    %3496 = vmatpush1.msra.mxu0 0.0
    %3497 = vmatprep.subr.mxu0 0.0
    %3498 = vmatpush1.msra.mxu0 0.0
    %3499 = vmatprep.subr.mxu0 0.0
    %3500 = vmatpush1.msra.mxu0 0.0
    %3501 = vmatprep.subr.mxu0 0.0
    %3502 = vmatpush1.msra.mxu0 0.0
    %3503 = vmatprep.subr.mxu0 0.0
    %3504 = vmatpush1.msra.mxu0 0.0
    %3505 = vmatprep.subr.mxu0 0.0
    %3506 = vmatpush1.msra.mxu0 0.0
    %3507 = vmatprep.subr.mxu0 0.0
    %3508 = vmatpush1.msra.mxu0 0.0
    %3509 = vmatprep.subr.mxu0 0.0
    %3510 = vmatpush1.msra.mxu0 0.0
    %3511 = vmatprep.mubr.f32.mxu0 0.0
    %v3512 = vand.u32 %v2351, 4294901760
    %v3513 = vsub.f32 %v2351, %v3512
    %v3514 = vand.u32 %v3513, 4294901760
    %v3515 = vsub.f32 %v3513, %v3514
    %v3516 = vand.u32 %v3515, 4294901760
    %3517 = vmatmul.mubr.f32.gmra.mrb[0].mxu0 %v3516
    %v3518 = vpop.f32.mrb[0].mxu0
    %v3519 = vadd.f32 0.0, %v3518
    %v3520 = vpop.f32.mrb[0].mxu0
    %v3521 = vadd.f32 0.0, %v3520
    %3522 = vdwg.mxu0
    %v3523 = vand.u32 %v116, 4294901760
    %v3524 = vsub.f32 %v116, %v3523
    %v3525 = vand.u32 %v3524, 4294901760
    %v3526 = vsub.f32 %v3524, %v3525
    %v3527 = vand.u32 %v3526, 4294901760
    %3528 = vmatprep.subr.mxu0 %v3527
    %v3529 = vand.u32 %v115, 4294901760
    %v3530 = vsub.f32 %v115, %v3529
    %v3531 = vand.u32 %v3530, 4294901760
    %v3532 = vsub.f32 %v3530, %v3531
    %v3533 = vand.u32 %v3532, 4294901760
    %3534 = vmatpush1.msra.mxu0 %v3533
    %v3535 = vand.u32 %v124, 4294901760
    %v3536 = vsub.f32 %v124, %v3535
    %v3537 = vand.u32 %v3536, 4294901760
    %v3538 = vsub.f32 %v3536, %v3537
    %v3539 = vand.u32 %v3538, 4294901760
    %3540 = vmatprep.subr.mxu0 %v3539
    %v3541 = vand.u32 %v123, 4294901760
    %v3542 = vsub.f32 %v123, %v3541
    %v3543 = vand.u32 %v3542, 4294901760
    %v3544 = vsub.f32 %v3542, %v3543
    %v3545 = vand.u32 %v3544, 4294901760
    %3546 = vmatpush1.msra.mxu0 %v3545
    %v3547 = vand.u32 %v132, 4294901760
    %v3548 = vsub.f32 %v132, %v3547
    %v3549 = vand.u32 %v3548, 4294901760
    %v3550 = vsub.f32 %v3548, %v3549
    %v3551 = vand.u32 %v3550, 4294901760
    %3552 = vmatprep.subr.mxu0 %v3551
    %v3553 = vand.u32 %v131, 4294901760
    %v3554 = vsub.f32 %v131, %v3553
    %v3555 = vand.u32 %v3554, 4294901760
    %v3556 = vsub.f32 %v3554, %v3555
    %v3557 = vand.u32 %v3556, 4294901760
    %3558 = vmatpush1.msra.mxu0 %v3557
    %v3559 = vand.u32 %v140, 4294901760
    %v3560 = vsub.f32 %v140, %v3559
    %v3561 = vand.u32 %v3560, 4294901760
    %v3562 = vsub.f32 %v3560, %v3561
    %v3563 = vand.u32 %v3562, 4294901760
    %3564 = vmatprep.subr.mxu0 %v3563
    %v3565 = vand.u32 %v139, 4294901760
    %v3566 = vsub.f32 %v139, %v3565
    %v3567 = vand.u32 %v3566, 4294901760
    %v3568 = vsub.f32 %v3566, %v3567
    %v3569 = vand.u32 %v3568, 4294901760
    %3570 = vmatpush1.msra.mxu0 %v3569
    %3571 = vmatprep.subr.mxu0 0.0
    %3572 = vmatpush1.msra.mxu0 0.0
    %3573 = vmatprep.subr.mxu0 0.0
    %3574 = vmatpush1.msra.mxu0 0.0
    %3575 = vmatprep.subr.mxu0 0.0
    %3576 = vmatpush1.msra.mxu0 0.0
    %3577 = vmatprep.subr.mxu0 0.0
    %3578 = vmatpush1.msra.mxu0 0.0
    %3579 = vmatprep.subr.mxu0 0.0
    %3580 = vmatpush1.msra.mxu0 0.0
    %3581 = vmatprep.subr.mxu0 0.0
    %3582 = vmatpush1.msra.mxu0 0.0
    %3583 = vmatprep.subr.mxu0 0.0
    %3584 = vmatpush1.msra.mxu0 0.0
    %3585 = vmatprep.subr.mxu0 0.0
    %3586 = vmatpush1.msra.mxu0 0.0
    %3587 = vmatprep.subr.mxu0 0.0
    %3588 = vmatpush1.msra.mxu0 0.0
    %3589 = vmatprep.subr.mxu0 0.0
    %3590 = vmatpush1.msra.mxu0 0.0
    %3591 = vmatprep.subr.mxu0 0.0
    %3592 = vmatpush1.msra.mxu0 0.0
    %3593 = vmatprep.subr.mxu0 0.0
    %3594 = vmatpush1.msra.mxu0 0.0
    %3595 = vmatprep.subr.mxu0 0.0
    %3596 = vmatpush1.msra.mxu0 0.0
    %3597 = vmatprep.subr.mxu0 0.0
    %3598 = vmatpush1.msra.mxu0 0.0
    %3599 = vmatprep.subr.mxu0 0.0
    %3600 = vmatpush1.msra.mxu0 0.0
    %3601 = vmatprep.subr.mxu0 0.0
    %3602 = vmatpush1.msra.mxu0 0.0
    %3603 = vmatprep.subr.mxu0 0.0
    %3604 = vmatpush1.msra.mxu0 0.0
    %3605 = vmatprep.subr.mxu0 0.0
    %3606 = vmatpush1.msra.mxu0 0.0
    %3607 = vmatprep.subr.mxu0 0.0
    %3608 = vmatpush1.msra.mxu0 0.0
    %3609 = vmatprep.subr.mxu0 0.0
    %3610 = vmatpush1.msra.mxu0 0.0
    %3611 = vmatprep.subr.mxu0 0.0
    %3612 = vmatpush1.msra.mxu0 0.0
    %3613 = vmatprep.subr.mxu0 0.0
    %3614 = vmatpush1.msra.mxu0 0.0
    %3615 = vmatprep.subr.mxu0 0.0
    %3616 = vmatpush1.msra.mxu0 0.0
    %3617 = vmatprep.subr.mxu0 0.0
    %3618 = vmatpush1.msra.mxu0 0.0
    %3619 = vmatprep.subr.mxu0 0.0
    %3620 = vmatpush1.msra.mxu0 0.0
    %3621 = vmatprep.subr.mxu0 0.0
    %3622 = vmatpush1.msra.mxu0 0.0
    %3623 = vmatprep.subr.mxu0 0.0
    %3624 = vmatpush1.msra.mxu0 0.0
    %3625 = vmatprep.subr.mxu0 0.0
    %3626 = vmatpush1.msra.mxu0 0.0
    %3627 = vmatprep.mubr.f32.mxu0 0.0
    %v3628 = vand.u32 %v2351, 4294901760
    %3629 = vmatmul.mubr.f32.gmra.mrb[0].mxu0 %v3628
    %v3630 = vpop.f32.mrb[0].mxu0
    %v3631 = vadd.f32 %v3519, %v3630
    %v3632 = vpop.f32.mrb[0].mxu0
    %v3633 = vadd.f32 %v3521, %v3632
    %3634 = vdwg.mxu0
    %v3635 = vand.u32 %v116, 4294901760
    %v3636 = vsub.f32 %v116, %v3635
    %3637 = vmatprep.subr.mxu0 %v3636
    %v3638 = vand.u32 %v115, 4294901760
    %v3639 = vsub.f32 %v115, %v3638
    %3640 = vmatpush1.msra.mxu0 %v3639
    %v3641 = vand.u32 %v124, 4294901760
    %v3642 = vsub.f32 %v124, %v3641
    %3643 = vmatprep.subr.mxu0 %v3642
    %v3644 = vand.u32 %v123, 4294901760
    %v3645 = vsub.f32 %v123, %v3644
    %3646 = vmatpush1.msra.mxu0 %v3645
    %v3647 = vand.u32 %v132, 4294901760
    %v3648 = vsub.f32 %v132, %v3647
    %3649 = vmatprep.subr.mxu0 %v3648
    %v3650 = vand.u32 %v131, 4294901760
    %v3651 = vsub.f32 %v131, %v3650
    %3652 = vmatpush1.msra.mxu0 %v3651
    %v3653 = vand.u32 %v140, 4294901760
    %v3654 = vsub.f32 %v140, %v3653
    %3655 = vmatprep.subr.mxu0 %v3654
    %v3656 = vand.u32 %v139, 4294901760
    %v3657 = vsub.f32 %v139, %v3656
    %3658 = vmatpush1.msra.mxu0 %v3657
    %3659 = vmatprep.subr.mxu0 0.0
    %3660 = vmatpush1.msra.mxu0 0.0
    %3661 = vmatprep.subr.mxu0 0.0
    %3662 = vmatpush1.msra.mxu0 0.0
    %3663 = vmatprep.subr.mxu0 0.0
    %3664 = vmatpush1.msra.mxu0 0.0
    %3665 = vmatprep.subr.mxu0 0.0
    %3666 = vmatpush1.msra.mxu0 0.0
    %3667 = vmatprep.subr.mxu0 0.0
    %3668 = vmatpush1.msra.mxu0 0.0
    %3669 = vmatprep.subr.mxu0 0.0
    %3670 = vmatpush1.msra.mxu0 0.0
    %3671 = vmatprep.subr.mxu0 0.0
    %3672 = vmatpush1.msra.mxu0 0.0
    %3673 = vmatprep.subr.mxu0 0.0
    %3674 = vmatpush1.msra.mxu0 0.0
    %3675 = vmatprep.subr.mxu0 0.0
    %3676 = vmatpush1.msra.mxu0 0.0
    %3677 = vmatprep.subr.mxu0 0.0
    %3678 = vmatpush1.msra.mxu0 0.0
    %3679 = vmatprep.subr.mxu0 0.0
    %3680 = vmatpush1.msra.mxu0 0.0
    %3681 = vmatprep.subr.mxu0 0.0
    %3682 = vmatpush1.msra.mxu0 0.0
    %3683 = vmatprep.subr.mxu0 0.0
    %3684 = vmatpush1.msra.mxu0 0.0
    %3685 = vmatprep.subr.mxu0 0.0
    %3686 = vmatpush1.msra.mxu0 0.0
    %3687 = vmatprep.subr.mxu0 0.0
    %3688 = vmatpush1.msra.mxu0 0.0
    %3689 = vmatprep.subr.mxu0 0.0
    %3690 = vmatpush1.msra.mxu0 0.0
    %3691 = vmatprep.subr.mxu0 0.0
    %3692 = vmatpush1.msra.mxu0 0.0
    %3693 = vmatprep.subr.mxu0 0.0
    %3694 = vmatpush1.msra.mxu0 0.0
    %3695 = vmatprep.subr.mxu0 0.0
    %3696 = vmatpush1.msra.mxu0 0.0
    %3697 = vmatprep.subr.mxu0 0.0
    %3698 = vmatpush1.msra.mxu0 0.0
    %3699 = vmatprep.subr.mxu0 0.0
    %3700 = vmatpush1.msra.mxu0 0.0
    %3701 = vmatprep.subr.mxu0 0.0
    %3702 = vmatpush1.msra.mxu0 0.0
    %3703 = vmatprep.subr.mxu0 0.0
    %3704 = vmatpush1.msra.mxu0 0.0
    %3705 = vmatprep.subr.mxu0 0.0
    %3706 = vmatpush1.msra.mxu0 0.0
    %3707 = vmatprep.subr.mxu0 0.0
    %3708 = vmatpush1.msra.mxu0 0.0
    %3709 = vmatprep.subr.mxu0 0.0
    %3710 = vmatpush1.msra.mxu0 0.0
    %3711 = vmatprep.subr.mxu0 0.0
    %3712 = vmatpush1.msra.mxu0 0.0
    %3713 = vmatprep.subr.mxu0 0.0
    %3714 = vmatpush1.msra.mxu0 0.0
    %3715 = vmatprep.mubr.f32.mxu0 0.0
    %v3716 = vand.u32 %v2351, 4294901760
    %v3717 = vsub.f32 %v2351, %v3716
    %3718 = vmatmul.mubr.f32.gmra.mrb[0].mxu0 %v3717
    %v3719 = vpop.f32.mrb[0].mxu0
    %v3720 = vadd.f32 %v3631, %v3719
    %v3721 = vpop.f32.mrb[0].mxu0
    %v3722 = vadd.f32 %v3633, %v3721
    %3723 = vdwg.mxu0
    %v3724 = vand.u32 %v116, 4294901760
    %3725 = vmatprep.subr.mxu0 %v3724
    %v3726 = vand.u32 %v115, 4294901760
    %3727 = vmatpush1.msra.mxu0 %v3726
    %v3728 = vand.u32 %v124, 4294901760
    %3729 = vmatprep.subr.mxu0 %v3728
    %v3730 = vand.u32 %v123, 4294901760
    %3731 = vmatpush1.msra.mxu0 %v3730
    %v3732 = vand.u32 %v132, 4294901760
    %3733 = vmatprep.subr.mxu0 %v3732
    %v3734 = vand.u32 %v131, 4294901760
    %3735 = vmatpush1.msra.mxu0 %v3734
    %v3736 = vand.u32 %v140, 4294901760
    %3737 = vmatprep.subr.mxu0 %v3736
    %v3738 = vand.u32 %v139, 4294901760
    %3739 = vmatpush1.msra.mxu0 %v3738
    %3740 = vmatprep.subr.mxu0 0.0
    %3741 = vmatpush1.msra.mxu0 0.0
    %3742 = vmatprep.subr.mxu0 0.0
    %3743 = vmatpush1.msra.mxu0 0.0
    %3744 = vmatprep.subr.mxu0 0.0
    %3745 = vmatpush1.msra.mxu0 0.0
    %3746 = vmatprep.subr.mxu0 0.0
    %3747 = vmatpush1.msra.mxu0 0.0
    %3748 = vmatprep.subr.mxu0 0.0
    %3749 = vmatpush1.msra.mxu0 0.0
    %3750 = vmatprep.subr.mxu0 0.0
    %3751 = vmatpush1.msra.mxu0 0.0
    %3752 = vmatprep.subr.mxu0 0.0
    %3753 = vmatpush1.msra.mxu0 0.0
    %3754 = vmatprep.subr.mxu0 0.0
    %3755 = vmatpush1.msra.mxu0 0.0
    %3756 = vmatprep.subr.mxu0 0.0
    %3757 = vmatpush1.msra.mxu0 0.0
    %3758 = vmatprep.subr.mxu0 0.0
    %3759 = vmatpush1.msra.mxu0 0.0
    %3760 = vmatprep.subr.mxu0 0.0
    %3761 = vmatpush1.msra.mxu0 0.0
    %3762 = vmatprep.subr.mxu0 0.0
    %3763 = vmatpush1.msra.mxu0 0.0
    %3764 = vmatprep.subr.mxu0 0.0
    %3765 = vmatpush1.msra.mxu0 0.0
    %3766 = vmatprep.subr.mxu0 0.0
    %3767 = vmatpush1.msra.mxu0 0.0
    %3768 = vmatprep.subr.mxu0 0.0
    %3769 = vmatpush1.msra.mxu0 0.0
    %3770 = vmatprep.subr.mxu0 0.0
    %3771 = vmatpush1.msra.mxu0 0.0
    %3772 = vmatprep.subr.mxu0 0.0
    %3773 = vmatpush1.msra.mxu0 0.0
    %3774 = vmatprep.subr.mxu0 0.0
    %3775 = vmatpush1.msra.mxu0 0.0
    %3776 = vmatprep.subr.mxu0 0.0
    %3777 = vmatpush1.msra.mxu0 0.0
    %3778 = vmatprep.subr.mxu0 0.0
    %3779 = vmatpush1.msra.mxu0 0.0
    %3780 = vmatprep.subr.mxu0 0.0
    %3781 = vmatpush1.msra.mxu0 0.0
    %3782 = vmatprep.subr.mxu0 0.0
    %3783 = vmatpush1.msra.mxu0 0.0
    %3784 = vmatprep.subr.mxu0 0.0
    %3785 = vmatpush1.msra.mxu0 0.0
    %3786 = vmatprep.subr.mxu0 0.0
    %3787 = vmatpush1.msra.mxu0 0.0
    %3788 = vmatprep.subr.mxu0 0.0
    %3789 = vmatpush1.msra.mxu0 0.0
    %3790 = vmatprep.subr.mxu0 0.0
    %3791 = vmatpush1.msra.mxu0 0.0
    %3792 = vmatprep.subr.mxu0 0.0
    %3793 = vmatpush1.msra.mxu0 0.0
    %3794 = vmatprep.subr.mxu0 0.0
    %3795 = vmatpush1.msra.mxu0 0.0
    %3796 = vmatprep.mubr.f32.mxu0 0.0
    %v3797 = vand.u32 %v2351, 4294901760
    %v3798 = vsub.f32 %v2351, %v3797
    %v3799 = vand.u32 %v3798, 4294901760
    %3800 = vmatmul.mubr.f32.gmra.mrb[0].mxu0 %v3799
    %v3801 = vpop.f32.mrb[0].mxu0
    %v3802 = vadd.f32 %v3720, %v3801
    %v3803 = vpop.f32.mrb[0].mxu0
    %v3804 = vadd.f32 %v3722, %v3803
    %3805 = vdwg.mxu0
    %v3806 = vand.u32 %v116, 4294901760
    %v3807 = vsub.f32 %v116, %v3806
    %v3808 = vand.u32 %v3807, 4294901760
    %3809 = vmatprep.subr.mxu0 %v3808
    %v3810 = vand.u32 %v115, 4294901760
    %v3811 = vsub.f32 %v115, %v3810
    %v3812 = vand.u32 %v3811, 4294901760
    %3813 = vmatpush1.msra.mxu0 %v3812
    %v3814 = vand.u32 %v124, 4294901760
    %v3815 = vsub.f32 %v124, %v3814
    %v3816 = vand.u32 %v3815, 4294901760
    %3817 = vmatprep.subr.mxu0 %v3816
    %v3818 = vand.u32 %v123, 4294901760
    %v3819 = vsub.f32 %v123, %v3818
    %v3820 = vand.u32 %v3819, 4294901760
    %3821 = vmatpush1.msra.mxu0 %v3820
    %v3822 = vand.u32 %v132, 4294901760
    %v3823 = vsub.f32 %v132, %v3822
    %v3824 = vand.u32 %v3823, 4294901760
    %3825 = vmatprep.subr.mxu0 %v3824
    %v3826 = vand.u32 %v131, 4294901760
    %v3827 = vsub.f32 %v131, %v3826
    %v3828 = vand.u32 %v3827, 4294901760
    %3829 = vmatpush1.msra.mxu0 %v3828
    %v3830 = vand.u32 %v140, 4294901760
    %v3831 = vsub.f32 %v140, %v3830
    %v3832 = vand.u32 %v3831, 4294901760
    %3833 = vmatprep.subr.mxu0 %v3832
    %v3834 = vand.u32 %v139, 4294901760
    %v3835 = vsub.f32 %v139, %v3834
    %v3836 = vand.u32 %v3835, 4294901760
    %3837 = vmatpush1.msra.mxu0 %v3836
    %3838 = vmatprep.subr.mxu0 0.0
    %3839 = vmatpush1.msra.mxu0 0.0
    %3840 = vmatprep.subr.mxu0 0.0
    %3841 = vmatpush1.msra.mxu0 0.0
    %3842 = vmatprep.subr.mxu0 0.0
    %3843 = vmatpush1.msra.mxu0 0.0
    %3844 = vmatprep.subr.mxu0 0.0
    %3845 = vmatpush1.msra.mxu0 0.0
    %3846 = vmatprep.subr.mxu0 0.0
    %3847 = vmatpush1.msra.mxu0 0.0
    %3848 = vmatprep.subr.mxu0 0.0
    %3849 = vmatpush1.msra.mxu0 0.0
    %3850 = vmatprep.subr.mxu0 0.0
    %3851 = vmatpush1.msra.mxu0 0.0
    %3852 = vmatprep.subr.mxu0 0.0
    %3853 = vmatpush1.msra.mxu0 0.0
    %3854 = vmatprep.subr.mxu0 0.0
    %3855 = vmatpush1.msra.mxu0 0.0
    %3856 = vmatprep.subr.mxu0 0.0
    %3857 = vmatpush1.msra.mxu0 0.0
    %3858 = vmatprep.subr.mxu0 0.0
    %3859 = vmatpush1.msra.mxu0 0.0
    %3860 = vmatprep.subr.mxu0 0.0
    %3861 = vmatpush1.msra.mxu0 0.0
    %3862 = vmatprep.subr.mxu0 0.0
    %3863 = vmatpush1.msra.mxu0 0.0
    %3864 = vmatprep.subr.mxu0 0.0
    %3865 = vmatpush1.msra.mxu0 0.0
    %3866 = vmatprep.subr.mxu0 0.0
    %3867 = vmatpush1.msra.mxu0 0.0
    %3868 = vmatprep.subr.mxu0 0.0
    %3869 = vmatpush1.msra.mxu0 0.0
    %3870 = vmatprep.subr.mxu0 0.0
    %3871 = vmatpush1.msra.mxu0 0.0
    %3872 = vmatprep.subr.mxu0 0.0
    %3873 = vmatpush1.msra.mxu0 0.0
    %3874 = vmatprep.subr.mxu0 0.0
    %3875 = vmatpush1.msra.mxu0 0.0
    %3876 = vmatprep.subr.mxu0 0.0
    %3877 = vmatpush1.msra.mxu0 0.0
    %3878 = vmatprep.subr.mxu0 0.0
    %3879 = vmatpush1.msra.mxu0 0.0
    %3880 = vmatprep.subr.mxu0 0.0
    %3881 = vmatpush1.msra.mxu0 0.0
    %3882 = vmatprep.subr.mxu0 0.0
    %3883 = vmatpush1.msra.mxu0 0.0
    %3884 = vmatprep.subr.mxu0 0.0
    %3885 = vmatpush1.msra.mxu0 0.0
    %3886 = vmatprep.subr.mxu0 0.0
    %3887 = vmatpush1.msra.mxu0 0.0
    %3888 = vmatprep.subr.mxu0 0.0
    %3889 = vmatpush1.msra.mxu0 0.0
    %3890 = vmatprep.subr.mxu0 0.0
    %3891 = vmatpush1.msra.mxu0 0.0
    %3892 = vmatprep.subr.mxu0 0.0
    %3893 = vmatpush1.msra.mxu0 0.0
    %3894 = vmatprep.mubr.f32.mxu0 0.0
    %v3895 = vand.u32 %v2351, 4294901760
    %3896 = vmatmul.mubr.f32.gmra.mrb[0].mxu0 %v3895
    %v3897 = vpop.f32.mrb[0].mxu0
    %v3898 = vadd.f32 %v3802, %v3897
    %v3899 = vpop.f32.mrb[0].mxu0
    %v3900 = vadd.f32 %v3804, %v3899
    %3901 = vdwg.mxu0
    %v3902 = vand.u32 %v116, 4294901760
    %3903 = vmatprep.subr.mxu0 %v3902
    %v3904 = vand.u32 %v115, 4294901760
    %3905 = vmatpush1.msra.mxu0 %v3904
    %v3906 = vand.u32 %v124, 4294901760
    %3907 = vmatprep.subr.mxu0 %v3906
    %v3908 = vand.u32 %v123, 4294901760
    %3909 = vmatpush1.msra.mxu0 %v3908
    %v3910 = vand.u32 %v132, 4294901760
    %3911 = vmatprep.subr.mxu0 %v3910
    %v3912 = vand.u32 %v131, 4294901760
    %3913 = vmatpush1.msra.mxu0 %v3912
    %v3914 = vand.u32 %v140, 4294901760
    %3915 = vmatprep.subr.mxu0 %v3914
    %v3916 = vand.u32 %v139, 4294901760
    %3917 = vmatpush1.msra.mxu0 %v3916
    %3918 = vmatprep.subr.mxu0 0.0
    %3919 = vmatpush1.msra.mxu0 0.0
    %3920 = vmatprep.subr.mxu0 0.0
    %3921 = vmatpush1.msra.mxu0 0.0
    %3922 = vmatprep.subr.mxu0 0.0
    %3923 = vmatpush1.msra.mxu0 0.0
    %3924 = vmatprep.subr.mxu0 0.0
    %3925 = vmatpush1.msra.mxu0 0.0
    %3926 = vmatprep.subr.mxu0 0.0
    %3927 = vmatpush1.msra.mxu0 0.0
    %3928 = vmatprep.subr.mxu0 0.0
    %3929 = vmatpush1.msra.mxu0 0.0
    %3930 = vmatprep.subr.mxu0 0.0
    %3931 = vmatpush1.msra.mxu0 0.0
    %3932 = vmatprep.subr.mxu0 0.0
    %3933 = vmatpush1.msra.mxu0 0.0
    %3934 = vmatprep.subr.mxu0 0.0
    %3935 = vmatpush1.msra.mxu0 0.0
    %3936 = vmatprep.subr.mxu0 0.0
    %3937 = vmatpush1.msra.mxu0 0.0
    %3938 = vmatprep.subr.mxu0 0.0
    %3939 = vmatpush1.msra.mxu0 0.0
    %3940 = vmatprep.subr.mxu0 0.0
    %3941 = vmatpush1.msra.mxu0 0.0
    %3942 = vmatprep.subr.mxu0 0.0
    %3943 = vmatpush1.msra.mxu0 0.0
    %3944 = vmatprep.subr.mxu0 0.0
    %3945 = vmatpush1.msra.mxu0 0.0
    %3946 = vmatprep.subr.mxu0 0.0
    %3947 = vmatpush1.msra.mxu0 0.0
    %3948 = vmatprep.subr.mxu0 0.0
    %3949 = vmatpush1.msra.mxu0 0.0
    %3950 = vmatprep.subr.mxu0 0.0
    %3951 = vmatpush1.msra.mxu0 0.0
    %3952 = vmatprep.subr.mxu0 0.0
    %3953 = vmatpush1.msra.mxu0 0.0
    %3954 = vmatprep.subr.mxu0 0.0
    %3955 = vmatpush1.msra.mxu0 0.0
    %3956 = vmatprep.subr.mxu0 0.0
    %3957 = vmatpush1.msra.mxu0 0.0
    %3958 = vmatprep.subr.mxu0 0.0
    %3959 = vmatpush1.msra.mxu0 0.0
    %3960 = vmatprep.subr.mxu0 0.0
    %3961 = vmatpush1.msra.mxu0 0.0
    %3962 = vmatprep.subr.mxu0 0.0
    %3963 = vmatpush1.msra.mxu0 0.0
    %3964 = vmatprep.subr.mxu0 0.0
    %3965 = vmatpush1.msra.mxu0 0.0
    %3966 = vmatprep.subr.mxu0 0.0
    %3967 = vmatpush1.msra.mxu0 0.0
    %3968 = vmatprep.subr.mxu0 0.0
    %3969 = vmatpush1.msra.mxu0 0.0
    %3970 = vmatprep.subr.mxu0 0.0
    %3971 = vmatpush1.msra.mxu0 0.0
    %3972 = vmatprep.subr.mxu0 0.0
    %3973 = vmatpush1.msra.mxu0 0.0
    %3974 = vmatprep.mubr.f32.mxu0 0.0
    %v3975 = vand.u32 %v2351, 4294901760
    %3976 = vmatmul.mubr.f32.gmra.mrb[0].mxu0 %v3975
    %v3977 = vpop.f32.mrb[0].mxu0
    %v3978 = vadd.f32 %v3898, %v3977
    %v3979 = vpop.f32.mrb[0].mxu0
    %v3980 = vadd.f32 %v3900, %v3979
    %3981 = vdwg.mxu0
    %v3982 = vand.u32 %v118, 4294901760
    %3983 = vmatprep.subr.mxu0 %v3982
    %v3984 = vand.u32 %v117, 4294901760
    %3985 = vmatpush1.msra.mxu0 %v3984
    %v3986 = vand.u32 %v126, 4294901760
    %3987 = vmatprep.subr.mxu0 %v3986
    %v3988 = vand.u32 %v125, 4294901760
    %3989 = vmatpush1.msra.mxu0 %v3988
    %v3990 = vand.u32 %v134, 4294901760
    %3991 = vmatprep.subr.mxu0 %v3990
    %v3992 = vand.u32 %v133, 4294901760
    %3993 = vmatpush1.msra.mxu0 %v3992
    %v3994 = vand.u32 %v142, 4294901760
    %3995 = vmatprep.subr.mxu0 %v3994
    %v3996 = vand.u32 %v141, 4294901760
    %3997 = vmatpush1.msra.mxu0 %v3996
    %3998 = vmatprep.subr.mxu0 0.0
    %3999 = vmatpush1.msra.mxu0 0.0
    %4000 = vmatprep.subr.mxu0 0.0
    %4001 = vmatpush1.msra.mxu0 0.0
    %4002 = vmatprep.subr.mxu0 0.0
    %4003 = vmatpush1.msra.mxu0 0.0
    %4004 = vmatprep.subr.mxu0 0.0
    %4005 = vmatpush1.msra.mxu0 0.0
    %4006 = vmatprep.subr.mxu0 0.0
    %4007 = vmatpush1.msra.mxu0 0.0
    %4008 = vmatprep.subr.mxu0 0.0
    %4009 = vmatpush1.msra.mxu0 0.0
    %4010 = vmatprep.subr.mxu0 0.0
    %4011 = vmatpush1.msra.mxu0 0.0
    %4012 = vmatprep.subr.mxu0 0.0
    %4013 = vmatpush1.msra.mxu0 0.0
    %4014 = vmatprep.subr.mxu0 0.0
    %4015 = vmatpush1.msra.mxu0 0.0
    %4016 = vmatprep.subr.mxu0 0.0
    %4017 = vmatpush1.msra.mxu0 0.0
    %4018 = vmatprep.subr.mxu0 0.0
    %4019 = vmatpush1.msra.mxu0 0.0
    %4020 = vmatprep.subr.mxu0 0.0
    %4021 = vmatpush1.msra.mxu0 0.0
    %4022 = vmatprep.subr.mxu0 0.0
    %4023 = vmatpush1.msra.mxu0 0.0
    %4024 = vmatprep.subr.mxu0 0.0
    %4025 = vmatpush1.msra.mxu0 0.0
    %4026 = vmatprep.subr.mxu0 0.0
    %4027 = vmatpush1.msra.mxu0 0.0
    %4028 = vmatprep.subr.mxu0 0.0
    %4029 = vmatpush1.msra.mxu0 0.0
    %4030 = vmatprep.subr.mxu0 0.0
    %4031 = vmatpush1.msra.mxu0 0.0
    %4032 = vmatprep.subr.mxu0 0.0
    %4033 = vmatpush1.msra.mxu0 0.0
    %4034 = vmatprep.subr.mxu0 0.0
    %4035 = vmatpush1.msra.mxu0 0.0
    %4036 = vmatprep.subr.mxu0 0.0
    %4037 = vmatpush1.msra.mxu0 0.0
    %4038 = vmatprep.subr.mxu0 0.0
    %4039 = vmatpush1.msra.mxu0 0.0
    %4040 = vmatprep.subr.mxu0 0.0
    %4041 = vmatpush1.msra.mxu0 0.0
    %4042 = vmatprep.subr.mxu0 0.0
    %4043 = vmatpush1.msra.mxu0 0.0
    %4044 = vmatprep.subr.mxu0 0.0
    %4045 = vmatpush1.msra.mxu0 0.0
    %4046 = vmatprep.subr.mxu0 0.0
    %4047 = vmatpush1.msra.mxu0 0.0
    %4048 = vmatprep.subr.mxu0 0.0
    %4049 = vmatpush1.msra.mxu0 0.0
    %4050 = vmatprep.subr.mxu0 0.0
    %4051 = vmatpush1.msra.mxu0 0.0
    %4052 = vmatprep.subr.mxu0 0.0
    %4053 = vmatpush1.msra.mxu0 0.0
    %4054 = vmatprep.mubr.f32.mxu0 0.0
    %v4055 = vand.u32 %v2351, 4294901760
    %v4056 = vsub.f32 %v2351, %v4055
    %v4057 = vand.u32 %v4056, 4294901760
    %v4058 = vsub.f32 %v4056, %v4057
    %v4059 = vand.u32 %v4058, 4294901760
    %4060 = vmatmul.mubr.f32.gmra.mrb[0].mxu0 %v4059
    %v4061 = vpop.f32.mrb[0].mxu0
    %v4062 = vadd.f32 0.0, %v4061
    %v4063 = vpop.f32.mrb[0].mxu0
    %v4064 = vadd.f32 0.0, %v4063
    %4065 = vdwg.mxu0
    %v4066 = vand.u32 %v118, 4294901760
    %v4067 = vsub.f32 %v118, %v4066
    %v4068 = vand.u32 %v4067, 4294901760
    %v4069 = vsub.f32 %v4067, %v4068
    %v4070 = vand.u32 %v4069, 4294901760
    %4071 = vmatprep.subr.mxu0 %v4070
    %v4072 = vand.u32 %v117, 4294901760
    %v4073 = vsub.f32 %v117, %v4072
    %v4074 = vand.u32 %v4073, 4294901760
    %v4075 = vsub.f32 %v4073, %v4074
    %v4076 = vand.u32 %v4075, 4294901760
    %4077 = vmatpush1.msra.mxu0 %v4076
    %v4078 = vand.u32 %v126, 4294901760
    %v4079 = vsub.f32 %v126, %v4078
    %v4080 = vand.u32 %v4079, 4294901760
    %v4081 = vsub.f32 %v4079, %v4080
    %v4082 = vand.u32 %v4081, 4294901760
    %4083 = vmatprep.subr.mxu0 %v4082
    %v4084 = vand.u32 %v125, 4294901760
    %v4085 = vsub.f32 %v125, %v4084
    %v4086 = vand.u32 %v4085, 4294901760
    %v4087 = vsub.f32 %v4085, %v4086
    %v4088 = vand.u32 %v4087, 4294901760
    %4089 = vmatpush1.msra.mxu0 %v4088
    %v4090 = vand.u32 %v134, 4294901760
    %v4091 = vsub.f32 %v134, %v4090
    %v4092 = vand.u32 %v4091, 4294901760
    %v4093 = vsub.f32 %v4091, %v4092
    %v4094 = vand.u32 %v4093, 4294901760
    %4095 = vmatprep.subr.mxu0 %v4094
    %v4096 = vand.u32 %v133, 4294901760
    %v4097 = vsub.f32 %v133, %v4096
    %v4098 = vand.u32 %v4097, 4294901760
    %v4099 = vsub.f32 %v4097, %v4098
    %v4100 = vand.u32 %v4099, 4294901760
    %4101 = vmatpush1.msra.mxu0 %v4100
    %v4102 = vand.u32 %v142, 4294901760
    %v4103 = vsub.f32 %v142, %v4102
    %v4104 = vand.u32 %v4103, 4294901760
    %v4105 = vsub.f32 %v4103, %v4104
    %v4106 = vand.u32 %v4105, 4294901760
    %4107 = vmatprep.subr.mxu0 %v4106
    %v4108 = vand.u32 %v141, 4294901760
    %v4109 = vsub.f32 %v141, %v4108
    %v4110 = vand.u32 %v4109, 4294901760
    %v4111 = vsub.f32 %v4109, %v4110
    %v4112 = vand.u32 %v4111, 4294901760
    %4113 = vmatpush1.msra.mxu0 %v4112
    %4114 = vmatprep.subr.mxu0 0.0
    %4115 = vmatpush1.msra.mxu0 0.0
    %4116 = vmatprep.subr.mxu0 0.0
    %4117 = vmatpush1.msra.mxu0 0.0
    %4118 = vmatprep.subr.mxu0 0.0
    %4119 = vmatpush1.msra.mxu0 0.0
    %4120 = vmatprep.subr.mxu0 0.0
    %4121 = vmatpush1.msra.mxu0 0.0
    %4122 = vmatprep.subr.mxu0 0.0
    %4123 = vmatpush1.msra.mxu0 0.0
    %4124 = vmatprep.subr.mxu0 0.0
    %4125 = vmatpush1.msra.mxu0 0.0
    %4126 = vmatprep.subr.mxu0 0.0
    %4127 = vmatpush1.msra.mxu0 0.0
    %4128 = vmatprep.subr.mxu0 0.0
    %4129 = vmatpush1.msra.mxu0 0.0
    %4130 = vmatprep.subr.mxu0 0.0
    %4131 = vmatpush1.msra.mxu0 0.0
    %4132 = vmatprep.subr.mxu0 0.0
    %4133 = vmatpush1.msra.mxu0 0.0
    %4134 = vmatprep.subr.mxu0 0.0
    %4135 = vmatpush1.msra.mxu0 0.0
    %4136 = vmatprep.subr.mxu0 0.0
    %4137 = vmatpush1.msra.mxu0 0.0
    %4138 = vmatprep.subr.mxu0 0.0
    %4139 = vmatpush1.msra.mxu0 0.0
    %4140 = vmatprep.subr.mxu0 0.0
    %4141 = vmatpush1.msra.mxu0 0.0
    %4142 = vmatprep.subr.mxu0 0.0
    %4143 = vmatpush1.msra.mxu0 0.0
    %4144 = vmatprep.subr.mxu0 0.0
    %4145 = vmatpush1.msra.mxu0 0.0
    %4146 = vmatprep.subr.mxu0 0.0
    %4147 = vmatpush1.msra.mxu0 0.0
    %4148 = vmatprep.subr.mxu0 0.0
    %4149 = vmatpush1.msra.mxu0 0.0
    %4150 = vmatprep.subr.mxu0 0.0
    %4151 = vmatpush1.msra.mxu0 0.0
    %4152 = vmatprep.subr.mxu0 0.0
    %4153 = vmatpush1.msra.mxu0 0.0
    %4154 = vmatprep.subr.mxu0 0.0
    %4155 = vmatpush1.msra.mxu0 0.0
    %4156 = vmatprep.subr.mxu0 0.0
    %4157 = vmatpush1.msra.mxu0 0.0
    %4158 = vmatprep.subr.mxu0 0.0
    %4159 = vmatpush1.msra.mxu0 0.0
    %4160 = vmatprep.subr.mxu0 0.0
    %4161 = vmatpush1.msra.mxu0 0.0
    %4162 = vmatprep.subr.mxu0 0.0
    %4163 = vmatpush1.msra.mxu0 0.0
    %4164 = vmatprep.subr.mxu0 0.0
    %4165 = vmatpush1.msra.mxu0 0.0
    %4166 = vmatprep.subr.mxu0 0.0
    %4167 = vmatpush1.msra.mxu0 0.0
    %4168 = vmatprep.subr.mxu0 0.0
    %4169 = vmatpush1.msra.mxu0 0.0
    %4170 = vmatprep.mubr.f32.mxu0 0.0
    %v4171 = vand.u32 %v2351, 4294901760
    %4172 = vmatmul.mubr.f32.gmra.mrb[0].mxu0 %v4171
    %v4173 = vpop.f32.mrb[0].mxu0
    %v4174 = vadd.f32 %v4062, %v4173
    %v4175 = vpop.f32.mrb[0].mxu0
    %v4176 = vadd.f32 %v4064, %v4175
    %4177 = vdwg.mxu0
    %v4178 = vand.u32 %v118, 4294901760
    %v4179 = vsub.f32 %v118, %v4178
    %4180 = vmatprep.subr.mxu0 %v4179
    %v4181 = vand.u32 %v117, 4294901760
    %v4182 = vsub.f32 %v117, %v4181
    %4183 = vmatpush1.msra.mxu0 %v4182
    %v4184 = vand.u32 %v126, 4294901760
    %v4185 = vsub.f32 %v126, %v4184
    %4186 = vmatprep.subr.mxu0 %v4185
    %v4187 = vand.u32 %v125, 4294901760
    %v4188 = vsub.f32 %v125, %v4187
    %4189 = vmatpush1.msra.mxu0 %v4188
    %v4190 = vand.u32 %v134, 4294901760
    %v4191 = vsub.f32 %v134, %v4190
    %4192 = vmatprep.subr.mxu0 %v4191
    %v4193 = vand.u32 %v133, 4294901760
    %v4194 = vsub.f32 %v133, %v4193
    %4195 = vmatpush1.msra.mxu0 %v4194
    %v4196 = vand.u32 %v142, 4294901760
    %v4197 = vsub.f32 %v142, %v4196
    %4198 = vmatprep.subr.mxu0 %v4197
    %v4199 = vand.u32 %v141, 4294901760
    %v4200 = vsub.f32 %v141, %v4199
    %4201 = vmatpush1.msra.mxu0 %v4200
    %4202 = vmatprep.subr.mxu0 0.0
    %4203 = vmatpush1.msra.mxu0 0.0
    %4204 = vmatprep.subr.mxu0 0.0
    %4205 = vmatpush1.msra.mxu0 0.0
    %4206 = vmatprep.subr.mxu0 0.0
    %4207 = vmatpush1.msra.mxu0 0.0
    %4208 = vmatprep.subr.mxu0 0.0
    %4209 = vmatpush1.msra.mxu0 0.0
    %4210 = vmatprep.subr.mxu0 0.0
    %4211 = vmatpush1.msra.mxu0 0.0
    %4212 = vmatprep.subr.mxu0 0.0
    %4213 = vmatpush1.msra.mxu0 0.0
    %4214 = vmatprep.subr.mxu0 0.0
    %4215 = vmatpush1.msra.mxu0 0.0
    %4216 = vmatprep.subr.mxu0 0.0
    %4217 = vmatpush1.msra.mxu0 0.0
    %4218 = vmatprep.subr.mxu0 0.0
    %4219 = vmatpush1.msra.mxu0 0.0
    %4220 = vmatprep.subr.mxu0 0.0
    %4221 = vmatpush1.msra.mxu0 0.0
    %4222 = vmatprep.subr.mxu0 0.0
    %4223 = vmatpush1.msra.mxu0 0.0
    %4224 = vmatprep.subr.mxu0 0.0
    %4225 = vmatpush1.msra.mxu0 0.0
    %4226 = vmatprep.subr.mxu0 0.0
    %4227 = vmatpush1.msra.mxu0 0.0
    %4228 = vmatprep.subr.mxu0 0.0
    %4229 = vmatpush1.msra.mxu0 0.0
    %4230 = vmatprep.subr.mxu0 0.0
    %4231 = vmatpush1.msra.mxu0 0.0
    %4232 = vmatprep.subr.mxu0 0.0
    %4233 = vmatpush1.msra.mxu0 0.0
    %4234 = vmatprep.subr.mxu0 0.0
    %4235 = vmatpush1.msra.mxu0 0.0
    %4236 = vmatprep.subr.mxu0 0.0
    %4237 = vmatpush1.msra.mxu0 0.0
    %4238 = vmatprep.subr.mxu0 0.0
    %4239 = vmatpush1.msra.mxu0 0.0
    %4240 = vmatprep.subr.mxu0 0.0
    %4241 = vmatpush1.msra.mxu0 0.0
    %4242 = vmatprep.subr.mxu0 0.0
    %4243 = vmatpush1.msra.mxu0 0.0
    %4244 = vmatprep.subr.mxu0 0.0
    %4245 = vmatpush1.msra.mxu0 0.0
    %4246 = vmatprep.subr.mxu0 0.0
    %4247 = vmatpush1.msra.mxu0 0.0
    %4248 = vmatprep.subr.mxu0 0.0
    %4249 = vmatpush1.msra.mxu0 0.0
    %4250 = vmatprep.subr.mxu0 0.0
    %4251 = vmatpush1.msra.mxu0 0.0
    %4252 = vmatprep.subr.mxu0 0.0
    %4253 = vmatpush1.msra.mxu0 0.0
    %4254 = vmatprep.subr.mxu0 0.0
    %4255 = vmatpush1.msra.mxu0 0.0
    %4256 = vmatprep.subr.mxu0 0.0
    %4257 = vmatpush1.msra.mxu0 0.0
    %4258 = vmatprep.mubr.f32.mxu0 0.0
    %v4259 = vand.u32 %v2351, 4294901760
    %v4260 = vsub.f32 %v2351, %v4259
    %4261 = vmatmul.mubr.f32.gmra.mrb[0].mxu0 %v4260
    %v4262 = vpop.f32.mrb[0].mxu0
    %v4263 = vadd.f32 %v4174, %v4262
    %v4264 = vpop.f32.mrb[0].mxu0
    %v4265 = vadd.f32 %v4176, %v4264
    %4266 = vdwg.mxu0
    %v4267 = vand.u32 %v118, 4294901760
    %4268 = vmatprep.subr.mxu0 %v4267
    %v4269 = vand.u32 %v117, 4294901760
    %4270 = vmatpush1.msra.mxu0 %v4269
    %v4271 = vand.u32 %v126, 4294901760
    %4272 = vmatprep.subr.mxu0 %v4271
    %v4273 = vand.u32 %v125, 4294901760
    %4274 = vmatpush1.msra.mxu0 %v4273
    %v4275 = vand.u32 %v134, 4294901760
    %4276 = vmatprep.subr.mxu0 %v4275
    %v4277 = vand.u32 %v133, 4294901760
    %4278 = vmatpush1.msra.mxu0 %v4277
    %v4279 = vand.u32 %v142, 4294901760
    %4280 = vmatprep.subr.mxu0 %v4279
    %v4281 = vand.u32 %v141, 4294901760
    %4282 = vmatpush1.msra.mxu0 %v4281
    %4283 = vmatprep.subr.mxu0 0.0
    %4284 = vmatpush1.msra.mxu0 0.0
    %4285 = vmatprep.subr.mxu0 0.0
    %4286 = vmatpush1.msra.mxu0 0.0
    %4287 = vmatprep.subr.mxu0 0.0
    %4288 = vmatpush1.msra.mxu0 0.0
    %4289 = vmatprep.subr.mxu0 0.0
    %4290 = vmatpush1.msra.mxu0 0.0
    %4291 = vmatprep.subr.mxu0 0.0
    %4292 = vmatpush1.msra.mxu0 0.0
    %4293 = vmatprep.subr.mxu0 0.0
    %4294 = vmatpush1.msra.mxu0 0.0
    %4295 = vmatprep.subr.mxu0 0.0
    %4296 = vmatpush1.msra.mxu0 0.0
    %4297 = vmatprep.subr.mxu0 0.0
    %4298 = vmatpush1.msra.mxu0 0.0
    %4299 = vmatprep.subr.mxu0 0.0
    %4300 = vmatpush1.msra.mxu0 0.0
    %4301 = vmatprep.subr.mxu0 0.0
    %4302 = vmatpush1.msra.mxu0 0.0
    %4303 = vmatprep.subr.mxu0 0.0
    %4304 = vmatpush1.msra.mxu0 0.0
    %4305 = vmatprep.subr.mxu0 0.0
    %4306 = vmatpush1.msra.mxu0 0.0
    %4307 = vmatprep.subr.mxu0 0.0
    %4308 = vmatpush1.msra.mxu0 0.0
    %4309 = vmatprep.subr.mxu0 0.0
    %4310 = vmatpush1.msra.mxu0 0.0
    %4311 = vmatprep.subr.mxu0 0.0
    %4312 = vmatpush1.msra.mxu0 0.0
    %4313 = vmatprep.subr.mxu0 0.0
    %4314 = vmatpush1.msra.mxu0 0.0
    %4315 = vmatprep.subr.mxu0 0.0
    %4316 = vmatpush1.msra.mxu0 0.0
    %4317 = vmatprep.subr.mxu0 0.0
    %4318 = vmatpush1.msra.mxu0 0.0
    %4319 = vmatprep.subr.mxu0 0.0
    %4320 = vmatpush1.msra.mxu0 0.0
    %4321 = vmatprep.subr.mxu0 0.0
    %4322 = vmatpush1.msra.mxu0 0.0
    %4323 = vmatprep.subr.mxu0 0.0
    %4324 = vmatpush1.msra.mxu0 0.0
    %4325 = vmatprep.subr.mxu0 0.0
    %4326 = vmatpush1.msra.mxu0 0.0
    %4327 = vmatprep.subr.mxu0 0.0
    %4328 = vmatpush1.msra.mxu0 0.0
    %4329 = vmatprep.subr.mxu0 0.0
    %4330 = vmatpush1.msra.mxu0 0.0
    %4331 = vmatprep.subr.mxu0 0.0
    %4332 = vmatpush1.msra.mxu0 0.0
    %4333 = vmatprep.subr.mxu0 0.0
    %4334 = vmatpush1.msra.mxu0 0.0
    %4335 = vmatprep.subr.mxu0 0.0
    %4336 = vmatpush1.msra.mxu0 0.0
    %4337 = vmatprep.subr.mxu0 0.0
    %4338 = vmatpush1.msra.mxu0 0.0
    %4339 = vmatprep.mubr.f32.mxu0 0.0
    %v4340 = vand.u32 %v2351, 4294901760
    %v4341 = vsub.f32 %v2351, %v4340
    %v4342 = vand.u32 %v4341, 4294901760
    %4343 = vmatmul.mubr.f32.gmra.mrb[0].mxu0 %v4342
    %v4344 = vpop.f32.mrb[0].mxu0
    %v4345 = vadd.f32 %v4263, %v4344
    %v4346 = vpop.f32.mrb[0].mxu0
    %v4347 = vadd.f32 %v4265, %v4346
    %4348 = vdwg.mxu0
    %v4349 = vand.u32 %v118, 4294901760
    %v4350 = vsub.f32 %v118, %v4349
    %v4351 = vand.u32 %v4350, 4294901760
    %4352 = vmatprep.subr.mxu0 %v4351
    %v4353 = vand.u32 %v117, 4294901760
    %v4354 = vsub.f32 %v117, %v4353
    %v4355 = vand.u32 %v4354, 4294901760
    %4356 = vmatpush1.msra.mxu0 %v4355
    %v4357 = vand.u32 %v126, 4294901760
    %v4358 = vsub.f32 %v126, %v4357
    %v4359 = vand.u32 %v4358, 4294901760
    %4360 = vmatprep.subr.mxu0 %v4359
    %v4361 = vand.u32 %v125, 4294901760
    %v4362 = vsub.f32 %v125, %v4361
    %v4363 = vand.u32 %v4362, 4294901760
    %4364 = vmatpush1.msra.mxu0 %v4363
    %v4365 = vand.u32 %v134, 4294901760
    %v4366 = vsub.f32 %v134, %v4365
    %v4367 = vand.u32 %v4366, 4294901760
    %4368 = vmatprep.subr.mxu0 %v4367
    %v4369 = vand.u32 %v133, 4294901760
    %v4370 = vsub.f32 %v133, %v4369
    %v4371 = vand.u32 %v4370, 4294901760
    %4372 = vmatpush1.msra.mxu0 %v4371
    %v4373 = vand.u32 %v142, 4294901760
    %v4374 = vsub.f32 %v142, %v4373
    %v4375 = vand.u32 %v4374, 4294901760
    %4376 = vmatprep.subr.mxu0 %v4375
    %v4377 = vand.u32 %v141, 4294901760
    %v4378 = vsub.f32 %v141, %v4377
    %v4379 = vand.u32 %v4378, 4294901760
    %4380 = vmatpush1.msra.mxu0 %v4379
    %4381 = vmatprep.subr.mxu0 0.0
    %4382 = vmatpush1.msra.mxu0 0.0
    %4383 = vmatprep.subr.mxu0 0.0
    %4384 = vmatpush1.msra.mxu0 0.0
    %4385 = vmatprep.subr.mxu0 0.0
    %4386 = vmatpush1.msra.mxu0 0.0
    %4387 = vmatprep.subr.mxu0 0.0
    %4388 = vmatpush1.msra.mxu0 0.0
    %4389 = vmatprep.subr.mxu0 0.0
    %4390 = vmatpush1.msra.mxu0 0.0
    %4391 = vmatprep.subr.mxu0 0.0
    %4392 = vmatpush1.msra.mxu0 0.0
    %4393 = vmatprep.subr.mxu0 0.0
    %4394 = vmatpush1.msra.mxu0 0.0
    %4395 = vmatprep.subr.mxu0 0.0
    %4396 = vmatpush1.msra.mxu0 0.0
    %4397 = vmatprep.subr.mxu0 0.0
    %4398 = vmatpush1.msra.mxu0 0.0
    %4399 = vmatprep.subr.mxu0 0.0
    %4400 = vmatpush1.msra.mxu0 0.0
    %4401 = vmatprep.subr.mxu0 0.0
    %4402 = vmatpush1.msra.mxu0 0.0
    %4403 = vmatprep.subr.mxu0 0.0
    %4404 = vmatpush1.msra.mxu0 0.0
    %4405 = vmatprep.subr.mxu0 0.0
    %4406 = vmatpush1.msra.mxu0 0.0
    %4407 = vmatprep.subr.mxu0 0.0
    %4408 = vmatpush1.msra.mxu0 0.0
    %4409 = vmatprep.subr.mxu0 0.0
    %4410 = vmatpush1.msra.mxu0 0.0
    %4411 = vmatprep.subr.mxu0 0.0
    %4412 = vmatpush1.msra.mxu0 0.0
    %4413 = vmatprep.subr.mxu0 0.0
    %4414 = vmatpush1.msra.mxu0 0.0
    %4415 = vmatprep.subr.mxu0 0.0
    %4416 = vmatpush1.msra.mxu0 0.0
    %4417 = vmatprep.subr.mxu0 0.0
    %4418 = vmatpush1.msra.mxu0 0.0
    %4419 = vmatprep.subr.mxu0 0.0
    %4420 = vmatpush1.msra.mxu0 0.0
    %4421 = vmatprep.subr.mxu0 0.0
    %4422 = vmatpush1.msra.mxu0 0.0
    %4423 = vmatprep.subr.mxu0 0.0
    %4424 = vmatpush1.msra.mxu0 0.0
    %4425 = vmatprep.subr.mxu0 0.0
    %4426 = vmatpush1.msra.mxu0 0.0
    %4427 = vmatprep.subr.mxu0 0.0
    %4428 = vmatpush1.msra.mxu0 0.0
    %4429 = vmatprep.subr.mxu0 0.0
    %4430 = vmatpush1.msra.mxu0 0.0
    %4431 = vmatprep.subr.mxu0 0.0
    %4432 = vmatpush1.msra.mxu0 0.0
    %4433 = vmatprep.subr.mxu0 0.0
    %4434 = vmatpush1.msra.mxu0 0.0
    %4435 = vmatprep.subr.mxu0 0.0
    %4436 = vmatpush1.msra.mxu0 0.0
    %4437 = vmatprep.mubr.f32.mxu0 0.0
    %v4438 = vand.u32 %v2351, 4294901760
    %4439 = vmatmul.mubr.f32.gmra.mrb[0].mxu0 %v4438
    %v4440 = vpop.f32.mrb[0].mxu0
    %v4441 = vadd.f32 %v4345, %v4440
    %v4442 = vpop.f32.mrb[0].mxu0
    %v4443 = vadd.f32 %v4347, %v4442
    %4444 = vdwg.mxu0
    %v4445 = vand.u32 %v118, 4294901760
    %4446 = vmatprep.subr.mxu0 %v4445
    %v4447 = vand.u32 %v117, 4294901760
    %4448 = vmatpush1.msra.mxu0 %v4447
    %v4449 = vand.u32 %v126, 4294901760
    %4450 = vmatprep.subr.mxu0 %v4449
    %v4451 = vand.u32 %v125, 4294901760
    %4452 = vmatpush1.msra.mxu0 %v4451
    %v4453 = vand.u32 %v134, 4294901760
    %4454 = vmatprep.subr.mxu0 %v4453
    %v4455 = vand.u32 %v133, 4294901760
    %4456 = vmatpush1.msra.mxu0 %v4455
    %v4457 = vand.u32 %v142, 4294901760
    %4458 = vmatprep.subr.mxu0 %v4457
    %v4459 = vand.u32 %v141, 4294901760
    %4460 = vmatpush1.msra.mxu0 %v4459
    %4461 = vmatprep.subr.mxu0 0.0
    %4462 = vmatpush1.msra.mxu0 0.0
    %4463 = vmatprep.subr.mxu0 0.0
    %4464 = vmatpush1.msra.mxu0 0.0
    %4465 = vmatprep.subr.mxu0 0.0
    %4466 = vmatpush1.msra.mxu0 0.0
    %4467 = vmatprep.subr.mxu0 0.0
    %4468 = vmatpush1.msra.mxu0 0.0
    %4469 = vmatprep.subr.mxu0 0.0
    %4470 = vmatpush1.msra.mxu0 0.0
    %4471 = vmatprep.subr.mxu0 0.0
    %4472 = vmatpush1.msra.mxu0 0.0
    %4473 = vmatprep.subr.mxu0 0.0
    %4474 = vmatpush1.msra.mxu0 0.0
    %4475 = vmatprep.subr.mxu0 0.0
    %4476 = vmatpush1.msra.mxu0 0.0
    %4477 = vmatprep.subr.mxu0 0.0
    %4478 = vmatpush1.msra.mxu0 0.0
    %4479 = vmatprep.subr.mxu0 0.0
    %4480 = vmatpush1.msra.mxu0 0.0
    %4481 = vmatprep.subr.mxu0 0.0
    %4482 = vmatpush1.msra.mxu0 0.0
    %4483 = vmatprep.subr.mxu0 0.0
    %4484 = vmatpush1.msra.mxu0 0.0
    %4485 = vmatprep.subr.mxu0 0.0
    %4486 = vmatpush1.msra.mxu0 0.0
    %4487 = vmatprep.subr.mxu0 0.0
    %4488 = vmatpush1.msra.mxu0 0.0
    %4489 = vmatprep.subr.mxu0 0.0
    %4490 = vmatpush1.msra.mxu0 0.0
    %4491 = vmatprep.subr.mxu0 0.0
    %4492 = vmatpush1.msra.mxu0 0.0
    %4493 = vmatprep.subr.mxu0 0.0
    %4494 = vmatpush1.msra.mxu0 0.0
    %4495 = vmatprep.subr.mxu0 0.0
    %4496 = vmatpush1.msra.mxu0 0.0
    %4497 = vmatprep.subr.mxu0 0.0
    %4498 = vmatpush1.msra.mxu0 0.0
    %4499 = vmatprep.subr.mxu0 0.0
    %4500 = vmatpush1.msra.mxu0 0.0
    %4501 = vmatprep.subr.mxu0 0.0
    %4502 = vmatpush1.msra.mxu0 0.0
    %4503 = vmatprep.subr.mxu0 0.0
    %4504 = vmatpush1.msra.mxu0 0.0
    %4505 = vmatprep.subr.mxu0 0.0
    %4506 = vmatpush1.msra.mxu0 0.0
    %4507 = vmatprep.subr.mxu0 0.0
    %4508 = vmatpush1.msra.mxu0 0.0
    %4509 = vmatprep.subr.mxu0 0.0
    %4510 = vmatpush1.msra.mxu0 0.0
    %4511 = vmatprep.subr.mxu0 0.0
    %4512 = vmatpush1.msra.mxu0 0.0
    %4513 = vmatprep.subr.mxu0 0.0
    %4514 = vmatpush1.msra.mxu0 0.0
    %4515 = vmatprep.subr.mxu0 0.0
    %4516 = vmatpush1.msra.mxu0 0.0
    %4517 = vmatprep.mubr.f32.mxu0 0.0
    %v4518 = vand.u32 %v2351, 4294901760
    %4519 = vmatmul.mubr.f32.gmra.mrb[0].mxu0 %v4518
    %v4520 = vpop.f32.mrb[0].mxu0
    %v4521 = vadd.f32 %v4441, %v4520
    %v4522 = vpop.f32.mrb[0].mxu0
    %v4523 = vadd.f32 %v4443, %v4522
    %4524 = vdwg.mxu0
    %v4526 = vsel %vm102, %v89, 0
    %v4528 = vand.u32 %v144, 4294901760
    %4529 = vmatprep.subr.mxu0 %v4528
    %v4530 = vand.u32 %v143, 4294901760
    %4531 = vmatpush1.msra.mxu0 %v4530
    %v4532 = vand.u32 %v152, 4294901760
    %4533 = vmatprep.subr.mxu0 %v4532
    %v4534 = vand.u32 %v151, 4294901760
    %4535 = vmatpush1.msra.mxu0 %v4534
    %v4536 = vand.u32 %v160, 4294901760
    %4537 = vmatprep.subr.mxu0 %v4536
    %v4538 = vand.u32 %v159, 4294901760
    %4539 = vmatpush1.msra.mxu0 %v4538
    %v4540 = vand.u32 %v168, 4294901760
    %4541 = vmatprep.subr.mxu0 %v4540
    %v4542 = vand.u32 %v167, 4294901760
    %4543 = vmatpush1.msra.mxu0 %v4542
    %4544 = vmatprep.subr.mxu0 0.0
    %4545 = vmatpush1.msra.mxu0 0.0
    %4546 = vmatprep.subr.mxu0 0.0
    %4547 = vmatpush1.msra.mxu0 0.0
    %4548 = vmatprep.subr.mxu0 0.0
    %4549 = vmatpush1.msra.mxu0 0.0
    %4550 = vmatprep.subr.mxu0 0.0
    %4551 = vmatpush1.msra.mxu0 0.0
    %4552 = vmatprep.subr.mxu0 0.0
    %4553 = vmatpush1.msra.mxu0 0.0
    %4554 = vmatprep.subr.mxu0 0.0
    %4555 = vmatpush1.msra.mxu0 0.0
    %4556 = vmatprep.subr.mxu0 0.0
    %4557 = vmatpush1.msra.mxu0 0.0
    %4558 = vmatprep.subr.mxu0 0.0
    %4559 = vmatpush1.msra.mxu0 0.0
    %4560 = vmatprep.subr.mxu0 0.0
    %4561 = vmatpush1.msra.mxu0 0.0
    %4562 = vmatprep.subr.mxu0 0.0
    %4563 = vmatpush1.msra.mxu0 0.0
    %4564 = vmatprep.subr.mxu0 0.0
    %4565 = vmatpush1.msra.mxu0 0.0
    %4566 = vmatprep.subr.mxu0 0.0
    %4567 = vmatpush1.msra.mxu0 0.0
    %4568 = vmatprep.subr.mxu0 0.0
    %4569 = vmatpush1.msra.mxu0 0.0
    %4570 = vmatprep.subr.mxu0 0.0
    %4571 = vmatpush1.msra.mxu0 0.0
    %4572 = vmatprep.subr.mxu0 0.0
    %4573 = vmatpush1.msra.mxu0 0.0
    %4574 = vmatprep.subr.mxu0 0.0
    %4575 = vmatpush1.msra.mxu0 0.0
    %4576 = vmatprep.subr.mxu0 0.0
    %4577 = vmatpush1.msra.mxu0 0.0
    %4578 = vmatprep.subr.mxu0 0.0
    %4579 = vmatpush1.msra.mxu0 0.0
    %4580 = vmatprep.subr.mxu0 0.0
    %4581 = vmatpush1.msra.mxu0 0.0
    %4582 = vmatprep.subr.mxu0 0.0
    %4583 = vmatpush1.msra.mxu0 0.0
    %4584 = vmatprep.subr.mxu0 0.0
    %4585 = vmatpush1.msra.mxu0 0.0
    %4586 = vmatprep.subr.mxu0 0.0
    %4587 = vmatpush1.msra.mxu0 0.0
    %4588 = vmatprep.subr.mxu0 0.0
    %4589 = vmatpush1.msra.mxu0 0.0
    %4590 = vmatprep.subr.mxu0 0.0
    %4591 = vmatpush1.msra.mxu0 0.0
    %4592 = vmatprep.subr.mxu0 0.0
    %4593 = vmatpush1.msra.mxu0 0.0
    %4594 = vmatprep.subr.mxu0 0.0
    %4595 = vmatpush1.msra.mxu0 0.0
    %4596 = vmatprep.subr.mxu0 0.0
    %4597 = vmatpush1.msra.mxu0 0.0
    %4598 = vmatprep.subr.mxu0 0.0
    %4599 = vmatpush1.msra.mxu0 0.0
    %4600 = vmatprep.mubr.f32.mxu0 0.0
    %v4601 = vand.u32 %v4526, 4294901760
    %v4602 = vsub.f32 %v4526, %v4601
    %v4603 = vand.u32 %v4602, 4294901760
    %v4604 = vsub.f32 %v4602, %v4603
    %v4605 = vand.u32 %v4604, 4294901760
    %4606 = vmatmul.mubr.f32.gmra.mrb[0].mxu0 %v4605
    %v4607 = vpop.f32.mrb[0].mxu0
    %v4608 = vadd.f32 0.0, %v4607
    %v4609 = vpop.f32.mrb[0].mxu0
    %v4610 = vadd.f32 0.0, %v4609
    %4611 = vdwg.mxu0
    %v4612 = vand.u32 %v144, 4294901760
    %v4613 = vsub.f32 %v144, %v4612
    %v4614 = vand.u32 %v4613, 4294901760
    %v4615 = vsub.f32 %v4613, %v4614
    %v4616 = vand.u32 %v4615, 4294901760
    %4617 = vmatprep.subr.mxu0 %v4616
    %v4618 = vand.u32 %v143, 4294901760
    %v4619 = vsub.f32 %v143, %v4618
    %v4620 = vand.u32 %v4619, 4294901760
    %v4621 = vsub.f32 %v4619, %v4620
    %v4622 = vand.u32 %v4621, 4294901760
    %4623 = vmatpush1.msra.mxu0 %v4622
    %v4624 = vand.u32 %v152, 4294901760
    %v4625 = vsub.f32 %v152, %v4624
    %v4626 = vand.u32 %v4625, 4294901760
    %v4627 = vsub.f32 %v4625, %v4626
    %v4628 = vand.u32 %v4627, 4294901760
    %4629 = vmatprep.subr.mxu0 %v4628
    %v4630 = vand.u32 %v151, 4294901760
    %v4631 = vsub.f32 %v151, %v4630
    %v4632 = vand.u32 %v4631, 4294901760
    %v4633 = vsub.f32 %v4631, %v4632
    %v4634 = vand.u32 %v4633, 4294901760
    %4635 = vmatpush1.msra.mxu0 %v4634
    %v4636 = vand.u32 %v160, 4294901760
    %v4637 = vsub.f32 %v160, %v4636
    %v4638 = vand.u32 %v4637, 4294901760
    %v4639 = vsub.f32 %v4637, %v4638
    %v4640 = vand.u32 %v4639, 4294901760
    %4641 = vmatprep.subr.mxu0 %v4640
    %v4642 = vand.u32 %v159, 4294901760
    %v4643 = vsub.f32 %v159, %v4642
    %v4644 = vand.u32 %v4643, 4294901760
    %v4645 = vsub.f32 %v4643, %v4644
    %v4646 = vand.u32 %v4645, 4294901760
    %4647 = vmatpush1.msra.mxu0 %v4646
    %v4648 = vand.u32 %v168, 4294901760
    %v4649 = vsub.f32 %v168, %v4648
    %v4650 = vand.u32 %v4649, 4294901760
    %v4651 = vsub.f32 %v4649, %v4650
    %v4652 = vand.u32 %v4651, 4294901760
    %4653 = vmatprep.subr.mxu0 %v4652
    %v4654 = vand.u32 %v167, 4294901760
    %v4655 = vsub.f32 %v167, %v4654
    %v4656 = vand.u32 %v4655, 4294901760
    %v4657 = vsub.f32 %v4655, %v4656
    %v4658 = vand.u32 %v4657, 4294901760
    %4659 = vmatpush1.msra.mxu0 %v4658
    %4660 = vmatprep.subr.mxu0 0.0
    %4661 = vmatpush1.msra.mxu0 0.0
    %4662 = vmatprep.subr.mxu0 0.0
    %4663 = vmatpush1.msra.mxu0 0.0
    %4664 = vmatprep.subr.mxu0 0.0
    %4665 = vmatpush1.msra.mxu0 0.0
    %4666 = vmatprep.subr.mxu0 0.0
    %4667 = vmatpush1.msra.mxu0 0.0
    %4668 = vmatprep.subr.mxu0 0.0
    %4669 = vmatpush1.msra.mxu0 0.0
    %4670 = vmatprep.subr.mxu0 0.0
    %4671 = vmatpush1.msra.mxu0 0.0
    %4672 = vmatprep.subr.mxu0 0.0
    %4673 = vmatpush1.msra.mxu0 0.0
    %4674 = vmatprep.subr.mxu0 0.0
    %4675 = vmatpush1.msra.mxu0 0.0
    %4676 = vmatprep.subr.mxu0 0.0
    %4677 = vmatpush1.msra.mxu0 0.0
    %4678 = vmatprep.subr.mxu0 0.0
    %4679 = vmatpush1.msra.mxu0 0.0
    %4680 = vmatprep.subr.mxu0 0.0
    %4681 = vmatpush1.msra.mxu0 0.0
    %4682 = vmatprep.subr.mxu0 0.0
    %4683 = vmatpush1.msra.mxu0 0.0
    %4684 = vmatprep.subr.mxu0 0.0
    %4685 = vmatpush1.msra.mxu0 0.0
    %4686 = vmatprep.subr.mxu0 0.0
    %4687 = vmatpush1.msra.mxu0 0.0
    %4688 = vmatprep.subr.mxu0 0.0
    %4689 = vmatpush1.msra.mxu0 0.0
    %4690 = vmatprep.subr.mxu0 0.0
    %4691 = vmatpush1.msra.mxu0 0.0
    %4692 = vmatprep.subr.mxu0 0.0
    %4693 = vmatpush1.msra.mxu0 0.0
    %4694 = vmatprep.subr.mxu0 0.0
    %4695 = vmatpush1.msra.mxu0 0.0
    %4696 = vmatprep.subr.mxu0 0.0
    %4697 = vmatpush1.msra.mxu0 0.0
    %4698 = vmatprep.subr.mxu0 0.0
    %4699 = vmatpush1.msra.mxu0 0.0
    %4700 = vmatprep.subr.mxu0 0.0
    %4701 = vmatpush1.msra.mxu0 0.0
    %4702 = vmatprep.subr.mxu0 0.0
    %4703 = vmatpush1.msra.mxu0 0.0
    %4704 = vmatprep.subr.mxu0 0.0
    %4705 = vmatpush1.msra.mxu0 0.0
    %4706 = vmatprep.subr.mxu0 0.0
    %4707 = vmatpush1.msra.mxu0 0.0
    %4708 = vmatprep.subr.mxu0 0.0
    %4709 = vmatpush1.msra.mxu0 0.0
    %4710 = vmatprep.subr.mxu0 0.0
    %4711 = vmatpush1.msra.mxu0 0.0
    %4712 = vmatprep.subr.mxu0 0.0
    %4713 = vmatpush1.msra.mxu0 0.0
    %4714 = vmatprep.subr.mxu0 0.0
    %4715 = vmatpush1.msra.mxu0 0.0
    %4716 = vmatprep.mubr.f32.mxu0 0.0
    %v4717 = vand.u32 %v4526, 4294901760
    %4718 = vmatmul.mubr.f32.gmra.mrb[0].mxu0 %v4717
    %v4719 = vpop.f32.mrb[0].mxu0
    %v4720 = vadd.f32 %v4608, %v4719
    %v4721 = vpop.f32.mrb[0].mxu0
    %v4722 = vadd.f32 %v4610, %v4721
    %4723 = vdwg.mxu0
    %v4724 = vand.u32 %v144, 4294901760
    %v4725 = vsub.f32 %v144, %v4724
    %4726 = vmatprep.subr.mxu0 %v4725
    %v4727 = vand.u32 %v143, 4294901760
    %v4728 = vsub.f32 %v143, %v4727
    %4729 = vmatpush1.msra.mxu0 %v4728
    %v4730 = vand.u32 %v152, 4294901760
    %v4731 = vsub.f32 %v152, %v4730
    %4732 = vmatprep.subr.mxu0 %v4731
    %v4733 = vand.u32 %v151, 4294901760
    %v4734 = vsub.f32 %v151, %v4733
    %4735 = vmatpush1.msra.mxu0 %v4734
    %v4736 = vand.u32 %v160, 4294901760
    %v4737 = vsub.f32 %v160, %v4736
    %4738 = vmatprep.subr.mxu0 %v4737
    %v4739 = vand.u32 %v159, 4294901760
    %v4740 = vsub.f32 %v159, %v4739
    %4741 = vmatpush1.msra.mxu0 %v4740
    %v4742 = vand.u32 %v168, 4294901760
    %v4743 = vsub.f32 %v168, %v4742
    %4744 = vmatprep.subr.mxu0 %v4743
    %v4745 = vand.u32 %v167, 4294901760
    %v4746 = vsub.f32 %v167, %v4745
    %4747 = vmatpush1.msra.mxu0 %v4746
    %4748 = vmatprep.subr.mxu0 0.0
    %4749 = vmatpush1.msra.mxu0 0.0
    %4750 = vmatprep.subr.mxu0 0.0
    %4751 = vmatpush1.msra.mxu0 0.0
    %4752 = vmatprep.subr.mxu0 0.0
    %4753 = vmatpush1.msra.mxu0 0.0
    %4754 = vmatprep.subr.mxu0 0.0
    %4755 = vmatpush1.msra.mxu0 0.0
    %4756 = vmatprep.subr.mxu0 0.0
    %4757 = vmatpush1.msra.mxu0 0.0
    %4758 = vmatprep.subr.mxu0 0.0
    %4759 = vmatpush1.msra.mxu0 0.0
    %4760 = vmatprep.subr.mxu0 0.0
    %4761 = vmatpush1.msra.mxu0 0.0
    %4762 = vmatprep.subr.mxu0 0.0
    %4763 = vmatpush1.msra.mxu0 0.0
    %4764 = vmatprep.subr.mxu0 0.0
    %4765 = vmatpush1.msra.mxu0 0.0
    %4766 = vmatprep.subr.mxu0 0.0
    %4767 = vmatpush1.msra.mxu0 0.0
    %4768 = vmatprep.subr.mxu0 0.0
    %4769 = vmatpush1.msra.mxu0 0.0
    %4770 = vmatprep.subr.mxu0 0.0
    %4771 = vmatpush1.msra.mxu0 0.0
    %4772 = vmatprep.subr.mxu0 0.0
    %4773 = vmatpush1.msra.mxu0 0.0
    %4774 = vmatprep.subr.mxu0 0.0
    %4775 = vmatpush1.msra.mxu0 0.0
    %4776 = vmatprep.subr.mxu0 0.0
    %4777 = vmatpush1.msra.mxu0 0.0
    %4778 = vmatprep.subr.mxu0 0.0
    %4779 = vmatpush1.msra.mxu0 0.0
    %4780 = vmatprep.subr.mxu0 0.0
    %4781 = vmatpush1.msra.mxu0 0.0
    %4782 = vmatprep.subr.mxu0 0.0
    %4783 = vmatpush1.msra.mxu0 0.0
    %4784 = vmatprep.subr.mxu0 0.0
    %4785 = vmatpush1.msra.mxu0 0.0
    %4786 = vmatprep.subr.mxu0 0.0
    %4787 = vmatpush1.msra.mxu0 0.0
    %4788 = vmatprep.subr.mxu0 0.0
    %4789 = vmatpush1.msra.mxu0 0.0
    %4790 = vmatprep.subr.mxu0 0.0
    %4791 = vmatpush1.msra.mxu0 0.0
    %4792 = vmatprep.subr.mxu0 0.0
    %4793 = vmatpush1.msra.mxu0 0.0
    %4794 = vmatprep.subr.mxu0 0.0
    %4795 = vmatpush1.msra.mxu0 0.0
    %4796 = vmatprep.subr.mxu0 0.0
    %4797 = vmatpush1.msra.mxu0 0.0
    %4798 = vmatprep.subr.mxu0 0.0
    %4799 = vmatpush1.msra.mxu0 0.0
    %4800 = vmatprep.subr.mxu0 0.0
    %4801 = vmatpush1.msra.mxu0 0.0
    %4802 = vmatprep.subr.mxu0 0.0
    %4803 = vmatpush1.msra.mxu0 0.0
    %4804 = vmatprep.mubr.f32.mxu0 0.0
    %v4805 = vand.u32 %v4526, 4294901760
    %v4806 = vsub.f32 %v4526, %v4805
    %4807 = vmatmul.mubr.f32.gmra.mrb[0].mxu0 %v4806
    %v4808 = vpop.f32.mrb[0].mxu0
    %v4809 = vadd.f32 %v4720, %v4808
    %v4810 = vpop.f32.mrb[0].mxu0
    %v4811 = vadd.f32 %v4722, %v4810
    %4812 = vdwg.mxu0
    %v4813 = vand.u32 %v144, 4294901760
    %4814 = vmatprep.subr.mxu0 %v4813
    %v4815 = vand.u32 %v143, 4294901760
    %4816 = vmatpush1.msra.mxu0 %v4815
    %v4817 = vand.u32 %v152, 4294901760
    %4818 = vmatprep.subr.mxu0 %v4817
    %v4819 = vand.u32 %v151, 4294901760
    %4820 = vmatpush1.msra.mxu0 %v4819
    %v4821 = vand.u32 %v160, 4294901760
    %4822 = vmatprep.subr.mxu0 %v4821
    %v4823 = vand.u32 %v159, 4294901760
    %4824 = vmatpush1.msra.mxu0 %v4823
    %v4825 = vand.u32 %v168, 4294901760
    %4826 = vmatprep.subr.mxu0 %v4825
    %v4827 = vand.u32 %v167, 4294901760
    %4828 = vmatpush1.msra.mxu0 %v4827
    %4829 = vmatprep.subr.mxu0 0.0
    %4830 = vmatpush1.msra.mxu0 0.0
    %4831 = vmatprep.subr.mxu0 0.0
    %4832 = vmatpush1.msra.mxu0 0.0
    %4833 = vmatprep.subr.mxu0 0.0
    %4834 = vmatpush1.msra.mxu0 0.0
    %4835 = vmatprep.subr.mxu0 0.0
    %4836 = vmatpush1.msra.mxu0 0.0
    %4837 = vmatprep.subr.mxu0 0.0
    %4838 = vmatpush1.msra.mxu0 0.0
    %4839 = vmatprep.subr.mxu0 0.0
    %4840 = vmatpush1.msra.mxu0 0.0
    %4841 = vmatprep.subr.mxu0 0.0
    %4842 = vmatpush1.msra.mxu0 0.0
    %4843 = vmatprep.subr.mxu0 0.0
    %4844 = vmatpush1.msra.mxu0 0.0
    %4845 = vmatprep.subr.mxu0 0.0
    %4846 = vmatpush1.msra.mxu0 0.0
    %4847 = vmatprep.subr.mxu0 0.0
    %4848 = vmatpush1.msra.mxu0 0.0
    %4849 = vmatprep.subr.mxu0 0.0
    %4850 = vmatpush1.msra.mxu0 0.0
    %4851 = vmatprep.subr.mxu0 0.0
    %4852 = vmatpush1.msra.mxu0 0.0
    %4853 = vmatprep.subr.mxu0 0.0
    %4854 = vmatpush1.msra.mxu0 0.0
    %4855 = vmatprep.subr.mxu0 0.0
    %4856 = vmatpush1.msra.mxu0 0.0
    %4857 = vmatprep.subr.mxu0 0.0
    %4858 = vmatpush1.msra.mxu0 0.0
    %4859 = vmatprep.subr.mxu0 0.0
    %4860 = vmatpush1.msra.mxu0 0.0
    %4861 = vmatprep.subr.mxu0 0.0
    %4862 = vmatpush1.msra.mxu0 0.0
    %4863 = vmatprep.subr.mxu0 0.0
    %4864 = vmatpush1.msra.mxu0 0.0
    %4865 = vmatprep.subr.mxu0 0.0
    %4866 = vmatpush1.msra.mxu0 0.0
    %4867 = vmatprep.subr.mxu0 0.0
    %4868 = vmatpush1.msra.mxu0 0.0
    %4869 = vmatprep.subr.mxu0 0.0
    %4870 = vmatpush1.msra.mxu0 0.0
    %4871 = vmatprep.subr.mxu0 0.0
    %4872 = vmatpush1.msra.mxu0 0.0
    %4873 = vmatprep.subr.mxu0 0.0
    %4874 = vmatpush1.msra.mxu0 0.0
    %4875 = vmatprep.subr.mxu0 0.0
    %4876 = vmatpush1.msra.mxu0 0.0
    %4877 = vmatprep.subr.mxu0 0.0
    %4878 = vmatpush1.msra.mxu0 0.0
    %4879 = vmatprep.subr.mxu0 0.0
    %4880 = vmatpush1.msra.mxu0 0.0
    %4881 = vmatprep.subr.mxu0 0.0
    %4882 = vmatpush1.msra.mxu0 0.0
    %4883 = vmatprep.subr.mxu0 0.0
    %4884 = vmatpush1.msra.mxu0 0.0
    %4885 = vmatprep.mubr.f32.mxu0 0.0
    %v4886 = vand.u32 %v4526, 4294901760
    %v4887 = vsub.f32 %v4526, %v4886
    %v4888 = vand.u32 %v4887, 4294901760
    %4889 = vmatmul.mubr.f32.gmra.mrb[0].mxu0 %v4888
    %v4890 = vpop.f32.mrb[0].mxu0
    %v4891 = vadd.f32 %v4809, %v4890
    %v4892 = vpop.f32.mrb[0].mxu0
    %v4893 = vadd.f32 %v4811, %v4892
    %4894 = vdwg.mxu0
    %v4895 = vand.u32 %v144, 4294901760
    %v4896 = vsub.f32 %v144, %v4895
    %v4897 = vand.u32 %v4896, 4294901760
    %4898 = vmatprep.subr.mxu0 %v4897
    %v4899 = vand.u32 %v143, 4294901760
    %v4900 = vsub.f32 %v143, %v4899
    %v4901 = vand.u32 %v4900, 4294901760
    %4902 = vmatpush1.msra.mxu0 %v4901
    %v4903 = vand.u32 %v152, 4294901760
    %v4904 = vsub.f32 %v152, %v4903
    %v4905 = vand.u32 %v4904, 4294901760
    %4906 = vmatprep.subr.mxu0 %v4905
    %v4907 = vand.u32 %v151, 4294901760
    %v4908 = vsub.f32 %v151, %v4907
    %v4909 = vand.u32 %v4908, 4294901760
    %4910 = vmatpush1.msra.mxu0 %v4909
    %v4911 = vand.u32 %v160, 4294901760
    %v4912 = vsub.f32 %v160, %v4911
    %v4913 = vand.u32 %v4912, 4294901760
    %4914 = vmatprep.subr.mxu0 %v4913
    %v4915 = vand.u32 %v159, 4294901760
    %v4916 = vsub.f32 %v159, %v4915
    %v4917 = vand.u32 %v4916, 4294901760
    %4918 = vmatpush1.msra.mxu0 %v4917
    %v4919 = vand.u32 %v168, 4294901760
    %v4920 = vsub.f32 %v168, %v4919
    %v4921 = vand.u32 %v4920, 4294901760
    %4922 = vmatprep.subr.mxu0 %v4921
    %v4923 = vand.u32 %v167, 4294901760
    %v4924 = vsub.f32 %v167, %v4923
    %v4925 = vand.u32 %v4924, 4294901760
    %4926 = vmatpush1.msra.mxu0 %v4925
    %4927 = vmatprep.subr.mxu0 0.0
    %4928 = vmatpush1.msra.mxu0 0.0
    %4929 = vmatprep.subr.mxu0 0.0
    %4930 = vmatpush1.msra.mxu0 0.0
    %4931 = vmatprep.subr.mxu0 0.0
    %4932 = vmatpush1.msra.mxu0 0.0
    %4933 = vmatprep.subr.mxu0 0.0
    %4934 = vmatpush1.msra.mxu0 0.0
    %4935 = vmatprep.subr.mxu0 0.0
    %4936 = vmatpush1.msra.mxu0 0.0
    %4937 = vmatprep.subr.mxu0 0.0
    %4938 = vmatpush1.msra.mxu0 0.0
    %4939 = vmatprep.subr.mxu0 0.0
    %4940 = vmatpush1.msra.mxu0 0.0
    %4941 = vmatprep.subr.mxu0 0.0
    %4942 = vmatpush1.msra.mxu0 0.0
    %4943 = vmatprep.subr.mxu0 0.0
    %4944 = vmatpush1.msra.mxu0 0.0
    %4945 = vmatprep.subr.mxu0 0.0
    %4946 = vmatpush1.msra.mxu0 0.0
    %4947 = vmatprep.subr.mxu0 0.0
    %4948 = vmatpush1.msra.mxu0 0.0
    %4949 = vmatprep.subr.mxu0 0.0
    %4950 = vmatpush1.msra.mxu0 0.0
    %4951 = vmatprep.subr.mxu0 0.0
    %4952 = vmatpush1.msra.mxu0 0.0
    %4953 = vmatprep.subr.mxu0 0.0
    %4954 = vmatpush1.msra.mxu0 0.0
    %4955 = vmatprep.subr.mxu0 0.0
    %4956 = vmatpush1.msra.mxu0 0.0
    %4957 = vmatprep.subr.mxu0 0.0
    %4958 = vmatpush1.msra.mxu0 0.0
    %4959 = vmatprep.subr.mxu0 0.0
    %4960 = vmatpush1.msra.mxu0 0.0
    %4961 = vmatprep.subr.mxu0 0.0
    %4962 = vmatpush1.msra.mxu0 0.0
    %4963 = vmatprep.subr.mxu0 0.0
    %4964 = vmatpush1.msra.mxu0 0.0
    %4965 = vmatprep.subr.mxu0 0.0
    %4966 = vmatpush1.msra.mxu0 0.0
    %4967 = vmatprep.subr.mxu0 0.0
    %4968 = vmatpush1.msra.mxu0 0.0
    %4969 = vmatprep.subr.mxu0 0.0
    %4970 = vmatpush1.msra.mxu0 0.0
    %4971 = vmatprep.subr.mxu0 0.0
    %4972 = vmatpush1.msra.mxu0 0.0
    %4973 = vmatprep.subr.mxu0 0.0
    %4974 = vmatpush1.msra.mxu0 0.0
    %4975 = vmatprep.subr.mxu0 0.0
    %4976 = vmatpush1.msra.mxu0 0.0
    %4977 = vmatprep.subr.mxu0 0.0
    %4978 = vmatpush1.msra.mxu0 0.0
    %4979 = vmatprep.subr.mxu0 0.0
    %4980 = vmatpush1.msra.mxu0 0.0
    %4981 = vmatprep.subr.mxu0 0.0
    %4982 = vmatpush1.msra.mxu0 0.0
    %4983 = vmatprep.mubr.f32.mxu0 0.0
    %v4984 = vand.u32 %v4526, 4294901760
    %4985 = vmatmul.mubr.f32.gmra.mrb[0].mxu0 %v4984
    %v4986 = vpop.f32.mrb[0].mxu0
    %v4987 = vadd.f32 %v4891, %v4986
    %v4988 = vpop.f32.mrb[0].mxu0
    %v4989 = vadd.f32 %v4893, %v4988
    %4990 = vdwg.mxu0
    %v4991 = vand.u32 %v144, 4294901760
    %4992 = vmatprep.subr.mxu0 %v4991
    %v4993 = vand.u32 %v143, 4294901760
    %4994 = vmatpush1.msra.mxu0 %v4993
    %v4995 = vand.u32 %v152, 4294901760
    %4996 = vmatprep.subr.mxu0 %v4995
    %v4997 = vand.u32 %v151, 4294901760
    %4998 = vmatpush1.msra.mxu0 %v4997
    %v4999 = vand.u32 %v160, 4294901760
    %5000 = vmatprep.subr.mxu0 %v4999
    %v5001 = vand.u32 %v159, 4294901760
    %5002 = vmatpush1.msra.mxu0 %v5001
    %v5003 = vand.u32 %v168, 4294901760
    %5004 = vmatprep.subr.mxu0 %v5003
    %v5005 = vand.u32 %v167, 4294901760
    %5006 = vmatpush1.msra.mxu0 %v5005
    %5007 = vmatprep.subr.mxu0 0.0
    %5008 = vmatpush1.msra.mxu0 0.0
    %5009 = vmatprep.subr.mxu0 0.0
    %5010 = vmatpush1.msra.mxu0 0.0
    %5011 = vmatprep.subr.mxu0 0.0
    %5012 = vmatpush1.msra.mxu0 0.0
    %5013 = vmatprep.subr.mxu0 0.0
    %5014 = vmatpush1.msra.mxu0 0.0
    %5015 = vmatprep.subr.mxu0 0.0
    %5016 = vmatpush1.msra.mxu0 0.0
    %5017 = vmatprep.subr.mxu0 0.0
    %5018 = vmatpush1.msra.mxu0 0.0
    %5019 = vmatprep.subr.mxu0 0.0
    %5020 = vmatpush1.msra.mxu0 0.0
    %5021 = vmatprep.subr.mxu0 0.0
    %5022 = vmatpush1.msra.mxu0 0.0
    %5023 = vmatprep.subr.mxu0 0.0
    %5024 = vmatpush1.msra.mxu0 0.0
    %5025 = vmatprep.subr.mxu0 0.0
    %5026 = vmatpush1.msra.mxu0 0.0
    %5027 = vmatprep.subr.mxu0 0.0
    %5028 = vmatpush1.msra.mxu0 0.0
    %5029 = vmatprep.subr.mxu0 0.0
    %5030 = vmatpush1.msra.mxu0 0.0
    %5031 = vmatprep.subr.mxu0 0.0
    %5032 = vmatpush1.msra.mxu0 0.0
    %5033 = vmatprep.subr.mxu0 0.0
    %5034 = vmatpush1.msra.mxu0 0.0
    %5035 = vmatprep.subr.mxu0 0.0
    %5036 = vmatpush1.msra.mxu0 0.0
    %5037 = vmatprep.subr.mxu0 0.0
    %5038 = vmatpush1.msra.mxu0 0.0
    %5039 = vmatprep.subr.mxu0 0.0
    %5040 = vmatpush1.msra.mxu0 0.0
    %5041 = vmatprep.subr.mxu0 0.0
    %5042 = vmatpush1.msra.mxu0 0.0
    %5043 = vmatprep.subr.mxu0 0.0
    %5044 = vmatpush1.msra.mxu0 0.0
    %5045 = vmatprep.subr.mxu0 0.0
    %5046 = vmatpush1.msra.mxu0 0.0
    %5047 = vmatprep.subr.mxu0 0.0
    %5048 = vmatpush1.msra.mxu0 0.0
    %5049 = vmatprep.subr.mxu0 0.0
    %5050 = vmatpush1.msra.mxu0 0.0
    %5051 = vmatprep.subr.mxu0 0.0
    %5052 = vmatpush1.msra.mxu0 0.0
    %5053 = vmatprep.subr.mxu0 0.0
    %5054 = vmatpush1.msra.mxu0 0.0
    %5055 = vmatprep.subr.mxu0 0.0
    %5056 = vmatpush1.msra.mxu0 0.0
    %5057 = vmatprep.subr.mxu0 0.0
    %5058 = vmatpush1.msra.mxu0 0.0
    %5059 = vmatprep.subr.mxu0 0.0
    %5060 = vmatpush1.msra.mxu0 0.0
    %5061 = vmatprep.subr.mxu0 0.0
    %5062 = vmatpush1.msra.mxu0 0.0
    %5063 = vmatprep.mubr.f32.mxu0 0.0
    %v5064 = vand.u32 %v4526, 4294901760
    %5065 = vmatmul.mubr.f32.gmra.mrb[0].mxu0 %v5064
    %v5066 = vpop.f32.mrb[0].mxu0
    %v5067 = vadd.f32 %v4987, %v5066
    %v5068 = vpop.f32.mrb[0].mxu0
    %v5069 = vadd.f32 %v4989, %v5068
    %5070 = vdwg.mxu0
    %v5071 = vand.u32 %v146, 4294901760
    %5072 = vmatprep.subr.mxu0 %v5071
    %v5073 = vand.u32 %v145, 4294901760
    %5074 = vmatpush1.msra.mxu0 %v5073
    %v5075 = vand.u32 %v154, 4294901760
    %5076 = vmatprep.subr.mxu0 %v5075
    %v5077 = vand.u32 %v153, 4294901760
    %5078 = vmatpush1.msra.mxu0 %v5077
    %v5079 = vand.u32 %v162, 4294901760
    %5080 = vmatprep.subr.mxu0 %v5079
    %v5081 = vand.u32 %v161, 4294901760
    %5082 = vmatpush1.msra.mxu0 %v5081
    %v5083 = vand.u32 %v170, 4294901760
    %5084 = vmatprep.subr.mxu0 %v5083
    %v5085 = vand.u32 %v169, 4294901760
    %5086 = vmatpush1.msra.mxu0 %v5085
    %5087 = vmatprep.subr.mxu0 0.0
    %5088 = vmatpush1.msra.mxu0 0.0
    %5089 = vmatprep.subr.mxu0 0.0
    %5090 = vmatpush1.msra.mxu0 0.0
    %5091 = vmatprep.subr.mxu0 0.0
    %5092 = vmatpush1.msra.mxu0 0.0
    %5093 = vmatprep.subr.mxu0 0.0
    %5094 = vmatpush1.msra.mxu0 0.0
    %5095 = vmatprep.subr.mxu0 0.0
    %5096 = vmatpush1.msra.mxu0 0.0
    %5097 = vmatprep.subr.mxu0 0.0
    %5098 = vmatpush1.msra.mxu0 0.0
    %5099 = vmatprep.subr.mxu0 0.0
    %5100 = vmatpush1.msra.mxu0 0.0
    %5101 = vmatprep.subr.mxu0 0.0
    %5102 = vmatpush1.msra.mxu0 0.0
    %5103 = vmatprep.subr.mxu0 0.0
    %5104 = vmatpush1.msra.mxu0 0.0
    %5105 = vmatprep.subr.mxu0 0.0
    %5106 = vmatpush1.msra.mxu0 0.0
    %5107 = vmatprep.subr.mxu0 0.0
    %5108 = vmatpush1.msra.mxu0 0.0
    %5109 = vmatprep.subr.mxu0 0.0
    %5110 = vmatpush1.msra.mxu0 0.0
    %5111 = vmatprep.subr.mxu0 0.0
    %5112 = vmatpush1.msra.mxu0 0.0
    %5113 = vmatprep.subr.mxu0 0.0
    %5114 = vmatpush1.msra.mxu0 0.0
    %5115 = vmatprep.subr.mxu0 0.0
    %5116 = vmatpush1.msra.mxu0 0.0
    %5117 = vmatprep.subr.mxu0 0.0
    %5118 = vmatpush1.msra.mxu0 0.0
    %5119 = vmatprep.subr.mxu0 0.0
    %5120 = vmatpush1.msra.mxu0 0.0
    %5121 = vmatprep.subr.mxu0 0.0
    %5122 = vmatpush1.msra.mxu0 0.0
    %5123 = vmatprep.subr.mxu0 0.0
    %5124 = vmatpush1.msra.mxu0 0.0
    %5125 = vmatprep.subr.mxu0 0.0
    %5126 = vmatpush1.msra.mxu0 0.0
    %5127 = vmatprep.subr.mxu0 0.0
    %5128 = vmatpush1.msra.mxu0 0.0
    %5129 = vmatprep.subr.mxu0 0.0
    %5130 = vmatpush1.msra.mxu0 0.0
    %5131 = vmatprep.subr.mxu0 0.0
    %5132 = vmatpush1.msra.mxu0 0.0
    %5133 = vmatprep.subr.mxu0 0.0
    %5134 = vmatpush1.msra.mxu0 0.0
    %5135 = vmatprep.subr.mxu0 0.0
    %5136 = vmatpush1.msra.mxu0 0.0
    %5137 = vmatprep.subr.mxu0 0.0
    %5138 = vmatpush1.msra.mxu0 0.0
    %5139 = vmatprep.subr.mxu0 0.0
    %5140 = vmatpush1.msra.mxu0 0.0
    %5141 = vmatprep.subr.mxu0 0.0
    %5142 = vmatpush1.msra.mxu0 0.0
    %5143 = vmatprep.mubr.f32.mxu0 0.0
    %v5144 = vand.u32 %v4526, 4294901760
    %v5145 = vsub.f32 %v4526, %v5144
    %v5146 = vand.u32 %v5145, 4294901760
    %v5147 = vsub.f32 %v5145, %v5146
    %v5148 = vand.u32 %v5147, 4294901760
    %5149 = vmatmul.mubr.f32.gmra.mrb[0].mxu0 %v5148
    %v5150 = vpop.f32.mrb[0].mxu0
    %v5151 = vadd.f32 0.0, %v5150
    %v5152 = vpop.f32.mrb[0].mxu0
    %v5153 = vadd.f32 0.0, %v5152
    %5154 = vdwg.mxu0
    %v5155 = vand.u32 %v146, 4294901760
    %v5156 = vsub.f32 %v146, %v5155
    %v5157 = vand.u32 %v5156, 4294901760
    %v5158 = vsub.f32 %v5156, %v5157
    %v5159 = vand.u32 %v5158, 4294901760
    %5160 = vmatprep.subr.mxu0 %v5159
    %v5161 = vand.u32 %v145, 4294901760
    %v5162 = vsub.f32 %v145, %v5161
    %v5163 = vand.u32 %v5162, 4294901760
    %v5164 = vsub.f32 %v5162, %v5163
    %v5165 = vand.u32 %v5164, 4294901760
    %5166 = vmatpush1.msra.mxu0 %v5165
    %v5167 = vand.u32 %v154, 4294901760
    %v5168 = vsub.f32 %v154, %v5167
    %v5169 = vand.u32 %v5168, 4294901760
    %v5170 = vsub.f32 %v5168, %v5169
    %v5171 = vand.u32 %v5170, 4294901760
    %5172 = vmatprep.subr.mxu0 %v5171
    %v5173 = vand.u32 %v153, 4294901760
    %v5174 = vsub.f32 %v153, %v5173
    %v5175 = vand.u32 %v5174, 4294901760
    %v5176 = vsub.f32 %v5174, %v5175
    %v5177 = vand.u32 %v5176, 4294901760
    %5178 = vmatpush1.msra.mxu0 %v5177
    %v5179 = vand.u32 %v162, 4294901760
    %v5180 = vsub.f32 %v162, %v5179
    %v5181 = vand.u32 %v5180, 4294901760
    %v5182 = vsub.f32 %v5180, %v5181
    %v5183 = vand.u32 %v5182, 4294901760
    %5184 = vmatprep.subr.mxu0 %v5183
    %v5185 = vand.u32 %v161, 4294901760
    %v5186 = vsub.f32 %v161, %v5185
    %v5187 = vand.u32 %v5186, 4294901760
    %v5188 = vsub.f32 %v5186, %v5187
    %v5189 = vand.u32 %v5188, 4294901760
    %5190 = vmatpush1.msra.mxu0 %v5189
    %v5191 = vand.u32 %v170, 4294901760
    %v5192 = vsub.f32 %v170, %v5191
    %v5193 = vand.u32 %v5192, 4294901760
    %v5194 = vsub.f32 %v5192, %v5193
    %v5195 = vand.u32 %v5194, 4294901760
    %5196 = vmatprep.subr.mxu0 %v5195
    %v5197 = vand.u32 %v169, 4294901760
    %v5198 = vsub.f32 %v169, %v5197
    %v5199 = vand.u32 %v5198, 4294901760
    %v5200 = vsub.f32 %v5198, %v5199
    %v5201 = vand.u32 %v5200, 4294901760
    %5202 = vmatpush1.msra.mxu0 %v5201
    %5203 = vmatprep.subr.mxu0 0.0
    %5204 = vmatpush1.msra.mxu0 0.0
    %5205 = vmatprep.subr.mxu0 0.0
    %5206 = vmatpush1.msra.mxu0 0.0
    %5207 = vmatprep.subr.mxu0 0.0
    %5208 = vmatpush1.msra.mxu0 0.0
    %5209 = vmatprep.subr.mxu0 0.0
    %5210 = vmatpush1.msra.mxu0 0.0
    %5211 = vmatprep.subr.mxu0 0.0
    %5212 = vmatpush1.msra.mxu0 0.0
    %5213 = vmatprep.subr.mxu0 0.0
    %5214 = vmatpush1.msra.mxu0 0.0
    %5215 = vmatprep.subr.mxu0 0.0
    %5216 = vmatpush1.msra.mxu0 0.0
    %5217 = vmatprep.subr.mxu0 0.0
    %5218 = vmatpush1.msra.mxu0 0.0
    %5219 = vmatprep.subr.mxu0 0.0
    %5220 = vmatpush1.msra.mxu0 0.0
    %5221 = vmatprep.subr.mxu0 0.0
    %5222 = vmatpush1.msra.mxu0 0.0
    %5223 = vmatprep.subr.mxu0 0.0
    %5224 = vmatpush1.msra.mxu0 0.0
    %5225 = vmatprep.subr.mxu0 0.0
    %5226 = vmatpush1.msra.mxu0 0.0
    %5227 = vmatprep.subr.mxu0 0.0
    %5228 = vmatpush1.msra.mxu0 0.0
    %5229 = vmatprep.subr.mxu0 0.0
    %5230 = vmatpush1.msra.mxu0 0.0
    %5231 = vmatprep.subr.mxu0 0.0
    %5232 = vmatpush1.msra.mxu0 0.0
    %5233 = vmatprep.subr.mxu0 0.0
    %5234 = vmatpush1.msra.mxu0 0.0
    %5235 = vmatprep.subr.mxu0 0.0
    %5236 = vmatpush1.msra.mxu0 0.0
    %5237 = vmatprep.subr.mxu0 0.0
    %5238 = vmatpush1.msra.mxu0 0.0
    %5239 = vmatprep.subr.mxu0 0.0
    %5240 = vmatpush1.msra.mxu0 0.0
    %5241 = vmatprep.subr.mxu0 0.0
    %5242 = vmatpush1.msra.mxu0 0.0
    %5243 = vmatprep.subr.mxu0 0.0
    %5244 = vmatpush1.msra.mxu0 0.0
    %5245 = vmatprep.subr.mxu0 0.0
    %5246 = vmatpush1.msra.mxu0 0.0
    %5247 = vmatprep.subr.mxu0 0.0
    %5248 = vmatpush1.msra.mxu0 0.0
    %5249 = vmatprep.subr.mxu0 0.0
    %5250 = vmatpush1.msra.mxu0 0.0
    %5251 = vmatprep.subr.mxu0 0.0
    %5252 = vmatpush1.msra.mxu0 0.0
    %5253 = vmatprep.subr.mxu0 0.0
    %5254 = vmatpush1.msra.mxu0 0.0
    %5255 = vmatprep.subr.mxu0 0.0
    %5256 = vmatpush1.msra.mxu0 0.0
    %5257 = vmatprep.subr.mxu0 0.0
    %5258 = vmatpush1.msra.mxu0 0.0
    %5259 = vmatprep.mubr.f32.mxu0 0.0
    %v5260 = vand.u32 %v4526, 4294901760
    %5261 = vmatmul.mubr.f32.gmra.mrb[0].mxu0 %v5260
    %v5262 = vpop.f32.mrb[0].mxu0
    %v5263 = vadd.f32 %v5151, %v5262
    %v5264 = vpop.f32.mrb[0].mxu0
    %v5265 = vadd.f32 %v5153, %v5264
    %5266 = vdwg.mxu0
    %v5267 = vand.u32 %v146, 4294901760
    %v5268 = vsub.f32 %v146, %v5267
    %5269 = vmatprep.subr.mxu0 %v5268
    %v5270 = vand.u32 %v145, 4294901760
    %v5271 = vsub.f32 %v145, %v5270
    %5272 = vmatpush1.msra.mxu0 %v5271
    %v5273 = vand.u32 %v154, 4294901760
    %v5274 = vsub.f32 %v154, %v5273
    %5275 = vmatprep.subr.mxu0 %v5274
    %v5276 = vand.u32 %v153, 4294901760
    %v5277 = vsub.f32 %v153, %v5276
    %5278 = vmatpush1.msra.mxu0 %v5277
    %v5279 = vand.u32 %v162, 4294901760
    %v5280 = vsub.f32 %v162, %v5279
    %5281 = vmatprep.subr.mxu0 %v5280
    %v5282 = vand.u32 %v161, 4294901760
    %v5283 = vsub.f32 %v161, %v5282
    %5284 = vmatpush1.msra.mxu0 %v5283
    %v5285 = vand.u32 %v170, 4294901760
    %v5286 = vsub.f32 %v170, %v5285
    %5287 = vmatprep.subr.mxu0 %v5286
    %v5288 = vand.u32 %v169, 4294901760
    %v5289 = vsub.f32 %v169, %v5288
    %5290 = vmatpush1.msra.mxu0 %v5289
    %5291 = vmatprep.subr.mxu0 0.0
    %5292 = vmatpush1.msra.mxu0 0.0
    %5293 = vmatprep.subr.mxu0 0.0
    %5294 = vmatpush1.msra.mxu0 0.0
    %5295 = vmatprep.subr.mxu0 0.0
    %5296 = vmatpush1.msra.mxu0 0.0
    %5297 = vmatprep.subr.mxu0 0.0
    %5298 = vmatpush1.msra.mxu0 0.0
    %5299 = vmatprep.subr.mxu0 0.0
    %5300 = vmatpush1.msra.mxu0 0.0
    %5301 = vmatprep.subr.mxu0 0.0
    %5302 = vmatpush1.msra.mxu0 0.0
    %5303 = vmatprep.subr.mxu0 0.0
    %5304 = vmatpush1.msra.mxu0 0.0
    %5305 = vmatprep.subr.mxu0 0.0
    %5306 = vmatpush1.msra.mxu0 0.0
    %5307 = vmatprep.subr.mxu0 0.0
    %5308 = vmatpush1.msra.mxu0 0.0
    %5309 = vmatprep.subr.mxu0 0.0
    %5310 = vmatpush1.msra.mxu0 0.0
    %5311 = vmatprep.subr.mxu0 0.0
    %5312 = vmatpush1.msra.mxu0 0.0
    %5313 = vmatprep.subr.mxu0 0.0
    %5314 = vmatpush1.msra.mxu0 0.0
    %5315 = vmatprep.subr.mxu0 0.0
    %5316 = vmatpush1.msra.mxu0 0.0
    %5317 = vmatprep.subr.mxu0 0.0
    %5318 = vmatpush1.msra.mxu0 0.0
    %5319 = vmatprep.subr.mxu0 0.0
    %5320 = vmatpush1.msra.mxu0 0.0
    %5321 = vmatprep.subr.mxu0 0.0
    %5322 = vmatpush1.msra.mxu0 0.0
    %5323 = vmatprep.subr.mxu0 0.0
    %5324 = vmatpush1.msra.mxu0 0.0
    %5325 = vmatprep.subr.mxu0 0.0
    %5326 = vmatpush1.msra.mxu0 0.0
    %5327 = vmatprep.subr.mxu0 0.0
    %5328 = vmatpush1.msra.mxu0 0.0
    %5329 = vmatprep.subr.mxu0 0.0
    %5330 = vmatpush1.msra.mxu0 0.0
    %5331 = vmatprep.subr.mxu0 0.0
    %5332 = vmatpush1.msra.mxu0 0.0
    %5333 = vmatprep.subr.mxu0 0.0
    %5334 = vmatpush1.msra.mxu0 0.0
    %5335 = vmatprep.subr.mxu0 0.0
    %5336 = vmatpush1.msra.mxu0 0.0
    %5337 = vmatprep.subr.mxu0 0.0
    %5338 = vmatpush1.msra.mxu0 0.0
    %5339 = vmatprep.subr.mxu0 0.0
    %5340 = vmatpush1.msra.mxu0 0.0
    %5341 = vmatprep.subr.mxu0 0.0
    %5342 = vmatpush1.msra.mxu0 0.0
    %5343 = vmatprep.subr.mxu0 0.0
    %5344 = vmatpush1.msra.mxu0 0.0
    %5345 = vmatprep.subr.mxu0 0.0
    %5346 = vmatpush1.msra.mxu0 0.0
    %5347 = vmatprep.mubr.f32.mxu0 0.0
    %v5348 = vand.u32 %v4526, 4294901760
    %v5349 = vsub.f32 %v4526, %v5348
    %5350 = vmatmul.mubr.f32.gmra.mrb[0].mxu0 %v5349
    %v5351 = vpop.f32.mrb[0].mxu0
    %v5352 = vadd.f32 %v5263, %v5351
    %v5353 = vpop.f32.mrb[0].mxu0
    %v5354 = vadd.f32 %v5265, %v5353
    %5355 = vdwg.mxu0
    %v5356 = vand.u32 %v146, 4294901760
    %5357 = vmatprep.subr.mxu0 %v5356
    %v5358 = vand.u32 %v145, 4294901760
    %5359 = vmatpush1.msra.mxu0 %v5358
    %v5360 = vand.u32 %v154, 4294901760
    %5361 = vmatprep.subr.mxu0 %v5360
    %v5362 = vand.u32 %v153, 4294901760
    %5363 = vmatpush1.msra.mxu0 %v5362
    %v5364 = vand.u32 %v162, 4294901760
    %5365 = vmatprep.subr.mxu0 %v5364
    %v5366 = vand.u32 %v161, 4294901760
    %5367 = vmatpush1.msra.mxu0 %v5366
    %v5368 = vand.u32 %v170, 4294901760
    %5369 = vmatprep.subr.mxu0 %v5368
    %v5370 = vand.u32 %v169, 4294901760
    %5371 = vmatpush1.msra.mxu0 %v5370
    %5372 = vmatprep.subr.mxu0 0.0
    %5373 = vmatpush1.msra.mxu0 0.0
    %5374 = vmatprep.subr.mxu0 0.0
    %5375 = vmatpush1.msra.mxu0 0.0
    %5376 = vmatprep.subr.mxu0 0.0
    %5377 = vmatpush1.msra.mxu0 0.0
    %5378 = vmatprep.subr.mxu0 0.0
    %5379 = vmatpush1.msra.mxu0 0.0
    %5380 = vmatprep.subr.mxu0 0.0
    %5381 = vmatpush1.msra.mxu0 0.0
    %5382 = vmatprep.subr.mxu0 0.0
    %5383 = vmatpush1.msra.mxu0 0.0
    %5384 = vmatprep.subr.mxu0 0.0
    %5385 = vmatpush1.msra.mxu0 0.0
    %5386 = vmatprep.subr.mxu0 0.0
    %5387 = vmatpush1.msra.mxu0 0.0
    %5388 = vmatprep.subr.mxu0 0.0
    %5389 = vmatpush1.msra.mxu0 0.0
    %5390 = vmatprep.subr.mxu0 0.0
    %5391 = vmatpush1.msra.mxu0 0.0
    %5392 = vmatprep.subr.mxu0 0.0
    %5393 = vmatpush1.msra.mxu0 0.0
    %5394 = vmatprep.subr.mxu0 0.0
    %5395 = vmatpush1.msra.mxu0 0.0
    %5396 = vmatprep.subr.mxu0 0.0
    %5397 = vmatpush1.msra.mxu0 0.0
    %5398 = vmatprep.subr.mxu0 0.0
    %5399 = vmatpush1.msra.mxu0 0.0
    %5400 = vmatprep.subr.mxu0 0.0
    %5401 = vmatpush1.msra.mxu0 0.0
    %5402 = vmatprep.subr.mxu0 0.0
    %5403 = vmatpush1.msra.mxu0 0.0
    %5404 = vmatprep.subr.mxu0 0.0
    %5405 = vmatpush1.msra.mxu0 0.0
    %5406 = vmatprep.subr.mxu0 0.0
    %5407 = vmatpush1.msra.mxu0 0.0
    %5408 = vmatprep.subr.mxu0 0.0
    %5409 = vmatpush1.msra.mxu0 0.0
    %5410 = vmatprep.subr.mxu0 0.0
    %5411 = vmatpush1.msra.mxu0 0.0
    %5412 = vmatprep.subr.mxu0 0.0
    %5413 = vmatpush1.msra.mxu0 0.0
    %5414 = vmatprep.subr.mxu0 0.0
    %5415 = vmatpush1.msra.mxu0 0.0
    %5416 = vmatprep.subr.mxu0 0.0
    %5417 = vmatpush1.msra.mxu0 0.0
    %5418 = vmatprep.subr.mxu0 0.0
    %5419 = vmatpush1.msra.mxu0 0.0
    %5420 = vmatprep.subr.mxu0 0.0
    %5421 = vmatpush1.msra.mxu0 0.0
    %5422 = vmatprep.subr.mxu0 0.0
    %5423 = vmatpush1.msra.mxu0 0.0
    %5424 = vmatprep.subr.mxu0 0.0
    %5425 = vmatpush1.msra.mxu0 0.0
    %5426 = vmatprep.subr.mxu0 0.0
    %5427 = vmatpush1.msra.mxu0 0.0
    %5428 = vmatprep.mubr.f32.mxu0 0.0
    %v5429 = vand.u32 %v4526, 4294901760
    %v5430 = vsub.f32 %v4526, %v5429
    %v5431 = vand.u32 %v5430, 4294901760
    %5432 = vmatmul.mubr.f32.gmra.mrb[0].mxu0 %v5431
    %v5433 = vpop.f32.mrb[0].mxu0
    %v5434 = vadd.f32 %v5352, %v5433
    %v5435 = vpop.f32.mrb[0].mxu0
    %v5436 = vadd.f32 %v5354, %v5435
    %5437 = vdwg.mxu0
    %v5438 = vand.u32 %v146, 4294901760
    %v5439 = vsub.f32 %v146, %v5438
    %v5440 = vand.u32 %v5439, 4294901760
    %5441 = vmatprep.subr.mxu0 %v5440
    %v5442 = vand.u32 %v145, 4294901760
    %v5443 = vsub.f32 %v145, %v5442
    %v5444 = vand.u32 %v5443, 4294901760
    %5445 = vmatpush1.msra.mxu0 %v5444
    %v5446 = vand.u32 %v154, 4294901760
    %v5447 = vsub.f32 %v154, %v5446
    %v5448 = vand.u32 %v5447, 4294901760
    %5449 = vmatprep.subr.mxu0 %v5448
    %v5450 = vand.u32 %v153, 4294901760
    %v5451 = vsub.f32 %v153, %v5450
    %v5452 = vand.u32 %v5451, 4294901760
    %5453 = vmatpush1.msra.mxu0 %v5452
    %v5454 = vand.u32 %v162, 4294901760
    %v5455 = vsub.f32 %v162, %v5454
    %v5456 = vand.u32 %v5455, 4294901760
    %5457 = vmatprep.subr.mxu0 %v5456
    %v5458 = vand.u32 %v161, 4294901760
    %v5459 = vsub.f32 %v161, %v5458
    %v5460 = vand.u32 %v5459, 4294901760
    %5461 = vmatpush1.msra.mxu0 %v5460
    %v5462 = vand.u32 %v170, 4294901760
    %v5463 = vsub.f32 %v170, %v5462
    %v5464 = vand.u32 %v5463, 4294901760
    %5465 = vmatprep.subr.mxu0 %v5464
    %v5466 = vand.u32 %v169, 4294901760
    %v5467 = vsub.f32 %v169, %v5466
    %v5468 = vand.u32 %v5467, 4294901760
    %5469 = vmatpush1.msra.mxu0 %v5468
    %5470 = vmatprep.subr.mxu0 0.0
    %5471 = vmatpush1.msra.mxu0 0.0
    %5472 = vmatprep.subr.mxu0 0.0
    %5473 = vmatpush1.msra.mxu0 0.0
    %5474 = vmatprep.subr.mxu0 0.0
    %5475 = vmatpush1.msra.mxu0 0.0
    %5476 = vmatprep.subr.mxu0 0.0
    %5477 = vmatpush1.msra.mxu0 0.0
    %5478 = vmatprep.subr.mxu0 0.0
    %5479 = vmatpush1.msra.mxu0 0.0
    %5480 = vmatprep.subr.mxu0 0.0
    %5481 = vmatpush1.msra.mxu0 0.0
    %5482 = vmatprep.subr.mxu0 0.0
    %5483 = vmatpush1.msra.mxu0 0.0
    %5484 = vmatprep.subr.mxu0 0.0
    %5485 = vmatpush1.msra.mxu0 0.0
    %5486 = vmatprep.subr.mxu0 0.0
    %5487 = vmatpush1.msra.mxu0 0.0
    %5488 = vmatprep.subr.mxu0 0.0
    %5489 = vmatpush1.msra.mxu0 0.0
    %5490 = vmatprep.subr.mxu0 0.0
    %5491 = vmatpush1.msra.mxu0 0.0
    %5492 = vmatprep.subr.mxu0 0.0
    %5493 = vmatpush1.msra.mxu0 0.0
    %5494 = vmatprep.subr.mxu0 0.0
    %5495 = vmatpush1.msra.mxu0 0.0
    %5496 = vmatprep.subr.mxu0 0.0
    %5497 = vmatpush1.msra.mxu0 0.0
    %5498 = vmatprep.subr.mxu0 0.0
    %5499 = vmatpush1.msra.mxu0 0.0
    %5500 = vmatprep.subr.mxu0 0.0
    %5501 = vmatpush1.msra.mxu0 0.0
    %5502 = vmatprep.subr.mxu0 0.0
    %5503 = vmatpush1.msra.mxu0 0.0
    %5504 = vmatprep.subr.mxu0 0.0
    %5505 = vmatpush1.msra.mxu0 0.0
    %5506 = vmatprep.subr.mxu0 0.0
    %5507 = vmatpush1.msra.mxu0 0.0
    %5508 = vmatprep.subr.mxu0 0.0
    %5509 = vmatpush1.msra.mxu0 0.0
    %5510 = vmatprep.subr.mxu0 0.0
    %5511 = vmatpush1.msra.mxu0 0.0
    %5512 = vmatprep.subr.mxu0 0.0
    %5513 = vmatpush1.msra.mxu0 0.0
    %5514 = vmatprep.subr.mxu0 0.0
    %5515 = vmatpush1.msra.mxu0 0.0
    %5516 = vmatprep.subr.mxu0 0.0
    %5517 = vmatpush1.msra.mxu0 0.0
    %5518 = vmatprep.subr.mxu0 0.0
    %5519 = vmatpush1.msra.mxu0 0.0
    %5520 = vmatprep.subr.mxu0 0.0
    %5521 = vmatpush1.msra.mxu0 0.0
    %5522 = vmatprep.subr.mxu0 0.0
    %5523 = vmatpush1.msra.mxu0 0.0
    %5524 = vmatprep.subr.mxu0 0.0
    %5525 = vmatpush1.msra.mxu0 0.0
    %5526 = vmatprep.mubr.f32.mxu0 0.0
    %v5527 = vand.u32 %v4526, 4294901760
    %5528 = vmatmul.mubr.f32.gmra.mrb[0].mxu0 %v5527
    %v5529 = vpop.f32.mrb[0].mxu0
    %v5530 = vadd.f32 %v5434, %v5529
    %v5531 = vpop.f32.mrb[0].mxu0
    %v5532 = vadd.f32 %v5436, %v5531
    %5533 = vdwg.mxu0
    %v5534 = vand.u32 %v146, 4294901760
    %5535 = vmatprep.subr.mxu0 %v5534
    %v5536 = vand.u32 %v145, 4294901760
    %5537 = vmatpush1.msra.mxu0 %v5536
    %v5538 = vand.u32 %v154, 4294901760
    %5539 = vmatprep.subr.mxu0 %v5538
    %v5540 = vand.u32 %v153, 4294901760
    %5541 = vmatpush1.msra.mxu0 %v5540
    %v5542 = vand.u32 %v162, 4294901760
    %5543 = vmatprep.subr.mxu0 %v5542
    %v5544 = vand.u32 %v161, 4294901760
    %5545 = vmatpush1.msra.mxu0 %v5544
    %v5546 = vand.u32 %v170, 4294901760
    %5547 = vmatprep.subr.mxu0 %v5546
    %v5548 = vand.u32 %v169, 4294901760
    %5549 = vmatpush1.msra.mxu0 %v5548
    %5550 = vmatprep.subr.mxu0 0.0
    %5551 = vmatpush1.msra.mxu0 0.0
    %5552 = vmatprep.subr.mxu0 0.0
    %5553 = vmatpush1.msra.mxu0 0.0
    %5554 = vmatprep.subr.mxu0 0.0
    %5555 = vmatpush1.msra.mxu0 0.0
    %5556 = vmatprep.subr.mxu0 0.0
    %5557 = vmatpush1.msra.mxu0 0.0
    %5558 = vmatprep.subr.mxu0 0.0
    %5559 = vmatpush1.msra.mxu0 0.0
    %5560 = vmatprep.subr.mxu0 0.0
    %5561 = vmatpush1.msra.mxu0 0.0
    %5562 = vmatprep.subr.mxu0 0.0
    %5563 = vmatpush1.msra.mxu0 0.0
    %5564 = vmatprep.subr.mxu0 0.0
    %5565 = vmatpush1.msra.mxu0 0.0
    %5566 = vmatprep.subr.mxu0 0.0
    %5567 = vmatpush1.msra.mxu0 0.0
    %5568 = vmatprep.subr.mxu0 0.0
    %5569 = vmatpush1.msra.mxu0 0.0
    %5570 = vmatprep.subr.mxu0 0.0
    %5571 = vmatpush1.msra.mxu0 0.0
    %5572 = vmatprep.subr.mxu0 0.0
    %5573 = vmatpush1.msra.mxu0 0.0
    %5574 = vmatprep.subr.mxu0 0.0
    %5575 = vmatpush1.msra.mxu0 0.0
    %5576 = vmatprep.subr.mxu0 0.0
    %5577 = vmatpush1.msra.mxu0 0.0
    %5578 = vmatprep.subr.mxu0 0.0
    %5579 = vmatpush1.msra.mxu0 0.0
    %5580 = vmatprep.subr.mxu0 0.0
    %5581 = vmatpush1.msra.mxu0 0.0
    %5582 = vmatprep.subr.mxu0 0.0
    %5583 = vmatpush1.msra.mxu0 0.0
    %5584 = vmatprep.subr.mxu0 0.0
    %5585 = vmatpush1.msra.mxu0 0.0
    %5586 = vmatprep.subr.mxu0 0.0
    %5587 = vmatpush1.msra.mxu0 0.0
    %5588 = vmatprep.subr.mxu0 0.0
    %5589 = vmatpush1.msra.mxu0 0.0
    %5590 = vmatprep.subr.mxu0 0.0
    %5591 = vmatpush1.msra.mxu0 0.0
    %5592 = vmatprep.subr.mxu0 0.0
    %5593 = vmatpush1.msra.mxu0 0.0
    %5594 = vmatprep.subr.mxu0 0.0
    %5595 = vmatpush1.msra.mxu0 0.0
    %5596 = vmatprep.subr.mxu0 0.0
    %5597 = vmatpush1.msra.mxu0 0.0
    %5598 = vmatprep.subr.mxu0 0.0
    %5599 = vmatpush1.msra.mxu0 0.0
    %5600 = vmatprep.subr.mxu0 0.0
    %5601 = vmatpush1.msra.mxu0 0.0
    %5602 = vmatprep.subr.mxu0 0.0
    %5603 = vmatpush1.msra.mxu0 0.0
    %5604 = vmatprep.subr.mxu0 0.0
    %5605 = vmatpush1.msra.mxu0 0.0
    %5606 = vmatprep.mubr.f32.mxu0 0.0
    %v5607 = vand.u32 %v4526, 4294901760
    %5608 = vmatmul.mubr.f32.gmra.mrb[0].mxu0 %v5607
    %v5609 = vpop.f32.mrb[0].mxu0
    %v5610 = vadd.f32 %v5530, %v5609
    %v5611 = vpop.f32.mrb[0].mxu0
    %v5612 = vadd.f32 %v5532, %v5611
    %5613 = vdwg.mxu0
    %v5614 = vand.u32 %v148, 4294901760
    %5615 = vmatprep.subr.mxu0 %v5614
    %v5616 = vand.u32 %v147, 4294901760
    %5617 = vmatpush1.msra.mxu0 %v5616
    %v5618 = vand.u32 %v156, 4294901760
    %5619 = vmatprep.subr.mxu0 %v5618
    %v5620 = vand.u32 %v155, 4294901760
    %5621 = vmatpush1.msra.mxu0 %v5620
    %v5622 = vand.u32 %v164, 4294901760
    %5623 = vmatprep.subr.mxu0 %v5622
    %v5624 = vand.u32 %v163, 4294901760
    %5625 = vmatpush1.msra.mxu0 %v5624
    %v5626 = vand.u32 %v172, 4294901760
    %5627 = vmatprep.subr.mxu0 %v5626
    %v5628 = vand.u32 %v171, 4294901760
    %5629 = vmatpush1.msra.mxu0 %v5628
    %5630 = vmatprep.subr.mxu0 0.0
    %5631 = vmatpush1.msra.mxu0 0.0
    %5632 = vmatprep.subr.mxu0 0.0
    %5633 = vmatpush1.msra.mxu0 0.0
    %5634 = vmatprep.subr.mxu0 0.0
    %5635 = vmatpush1.msra.mxu0 0.0
    %5636 = vmatprep.subr.mxu0 0.0
    %5637 = vmatpush1.msra.mxu0 0.0
    %5638 = vmatprep.subr.mxu0 0.0
    %5639 = vmatpush1.msra.mxu0 0.0
    %5640 = vmatprep.subr.mxu0 0.0
    %5641 = vmatpush1.msra.mxu0 0.0
    %5642 = vmatprep.subr.mxu0 0.0
    %5643 = vmatpush1.msra.mxu0 0.0
    %5644 = vmatprep.subr.mxu0 0.0
    %5645 = vmatpush1.msra.mxu0 0.0
    %5646 = vmatprep.subr.mxu0 0.0
    %5647 = vmatpush1.msra.mxu0 0.0
    %5648 = vmatprep.subr.mxu0 0.0
    %5649 = vmatpush1.msra.mxu0 0.0
    %5650 = vmatprep.subr.mxu0 0.0
    %5651 = vmatpush1.msra.mxu0 0.0
    %5652 = vmatprep.subr.mxu0 0.0
    %5653 = vmatpush1.msra.mxu0 0.0
    %5654 = vmatprep.subr.mxu0 0.0
    %5655 = vmatpush1.msra.mxu0 0.0
    %5656 = vmatprep.subr.mxu0 0.0
    %5657 = vmatpush1.msra.mxu0 0.0
    %5658 = vmatprep.subr.mxu0 0.0
    %5659 = vmatpush1.msra.mxu0 0.0
    %5660 = vmatprep.subr.mxu0 0.0
    %5661 = vmatpush1.msra.mxu0 0.0
    %5662 = vmatprep.subr.mxu0 0.0
    %5663 = vmatpush1.msra.mxu0 0.0
    %5664 = vmatprep.subr.mxu0 0.0
    %5665 = vmatpush1.msra.mxu0 0.0
    %5666 = vmatprep.subr.mxu0 0.0
    %5667 = vmatpush1.msra.mxu0 0.0
    %5668 = vmatprep.subr.mxu0 0.0
    %5669 = vmatpush1.msra.mxu0 0.0
    %5670 = vmatprep.subr.mxu0 0.0
    %5671 = vmatpush1.msra.mxu0 0.0
    %5672 = vmatprep.subr.mxu0 0.0
    %5673 = vmatpush1.msra.mxu0 0.0
    %5674 = vmatprep.subr.mxu0 0.0
    %5675 = vmatpush1.msra.mxu0 0.0
    %5676 = vmatprep.subr.mxu0 0.0
    %5677 = vmatpush1.msra.mxu0 0.0
    %5678 = vmatprep.subr.mxu0 0.0
    %5679 = vmatpush1.msra.mxu0 0.0
    %5680 = vmatprep.subr.mxu0 0.0
    %5681 = vmatpush1.msra.mxu0 0.0
    %5682 = vmatprep.subr.mxu0 0.0
    %5683 = vmatpush1.msra.mxu0 0.0
    %5684 = vmatprep.subr.mxu0 0.0
    %5685 = vmatpush1.msra.mxu0 0.0
    %5686 = vmatprep.mubr.f32.mxu0 0.0
    %v5687 = vand.u32 %v4526, 4294901760
    %v5688 = vsub.f32 %v4526, %v5687
    %v5689 = vand.u32 %v5688, 4294901760
    %v5690 = vsub.f32 %v5688, %v5689
    %v5691 = vand.u32 %v5690, 4294901760
    %5692 = vmatmul.mubr.f32.gmra.mrb[0].mxu0 %v5691
    %v5693 = vpop.f32.mrb[0].mxu0
    %v5694 = vadd.f32 0.0, %v5693
    %v5695 = vpop.f32.mrb[0].mxu0
    %v5696 = vadd.f32 0.0, %v5695
    %5697 = vdwg.mxu0
    %v5698 = vand.u32 %v148, 4294901760
    %v5699 = vsub.f32 %v148, %v5698
    %v5700 = vand.u32 %v5699, 4294901760
    %v5701 = vsub.f32 %v5699, %v5700
    %v5702 = vand.u32 %v5701, 4294901760
    %5703 = vmatprep.subr.mxu0 %v5702
    %v5704 = vand.u32 %v147, 4294901760
    %v5705 = vsub.f32 %v147, %v5704
    %v5706 = vand.u32 %v5705, 4294901760
    %v5707 = vsub.f32 %v5705, %v5706
    %v5708 = vand.u32 %v5707, 4294901760
    %5709 = vmatpush1.msra.mxu0 %v5708
    %v5710 = vand.u32 %v156, 4294901760
    %v5711 = vsub.f32 %v156, %v5710
    %v5712 = vand.u32 %v5711, 4294901760
    %v5713 = vsub.f32 %v5711, %v5712
    %v5714 = vand.u32 %v5713, 4294901760
    %5715 = vmatprep.subr.mxu0 %v5714
    %v5716 = vand.u32 %v155, 4294901760
    %v5717 = vsub.f32 %v155, %v5716
    %v5718 = vand.u32 %v5717, 4294901760
    %v5719 = vsub.f32 %v5717, %v5718
    %v5720 = vand.u32 %v5719, 4294901760
    %5721 = vmatpush1.msra.mxu0 %v5720
    %v5722 = vand.u32 %v164, 4294901760
    %v5723 = vsub.f32 %v164, %v5722
    %v5724 = vand.u32 %v5723, 4294901760
    %v5725 = vsub.f32 %v5723, %v5724
    %v5726 = vand.u32 %v5725, 4294901760
    %5727 = vmatprep.subr.mxu0 %v5726
    %v5728 = vand.u32 %v163, 4294901760
    %v5729 = vsub.f32 %v163, %v5728
    %v5730 = vand.u32 %v5729, 4294901760
    %v5731 = vsub.f32 %v5729, %v5730
    %v5732 = vand.u32 %v5731, 4294901760
    %5733 = vmatpush1.msra.mxu0 %v5732
    %v5734 = vand.u32 %v172, 4294901760
    %v5735 = vsub.f32 %v172, %v5734
    %v5736 = vand.u32 %v5735, 4294901760
    %v5737 = vsub.f32 %v5735, %v5736
    %v5738 = vand.u32 %v5737, 4294901760
    %5739 = vmatprep.subr.mxu0 %v5738
    %v5740 = vand.u32 %v171, 4294901760
    %v5741 = vsub.f32 %v171, %v5740
    %v5742 = vand.u32 %v5741, 4294901760
    %v5743 = vsub.f32 %v5741, %v5742
    %v5744 = vand.u32 %v5743, 4294901760
    %5745 = vmatpush1.msra.mxu0 %v5744
    %5746 = vmatprep.subr.mxu0 0.0
    %5747 = vmatpush1.msra.mxu0 0.0
    %5748 = vmatprep.subr.mxu0 0.0
    %5749 = vmatpush1.msra.mxu0 0.0
    %5750 = vmatprep.subr.mxu0 0.0
    %5751 = vmatpush1.msra.mxu0 0.0
    %5752 = vmatprep.subr.mxu0 0.0
    %5753 = vmatpush1.msra.mxu0 0.0
    %5754 = vmatprep.subr.mxu0 0.0
    %5755 = vmatpush1.msra.mxu0 0.0
    %5756 = vmatprep.subr.mxu0 0.0
    %5757 = vmatpush1.msra.mxu0 0.0
    %5758 = vmatprep.subr.mxu0 0.0
    %5759 = vmatpush1.msra.mxu0 0.0
    %5760 = vmatprep.subr.mxu0 0.0
    %5761 = vmatpush1.msra.mxu0 0.0
    %5762 = vmatprep.subr.mxu0 0.0
    %5763 = vmatpush1.msra.mxu0 0.0
    %5764 = vmatprep.subr.mxu0 0.0
    %5765 = vmatpush1.msra.mxu0 0.0
    %5766 = vmatprep.subr.mxu0 0.0
    %5767 = vmatpush1.msra.mxu0 0.0
    %5768 = vmatprep.subr.mxu0 0.0
    %5769 = vmatpush1.msra.mxu0 0.0
    %5770 = vmatprep.subr.mxu0 0.0
    %5771 = vmatpush1.msra.mxu0 0.0
    %5772 = vmatprep.subr.mxu0 0.0
    %5773 = vmatpush1.msra.mxu0 0.0
    %5774 = vmatprep.subr.mxu0 0.0
    %5775 = vmatpush1.msra.mxu0 0.0
    %5776 = vmatprep.subr.mxu0 0.0
    %5777 = vmatpush1.msra.mxu0 0.0
    %5778 = vmatprep.subr.mxu0 0.0
    %5779 = vmatpush1.msra.mxu0 0.0
    %5780 = vmatprep.subr.mxu0 0.0
    %5781 = vmatpush1.msra.mxu0 0.0
    %5782 = vmatprep.subr.mxu0 0.0
    %5783 = vmatpush1.msra.mxu0 0.0
    %5784 = vmatprep.subr.mxu0 0.0
    %5785 = vmatpush1.msra.mxu0 0.0
    %5786 = vmatprep.subr.mxu0 0.0
    %5787 = vmatpush1.msra.mxu0 0.0
    %5788 = vmatprep.subr.mxu0 0.0
    %5789 = vmatpush1.msra.mxu0 0.0
    %5790 = vmatprep.subr.mxu0 0.0
    %5791 = vmatpush1.msra.mxu0 0.0
    %5792 = vmatprep.subr.mxu0 0.0
    %5793 = vmatpush1.msra.mxu0 0.0
    %5794 = vmatprep.subr.mxu0 0.0
    %5795 = vmatpush1.msra.mxu0 0.0
    %5796 = vmatprep.subr.mxu0 0.0
    %5797 = vmatpush1.msra.mxu0 0.0
    %5798 = vmatprep.subr.mxu0 0.0
    %5799 = vmatpush1.msra.mxu0 0.0
    %5800 = vmatprep.subr.mxu0 0.0
    %5801 = vmatpush1.msra.mxu0 0.0
    %5802 = vmatprep.mubr.f32.mxu0 0.0
    %v5803 = vand.u32 %v4526, 4294901760
    %5804 = vmatmul.mubr.f32.gmra.mrb[0].mxu0 %v5803
    %v5805 = vpop.f32.mrb[0].mxu0
    %v5806 = vadd.f32 %v5694, %v5805
    %v5807 = vpop.f32.mrb[0].mxu0
    %v5808 = vadd.f32 %v5696, %v5807
    %5809 = vdwg.mxu0
    %v5810 = vand.u32 %v148, 4294901760
    %v5811 = vsub.f32 %v148, %v5810
    %5812 = vmatprep.subr.mxu0 %v5811
    %v5813 = vand.u32 %v147, 4294901760
    %v5814 = vsub.f32 %v147, %v5813
    %5815 = vmatpush1.msra.mxu0 %v5814
    %v5816 = vand.u32 %v156, 4294901760
    %v5817 = vsub.f32 %v156, %v5816
    %5818 = vmatprep.subr.mxu0 %v5817
    %v5819 = vand.u32 %v155, 4294901760
    %v5820 = vsub.f32 %v155, %v5819
    %5821 = vmatpush1.msra.mxu0 %v5820
    %v5822 = vand.u32 %v164, 4294901760
    %v5823 = vsub.f32 %v164, %v5822
    %5824 = vmatprep.subr.mxu0 %v5823
    %v5825 = vand.u32 %v163, 4294901760
    %v5826 = vsub.f32 %v163, %v5825
    %5827 = vmatpush1.msra.mxu0 %v5826
    %v5828 = vand.u32 %v172, 4294901760
    %v5829 = vsub.f32 %v172, %v5828
    %5830 = vmatprep.subr.mxu0 %v5829
    %v5831 = vand.u32 %v171, 4294901760
    %v5832 = vsub.f32 %v171, %v5831
    %5833 = vmatpush1.msra.mxu0 %v5832
    %5834 = vmatprep.subr.mxu0 0.0
    %5835 = vmatpush1.msra.mxu0 0.0
    %5836 = vmatprep.subr.mxu0 0.0
    %5837 = vmatpush1.msra.mxu0 0.0
    %5838 = vmatprep.subr.mxu0 0.0
    %5839 = vmatpush1.msra.mxu0 0.0
    %5840 = vmatprep.subr.mxu0 0.0
    %5841 = vmatpush1.msra.mxu0 0.0
    %5842 = vmatprep.subr.mxu0 0.0
    %5843 = vmatpush1.msra.mxu0 0.0
    %5844 = vmatprep.subr.mxu0 0.0
    %5845 = vmatpush1.msra.mxu0 0.0
    %5846 = vmatprep.subr.mxu0 0.0
    %5847 = vmatpush1.msra.mxu0 0.0
    %5848 = vmatprep.subr.mxu0 0.0
    %5849 = vmatpush1.msra.mxu0 0.0
    %5850 = vmatprep.subr.mxu0 0.0
    %5851 = vmatpush1.msra.mxu0 0.0
    %5852 = vmatprep.subr.mxu0 0.0
    %5853 = vmatpush1.msra.mxu0 0.0
    %5854 = vmatprep.subr.mxu0 0.0
    %5855 = vmatpush1.msra.mxu0 0.0
    %5856 = vmatprep.subr.mxu0 0.0
    %5857 = vmatpush1.msra.mxu0 0.0
    %5858 = vmatprep.subr.mxu0 0.0
    %5859 = vmatpush1.msra.mxu0 0.0
    %5860 = vmatprep.subr.mxu0 0.0
    %5861 = vmatpush1.msra.mxu0 0.0
    %5862 = vmatprep.subr.mxu0 0.0
    %5863 = vmatpush1.msra.mxu0 0.0
    %5864 = vmatprep.subr.mxu0 0.0
    %5865 = vmatpush1.msra.mxu0 0.0
    %5866 = vmatprep.subr.mxu0 0.0
    %5867 = vmatpush1.msra.mxu0 0.0
    %5868 = vmatprep.subr.mxu0 0.0
    %5869 = vmatpush1.msra.mxu0 0.0
    %5870 = vmatprep.subr.mxu0 0.0
    %5871 = vmatpush1.msra.mxu0 0.0
    %5872 = vmatprep.subr.mxu0 0.0
    %5873 = vmatpush1.msra.mxu0 0.0
    %5874 = vmatprep.subr.mxu0 0.0
    %5875 = vmatpush1.msra.mxu0 0.0
    %5876 = vmatprep.subr.mxu0 0.0
    %5877 = vmatpush1.msra.mxu0 0.0
    %5878 = vmatprep.subr.mxu0 0.0
    %5879 = vmatpush1.msra.mxu0 0.0
    %5880 = vmatprep.subr.mxu0 0.0
    %5881 = vmatpush1.msra.mxu0 0.0
    %5882 = vmatprep.subr.mxu0 0.0
    %5883 = vmatpush1.msra.mxu0 0.0
    %5884 = vmatprep.subr.mxu0 0.0
    %5885 = vmatpush1.msra.mxu0 0.0
    %5886 = vmatprep.subr.mxu0 0.0
    %5887 = vmatpush1.msra.mxu0 0.0
    %5888 = vmatprep.subr.mxu0 0.0
    %5889 = vmatpush1.msra.mxu0 0.0
    %5890 = vmatprep.mubr.f32.mxu0 0.0
    %v5891 = vand.u32 %v4526, 4294901760
    %v5892 = vsub.f32 %v4526, %v5891
    %5893 = vmatmul.mubr.f32.gmra.mrb[0].mxu0 %v5892
    %v5894 = vpop.f32.mrb[0].mxu0
    %v5895 = vadd.f32 %v5806, %v5894
    %v5896 = vpop.f32.mrb[0].mxu0
    %v5897 = vadd.f32 %v5808, %v5896
    %5898 = vdwg.mxu0
    %v5899 = vand.u32 %v148, 4294901760
    %5900 = vmatprep.subr.mxu0 %v5899
    %v5901 = vand.u32 %v147, 4294901760
    %5902 = vmatpush1.msra.mxu0 %v5901
    %v5903 = vand.u32 %v156, 4294901760
    %5904 = vmatprep.subr.mxu0 %v5903
    %v5905 = vand.u32 %v155, 4294901760
    %5906 = vmatpush1.msra.mxu0 %v5905
    %v5907 = vand.u32 %v164, 4294901760
    %5908 = vmatprep.subr.mxu0 %v5907
    %v5909 = vand.u32 %v163, 4294901760
    %5910 = vmatpush1.msra.mxu0 %v5909
    %v5911 = vand.u32 %v172, 4294901760
    %5912 = vmatprep.subr.mxu0 %v5911
    %v5913 = vand.u32 %v171, 4294901760
    %5914 = vmatpush1.msra.mxu0 %v5913
    %5915 = vmatprep.subr.mxu0 0.0
    %5916 = vmatpush1.msra.mxu0 0.0
    %5917 = vmatprep.subr.mxu0 0.0
    %5918 = vmatpush1.msra.mxu0 0.0
    %5919 = vmatprep.subr.mxu0 0.0
    %5920 = vmatpush1.msra.mxu0 0.0
    %5921 = vmatprep.subr.mxu0 0.0
    %5922 = vmatpush1.msra.mxu0 0.0
    %5923 = vmatprep.subr.mxu0 0.0
    %5924 = vmatpush1.msra.mxu0 0.0
    %5925 = vmatprep.subr.mxu0 0.0
    %5926 = vmatpush1.msra.mxu0 0.0
    %5927 = vmatprep.subr.mxu0 0.0
    %5928 = vmatpush1.msra.mxu0 0.0
    %5929 = vmatprep.subr.mxu0 0.0
    %5930 = vmatpush1.msra.mxu0 0.0
    %5931 = vmatprep.subr.mxu0 0.0
    %5932 = vmatpush1.msra.mxu0 0.0
    %5933 = vmatprep.subr.mxu0 0.0
    %5934 = vmatpush1.msra.mxu0 0.0
    %5935 = vmatprep.subr.mxu0 0.0
    %5936 = vmatpush1.msra.mxu0 0.0
    %5937 = vmatprep.subr.mxu0 0.0
    %5938 = vmatpush1.msra.mxu0 0.0
    %5939 = vmatprep.subr.mxu0 0.0
    %5940 = vmatpush1.msra.mxu0 0.0
    %5941 = vmatprep.subr.mxu0 0.0
    %5942 = vmatpush1.msra.mxu0 0.0
    %5943 = vmatprep.subr.mxu0 0.0
    %5944 = vmatpush1.msra.mxu0 0.0
    %5945 = vmatprep.subr.mxu0 0.0
    %5946 = vmatpush1.msra.mxu0 0.0
    %5947 = vmatprep.subr.mxu0 0.0
    %5948 = vmatpush1.msra.mxu0 0.0
    %5949 = vmatprep.subr.mxu0 0.0
    %5950 = vmatpush1.msra.mxu0 0.0
    %5951 = vmatprep.subr.mxu0 0.0
    %5952 = vmatpush1.msra.mxu0 0.0
    %5953 = vmatprep.subr.mxu0 0.0
    %5954 = vmatpush1.msra.mxu0 0.0
    %5955 = vmatprep.subr.mxu0 0.0
    %5956 = vmatpush1.msra.mxu0 0.0
    %5957 = vmatprep.subr.mxu0 0.0
    %5958 = vmatpush1.msra.mxu0 0.0
    %5959 = vmatprep.subr.mxu0 0.0
    %5960 = vmatpush1.msra.mxu0 0.0
    %5961 = vmatprep.subr.mxu0 0.0
    %5962 = vmatpush1.msra.mxu0 0.0
    %5963 = vmatprep.subr.mxu0 0.0
    %5964 = vmatpush1.msra.mxu0 0.0
    %5965 = vmatprep.subr.mxu0 0.0
    %5966 = vmatpush1.msra.mxu0 0.0
    %5967 = vmatprep.subr.mxu0 0.0
    %5968 = vmatpush1.msra.mxu0 0.0
    %5969 = vmatprep.subr.mxu0 0.0
    %5970 = vmatpush1.msra.mxu0 0.0
    %5971 = vmatprep.mubr.f32.mxu0 0.0
    %v5972 = vand.u32 %v4526, 4294901760
    %v5973 = vsub.f32 %v4526, %v5972
    %v5974 = vand.u32 %v5973, 4294901760
    %5975 = vmatmul.mubr.f32.gmra.mrb[0].mxu0 %v5974
    %v5976 = vpop.f32.mrb[0].mxu0
    %v5977 = vadd.f32 %v5895, %v5976
    %v5978 = vpop.f32.mrb[0].mxu0
    %v5979 = vadd.f32 %v5897, %v5978
    %5980 = vdwg.mxu0
    %v5981 = vand.u32 %v148, 4294901760
    %v5982 = vsub.f32 %v148, %v5981
    %v5983 = vand.u32 %v5982, 4294901760
    %5984 = vmatprep.subr.mxu0 %v5983
    %v5985 = vand.u32 %v147, 4294901760
    %v5986 = vsub.f32 %v147, %v5985
    %v5987 = vand.u32 %v5986, 4294901760
    %5988 = vmatpush1.msra.mxu0 %v5987
    %v5989 = vand.u32 %v156, 4294901760
    %v5990 = vsub.f32 %v156, %v5989
    %v5991 = vand.u32 %v5990, 4294901760
    %5992 = vmatprep.subr.mxu0 %v5991
    %v5993 = vand.u32 %v155, 4294901760
    %v5994 = vsub.f32 %v155, %v5993
    %v5995 = vand.u32 %v5994, 4294901760
    %5996 = vmatpush1.msra.mxu0 %v5995
    %v5997 = vand.u32 %v164, 4294901760
    %v5998 = vsub.f32 %v164, %v5997
    %v5999 = vand.u32 %v5998, 4294901760
    %6000 = vmatprep.subr.mxu0 %v5999
    %v6001 = vand.u32 %v163, 4294901760
    %v6002 = vsub.f32 %v163, %v6001
    %v6003 = vand.u32 %v6002, 4294901760
    %6004 = vmatpush1.msra.mxu0 %v6003
    %v6005 = vand.u32 %v172, 4294901760
    %v6006 = vsub.f32 %v172, %v6005
    %v6007 = vand.u32 %v6006, 4294901760
    %6008 = vmatprep.subr.mxu0 %v6007
    %v6009 = vand.u32 %v171, 4294901760
    %v6010 = vsub.f32 %v171, %v6009
    %v6011 = vand.u32 %v6010, 4294901760
    %6012 = vmatpush1.msra.mxu0 %v6011
    %6013 = vmatprep.subr.mxu0 0.0
    %6014 = vmatpush1.msra.mxu0 0.0
    %6015 = vmatprep.subr.mxu0 0.0
    %6016 = vmatpush1.msra.mxu0 0.0
    %6017 = vmatprep.subr.mxu0 0.0
    %6018 = vmatpush1.msra.mxu0 0.0
    %6019 = vmatprep.subr.mxu0 0.0
    %6020 = vmatpush1.msra.mxu0 0.0
    %6021 = vmatprep.subr.mxu0 0.0
    %6022 = vmatpush1.msra.mxu0 0.0
    %6023 = vmatprep.subr.mxu0 0.0
    %6024 = vmatpush1.msra.mxu0 0.0
    %6025 = vmatprep.subr.mxu0 0.0
    %6026 = vmatpush1.msra.mxu0 0.0
    %6027 = vmatprep.subr.mxu0 0.0
    %6028 = vmatpush1.msra.mxu0 0.0
    %6029 = vmatprep.subr.mxu0 0.0
    %6030 = vmatpush1.msra.mxu0 0.0
    %6031 = vmatprep.subr.mxu0 0.0
    %6032 = vmatpush1.msra.mxu0 0.0
    %6033 = vmatprep.subr.mxu0 0.0
    %6034 = vmatpush1.msra.mxu0 0.0
    %6035 = vmatprep.subr.mxu0 0.0
    %6036 = vmatpush1.msra.mxu0 0.0
    %6037 = vmatprep.subr.mxu0 0.0
    %6038 = vmatpush1.msra.mxu0 0.0
    %6039 = vmatprep.subr.mxu0 0.0
    %6040 = vmatpush1.msra.mxu0 0.0
    %6041 = vmatprep.subr.mxu0 0.0
    %6042 = vmatpush1.msra.mxu0 0.0
    %6043 = vmatprep.subr.mxu0 0.0
    %6044 = vmatpush1.msra.mxu0 0.0
    %6045 = vmatprep.subr.mxu0 0.0
    %6046 = vmatpush1.msra.mxu0 0.0
    %6047 = vmatprep.subr.mxu0 0.0
    %6048 = vmatpush1.msra.mxu0 0.0
    %6049 = vmatprep.subr.mxu0 0.0
    %6050 = vmatpush1.msra.mxu0 0.0
    %6051 = vmatprep.subr.mxu0 0.0
    %6052 = vmatpush1.msra.mxu0 0.0
    %6053 = vmatprep.subr.mxu0 0.0
    %6054 = vmatpush1.msra.mxu0 0.0
    %6055 = vmatprep.subr.mxu0 0.0
    %6056 = vmatpush1.msra.mxu0 0.0
    %6057 = vmatprep.subr.mxu0 0.0
    %6058 = vmatpush1.msra.mxu0 0.0
    %6059 = vmatprep.subr.mxu0 0.0
    %6060 = vmatpush1.msra.mxu0 0.0
    %6061 = vmatprep.subr.mxu0 0.0
    %6062 = vmatpush1.msra.mxu0 0.0
    %6063 = vmatprep.subr.mxu0 0.0
    %6064 = vmatpush1.msra.mxu0 0.0
    %6065 = vmatprep.subr.mxu0 0.0
    %6066 = vmatpush1.msra.mxu0 0.0
    %6067 = vmatprep.subr.mxu0 0.0
    %6068 = vmatpush1.msra.mxu0 0.0
    %6069 = vmatprep.mubr.f32.mxu0 0.0
    %v6070 = vand.u32 %v4526, 4294901760
    %6071 = vmatmul.mubr.f32.gmra.mrb[0].mxu0 %v6070
    %v6072 = vpop.f32.mrb[0].mxu0
    %v6073 = vadd.f32 %v5977, %v6072
    %v6074 = vpop.f32.mrb[0].mxu0
    %v6075 = vadd.f32 %v5979, %v6074
    %6076 = vdwg.mxu0
    %v6077 = vand.u32 %v148, 4294901760
    %6078 = vmatprep.subr.mxu0 %v6077
    %v6079 = vand.u32 %v147, 4294901760
    %6080 = vmatpush1.msra.mxu0 %v6079
    %v6081 = vand.u32 %v156, 4294901760
    %6082 = vmatprep.subr.mxu0 %v6081
    %v6083 = vand.u32 %v155, 4294901760
    %6084 = vmatpush1.msra.mxu0 %v6083
    %v6085 = vand.u32 %v164, 4294901760
    %6086 = vmatprep.subr.mxu0 %v6085
    %v6087 = vand.u32 %v163, 4294901760
    %6088 = vmatpush1.msra.mxu0 %v6087
    %v6089 = vand.u32 %v172, 4294901760
    %6090 = vmatprep.subr.mxu0 %v6089
    %v6091 = vand.u32 %v171, 4294901760
    %6092 = vmatpush1.msra.mxu0 %v6091
    %6093 = vmatprep.subr.mxu0 0.0
    %6094 = vmatpush1.msra.mxu0 0.0
    %6095 = vmatprep.subr.mxu0 0.0
    %6096 = vmatpush1.msra.mxu0 0.0
    %6097 = vmatprep.subr.mxu0 0.0
    %6098 = vmatpush1.msra.mxu0 0.0
    %6099 = vmatprep.subr.mxu0 0.0
    %6100 = vmatpush1.msra.mxu0 0.0
    %6101 = vmatprep.subr.mxu0 0.0
    %6102 = vmatpush1.msra.mxu0 0.0
    %6103 = vmatprep.subr.mxu0 0.0
    %6104 = vmatpush1.msra.mxu0 0.0
    %6105 = vmatprep.subr.mxu0 0.0
    %6106 = vmatpush1.msra.mxu0 0.0
    %6107 = vmatprep.subr.mxu0 0.0
    %6108 = vmatpush1.msra.mxu0 0.0
    %6109 = vmatprep.subr.mxu0 0.0
    %6110 = vmatpush1.msra.mxu0 0.0
    %6111 = vmatprep.subr.mxu0 0.0
    %6112 = vmatpush1.msra.mxu0 0.0
    %6113 = vmatprep.subr.mxu0 0.0
    %6114 = vmatpush1.msra.mxu0 0.0
    %6115 = vmatprep.subr.mxu0 0.0
    %6116 = vmatpush1.msra.mxu0 0.0
    %6117 = vmatprep.subr.mxu0 0.0
    %6118 = vmatpush1.msra.mxu0 0.0
    %6119 = vmatprep.subr.mxu0 0.0
    %6120 = vmatpush1.msra.mxu0 0.0
    %6121 = vmatprep.subr.mxu0 0.0
    %6122 = vmatpush1.msra.mxu0 0.0
    %6123 = vmatprep.subr.mxu0 0.0
    %6124 = vmatpush1.msra.mxu0 0.0
    %6125 = vmatprep.subr.mxu0 0.0
    %6126 = vmatpush1.msra.mxu0 0.0
    %6127 = vmatprep.subr.mxu0 0.0
    %6128 = vmatpush1.msra.mxu0 0.0
    %6129 = vmatprep.subr.mxu0 0.0
    %6130 = vmatpush1.msra.mxu0 0.0
    %6131 = vmatprep.subr.mxu0 0.0
    %6132 = vmatpush1.msra.mxu0 0.0
    %6133 = vmatprep.subr.mxu0 0.0
    %6134 = vmatpush1.msra.mxu0 0.0
    %6135 = vmatprep.subr.mxu0 0.0
    %6136 = vmatpush1.msra.mxu0 0.0
    %6137 = vmatprep.subr.mxu0 0.0
    %6138 = vmatpush1.msra.mxu0 0.0
    %6139 = vmatprep.subr.mxu0 0.0
    %6140 = vmatpush1.msra.mxu0 0.0
    %6141 = vmatprep.subr.mxu0 0.0
    %6142 = vmatpush1.msra.mxu0 0.0
    %6143 = vmatprep.subr.mxu0 0.0
    %6144 = vmatpush1.msra.mxu0 0.0
    %6145 = vmatprep.subr.mxu0 0.0
    %6146 = vmatpush1.msra.mxu0 0.0
    %6147 = vmatprep.subr.mxu0 0.0
    %6148 = vmatpush1.msra.mxu0 0.0
    %6149 = vmatprep.mubr.f32.mxu0 0.0
    %v6150 = vand.u32 %v4526, 4294901760
    %6151 = vmatmul.mubr.f32.gmra.mrb[0].mxu0 %v6150
    %v6152 = vpop.f32.mrb[0].mxu0
    %v6153 = vadd.f32 %v6073, %v6152
    %v6154 = vpop.f32.mrb[0].mxu0
    %v6155 = vadd.f32 %v6075, %v6154
    %6156 = vdwg.mxu0
    %v6157 = vand.u32 %v150, 4294901760
    %6158 = vmatprep.subr.mxu0 %v6157
    %v6159 = vand.u32 %v149, 4294901760
    %6160 = vmatpush1.msra.mxu0 %v6159
    %v6161 = vand.u32 %v158, 4294901760
    %6162 = vmatprep.subr.mxu0 %v6161
    %v6163 = vand.u32 %v157, 4294901760
    %6164 = vmatpush1.msra.mxu0 %v6163
    %v6165 = vand.u32 %v166, 4294901760
    %6166 = vmatprep.subr.mxu0 %v6165
    %v6167 = vand.u32 %v165, 4294901760
    %6168 = vmatpush1.msra.mxu0 %v6167
    %v6169 = vand.u32 %v174, 4294901760
    %6170 = vmatprep.subr.mxu0 %v6169
    %v6171 = vand.u32 %v173, 4294901760
    %6172 = vmatpush1.msra.mxu0 %v6171
    %6173 = vmatprep.subr.mxu0 0.0
    %6174 = vmatpush1.msra.mxu0 0.0
    %6175 = vmatprep.subr.mxu0 0.0
    %6176 = vmatpush1.msra.mxu0 0.0
    %6177 = vmatprep.subr.mxu0 0.0
    %6178 = vmatpush1.msra.mxu0 0.0
    %6179 = vmatprep.subr.mxu0 0.0
    %6180 = vmatpush1.msra.mxu0 0.0
    %6181 = vmatprep.subr.mxu0 0.0
    %6182 = vmatpush1.msra.mxu0 0.0
    %6183 = vmatprep.subr.mxu0 0.0
    %6184 = vmatpush1.msra.mxu0 0.0
    %6185 = vmatprep.subr.mxu0 0.0
    %6186 = vmatpush1.msra.mxu0 0.0
    %6187 = vmatprep.subr.mxu0 0.0
    %6188 = vmatpush1.msra.mxu0 0.0
    %6189 = vmatprep.subr.mxu0 0.0
    %6190 = vmatpush1.msra.mxu0 0.0
    %6191 = vmatprep.subr.mxu0 0.0
    %6192 = vmatpush1.msra.mxu0 0.0
    %6193 = vmatprep.subr.mxu0 0.0
    %6194 = vmatpush1.msra.mxu0 0.0
    %6195 = vmatprep.subr.mxu0 0.0
    %6196 = vmatpush1.msra.mxu0 0.0
    %6197 = vmatprep.subr.mxu0 0.0
    %6198 = vmatpush1.msra.mxu0 0.0
    %6199 = vmatprep.subr.mxu0 0.0
    %6200 = vmatpush1.msra.mxu0 0.0
    %6201 = vmatprep.subr.mxu0 0.0
    %6202 = vmatpush1.msra.mxu0 0.0
    %6203 = vmatprep.subr.mxu0 0.0
    %6204 = vmatpush1.msra.mxu0 0.0
    %6205 = vmatprep.subr.mxu0 0.0
    %6206 = vmatpush1.msra.mxu0 0.0
    %6207 = vmatprep.subr.mxu0 0.0
    %6208 = vmatpush1.msra.mxu0 0.0
    %6209 = vmatprep.subr.mxu0 0.0
    %6210 = vmatpush1.msra.mxu0 0.0
    %6211 = vmatprep.subr.mxu0 0.0
    %6212 = vmatpush1.msra.mxu0 0.0
    %6213 = vmatprep.subr.mxu0 0.0
    %6214 = vmatpush1.msra.mxu0 0.0
    %6215 = vmatprep.subr.mxu0 0.0
    %6216 = vmatpush1.msra.mxu0 0.0
    %6217 = vmatprep.subr.mxu0 0.0
    %6218 = vmatpush1.msra.mxu0 0.0
    %6219 = vmatprep.subr.mxu0 0.0
    %6220 = vmatpush1.msra.mxu0 0.0
    %6221 = vmatprep.subr.mxu0 0.0
    %6222 = vmatpush1.msra.mxu0 0.0
    %6223 = vmatprep.subr.mxu0 0.0
    %6224 = vmatpush1.msra.mxu0 0.0
    %6225 = vmatprep.subr.mxu0 0.0
    %6226 = vmatpush1.msra.mxu0 0.0
    %6227 = vmatprep.subr.mxu0 0.0
    %6228 = vmatpush1.msra.mxu0 0.0
    %6229 = vmatprep.mubr.f32.mxu0 0.0
    %v6230 = vand.u32 %v4526, 4294901760
    %v6231 = vsub.f32 %v4526, %v6230
    %v6232 = vand.u32 %v6231, 4294901760
    %v6233 = vsub.f32 %v6231, %v6232
    %v6234 = vand.u32 %v6233, 4294901760
    %6235 = vmatmul.mubr.f32.gmra.mrb[0].mxu0 %v6234
    %v6236 = vpop.f32.mrb[0].mxu0
    %v6237 = vadd.f32 0.0, %v6236
    %v6238 = vpop.f32.mrb[0].mxu0
    %v6239 = vadd.f32 0.0, %v6238
    %6240 = vdwg.mxu0
    %v6241 = vand.u32 %v150, 4294901760
    %v6242 = vsub.f32 %v150, %v6241
    %v6243 = vand.u32 %v6242, 4294901760
    %v6244 = vsub.f32 %v6242, %v6243
    %v6245 = vand.u32 %v6244, 4294901760
    %6246 = vmatprep.subr.mxu0 %v6245
    %v6247 = vand.u32 %v149, 4294901760
    %v6248 = vsub.f32 %v149, %v6247
    %v6249 = vand.u32 %v6248, 4294901760
    %v6250 = vsub.f32 %v6248, %v6249
    %v6251 = vand.u32 %v6250, 4294901760
    %6252 = vmatpush1.msra.mxu0 %v6251
    %v6253 = vand.u32 %v158, 4294901760
    %v6254 = vsub.f32 %v158, %v6253
    %v6255 = vand.u32 %v6254, 4294901760
    %v6256 = vsub.f32 %v6254, %v6255
    %v6257 = vand.u32 %v6256, 4294901760
    %6258 = vmatprep.subr.mxu0 %v6257
    %v6259 = vand.u32 %v157, 4294901760
    %v6260 = vsub.f32 %v157, %v6259
    %v6261 = vand.u32 %v6260, 4294901760
    %v6262 = vsub.f32 %v6260, %v6261
    %v6263 = vand.u32 %v6262, 4294901760
    %6264 = vmatpush1.msra.mxu0 %v6263
    %v6265 = vand.u32 %v166, 4294901760
    %v6266 = vsub.f32 %v166, %v6265
    %v6267 = vand.u32 %v6266, 4294901760
    %v6268 = vsub.f32 %v6266, %v6267
    %v6269 = vand.u32 %v6268, 4294901760
    %6270 = vmatprep.subr.mxu0 %v6269
    %v6271 = vand.u32 %v165, 4294901760
    %v6272 = vsub.f32 %v165, %v6271
    %v6273 = vand.u32 %v6272, 4294901760
    %v6274 = vsub.f32 %v6272, %v6273
    %v6275 = vand.u32 %v6274, 4294901760
    %6276 = vmatpush1.msra.mxu0 %v6275
    %v6277 = vand.u32 %v174, 4294901760
    %v6278 = vsub.f32 %v174, %v6277
    %v6279 = vand.u32 %v6278, 4294901760
    %v6280 = vsub.f32 %v6278, %v6279
    %v6281 = vand.u32 %v6280, 4294901760
    %6282 = vmatprep.subr.mxu0 %v6281
    %v6283 = vand.u32 %v173, 4294901760
    %v6284 = vsub.f32 %v173, %v6283
    %v6285 = vand.u32 %v6284, 4294901760
    %v6286 = vsub.f32 %v6284, %v6285
    %v6287 = vand.u32 %v6286, 4294901760
    %6288 = vmatpush1.msra.mxu0 %v6287
    %6289 = vmatprep.subr.mxu0 0.0
    %6290 = vmatpush1.msra.mxu0 0.0
    %6291 = vmatprep.subr.mxu0 0.0
    %6292 = vmatpush1.msra.mxu0 0.0
    %6293 = vmatprep.subr.mxu0 0.0
    %6294 = vmatpush1.msra.mxu0 0.0
    %6295 = vmatprep.subr.mxu0 0.0
    %6296 = vmatpush1.msra.mxu0 0.0
    %6297 = vmatprep.subr.mxu0 0.0
    %6298 = vmatpush1.msra.mxu0 0.0
    %6299 = vmatprep.subr.mxu0 0.0
    %6300 = vmatpush1.msra.mxu0 0.0
    %6301 = vmatprep.subr.mxu0 0.0
    %6302 = vmatpush1.msra.mxu0 0.0
    %6303 = vmatprep.subr.mxu0 0.0
    %6304 = vmatpush1.msra.mxu0 0.0
    %6305 = vmatprep.subr.mxu0 0.0
    %6306 = vmatpush1.msra.mxu0 0.0
    %6307 = vmatprep.subr.mxu0 0.0
    %6308 = vmatpush1.msra.mxu0 0.0
    %6309 = vmatprep.subr.mxu0 0.0
    %6310 = vmatpush1.msra.mxu0 0.0
    %6311 = vmatprep.subr.mxu0 0.0
    %6312 = vmatpush1.msra.mxu0 0.0
    %6313 = vmatprep.subr.mxu0 0.0
    %6314 = vmatpush1.msra.mxu0 0.0
    %6315 = vmatprep.subr.mxu0 0.0
    %6316 = vmatpush1.msra.mxu0 0.0
    %6317 = vmatprep.subr.mxu0 0.0
    %6318 = vmatpush1.msra.mxu0 0.0
    %6319 = vmatprep.subr.mxu0 0.0
    %6320 = vmatpush1.msra.mxu0 0.0
    %6321 = vmatprep.subr.mxu0 0.0
    %6322 = vmatpush1.msra.mxu0 0.0
    %6323 = vmatprep.subr.mxu0 0.0
    %6324 = vmatpush1.msra.mxu0 0.0
    %6325 = vmatprep.subr.mxu0 0.0
    %6326 = vmatpush1.msra.mxu0 0.0
    %6327 = vmatprep.subr.mxu0 0.0
    %6328 = vmatpush1.msra.mxu0 0.0
    %6329 = vmatprep.subr.mxu0 0.0
    %6330 = vmatpush1.msra.mxu0 0.0
    %6331 = vmatprep.subr.mxu0 0.0
    %6332 = vmatpush1.msra.mxu0 0.0
    %6333 = vmatprep.subr.mxu0 0.0
    %6334 = vmatpush1.msra.mxu0 0.0
    %6335 = vmatprep.subr.mxu0 0.0
    %6336 = vmatpush1.msra.mxu0 0.0
    %6337 = vmatprep.subr.mxu0 0.0
    %6338 = vmatpush1.msra.mxu0 0.0
    %6339 = vmatprep.subr.mxu0 0.0
    %6340 = vmatpush1.msra.mxu0 0.0
    %6341 = vmatprep.subr.mxu0 0.0
    %6342 = vmatpush1.msra.mxu0 0.0
    %6343 = vmatprep.subr.mxu0 0.0
    %6344 = vmatpush1.msra.mxu0 0.0
    %6345 = vmatprep.mubr.f32.mxu0 0.0
    %v6346 = vand.u32 %v4526, 4294901760
    %6347 = vmatmul.mubr.f32.gmra.mrb[0].mxu0 %v6346
    %v6348 = vpop.f32.mrb[0].mxu0
    %v6349 = vadd.f32 %v6237, %v6348
    %v6350 = vpop.f32.mrb[0].mxu0
    %v6351 = vadd.f32 %v6239, %v6350
    %6352 = vdwg.mxu0
    %v6353 = vand.u32 %v150, 4294901760
    %v6354 = vsub.f32 %v150, %v6353
    %6355 = vmatprep.subr.mxu0 %v6354
    %v6356 = vand.u32 %v149, 4294901760
    %v6357 = vsub.f32 %v149, %v6356
    %6358 = vmatpush1.msra.mxu0 %v6357
    %v6359 = vand.u32 %v158, 4294901760
    %v6360 = vsub.f32 %v158, %v6359
    %6361 = vmatprep.subr.mxu0 %v6360
    %v6362 = vand.u32 %v157, 4294901760
    %v6363 = vsub.f32 %v157, %v6362
    %6364 = vmatpush1.msra.mxu0 %v6363
    %v6365 = vand.u32 %v166, 4294901760
    %v6366 = vsub.f32 %v166, %v6365
    %6367 = vmatprep.subr.mxu0 %v6366
    %v6368 = vand.u32 %v165, 4294901760
    %v6369 = vsub.f32 %v165, %v6368
    %6370 = vmatpush1.msra.mxu0 %v6369
    %v6371 = vand.u32 %v174, 4294901760
    %v6372 = vsub.f32 %v174, %v6371
    %6373 = vmatprep.subr.mxu0 %v6372
    %v6374 = vand.u32 %v173, 4294901760
    %v6375 = vsub.f32 %v173, %v6374
    %6376 = vmatpush1.msra.mxu0 %v6375
    %6377 = vmatprep.subr.mxu0 0.0
    %6378 = vmatpush1.msra.mxu0 0.0
    %6379 = vmatprep.subr.mxu0 0.0
    %6380 = vmatpush1.msra.mxu0 0.0
    %6381 = vmatprep.subr.mxu0 0.0
    %6382 = vmatpush1.msra.mxu0 0.0
    %6383 = vmatprep.subr.mxu0 0.0
    %6384 = vmatpush1.msra.mxu0 0.0
    %6385 = vmatprep.subr.mxu0 0.0
    %6386 = vmatpush1.msra.mxu0 0.0
    %6387 = vmatprep.subr.mxu0 0.0
    %6388 = vmatpush1.msra.mxu0 0.0
    %6389 = vmatprep.subr.mxu0 0.0
    %6390 = vmatpush1.msra.mxu0 0.0
    %6391 = vmatprep.subr.mxu0 0.0
    %6392 = vmatpush1.msra.mxu0 0.0
    %6393 = vmatprep.subr.mxu0 0.0
    %6394 = vmatpush1.msra.mxu0 0.0
    %6395 = vmatprep.subr.mxu0 0.0
    %6396 = vmatpush1.msra.mxu0 0.0
    %6397 = vmatprep.subr.mxu0 0.0
    %6398 = vmatpush1.msra.mxu0 0.0
    %6399 = vmatprep.subr.mxu0 0.0
    %6400 = vmatpush1.msra.mxu0 0.0
    %6401 = vmatprep.subr.mxu0 0.0
    %6402 = vmatpush1.msra.mxu0 0.0
    %6403 = vmatprep.subr.mxu0 0.0
    %6404 = vmatpush1.msra.mxu0 0.0
    %6405 = vmatprep.subr.mxu0 0.0
    %6406 = vmatpush1.msra.mxu0 0.0
    %6407 = vmatprep.subr.mxu0 0.0
    %6408 = vmatpush1.msra.mxu0 0.0
    %6409 = vmatprep.subr.mxu0 0.0
    %6410 = vmatpush1.msra.mxu0 0.0
    %6411 = vmatprep.subr.mxu0 0.0
    %6412 = vmatpush1.msra.mxu0 0.0
    %6413 = vmatprep.subr.mxu0 0.0
    %6414 = vmatpush1.msra.mxu0 0.0
    %6415 = vmatprep.subr.mxu0 0.0
    %6416 = vmatpush1.msra.mxu0 0.0
    %6417 = vmatprep.subr.mxu0 0.0
    %6418 = vmatpush1.msra.mxu0 0.0
    %6419 = vmatprep.subr.mxu0 0.0
    %6420 = vmatpush1.msra.mxu0 0.0
    %6421 = vmatprep.subr.mxu0 0.0
    %6422 = vmatpush1.msra.mxu0 0.0
    %6423 = vmatprep.subr.mxu0 0.0
    %6424 = vmatpush1.msra.mxu0 0.0
    %6425 = vmatprep.subr.mxu0 0.0
    %6426 = vmatpush1.msra.mxu0 0.0
    %6427 = vmatprep.subr.mxu0 0.0
    %6428 = vmatpush1.msra.mxu0 0.0
    %6429 = vmatprep.subr.mxu0 0.0
    %6430 = vmatpush1.msra.mxu0 0.0
    %6431 = vmatprep.subr.mxu0 0.0
    %6432 = vmatpush1.msra.mxu0 0.0
    %6433 = vmatprep.mubr.f32.mxu0 0.0
    %v6434 = vand.u32 %v4526, 4294901760
    %v6435 = vsub.f32 %v4526, %v6434
    %6436 = vmatmul.mubr.f32.gmra.mrb[0].mxu0 %v6435
    %v6437 = vpop.f32.mrb[0].mxu0
    %v6438 = vadd.f32 %v6349, %v6437
    %v6439 = vpop.f32.mrb[0].mxu0
    %v6440 = vadd.f32 %v6351, %v6439
    %6441 = vdwg.mxu0
    %v6442 = vand.u32 %v150, 4294901760
    %6443 = vmatprep.subr.mxu0 %v6442
    %v6444 = vand.u32 %v149, 4294901760
    %6445 = vmatpush1.msra.mxu0 %v6444
    %v6446 = vand.u32 %v158, 4294901760
    %6447 = vmatprep.subr.mxu0 %v6446
    %v6448 = vand.u32 %v157, 4294901760
    %6449 = vmatpush1.msra.mxu0 %v6448
    %v6450 = vand.u32 %v166, 4294901760
    %6451 = vmatprep.subr.mxu0 %v6450
    %v6452 = vand.u32 %v165, 4294901760
    %6453 = vmatpush1.msra.mxu0 %v6452
    %v6454 = vand.u32 %v174, 4294901760
    %6455 = vmatprep.subr.mxu0 %v6454
    %v6456 = vand.u32 %v173, 4294901760
    %6457 = vmatpush1.msra.mxu0 %v6456
    %6458 = vmatprep.subr.mxu0 0.0
    %6459 = vmatpush1.msra.mxu0 0.0
    %6460 = vmatprep.subr.mxu0 0.0
    %6461 = vmatpush1.msra.mxu0 0.0
    %6462 = vmatprep.subr.mxu0 0.0
    %6463 = vmatpush1.msra.mxu0 0.0
    %6464 = vmatprep.subr.mxu0 0.0
    %6465 = vmatpush1.msra.mxu0 0.0
    %6466 = vmatprep.subr.mxu0 0.0
    %6467 = vmatpush1.msra.mxu0 0.0
    %6468 = vmatprep.subr.mxu0 0.0
    %6469 = vmatpush1.msra.mxu0 0.0
    %6470 = vmatprep.subr.mxu0 0.0
    %6471 = vmatpush1.msra.mxu0 0.0
    %6472 = vmatprep.subr.mxu0 0.0
    %6473 = vmatpush1.msra.mxu0 0.0
    %6474 = vmatprep.subr.mxu0 0.0
    %6475 = vmatpush1.msra.mxu0 0.0
    %6476 = vmatprep.subr.mxu0 0.0
    %6477 = vmatpush1.msra.mxu0 0.0
    %6478 = vmatprep.subr.mxu0 0.0
    %6479 = vmatpush1.msra.mxu0 0.0
    %6480 = vmatprep.subr.mxu0 0.0
    %6481 = vmatpush1.msra.mxu0 0.0
    %6482 = vmatprep.subr.mxu0 0.0
    %6483 = vmatpush1.msra.mxu0 0.0
    %6484 = vmatprep.subr.mxu0 0.0
    %6485 = vmatpush1.msra.mxu0 0.0
    %6486 = vmatprep.subr.mxu0 0.0
    %6487 = vmatpush1.msra.mxu0 0.0
    %6488 = vmatprep.subr.mxu0 0.0
    %6489 = vmatpush1.msra.mxu0 0.0
    %6490 = vmatprep.subr.mxu0 0.0
    %6491 = vmatpush1.msra.mxu0 0.0
    %6492 = vmatprep.subr.mxu0 0.0
    %6493 = vmatpush1.msra.mxu0 0.0
    %6494 = vmatprep.subr.mxu0 0.0
    %6495 = vmatpush1.msra.mxu0 0.0
    %6496 = vmatprep.subr.mxu0 0.0
    %6497 = vmatpush1.msra.mxu0 0.0
    %6498 = vmatprep.subr.mxu0 0.0
    %6499 = vmatpush1.msra.mxu0 0.0
    %6500 = vmatprep.subr.mxu0 0.0
    %6501 = vmatpush1.msra.mxu0 0.0
    %6502 = vmatprep.subr.mxu0 0.0
    %6503 = vmatpush1.msra.mxu0 0.0
    %6504 = vmatprep.subr.mxu0 0.0
    %6505 = vmatpush1.msra.mxu0 0.0
    %6506 = vmatprep.subr.mxu0 0.0
    %6507 = vmatpush1.msra.mxu0 0.0
    %6508 = vmatprep.subr.mxu0 0.0
    %6509 = vmatpush1.msra.mxu0 0.0
    %6510 = vmatprep.subr.mxu0 0.0
    %6511 = vmatpush1.msra.mxu0 0.0
    %6512 = vmatprep.subr.mxu0 0.0
    %6513 = vmatpush1.msra.mxu0 0.0
    %6514 = vmatprep.mubr.f32.mxu0 0.0
    %v6515 = vand.u32 %v4526, 4294901760
    %v6516 = vsub.f32 %v4526, %v6515
    %v6517 = vand.u32 %v6516, 4294901760
    %6518 = vmatmul.mubr.f32.gmra.mrb[0].mxu0 %v6517
    %v6519 = vpop.f32.mrb[0].mxu0
    %v6520 = vadd.f32 %v6438, %v6519
    %v6521 = vpop.f32.mrb[0].mxu0
    %v6522 = vadd.f32 %v6440, %v6521
    %6523 = vdwg.mxu0
    %v6524 = vand.u32 %v150, 4294901760
    %v6525 = vsub.f32 %v150, %v6524
    %v6526 = vand.u32 %v6525, 4294901760
    %6527 = vmatprep.subr.mxu0 %v6526
    %v6528 = vand.u32 %v149, 4294901760
    %v6529 = vsub.f32 %v149, %v6528
    %v6530 = vand.u32 %v6529, 4294901760
    %6531 = vmatpush1.msra.mxu0 %v6530
    %v6532 = vand.u32 %v158, 4294901760
    %v6533 = vsub.f32 %v158, %v6532
    %v6534 = vand.u32 %v6533, 4294901760
    %6535 = vmatprep.subr.mxu0 %v6534
    %v6536 = vand.u32 %v157, 4294901760
    %v6537 = vsub.f32 %v157, %v6536
    %v6538 = vand.u32 %v6537, 4294901760
    %6539 = vmatpush1.msra.mxu0 %v6538
    %v6540 = vand.u32 %v166, 4294901760
    %v6541 = vsub.f32 %v166, %v6540
    %v6542 = vand.u32 %v6541, 4294901760
    %6543 = vmatprep.subr.mxu0 %v6542
    %v6544 = vand.u32 %v165, 4294901760
    %v6545 = vsub.f32 %v165, %v6544
    %v6546 = vand.u32 %v6545, 4294901760
    %6547 = vmatpush1.msra.mxu0 %v6546
    %v6548 = vand.u32 %v174, 4294901760
    %v6549 = vsub.f32 %v174, %v6548
    %v6550 = vand.u32 %v6549, 4294901760
    %6551 = vmatprep.subr.mxu0 %v6550
    %v6552 = vand.u32 %v173, 4294901760
    %v6553 = vsub.f32 %v173, %v6552
    %v6554 = vand.u32 %v6553, 4294901760
    %6555 = vmatpush1.msra.mxu0 %v6554
    %6556 = vmatprep.subr.mxu0 0.0
    %6557 = vmatpush1.msra.mxu0 0.0
    %6558 = vmatprep.subr.mxu0 0.0
    %6559 = vmatpush1.msra.mxu0 0.0
    %6560 = vmatprep.subr.mxu0 0.0
    %6561 = vmatpush1.msra.mxu0 0.0
    %6562 = vmatprep.subr.mxu0 0.0
    %6563 = vmatpush1.msra.mxu0 0.0
    %6564 = vmatprep.subr.mxu0 0.0
    %6565 = vmatpush1.msra.mxu0 0.0
    %6566 = vmatprep.subr.mxu0 0.0
    %6567 = vmatpush1.msra.mxu0 0.0
    %6568 = vmatprep.subr.mxu0 0.0
    %6569 = vmatpush1.msra.mxu0 0.0
    %6570 = vmatprep.subr.mxu0 0.0
    %6571 = vmatpush1.msra.mxu0 0.0
    %6572 = vmatprep.subr.mxu0 0.0
    %6573 = vmatpush1.msra.mxu0 0.0
    %6574 = vmatprep.subr.mxu0 0.0
    %6575 = vmatpush1.msra.mxu0 0.0
    %6576 = vmatprep.subr.mxu0 0.0
    %6577 = vmatpush1.msra.mxu0 0.0
    %6578 = vmatprep.subr.mxu0 0.0
    %6579 = vmatpush1.msra.mxu0 0.0
    %6580 = vmatprep.subr.mxu0 0.0
    %6581 = vmatpush1.msra.mxu0 0.0
    %6582 = vmatprep.subr.mxu0 0.0
    %6583 = vmatpush1.msra.mxu0 0.0
    %6584 = vmatprep.subr.mxu0 0.0
    %6585 = vmatpush1.msra.mxu0 0.0
    %6586 = vmatprep.subr.mxu0 0.0
    %6587 = vmatpush1.msra.mxu0 0.0
    %6588 = vmatprep.subr.mxu0 0.0
    %6589 = vmatpush1.msra.mxu0 0.0
    %6590 = vmatprep.subr.mxu0 0.0
    %6591 = vmatpush1.msra.mxu0 0.0
    %6592 = vmatprep.subr.mxu0 0.0
    %6593 = vmatpush1.msra.mxu0 0.0
    %6594 = vmatprep.subr.mxu0 0.0
    %6595 = vmatpush1.msra.mxu0 0.0
    %6596 = vmatprep.subr.mxu0 0.0
    %6597 = vmatpush1.msra.mxu0 0.0
    %6598 = vmatprep.subr.mxu0 0.0
    %6599 = vmatpush1.msra.mxu0 0.0
    %6600 = vmatprep.subr.mxu0 0.0
    %6601 = vmatpush1.msra.mxu0 0.0
    %6602 = vmatprep.subr.mxu0 0.0
    %6603 = vmatpush1.msra.mxu0 0.0
    %6604 = vmatprep.subr.mxu0 0.0
    %6605 = vmatpush1.msra.mxu0 0.0
    %6606 = vmatprep.subr.mxu0 0.0
    %6607 = vmatpush1.msra.mxu0 0.0
    %6608 = vmatprep.subr.mxu0 0.0
    %6609 = vmatpush1.msra.mxu0 0.0
    %6610 = vmatprep.subr.mxu0 0.0
    %6611 = vmatpush1.msra.mxu0 0.0
    %6612 = vmatprep.mubr.f32.mxu0 0.0
    %v6613 = vand.u32 %v4526, 4294901760
    %6614 = vmatmul.mubr.f32.gmra.mrb[0].mxu0 %v6613
    %v6615 = vpop.f32.mrb[0].mxu0
    %v6616 = vadd.f32 %v6520, %v6615
    %v6617 = vpop.f32.mrb[0].mxu0
    %v6618 = vadd.f32 %v6522, %v6617
    %6619 = vdwg.mxu0
    %v6620 = vand.u32 %v150, 4294901760
    %6621 = vmatprep.subr.mxu0 %v6620
    %v6622 = vand.u32 %v149, 4294901760
    %6623 = vmatpush1.msra.mxu0 %v6622
    %v6624 = vand.u32 %v158, 4294901760
    %6625 = vmatprep.subr.mxu0 %v6624
    %v6626 = vand.u32 %v157, 4294901760
    %6627 = vmatpush1.msra.mxu0 %v6626
    %v6628 = vand.u32 %v166, 4294901760
    %6629 = vmatprep.subr.mxu0 %v6628
    %v6630 = vand.u32 %v165, 4294901760
    %6631 = vmatpush1.msra.mxu0 %v6630
    %v6632 = vand.u32 %v174, 4294901760
    %6633 = vmatprep.subr.mxu0 %v6632
    %v6634 = vand.u32 %v173, 4294901760
    %6635 = vmatpush1.msra.mxu0 %v6634
    %6636 = vmatprep.subr.mxu0 0.0
    %6637 = vmatpush1.msra.mxu0 0.0
    %6638 = vmatprep.subr.mxu0 0.0
    %6639 = vmatpush1.msra.mxu0 0.0
    %6640 = vmatprep.subr.mxu0 0.0
    %6641 = vmatpush1.msra.mxu0 0.0
    %6642 = vmatprep.subr.mxu0 0.0
    %6643 = vmatpush1.msra.mxu0 0.0
    %6644 = vmatprep.subr.mxu0 0.0
    %6645 = vmatpush1.msra.mxu0 0.0
    %6646 = vmatprep.subr.mxu0 0.0
    %6647 = vmatpush1.msra.mxu0 0.0
    %6648 = vmatprep.subr.mxu0 0.0
    %6649 = vmatpush1.msra.mxu0 0.0
    %6650 = vmatprep.subr.mxu0 0.0
    %6651 = vmatpush1.msra.mxu0 0.0
    %6652 = vmatprep.subr.mxu0 0.0
    %6653 = vmatpush1.msra.mxu0 0.0
    %6654 = vmatprep.subr.mxu0 0.0
    %6655 = vmatpush1.msra.mxu0 0.0
    %6656 = vmatprep.subr.mxu0 0.0
    %6657 = vmatpush1.msra.mxu0 0.0
    %6658 = vmatprep.subr.mxu0 0.0
    %6659 = vmatpush1.msra.mxu0 0.0
    %6660 = vmatprep.subr.mxu0 0.0
    %6661 = vmatpush1.msra.mxu0 0.0
    %6662 = vmatprep.subr.mxu0 0.0
    %6663 = vmatpush1.msra.mxu0 0.0
    %6664 = vmatprep.subr.mxu0 0.0
    %6665 = vmatpush1.msra.mxu0 0.0
    %6666 = vmatprep.subr.mxu0 0.0
    %6667 = vmatpush1.msra.mxu0 0.0
    %6668 = vmatprep.subr.mxu0 0.0
    %6669 = vmatpush1.msra.mxu0 0.0
    %6670 = vmatprep.subr.mxu0 0.0
    %6671 = vmatpush1.msra.mxu0 0.0
    %6672 = vmatprep.subr.mxu0 0.0
    %6673 = vmatpush1.msra.mxu0 0.0
    %6674 = vmatprep.subr.mxu0 0.0
    %6675 = vmatpush1.msra.mxu0 0.0
    %6676 = vmatprep.subr.mxu0 0.0
    %6677 = vmatpush1.msra.mxu0 0.0
    %6678 = vmatprep.subr.mxu0 0.0
    %6679 = vmatpush1.msra.mxu0 0.0
    %6680 = vmatprep.subr.mxu0 0.0
    %6681 = vmatpush1.msra.mxu0 0.0
    %6682 = vmatprep.subr.mxu0 0.0
    %6683 = vmatpush1.msra.mxu0 0.0
    %6684 = vmatprep.subr.mxu0 0.0
    %6685 = vmatpush1.msra.mxu0 0.0
    %6686 = vmatprep.subr.mxu0 0.0
    %6687 = vmatpush1.msra.mxu0 0.0
    %6688 = vmatprep.subr.mxu0 0.0
    %6689 = vmatpush1.msra.mxu0 0.0
    %6690 = vmatprep.subr.mxu0 0.0
    %6691 = vmatpush1.msra.mxu0 0.0
    %6692 = vmatprep.mubr.f32.mxu0 0.0
    %v6693 = vand.u32 %v4526, 4294901760
    %6694 = vmatmul.mubr.f32.gmra.mrb[0].mxu0 %v6693
    %v6695 = vpop.f32.mrb[0].mxu0
    %v6696 = vadd.f32 %v6616, %v6695
    %v6697 = vpop.f32.mrb[0].mxu0
    %v6698 = vadd.f32 %v6618, %v6697
    %6699 = vdwg.mxu0
    %v6700 = vld [vmem:[#allocation3] sm:$0xff]
    %v6701 = vld [vmem:[#allocation3 + $0x8] sm:$0xff]
    %v6702 = vld [vmem:[#allocation3 + $0x10] sm:$0xff]
    %v6703 = vld [vmem:[#allocation3 + $0x18] sm:$0xff]
    %v6704 = vld [vmem:[#allocation3 + $0x20] sm:$0xff]
    %v6705 = vld [vmem:[#allocation3 + $0x28] sm:$0xff]
    %v6706 = vld [vmem:[#allocation3 + $0x30] sm:$0xff]
    %v6707 = vld [vmem:[#allocation3 + $0x38] sm:$0xff]
    %v6708 = vmul.f32 %v717, %v5067
    %v6709 = vmul.f32 %v719, %v5069
    %v6710 = vmul.f32 %v1260, %v5610
    %v6711 = vmul.f32 %v1262, %v5612
    %v6712 = vmul.f32 %v1803, %v6153
    %v6713 = vmul.f32 %v1805, %v6155
    %v6714 = vmul.f32 %v2346, %v6696
    %v6715 = vmul.f32 %v2348, %v6698
    %v6716 = vmul.f32 %v6708, 0.5
    %v6717 = vmul.f32 %v6709, 0.5
    %v6718 = vmul.f32 %v6710, 0.5
    %v6719 = vmul.f32 %v6711, 0.5
    %v6720 = vmul.f32 %v6712, 0.5
    %v6721 = vmul.f32 %v6713, 0.5
    %v6722 = vmul.f32 %v6714, 0.5
    %v6723 = vmul.f32 %v6715, 0.5
    %v6724 = vadd.f32 %v6700, %v6716
    %v6725 = vadd.f32 %v6701, %v6717
    %v6726 = vadd.f32 %v6702, %v6718
    %v6727 = vadd.f32 %v6703, %v6719
    %v6728 = vadd.f32 %v6704, %v6720
    %v6729 = vadd.f32 %v6705, %v6721
    %v6730 = vadd.f32 %v6706, %v6722
    %v6731 = vadd.f32 %v6707, %v6723
    %v6732 = vld [vmem:[#allocation8] sm:$0xff]
    %v6733 = vld [vmem:[#allocation8 + $0x8] sm:$0xff]
    %v6734 = vld [vmem:[#allocation8 + $0x10] sm:$0xff]
    %v6735 = vld [vmem:[#allocation8 + $0x18] sm:$0xff]
    %v6736 = vld [vmem:[#allocation8 + $0x20] sm:$0xff]
    %v6737 = vld [vmem:[#allocation8 + $0x28] sm:$0xff]
    %v6738 = vld [vmem:[#allocation8 + $0x30] sm:$0xff]
    %v6739 = vld [vmem:[#allocation8 + $0x38] sm:$0xff]
    %v6740 = vsub.f32 %v6724, %v6732
    %v6741 = vsub.f32 %v6725, %v6733
    %v6742 = vsub.f32 %v6726, %v6734
    %v6743 = vsub.f32 %v6727, %v6735
    %v6744 = vsub.f32 %v6728, %v6736
    %v6745 = vsub.f32 %v6729, %v6737
    %v6746 = vsub.f32 %v6730, %v6738
    %v6747 = vsub.f32 %v6731, %v6739
    %v6748 = vstv %s86
    %v6749 = vmul.f32 %v6748, %v6740
    %v6750 = vmul.f32 %v6748, %v6741
    %v6751 = vmul.f32 %v6748, %v6742
    %v6752 = vmul.f32 %v6748, %v6743
    %v6753 = vmul.f32 %v6748, %v6744
    %v6754 = vmul.f32 %v6748, %v6745
    %v6755 = vmul.f32 %v6748, %v6746
    %v6756 = vmul.f32 %v6748, %v6747
    %v6757 = vadd.f32 %v6724, %v6749
    %v6758 = vadd.f32 %v6725, %v6750
    %v6759 = vadd.f32 %v6726, %v6751
    %v6760 = vadd.f32 %v6727, %v6752
    %v6761 = vadd.f32 %v6728, %v6753
    %v6762 = vadd.f32 %v6729, %v6754
    %v6763 = vadd.f32 %v6730, %v6755
    %v6764 = vadd.f32 %v6731, %v6756
    %6765 = vst [vmem:[#allocation13] sm:$0xff] %v6724
    %6766 = vst [vmem:[#allocation13 + $0x8] sm:$0xff] %v6725
    %6767 = vst [vmem:[#allocation13 + $0x10] sm:$0xff] %v6726
    %6768 = vst [vmem:[#allocation13 + $0x18] sm:$0xff] %v6727
    %6769 = vst [vmem:[#allocation13 + $0x20] sm:$0xff] %v6728
    %6770 = vst [vmem:[#allocation13 + $0x28] sm:$0xff] %v6729
    %6771 = vst [vmem:[#allocation13 + $0x30] sm:$0xff] %v6730
    %6772 = vst [vmem:[#allocation13 + $0x38] sm:$0xff] %v6731
    %6773 = vst [vmem:[#allocation10] sm:$0xff] %v6757
    %6774 = vst [vmem:[#allocation10 + $0x8] sm:$0xff] %v6758
    %6775 = vst [vmem:[#allocation10 + $0x10] sm:$0xff] %v6759
    %6776 = vst [vmem:[#allocation10 + $0x18] sm:$0xff] %v6760
    %6777 = vst [vmem:[#allocation10 + $0x20] sm:$0xff] %v6761
    %6778 = vst [vmem:[#allocation10 + $0x28] sm:$0xff] %v6762
    %6779 = vst [vmem:[#allocation10 + $0x30] sm:$0xff] %v6763
    %6780 = vst [vmem:[#allocation10 + $0x38] sm:$0xff] %v6764
    %v6781 = vmul.f32 %v2892, %v6757
    %v6782 = vmul.f32 %v2894, %v6758
    %v6783 = vmul.f32 %v3435, %v6759
    %v6784 = vmul.f32 %v3437, %v6760
    %v6785 = vmul.f32 %v3978, %v6761
    %v6786 = vmul.f32 %v3980, %v6762
    %v6787 = vmul.f32 %v4521, %v6763
    %v6788 = vmul.f32 %v4523, %v6764
    %v6789 = vld [vmem:[%s3] sm:$0xff]
    %v6790 = vld [vmem:[%s3 + $0x8] sm:$0xff]
    %v6791 = vld [vmem:[%s3 + $0x10] sm:$0xff]
    %v6792 = vld [vmem:[%s3 + $0x18] sm:$0xff]
    %v6793 = vld [vmem:[%s3 + $0x20] sm:$0xff]
    %v6794 = vld [vmem:[%s3 + $0x28] sm:$0xff]
    %v6795 = vld [vmem:[%s3 + $0x30] sm:$0xff]
    %v6796 = vld [vmem:[%s3 + $0x38] sm:$0xff]
    %v6797 = vld [vmem:[%s3 + $0x40] sm:$0xff]
    %v6798 = vld [vmem:[%s3 + $0x48] sm:$0xff]
    %v6799 = vld [vmem:[%s3 + $0x50] sm:$0xff]
    %v6800 = vld [vmem:[%s3 + $0x58] sm:$0xff]
    %v6801 = vld [vmem:[%s3 + $0x60] sm:$0xff]
    %v6802 = vld [vmem:[%s3 + $0x68] sm:$0xff]
    %v6803 = vld [vmem:[%s3 + $0x70] sm:$0xff]
    %v6804 = vld [vmem:[%s3 + $0x78] sm:$0xff]
    %v6805 = vld [vmem:[%s3 + $0x80] sm:$0xff]
    %v6806 = vld [vmem:[%s3 + $0x88] sm:$0xff]
    %v6807 = vld [vmem:[%s3 + $0x90] sm:$0xff]
    %v6808 = vld [vmem:[%s3 + $0x98] sm:$0xff]
    %v6809 = vld [vmem:[%s3 + $0xa0] sm:$0xff]
    %v6810 = vld [vmem:[%s3 + $0xa8] sm:$0xff]
    %v6811 = vld [vmem:[%s3 + $0xb0] sm:$0xff]
    %v6812 = vld [vmem:[%s3 + $0xb8] sm:$0xff]
    %v6813 = vld [vmem:[%s3 + $0xc0] sm:$0xff]
    %v6814 = vld [vmem:[%s3 + $0xc8] sm:$0xff]
    %v6815 = vld [vmem:[%s3 + $0xd0] sm:$0xff]
    %v6816 = vld [vmem:[%s3 + $0xd8] sm:$0xff]
    %v6817 = vld [vmem:[%s3 + $0xe0] sm:$0xff]
    %v6818 = vld [vmem:[%s3 + $0xe8] sm:$0xff]
    %v6819 = vld [vmem:[%s3 + $0xf0] sm:$0xff]
    %v6820 = vld [vmem:[%s3 + $0xf8] sm:$0xff]
    %v6821 = vld [vmem:[%s3 + $0x100] sm:$0xff]
    %v6822 = vld [vmem:[%s3 + $0x108] sm:$0xff]
    %v6823 = vld [vmem:[%s3 + $0x110] sm:$0xff]
    %v6824 = vld [vmem:[%s3 + $0x118] sm:$0xff]
    %v6825 = vld [vmem:[%s3 + $0x120] sm:$0xff]
    %v6826 = vld [vmem:[%s3 + $0x128] sm:$0xff]
    %v6827 = vld [vmem:[%s3 + $0x130] sm:$0xff]
    %v6828 = vld [vmem:[%s3 + $0x138] sm:$0xff]
    %v6829 = vld [vmem:[%s3 + $0x140] sm:$0xff]
    %v6830 = vld [vmem:[%s3 + $0x148] sm:$0xff]
    %v6831 = vld [vmem:[%s3 + $0x150] sm:$0xff]
    %v6832 = vld [vmem:[%s3 + $0x158] sm:$0xff]
    %v6833 = vld [vmem:[%s3 + $0x160] sm:$0xff]
    %v6834 = vld [vmem:[%s3 + $0x168] sm:$0xff]
    %v6835 = vld [vmem:[%s3 + $0x170] sm:$0xff]
    %v6836 = vld [vmem:[%s3 + $0x178] sm:$0xff]
    %v6837 = vld [vmem:[%s3 + $0x180] sm:$0xff]
    %v6838 = vld [vmem:[%s3 + $0x188] sm:$0xff]
    %v6839 = vld [vmem:[%s3 + $0x190] sm:$0xff]
    %v6840 = vld [vmem:[%s3 + $0x198] sm:$0xff]
    %v6841 = vld [vmem:[%s3 + $0x1a0] sm:$0xff]
    %v6842 = vld [vmem:[%s3 + $0x1a8] sm:$0xff]
    %v6843 = vld [vmem:[%s3 + $0x1b0] sm:$0xff]
    %v6844 = vld [vmem:[%s3 + $0x1b8] sm:$0xff]
    %v6845 = vld [vmem:[%s3 + $0x1c0] sm:$0xff]
    %v6846 = vld [vmem:[%s3 + $0x1c8] sm:$0xff]
    %v6847 = vld [vmem:[%s3 + $0x1d0] sm:$0xff]
    %v6848 = vld [vmem:[%s3 + $0x1d8] sm:$0xff]
    %v6849 = vld [vmem:[%s3 + $0x1e0] sm:$0xff]
    %v6850 = vld [vmem:[%s3 + $0x1e8] sm:$0xff]
    %v6851 = vld [vmem:[%s3 + $0x1f0] sm:$0xff]
    %v6852 = vld [vmem:[%s3 + $0x1f8] sm:$0xff]
    %v6853 = vld [vmem:[%s3 + $0x200] sm:$0xff]
    %v6854 = vld [vmem:[%s3 + $0x208] sm:$0xff]
    %v6855 = vld [vmem:[%s3 + $0x210] sm:$0xff]
    %v6856 = vld [vmem:[%s3 + $0x218] sm:$0xff]
    %v6857 = vld [vmem:[%s3 + $0x220] sm:$0xff]
    %v6858 = vld [vmem:[%s3 + $0x228] sm:$0xff]
    %v6859 = vld [vmem:[%s3 + $0x230] sm:$0xff]
    %v6860 = vld [vmem:[%s3 + $0x238] sm:$0xff]
    %v6861 = vld [vmem:[%s3 + $0x240] sm:$0xff]
    %v6862 = vld [vmem:[%s3 + $0x248] sm:$0xff]
    %v6863 = vld [vmem:[%s3 + $0x250] sm:$0xff]
    %v6864 = vld [vmem:[%s3 + $0x258] sm:$0xff]
    %v6865 = vld [vmem:[%s3 + $0x260] sm:$0xff]
    %v6866 = vld [vmem:[%s3 + $0x268] sm:$0xff]
    %v6867 = vld [vmem:[%s3 + $0x270] sm:$0xff]
    %v6868 = vld [vmem:[%s3 + $0x278] sm:$0xff]
    %v6869 = vld [vmem:[%s3 + $0x280] sm:$0xff]
    %v6870 = vld [vmem:[%s3 + $0x288] sm:$0xff]
    %v6871 = vld [vmem:[%s3 + $0x290] sm:$0xff]
    %v6872 = vld [vmem:[%s3 + $0x298] sm:$0xff]
    %v6873 = vld [vmem:[%s3 + $0x2a0] sm:$0xff]
    %v6874 = vld [vmem:[%s3 + $0x2a8] sm:$0xff]
    %v6875 = vld [vmem:[%s3 + $0x2b0] sm:$0xff]
    %v6876 = vld [vmem:[%s3 + $0x2b8] sm:$0xff]
    %v6877 = vld [vmem:[%s3 + $0x2c0] sm:$0xff]
    %v6878 = vld [vmem:[%s3 + $0x2c8] sm:$0xff]
    %v6879 = vld [vmem:[%s3 + $0x2d0] sm:$0xff]
    %v6880 = vld [vmem:[%s3 + $0x2d8] sm:$0xff]
    %v6881 = vld [vmem:[%s3 + $0x2e0] sm:$0xff]
    %v6882 = vld [vmem:[%s3 + $0x2e8] sm:$0xff]
    %v6883 = vld [vmem:[%s3 + $0x2f0] sm:$0xff]
    %v6884 = vld [vmem:[%s3 + $0x2f8] sm:$0xff]
    %v6885 = vld [vmem:[%s3 + $0x300] sm:$0xff]
    %v6886 = vld [vmem:[%s3 + $0x308] sm:$0xff]
    %v6887 = vld [vmem:[%s3 + $0x310] sm:$0xff]
    %v6888 = vld [vmem:[%s3 + $0x318] sm:$0xff]
    %v6889 = vld [vmem:[%s3 + $0x320] sm:$0xff]
    %v6890 = vld [vmem:[%s3 + $0x328] sm:$0xff]
    %v6891 = vld [vmem:[%s3 + $0x330] sm:$0xff]
    %v6892 = vld [vmem:[%s3 + $0x338] sm:$0xff]
    %v6893 = vld [vmem:[%s3 + $0x340] sm:$0xff]
    %v6894 = vld [vmem:[%s3 + $0x348] sm:$0xff]
    %v6895 = vld [vmem:[%s3 + $0x350] sm:$0xff]
    %v6896 = vld [vmem:[%s3 + $0x358] sm:$0xff]
    %v6897 = vld [vmem:[%s3 + $0x360] sm:$0xff]
    %v6898 = vld [vmem:[%s3 + $0x368] sm:$0xff]
    %v6899 = vld [vmem:[%s3 + $0x370] sm:$0xff]
    %v6900 = vld [vmem:[%s3 + $0x378] sm:$0xff]
    %v6901 = vld [vmem:[%s3 + $0x380] sm:$0xff]
    %v6902 = vld [vmem:[%s3 + $0x388] sm:$0xff]
    %v6903 = vld [vmem:[%s3 + $0x390] sm:$0xff]
    %v6904 = vld [vmem:[%s3 + $0x398] sm:$0xff]
    %v6905 = vld [vmem:[%s3 + $0x3a0] sm:$0xff]
    %v6906 = vld [vmem:[%s3 + $0x3a8] sm:$0xff]
    %v6907 = vld [vmem:[%s3 + $0x3b0] sm:$0xff]
    %v6908 = vld [vmem:[%s3 + $0x3b8] sm:$0xff]
    %v6909 = vld [vmem:[%s3 + $0x3c0] sm:$0xff]
    %v6910 = vld [vmem:[%s3 + $0x3c8] sm:$0xff]
    %v6911 = vld [vmem:[%s3 + $0x3d0] sm:$0xff]
    %v6912 = vld [vmem:[%s3 + $0x3d8] sm:$0xff]
    %v6913 = vld [vmem:[%s3 + $0x3e0] sm:$0xff]
    %v6914 = vld [vmem:[%s3 + $0x3e8] sm:$0xff]
    %v6915 = vld [vmem:[%s3 + $0x3f0] sm:$0xff]
    %v6916 = vld [vmem:[%s3 + $0x3f8] sm:$0xff]
    %6917 = vmatprep.subr.mxu0 0.0
    %v6918 = vand.u32 %v6789, 4294901760
    %6919 = vmatpush1.msra.mxu0 %v6918
    %6920 = vmatprep.subr.mxu0 0.0
    %v6921 = vand.u32 %v6790, 4294901760
    %6922 = vmatpush1.msra.mxu0 %v6921
    %6923 = vmatprep.subr.mxu0 0.0
    %v6924 = vand.u32 %v6791, 4294901760
    %6925 = vmatpush1.msra.mxu0 %v6924
    %6926 = vmatprep.subr.mxu0 0.0
    %v6927 = vand.u32 %v6792, 4294901760
    %6928 = vmatpush1.msra.mxu0 %v6927
    %6929 = vmatprep.subr.mxu0 0.0
    %v6930 = vand.u32 %v6793, 4294901760
    %6931 = vmatpush1.msra.mxu0 %v6930
    %6932 = vmatprep.subr.mxu0 0.0
    %v6933 = vand.u32 %v6794, 4294901760
    %6934 = vmatpush1.msra.mxu0 %v6933
    %6935 = vmatprep.subr.mxu0 0.0
    %v6936 = vand.u32 %v6795, 4294901760
    %6937 = vmatpush1.msra.mxu0 %v6936
    %6938 = vmatprep.subr.mxu0 0.0
    %v6939 = vand.u32 %v6796, 4294901760
    %6940 = vmatpush1.msra.mxu0 %v6939
    %6941 = vmatprep.subr.mxu0 0.0
    %v6942 = vand.u32 %v6797, 4294901760
    %6943 = vmatpush1.msra.mxu0 %v6942
    %6944 = vmatprep.subr.mxu0 0.0
    %v6945 = vand.u32 %v6798, 4294901760
    %6946 = vmatpush1.msra.mxu0 %v6945
    %6947 = vmatprep.subr.mxu0 0.0
    %v6948 = vand.u32 %v6799, 4294901760
    %6949 = vmatpush1.msra.mxu0 %v6948
    %6950 = vmatprep.subr.mxu0 0.0
    %v6951 = vand.u32 %v6800, 4294901760
    %6952 = vmatpush1.msra.mxu0 %v6951
    %6953 = vmatprep.subr.mxu0 0.0
    %v6954 = vand.u32 %v6801, 4294901760
    %6955 = vmatpush1.msra.mxu0 %v6954
    %6956 = vmatprep.subr.mxu0 0.0
    %v6957 = vand.u32 %v6802, 4294901760
    %6958 = vmatpush1.msra.mxu0 %v6957
    %6959 = vmatprep.subr.mxu0 0.0
    %v6960 = vand.u32 %v6803, 4294901760
    %6961 = vmatpush1.msra.mxu0 %v6960
    %6962 = vmatprep.subr.mxu0 0.0
    %v6963 = vand.u32 %v6804, 4294901760
    %6964 = vmatpush1.msra.mxu0 %v6963
    %6965 = vmatprep.subr.mxu0 0.0
    %v6966 = vand.u32 %v6805, 4294901760
    %6967 = vmatpush1.msra.mxu0 %v6966
    %6968 = vmatprep.subr.mxu0 0.0
    %v6969 = vand.u32 %v6806, 4294901760
    %6970 = vmatpush1.msra.mxu0 %v6969
    %6971 = vmatprep.subr.mxu0 0.0
    %v6972 = vand.u32 %v6807, 4294901760
    %6973 = vmatpush1.msra.mxu0 %v6972
    %6974 = vmatprep.subr.mxu0 0.0
    %v6975 = vand.u32 %v6808, 4294901760
    %6976 = vmatpush1.msra.mxu0 %v6975
    %6977 = vmatprep.subr.mxu0 0.0
    %v6978 = vand.u32 %v6809, 4294901760
    %6979 = vmatpush1.msra.mxu0 %v6978
    %6980 = vmatprep.subr.mxu0 0.0
    %v6981 = vand.u32 %v6810, 4294901760
    %6982 = vmatpush1.msra.mxu0 %v6981
    %6983 = vmatprep.subr.mxu0 0.0
    %v6984 = vand.u32 %v6811, 4294901760
    %6985 = vmatpush1.msra.mxu0 %v6984
    %6986 = vmatprep.subr.mxu0 0.0
    %v6987 = vand.u32 %v6812, 4294901760
    %6988 = vmatpush1.msra.mxu0 %v6987
    %6989 = vmatprep.subr.mxu0 0.0
    %v6990 = vand.u32 %v6813, 4294901760
    %6991 = vmatpush1.msra.mxu0 %v6990
    %6992 = vmatprep.subr.mxu0 0.0
    %v6993 = vand.u32 %v6814, 4294901760
    %6994 = vmatpush1.msra.mxu0 %v6993
    %6995 = vmatprep.subr.mxu0 0.0
    %v6996 = vand.u32 %v6815, 4294901760
    %6997 = vmatpush1.msra.mxu0 %v6996
    %6998 = vmatprep.subr.mxu0 0.0
    %v6999 = vand.u32 %v6816, 4294901760
    %7000 = vmatpush1.msra.mxu0 %v6999
    %7001 = vmatprep.subr.mxu0 0.0
    %v7002 = vand.u32 %v6817, 4294901760
    %7003 = vmatpush1.msra.mxu0 %v7002
    %7004 = vmatprep.subr.mxu0 0.0
    %v7005 = vand.u32 %v6818, 4294901760
    %7006 = vmatpush1.msra.mxu0 %v7005
    %7007 = vmatprep.subr.mxu0 0.0
    %v7008 = vand.u32 %v6819, 4294901760
    %7009 = vmatpush1.msra.mxu0 %v7008
    %7010 = vmatprep.subr.mxu0 0.0
    %v7011 = vand.u32 %v6820, 4294901760
    %7012 = vmatpush1.msra.mxu0 %v7011
    %v7013 = vand.u32 %v6782, 4294901760
    %v7014 = vsub.f32 %v6782, %v7013
    %v7015 = vand.u32 %v7014, 4294901760
    %v7016 = vsub.f32 %v7014, %v7015
    %v7017 = vand.u32 %v7016, 4294901760
    %7018 = vmatprep.mubr.f32.mxu0 %v7017
    %v7019 = vand.u32 %v6781, 4294901760
    %v7020 = vsub.f32 %v6781, %v7019
    %v7021 = vand.u32 %v7020, 4294901760
    %v7022 = vsub.f32 %v7020, %v7021
    %v7023 = vand.u32 %v7022, 4294901760
    %7024 = vmatmul.mubr.f32.gmra.mrb[0].mxu0 %v7023
    %v7025 = vpop.f32.mrb[0].mxu0
    %v7026 = vadd.f32 0.0, %v7025
    %v7027 = vpop.f32.mrb[0].mxu0
    %7028 = vdwg.mxu0
    %7029 = vmatprep.subr.mxu0 0.0
    %v7030 = vand.u32 %v6789, 4294901760
    %v7031 = vsub.f32 %v6789, %v7030
    %v7032 = vand.u32 %v7031, 4294901760
    %v7033 = vsub.f32 %v7031, %v7032
    %v7034 = vand.u32 %v7033, 4294901760
    %7035 = vmatpush1.msra.mxu0 %v7034
    %7036 = vmatprep.subr.mxu0 0.0
    %v7037 = vand.u32 %v6790, 4294901760
    %v7038 = vsub.f32 %v6790, %v7037
    %v7039 = vand.u32 %v7038, 4294901760
    %v7040 = vsub.f32 %v7038, %v7039
    %v7041 = vand.u32 %v7040, 4294901760
    %7042 = vmatpush1.msra.mxu0 %v7041
    %7043 = vmatprep.subr.mxu0 0.0
    %v7044 = vand.u32 %v6791, 4294901760
    %v7045 = vsub.f32 %v6791, %v7044
    %v7046 = vand.u32 %v7045, 4294901760
    %v7047 = vsub.f32 %v7045, %v7046
    %v7048 = vand.u32 %v7047, 4294901760
    %7049 = vmatpush1.msra.mxu0 %v7048
    %7050 = vmatprep.subr.mxu0 0.0
    %v7051 = vand.u32 %v6792, 4294901760
    %v7052 = vsub.f32 %v6792, %v7051
    %v7053 = vand.u32 %v7052, 4294901760
    %v7054 = vsub.f32 %v7052, %v7053
    %v7055 = vand.u32 %v7054, 4294901760
    %7056 = vmatpush1.msra.mxu0 %v7055
    %7057 = vmatprep.subr.mxu0 0.0
    %v7058 = vand.u32 %v6793, 4294901760
    %v7059 = vsub.f32 %v6793, %v7058
    %v7060 = vand.u32 %v7059, 4294901760
    %v7061 = vsub.f32 %v7059, %v7060
    %v7062 = vand.u32 %v7061, 4294901760
    %7063 = vmatpush1.msra.mxu0 %v7062
    %7064 = vmatprep.subr.mxu0 0.0
    %v7065 = vand.u32 %v6794, 4294901760
    %v7066 = vsub.f32 %v6794, %v7065
    %v7067 = vand.u32 %v7066, 4294901760
    %v7068 = vsub.f32 %v7066, %v7067
    %v7069 = vand.u32 %v7068, 4294901760
    %7070 = vmatpush1.msra.mxu0 %v7069
    %7071 = vmatprep.subr.mxu0 0.0
    %v7072 = vand.u32 %v6795, 4294901760
    %v7073 = vsub.f32 %v6795, %v7072
    %v7074 = vand.u32 %v7073, 4294901760
    %v7075 = vsub.f32 %v7073, %v7074
    %v7076 = vand.u32 %v7075, 4294901760
    %7077 = vmatpush1.msra.mxu0 %v7076
    %7078 = vmatprep.subr.mxu0 0.0
    %v7079 = vand.u32 %v6796, 4294901760
    %v7080 = vsub.f32 %v6796, %v7079
    %v7081 = vand.u32 %v7080, 4294901760
    %v7082 = vsub.f32 %v7080, %v7081
    %v7083 = vand.u32 %v7082, 4294901760
    %7084 = vmatpush1.msra.mxu0 %v7083
    %7085 = vmatprep.subr.mxu0 0.0
    %v7086 = vand.u32 %v6797, 4294901760
    %v7087 = vsub.f32 %v6797, %v7086
    %v7088 = vand.u32 %v7087, 4294901760
    %v7089 = vsub.f32 %v7087, %v7088
    %v7090 = vand.u32 %v7089, 4294901760
    %7091 = vmatpush1.msra.mxu0 %v7090
    %7092 = vmatprep.subr.mxu0 0.0
    %v7093 = vand.u32 %v6798, 4294901760
    %v7094 = vsub.f32 %v6798, %v7093
    %v7095 = vand.u32 %v7094, 4294901760
    %v7096 = vsub.f32 %v7094, %v7095
    %v7097 = vand.u32 %v7096, 4294901760
    %7098 = vmatpush1.msra.mxu0 %v7097
    %7099 = vmatprep.subr.mxu0 0.0
    %v7100 = vand.u32 %v6799, 4294901760
    %v7101 = vsub.f32 %v6799, %v7100
    %v7102 = vand.u32 %v7101, 4294901760
    %v7103 = vsub.f32 %v7101, %v7102
    %v7104 = vand.u32 %v7103, 4294901760
    %7105 = vmatpush1.msra.mxu0 %v7104
    %7106 = vmatprep.subr.mxu0 0.0
    %v7107 = vand.u32 %v6800, 4294901760
    %v7108 = vsub.f32 %v6800, %v7107
    %v7109 = vand.u32 %v7108, 4294901760
    %v7110 = vsub.f32 %v7108, %v7109
    %v7111 = vand.u32 %v7110, 4294901760
    %7112 = vmatpush1.msra.mxu0 %v7111
    %7113 = vmatprep.subr.mxu0 0.0
    %v7114 = vand.u32 %v6801, 4294901760
    %v7115 = vsub.f32 %v6801, %v7114
    %v7116 = vand.u32 %v7115, 4294901760
    %v7117 = vsub.f32 %v7115, %v7116
    %v7118 = vand.u32 %v7117, 4294901760
    %7119 = vmatpush1.msra.mxu0 %v7118
    %7120 = vmatprep.subr.mxu0 0.0
    %v7121 = vand.u32 %v6802, 4294901760
    %v7122 = vsub.f32 %v6802, %v7121
    %v7123 = vand.u32 %v7122, 4294901760
    %v7124 = vsub.f32 %v7122, %v7123
    %v7125 = vand.u32 %v7124, 4294901760
    %7126 = vmatpush1.msra.mxu0 %v7125
    %7127 = vmatprep.subr.mxu0 0.0
    %v7128 = vand.u32 %v6803, 4294901760
    %v7129 = vsub.f32 %v6803, %v7128
    %v7130 = vand.u32 %v7129, 4294901760
    %v7131 = vsub.f32 %v7129, %v7130
    %v7132 = vand.u32 %v7131, 4294901760
    %7133 = vmatpush1.msra.mxu0 %v7132
    %7134 = vmatprep.subr.mxu0 0.0
    %v7135 = vand.u32 %v6804, 4294901760
    %v7136 = vsub.f32 %v6804, %v7135
    %v7137 = vand.u32 %v7136, 4294901760
    %v7138 = vsub.f32 %v7136, %v7137
    %v7139 = vand.u32 %v7138, 4294901760
    %7140 = vmatpush1.msra.mxu0 %v7139
    %7141 = vmatprep.subr.mxu0 0.0
    %v7142 = vand.u32 %v6805, 4294901760
    %v7143 = vsub.f32 %v6805, %v7142
    %v7144 = vand.u32 %v7143, 4294901760
    %v7145 = vsub.f32 %v7143, %v7144
    %v7146 = vand.u32 %v7145, 4294901760
    %7147 = vmatpush1.msra.mxu0 %v7146
    %7148 = vmatprep.subr.mxu0 0.0
    %v7149 = vand.u32 %v6806, 4294901760
    %v7150 = vsub.f32 %v6806, %v7149
    %v7151 = vand.u32 %v7150, 4294901760
    %v7152 = vsub.f32 %v7150, %v7151
    %v7153 = vand.u32 %v7152, 4294901760
    %7154 = vmatpush1.msra.mxu0 %v7153
    %7155 = vmatprep.subr.mxu0 0.0
    %v7156 = vand.u32 %v6807, 4294901760
    %v7157 = vsub.f32 %v6807, %v7156
    %v7158 = vand.u32 %v7157, 4294901760
    %v7159 = vsub.f32 %v7157, %v7158
    %v7160 = vand.u32 %v7159, 4294901760
    %7161 = vmatpush1.msra.mxu0 %v7160
    %7162 = vmatprep.subr.mxu0 0.0
    %v7163 = vand.u32 %v6808, 4294901760
    %v7164 = vsub.f32 %v6808, %v7163
    %v7165 = vand.u32 %v7164, 4294901760
    %v7166 = vsub.f32 %v7164, %v7165
    %v7167 = vand.u32 %v7166, 4294901760
    %7168 = vmatpush1.msra.mxu0 %v7167
    %7169 = vmatprep.subr.mxu0 0.0
    %v7170 = vand.u32 %v6809, 4294901760
    %v7171 = vsub.f32 %v6809, %v7170
    %v7172 = vand.u32 %v7171, 4294901760
    %v7173 = vsub.f32 %v7171, %v7172
    %v7174 = vand.u32 %v7173, 4294901760
    %7175 = vmatpush1.msra.mxu0 %v7174
    %7176 = vmatprep.subr.mxu0 0.0
    %v7177 = vand.u32 %v6810, 4294901760
    %v7178 = vsub.f32 %v6810, %v7177
    %v7179 = vand.u32 %v7178, 4294901760
    %v7180 = vsub.f32 %v7178, %v7179
    %v7181 = vand.u32 %v7180, 4294901760
    %7182 = vmatpush1.msra.mxu0 %v7181
    %7183 = vmatprep.subr.mxu0 0.0
    %v7184 = vand.u32 %v6811, 4294901760
    %v7185 = vsub.f32 %v6811, %v7184
    %v7186 = vand.u32 %v7185, 4294901760
    %v7187 = vsub.f32 %v7185, %v7186
    %v7188 = vand.u32 %v7187, 4294901760
    %7189 = vmatpush1.msra.mxu0 %v7188
    %7190 = vmatprep.subr.mxu0 0.0
    %v7191 = vand.u32 %v6812, 4294901760
    %v7192 = vsub.f32 %v6812, %v7191
    %v7193 = vand.u32 %v7192, 4294901760
    %v7194 = vsub.f32 %v7192, %v7193
    %v7195 = vand.u32 %v7194, 4294901760
    %7196 = vmatpush1.msra.mxu0 %v7195
    %7197 = vmatprep.subr.mxu0 0.0
    %v7198 = vand.u32 %v6813, 4294901760
    %v7199 = vsub.f32 %v6813, %v7198
    %v7200 = vand.u32 %v7199, 4294901760
    %v7201 = vsub.f32 %v7199, %v7200
    %v7202 = vand.u32 %v7201, 4294901760
    %7203 = vmatpush1.msra.mxu0 %v7202
    %7204 = vmatprep.subr.mxu0 0.0
    %v7205 = vand.u32 %v6814, 4294901760
    %v7206 = vsub.f32 %v6814, %v7205
    %v7207 = vand.u32 %v7206, 4294901760
    %v7208 = vsub.f32 %v7206, %v7207
    %v7209 = vand.u32 %v7208, 4294901760
    %7210 = vmatpush1.msra.mxu0 %v7209
    %7211 = vmatprep.subr.mxu0 0.0
    %v7212 = vand.u32 %v6815, 4294901760
    %v7213 = vsub.f32 %v6815, %v7212
    %v7214 = vand.u32 %v7213, 4294901760
    %v7215 = vsub.f32 %v7213, %v7214
    %v7216 = vand.u32 %v7215, 4294901760
    %7217 = vmatpush1.msra.mxu0 %v7216
    %7218 = vmatprep.subr.mxu0 0.0
    %v7219 = vand.u32 %v6816, 4294901760
    %v7220 = vsub.f32 %v6816, %v7219
    %v7221 = vand.u32 %v7220, 4294901760
    %v7222 = vsub.f32 %v7220, %v7221
    %v7223 = vand.u32 %v7222, 4294901760
    %7224 = vmatpush1.msra.mxu0 %v7223
    %7225 = vmatprep.subr.mxu0 0.0
    %v7226 = vand.u32 %v6817, 4294901760
    %v7227 = vsub.f32 %v6817, %v7226
    %v7228 = vand.u32 %v7227, 4294901760
    %v7229 = vsub.f32 %v7227, %v7228
    %v7230 = vand.u32 %v7229, 4294901760
    %7231 = vmatpush1.msra.mxu0 %v7230
    %7232 = vmatprep.subr.mxu0 0.0
    %v7233 = vand.u32 %v6818, 4294901760
    %v7234 = vsub.f32 %v6818, %v7233
    %v7235 = vand.u32 %v7234, 4294901760
    %v7236 = vsub.f32 %v7234, %v7235
    %v7237 = vand.u32 %v7236, 4294901760
    %7238 = vmatpush1.msra.mxu0 %v7237
    %7239 = vmatprep.subr.mxu0 0.0
    %v7240 = vand.u32 %v6819, 4294901760
    %v7241 = vsub.f32 %v6819, %v7240
    %v7242 = vand.u32 %v7241, 4294901760
    %v7243 = vsub.f32 %v7241, %v7242
    %v7244 = vand.u32 %v7243, 4294901760
    %7245 = vmatpush1.msra.mxu0 %v7244
    %7246 = vmatprep.subr.mxu0 0.0
    %v7247 = vand.u32 %v6820, 4294901760
    %v7248 = vsub.f32 %v6820, %v7247
    %v7249 = vand.u32 %v7248, 4294901760
    %v7250 = vsub.f32 %v7248, %v7249
    %v7251 = vand.u32 %v7250, 4294901760
    %7252 = vmatpush1.msra.mxu0 %v7251
    %v7253 = vand.u32 %v6782, 4294901760
    %7254 = vmatprep.mubr.f32.mxu0 %v7253
    %v7255 = vand.u32 %v6781, 4294901760
    %7256 = vmatmul.mubr.f32.gmra.mrb[0].mxu0 %v7255
    %v7257 = vpop.f32.mrb[0].mxu0
    %v7258 = vadd.f32 %v7026, %v7257
    %v7259 = vpop.f32.mrb[0].mxu0
    %7260 = vdwg.mxu0
    %7261 = vmatprep.subr.mxu0 0.0
    %v7262 = vand.u32 %v6789, 4294901760
    %v7263 = vsub.f32 %v6789, %v7262
    %7264 = vmatpush1.msra.mxu0 %v7263
    %7265 = vmatprep.subr.mxu0 0.0
    %v7266 = vand.u32 %v6790, 4294901760
    %v7267 = vsub.f32 %v6790, %v7266
    %7268 = vmatpush1.msra.mxu0 %v7267
    %7269 = vmatprep.subr.mxu0 0.0
    %v7270 = vand.u32 %v6791, 4294901760
    %v7271 = vsub.f32 %v6791, %v7270
    %7272 = vmatpush1.msra.mxu0 %v7271
    %7273 = vmatprep.subr.mxu0 0.0
    %v7274 = vand.u32 %v6792, 4294901760
    %v7275 = vsub.f32 %v6792, %v7274
    %7276 = vmatpush1.msra.mxu0 %v7275
    %7277 = vmatprep.subr.mxu0 0.0
    %v7278 = vand.u32 %v6793, 4294901760
    %v7279 = vsub.f32 %v6793, %v7278
    %7280 = vmatpush1.msra.mxu0 %v7279
    %7281 = vmatprep.subr.mxu0 0.0
    %v7282 = vand.u32 %v6794, 4294901760
    %v7283 = vsub.f32 %v6794, %v7282
    %7284 = vmatpush1.msra.mxu0 %v7283
    %7285 = vmatprep.subr.mxu0 0.0
    %v7286 = vand.u32 %v6795, 4294901760
    %v7287 = vsub.f32 %v6795, %v7286
    %7288 = vmatpush1.msra.mxu0 %v7287
    %7289 = vmatprep.subr.mxu0 0.0
    %v7290 = vand.u32 %v6796, 4294901760
    %v7291 = vsub.f32 %v6796, %v7290
    %7292 = vmatpush1.msra.mxu0 %v7291
    %7293 = vmatprep.subr.mxu0 0.0
    %v7294 = vand.u32 %v6797, 4294901760
    %v7295 = vsub.f32 %v6797, %v7294
    %7296 = vmatpush1.msra.mxu0 %v7295
    %7297 = vmatprep.subr.mxu0 0.0
    %v7298 = vand.u32 %v6798, 4294901760
    %v7299 = vsub.f32 %v6798, %v7298
    %7300 = vmatpush1.msra.mxu0 %v7299
    %7301 = vmatprep.subr.mxu0 0.0
    %v7302 = vand.u32 %v6799, 4294901760
    %v7303 = vsub.f32 %v6799, %v7302
    %7304 = vmatpush1.msra.mxu0 %v7303
    %7305 = vmatprep.subr.mxu0 0.0
    %v7306 = vand.u32 %v6800, 4294901760
    %v7307 = vsub.f32 %v6800, %v7306
    %7308 = vmatpush1.msra.mxu0 %v7307
    %7309 = vmatprep.subr.mxu0 0.0
    %v7310 = vand.u32 %v6801, 4294901760
    %v7311 = vsub.f32 %v6801, %v7310
    %7312 = vmatpush1.msra.mxu0 %v7311
    %7313 = vmatprep.subr.mxu0 0.0
    %v7314 = vand.u32 %v6802, 4294901760
    %v7315 = vsub.f32 %v6802, %v7314
    %7316 = vmatpush1.msra.mxu0 %v7315
    %7317 = vmatprep.subr.mxu0 0.0
    %v7318 = vand.u32 %v6803, 4294901760
    %v7319 = vsub.f32 %v6803, %v7318
    %7320 = vmatpush1.msra.mxu0 %v7319
    %7321 = vmatprep.subr.mxu0 0.0
    %v7322 = vand.u32 %v6804, 4294901760
    %v7323 = vsub.f32 %v6804, %v7322
    %7324 = vmatpush1.msra.mxu0 %v7323
    %7325 = vmatprep.subr.mxu0 0.0
    %v7326 = vand.u32 %v6805, 4294901760
    %v7327 = vsub.f32 %v6805, %v7326
    %7328 = vmatpush1.msra.mxu0 %v7327
    %7329 = vmatprep.subr.mxu0 0.0
    %v7330 = vand.u32 %v6806, 4294901760
    %v7331 = vsub.f32 %v6806, %v7330
    %7332 = vmatpush1.msra.mxu0 %v7331
    %7333 = vmatprep.subr.mxu0 0.0
    %v7334 = vand.u32 %v6807, 4294901760
    %v7335 = vsub.f32 %v6807, %v7334
    %7336 = vmatpush1.msra.mxu0 %v7335
    %7337 = vmatprep.subr.mxu0 0.0
    %v7338 = vand.u32 %v6808, 4294901760
    %v7339 = vsub.f32 %v6808, %v7338
    %7340 = vmatpush1.msra.mxu0 %v7339
    %7341 = vmatprep.subr.mxu0 0.0
    %v7342 = vand.u32 %v6809, 4294901760
    %v7343 = vsub.f32 %v6809, %v7342
    %7344 = vmatpush1.msra.mxu0 %v7343
    %7345 = vmatprep.subr.mxu0 0.0
    %v7346 = vand.u32 %v6810, 4294901760
    %v7347 = vsub.f32 %v6810, %v7346
    %7348 = vmatpush1.msra.mxu0 %v7347
    %7349 = vmatprep.subr.mxu0 0.0
    %v7350 = vand.u32 %v6811, 4294901760
    %v7351 = vsub.f32 %v6811, %v7350
    %7352 = vmatpush1.msra.mxu0 %v7351
    %7353 = vmatprep.subr.mxu0 0.0
    %v7354 = vand.u32 %v6812, 4294901760
    %v7355 = vsub.f32 %v6812, %v7354
    %7356 = vmatpush1.msra.mxu0 %v7355
    %7357 = vmatprep.subr.mxu0 0.0
    %v7358 = vand.u32 %v6813, 4294901760
    %v7359 = vsub.f32 %v6813, %v7358
    %7360 = vmatpush1.msra.mxu0 %v7359
    %7361 = vmatprep.subr.mxu0 0.0
    %v7362 = vand.u32 %v6814, 4294901760
    %v7363 = vsub.f32 %v6814, %v7362
    %7364 = vmatpush1.msra.mxu0 %v7363
    %7365 = vmatprep.subr.mxu0 0.0
    %v7366 = vand.u32 %v6815, 4294901760
    %v7367 = vsub.f32 %v6815, %v7366
    %7368 = vmatpush1.msra.mxu0 %v7367
    %7369 = vmatprep.subr.mxu0 0.0
    %v7370 = vand.u32 %v6816, 4294901760
    %v7371 = vsub.f32 %v6816, %v7370
    %7372 = vmatpush1.msra.mxu0 %v7371
    %7373 = vmatprep.subr.mxu0 0.0
    %v7374 = vand.u32 %v6817, 4294901760
    %v7375 = vsub.f32 %v6817, %v7374
    %7376 = vmatpush1.msra.mxu0 %v7375
    %7377 = vmatprep.subr.mxu0 0.0
    %v7378 = vand.u32 %v6818, 4294901760
    %v7379 = vsub.f32 %v6818, %v7378
    %7380 = vmatpush1.msra.mxu0 %v7379
    %7381 = vmatprep.subr.mxu0 0.0
    %v7382 = vand.u32 %v6819, 4294901760
    %v7383 = vsub.f32 %v6819, %v7382
    %7384 = vmatpush1.msra.mxu0 %v7383
    %7385 = vmatprep.subr.mxu0 0.0
    %v7386 = vand.u32 %v6820, 4294901760
    %v7387 = vsub.f32 %v6820, %v7386
    %7388 = vmatpush1.msra.mxu0 %v7387
    %v7389 = vand.u32 %v6782, 4294901760
    %v7390 = vsub.f32 %v6782, %v7389
    %7391 = vmatprep.mubr.f32.mxu0 %v7390
    %v7392 = vand.u32 %v6781, 4294901760
    %v7393 = vsub.f32 %v6781, %v7392
    %7394 = vmatmul.mubr.f32.gmra.mrb[0].mxu0 %v7393
    %v7395 = vpop.f32.mrb[0].mxu0
    %v7396 = vadd.f32 %v7258, %v7395
    %v7397 = vpop.f32.mrb[0].mxu0
    %7398 = vdwg.mxu0
    %7399 = vmatprep.subr.mxu0 0.0
    %v7400 = vand.u32 %v6789, 4294901760
    %7401 = vmatpush1.msra.mxu0 %v7400
    %7402 = vmatprep.subr.mxu0 0.0
    %v7403 = vand.u32 %v6790, 4294901760
    %7404 = vmatpush1.msra.mxu0 %v7403
    %7405 = vmatprep.subr.mxu0 0.0
    %v7406 = vand.u32 %v6791, 4294901760
    %7407 = vmatpush1.msra.mxu0 %v7406
    %7408 = vmatprep.subr.mxu0 0.0
    %v7409 = vand.u32 %v6792, 4294901760
    %7410 = vmatpush1.msra.mxu0 %v7409
    %7411 = vmatprep.subr.mxu0 0.0
    %v7412 = vand.u32 %v6793, 4294901760
    %7413 = vmatpush1.msra.mxu0 %v7412
    %7414 = vmatprep.subr.mxu0 0.0
    %v7415 = vand.u32 %v6794, 4294901760
    %7416 = vmatpush1.msra.mxu0 %v7415
    %7417 = vmatprep.subr.mxu0 0.0
    %v7418 = vand.u32 %v6795, 4294901760
    %7419 = vmatpush1.msra.mxu0 %v7418
    %7420 = vmatprep.subr.mxu0 0.0
    %v7421 = vand.u32 %v6796, 4294901760
    %7422 = vmatpush1.msra.mxu0 %v7421
    %7423 = vmatprep.subr.mxu0 0.0
    %v7424 = vand.u32 %v6797, 4294901760
    %7425 = vmatpush1.msra.mxu0 %v7424
    %7426 = vmatprep.subr.mxu0 0.0
    %v7427 = vand.u32 %v6798, 4294901760
    %7428 = vmatpush1.msra.mxu0 %v7427
    %7429 = vmatprep.subr.mxu0 0.0
    %v7430 = vand.u32 %v6799, 4294901760
    %7431 = vmatpush1.msra.mxu0 %v7430
    %7432 = vmatprep.subr.mxu0 0.0
    %v7433 = vand.u32 %v6800, 4294901760
    %7434 = vmatpush1.msra.mxu0 %v7433
    %7435 = vmatprep.subr.mxu0 0.0
    %v7436 = vand.u32 %v6801, 4294901760
    %7437 = vmatpush1.msra.mxu0 %v7436
    %7438 = vmatprep.subr.mxu0 0.0
    %v7439 = vand.u32 %v6802, 4294901760
    %7440 = vmatpush1.msra.mxu0 %v7439
    %7441 = vmatprep.subr.mxu0 0.0
    %v7442 = vand.u32 %v6803, 4294901760
    %7443 = vmatpush1.msra.mxu0 %v7442
    %7444 = vmatprep.subr.mxu0 0.0
    %v7445 = vand.u32 %v6804, 4294901760
    %7446 = vmatpush1.msra.mxu0 %v7445
    %7447 = vmatprep.subr.mxu0 0.0
    %v7448 = vand.u32 %v6805, 4294901760
    %7449 = vmatpush1.msra.mxu0 %v7448
    %7450 = vmatprep.subr.mxu0 0.0
    %v7451 = vand.u32 %v6806, 4294901760
    %7452 = vmatpush1.msra.mxu0 %v7451
    %7453 = vmatprep.subr.mxu0 0.0
    %v7454 = vand.u32 %v6807, 4294901760
    %7455 = vmatpush1.msra.mxu0 %v7454
    %7456 = vmatprep.subr.mxu0 0.0
    %v7457 = vand.u32 %v6808, 4294901760
    %7458 = vmatpush1.msra.mxu0 %v7457
    %7459 = vmatprep.subr.mxu0 0.0
    %v7460 = vand.u32 %v6809, 4294901760
    %7461 = vmatpush1.msra.mxu0 %v7460
    %7462 = vmatprep.subr.mxu0 0.0
    %v7463 = vand.u32 %v6810, 4294901760
    %7464 = vmatpush1.msra.mxu0 %v7463
    %7465 = vmatprep.subr.mxu0 0.0
    %v7466 = vand.u32 %v6811, 4294901760
    %7467 = vmatpush1.msra.mxu0 %v7466
    %7468 = vmatprep.subr.mxu0 0.0
    %v7469 = vand.u32 %v6812, 4294901760
    %7470 = vmatpush1.msra.mxu0 %v7469
    %7471 = vmatprep.subr.mxu0 0.0
    %v7472 = vand.u32 %v6813, 4294901760
    %7473 = vmatpush1.msra.mxu0 %v7472
    %7474 = vmatprep.subr.mxu0 0.0
    %v7475 = vand.u32 %v6814, 4294901760
    %7476 = vmatpush1.msra.mxu0 %v7475
    %7477 = vmatprep.subr.mxu0 0.0
    %v7478 = vand.u32 %v6815, 4294901760
    %7479 = vmatpush1.msra.mxu0 %v7478
    %7480 = vmatprep.subr.mxu0 0.0
    %v7481 = vand.u32 %v6816, 4294901760
    %7482 = vmatpush1.msra.mxu0 %v7481
    %7483 = vmatprep.subr.mxu0 0.0
    %v7484 = vand.u32 %v6817, 4294901760
    %7485 = vmatpush1.msra.mxu0 %v7484
    %7486 = vmatprep.subr.mxu0 0.0
    %v7487 = vand.u32 %v6818, 4294901760
    %7488 = vmatpush1.msra.mxu0 %v7487
    %7489 = vmatprep.subr.mxu0 0.0
    %v7490 = vand.u32 %v6819, 4294901760
    %7491 = vmatpush1.msra.mxu0 %v7490
    %7492 = vmatprep.subr.mxu0 0.0
    %v7493 = vand.u32 %v6820, 4294901760
    %7494 = vmatpush1.msra.mxu0 %v7493
    %v7495 = vand.u32 %v6782, 4294901760
    %v7496 = vsub.f32 %v6782, %v7495
    %v7497 = vand.u32 %v7496, 4294901760
    %7498 = vmatprep.mubr.f32.mxu0 %v7497
    %v7499 = vand.u32 %v6781, 4294901760
    %v7500 = vsub.f32 %v6781, %v7499
    %v7501 = vand.u32 %v7500, 4294901760
    %7502 = vmatmul.mubr.f32.gmra.mrb[0].mxu0 %v7501
    %v7503 = vpop.f32.mrb[0].mxu0
    %v7504 = vadd.f32 %v7396, %v7503
    %v7505 = vpop.f32.mrb[0].mxu0
    %7506 = vdwg.mxu0
    %7507 = vmatprep.subr.mxu0 0.0
    %v7508 = vand.u32 %v6789, 4294901760
    %v7509 = vsub.f32 %v6789, %v7508
    %v7510 = vand.u32 %v7509, 4294901760
    %7511 = vmatpush1.msra.mxu0 %v7510
    %7512 = vmatprep.subr.mxu0 0.0
    %v7513 = vand.u32 %v6790, 4294901760
    %v7514 = vsub.f32 %v6790, %v7513
    %v7515 = vand.u32 %v7514, 4294901760
    %7516 = vmatpush1.msra.mxu0 %v7515
    %7517 = vmatprep.subr.mxu0 0.0
    %v7518 = vand.u32 %v6791, 4294901760
    %v7519 = vsub.f32 %v6791, %v7518
    %v7520 = vand.u32 %v7519, 4294901760
    %7521 = vmatpush1.msra.mxu0 %v7520
    %7522 = vmatprep.subr.mxu0 0.0
    %v7523 = vand.u32 %v6792, 4294901760
    %v7524 = vsub.f32 %v6792, %v7523
    %v7525 = vand.u32 %v7524, 4294901760
    %7526 = vmatpush1.msra.mxu0 %v7525
    %7527 = vmatprep.subr.mxu0 0.0
    %v7528 = vand.u32 %v6793, 4294901760
    %v7529 = vsub.f32 %v6793, %v7528
    %v7530 = vand.u32 %v7529, 4294901760
    %7531 = vmatpush1.msra.mxu0 %v7530
    %7532 = vmatprep.subr.mxu0 0.0
    %v7533 = vand.u32 %v6794, 4294901760
    %v7534 = vsub.f32 %v6794, %v7533
    %v7535 = vand.u32 %v7534, 4294901760
    %7536 = vmatpush1.msra.mxu0 %v7535
    %7537 = vmatprep.subr.mxu0 0.0
    %v7538 = vand.u32 %v6795, 4294901760
    %v7539 = vsub.f32 %v6795, %v7538
    %v7540 = vand.u32 %v7539, 4294901760
    %7541 = vmatpush1.msra.mxu0 %v7540
    %7542 = vmatprep.subr.mxu0 0.0
    %v7543 = vand.u32 %v6796, 4294901760
    %v7544 = vsub.f32 %v6796, %v7543
    %v7545 = vand.u32 %v7544, 4294901760
    %7546 = vmatpush1.msra.mxu0 %v7545
    %7547 = vmatprep.subr.mxu0 0.0
    %v7548 = vand.u32 %v6797, 4294901760
    %v7549 = vsub.f32 %v6797, %v7548
    %v7550 = vand.u32 %v7549, 4294901760
    %7551 = vmatpush1.msra.mxu0 %v7550
    %7552 = vmatprep.subr.mxu0 0.0
    %v7553 = vand.u32 %v6798, 4294901760
    %v7554 = vsub.f32 %v6798, %v7553
    %v7555 = vand.u32 %v7554, 4294901760
    %7556 = vmatpush1.msra.mxu0 %v7555
    %7557 = vmatprep.subr.mxu0 0.0
    %v7558 = vand.u32 %v6799, 4294901760
    %v7559 = vsub.f32 %v6799, %v7558
    %v7560 = vand.u32 %v7559, 4294901760
    %7561 = vmatpush1.msra.mxu0 %v7560
    %7562 = vmatprep.subr.mxu0 0.0
    %v7563 = vand.u32 %v6800, 4294901760
    %v7564 = vsub.f32 %v6800, %v7563
    %v7565 = vand.u32 %v7564, 4294901760
    %7566 = vmatpush1.msra.mxu0 %v7565
    %7567 = vmatprep.subr.mxu0 0.0
    %v7568 = vand.u32 %v6801, 4294901760
    %v7569 = vsub.f32 %v6801, %v7568
    %v7570 = vand.u32 %v7569, 4294901760
    %7571 = vmatpush1.msra.mxu0 %v7570
    %7572 = vmatprep.subr.mxu0 0.0
    %v7573 = vand.u32 %v6802, 4294901760
    %v7574 = vsub.f32 %v6802, %v7573
    %v7575 = vand.u32 %v7574, 4294901760
    %7576 = vmatpush1.msra.mxu0 %v7575
    %7577 = vmatprep.subr.mxu0 0.0
    %v7578 = vand.u32 %v6803, 4294901760
    %v7579 = vsub.f32 %v6803, %v7578
    %v7580 = vand.u32 %v7579, 4294901760
    %7581 = vmatpush1.msra.mxu0 %v7580
    %7582 = vmatprep.subr.mxu0 0.0
    %v7583 = vand.u32 %v6804, 4294901760
    %v7584 = vsub.f32 %v6804, %v7583
    %v7585 = vand.u32 %v7584, 4294901760
    %7586 = vmatpush1.msra.mxu0 %v7585
    %7587 = vmatprep.subr.mxu0 0.0
    %v7588 = vand.u32 %v6805, 4294901760
    %v7589 = vsub.f32 %v6805, %v7588
    %v7590 = vand.u32 %v7589, 4294901760
    %7591 = vmatpush1.msra.mxu0 %v7590
    %7592 = vmatprep.subr.mxu0 0.0
    %v7593 = vand.u32 %v6806, 4294901760
    %v7594 = vsub.f32 %v6806, %v7593
    %v7595 = vand.u32 %v7594, 4294901760
    %7596 = vmatpush1.msra.mxu0 %v7595
    %7597 = vmatprep.subr.mxu0 0.0
    %v7598 = vand.u32 %v6807, 4294901760
    %v7599 = vsub.f32 %v6807, %v7598
    %v7600 = vand.u32 %v7599, 4294901760
    %7601 = vmatpush1.msra.mxu0 %v7600
    %7602 = vmatprep.subr.mxu0 0.0
    %v7603 = vand.u32 %v6808, 4294901760
    %v7604 = vsub.f32 %v6808, %v7603
    %v7605 = vand.u32 %v7604, 4294901760
    %7606 = vmatpush1.msra.mxu0 %v7605
    %7607 = vmatprep.subr.mxu0 0.0
    %v7608 = vand.u32 %v6809, 4294901760
    %v7609 = vsub.f32 %v6809, %v7608
    %v7610 = vand.u32 %v7609, 4294901760
    %7611 = vmatpush1.msra.mxu0 %v7610
    %7612 = vmatprep.subr.mxu0 0.0
    %v7613 = vand.u32 %v6810, 4294901760
    %v7614 = vsub.f32 %v6810, %v7613
    %v7615 = vand.u32 %v7614, 4294901760
    %7616 = vmatpush1.msra.mxu0 %v7615
    %7617 = vmatprep.subr.mxu0 0.0
    %v7618 = vand.u32 %v6811, 4294901760
    %v7619 = vsub.f32 %v6811, %v7618
    %v7620 = vand.u32 %v7619, 4294901760
    %7621 = vmatpush1.msra.mxu0 %v7620
    %7622 = vmatprep.subr.mxu0 0.0
    %v7623 = vand.u32 %v6812, 4294901760
    %v7624 = vsub.f32 %v6812, %v7623
    %v7625 = vand.u32 %v7624, 4294901760
    %7626 = vmatpush1.msra.mxu0 %v7625
    %7627 = vmatprep.subr.mxu0 0.0
    %v7628 = vand.u32 %v6813, 4294901760
    %v7629 = vsub.f32 %v6813, %v7628
    %v7630 = vand.u32 %v7629, 4294901760
    %7631 = vmatpush1.msra.mxu0 %v7630
    %7632 = vmatprep.subr.mxu0 0.0
    %v7633 = vand.u32 %v6814, 4294901760
    %v7634 = vsub.f32 %v6814, %v7633
    %v7635 = vand.u32 %v7634, 4294901760
    %7636 = vmatpush1.msra.mxu0 %v7635
    %7637 = vmatprep.subr.mxu0 0.0
    %v7638 = vand.u32 %v6815, 4294901760
    %v7639 = vsub.f32 %v6815, %v7638
    %v7640 = vand.u32 %v7639, 4294901760
    %7641 = vmatpush1.msra.mxu0 %v7640
    %7642 = vmatprep.subr.mxu0 0.0
    %v7643 = vand.u32 %v6816, 4294901760
    %v7644 = vsub.f32 %v6816, %v7643
    %v7645 = vand.u32 %v7644, 4294901760
    %7646 = vmatpush1.msra.mxu0 %v7645
    %7647 = vmatprep.subr.mxu0 0.0
    %v7648 = vand.u32 %v6817, 4294901760
    %v7649 = vsub.f32 %v6817, %v7648
    %v7650 = vand.u32 %v7649, 4294901760
    %7651 = vmatpush1.msra.mxu0 %v7650
    %7652 = vmatprep.subr.mxu0 0.0
    %v7653 = vand.u32 %v6818, 4294901760
    %v7654 = vsub.f32 %v6818, %v7653
    %v7655 = vand.u32 %v7654, 4294901760
    %7656 = vmatpush1.msra.mxu0 %v7655
    %7657 = vmatprep.subr.mxu0 0.0
    %v7658 = vand.u32 %v6819, 4294901760
    %v7659 = vsub.f32 %v6819, %v7658
    %v7660 = vand.u32 %v7659, 4294901760
    %7661 = vmatpush1.msra.mxu0 %v7660
    %7662 = vmatprep.subr.mxu0 0.0
    %v7663 = vand.u32 %v6820, 4294901760
    %v7664 = vsub.f32 %v6820, %v7663
    %v7665 = vand.u32 %v7664, 4294901760
    %7666 = vmatpush1.msra.mxu0 %v7665
    %v7667 = vand.u32 %v6782, 4294901760
    %7668 = vmatprep.mubr.f32.mxu0 %v7667
    %v7669 = vand.u32 %v6781, 4294901760
    %7670 = vmatmul.mubr.f32.gmra.mrb[0].mxu0 %v7669
    %v7671 = vpop.f32.mrb[0].mxu0
    %v7672 = vadd.f32 %v7504, %v7671
    %v7673 = vpop.f32.mrb[0].mxu0
    %7674 = vdwg.mxu0
    %7675 = vmatprep.subr.mxu0 0.0
    %v7676 = vand.u32 %v6789, 4294901760
    %7677 = vmatpush1.msra.mxu0 %v7676
    %7678 = vmatprep.subr.mxu0 0.0
    %v7679 = vand.u32 %v6790, 4294901760
    %7680 = vmatpush1.msra.mxu0 %v7679
    %7681 = vmatprep.subr.mxu0 0.0
    %v7682 = vand.u32 %v6791, 4294901760
    %7683 = vmatpush1.msra.mxu0 %v7682
    %7684 = vmatprep.subr.mxu0 0.0
    %v7685 = vand.u32 %v6792, 4294901760
    %7686 = vmatpush1.msra.mxu0 %v7685
    %7687 = vmatprep.subr.mxu0 0.0
    %v7688 = vand.u32 %v6793, 4294901760
    %7689 = vmatpush1.msra.mxu0 %v7688
    %7690 = vmatprep.subr.mxu0 0.0
    %v7691 = vand.u32 %v6794, 4294901760
    %7692 = vmatpush1.msra.mxu0 %v7691
    %7693 = vmatprep.subr.mxu0 0.0
    %v7694 = vand.u32 %v6795, 4294901760
    %7695 = vmatpush1.msra.mxu0 %v7694
    %7696 = vmatprep.subr.mxu0 0.0
    %v7697 = vand.u32 %v6796, 4294901760
    %7698 = vmatpush1.msra.mxu0 %v7697
    %7699 = vmatprep.subr.mxu0 0.0
    %v7700 = vand.u32 %v6797, 4294901760
    %7701 = vmatpush1.msra.mxu0 %v7700
    %7702 = vmatprep.subr.mxu0 0.0
    %v7703 = vand.u32 %v6798, 4294901760
    %7704 = vmatpush1.msra.mxu0 %v7703
    %7705 = vmatprep.subr.mxu0 0.0
    %v7706 = vand.u32 %v6799, 4294901760
    %7707 = vmatpush1.msra.mxu0 %v7706
    %7708 = vmatprep.subr.mxu0 0.0
    %v7709 = vand.u32 %v6800, 4294901760
    %7710 = vmatpush1.msra.mxu0 %v7709
    %7711 = vmatprep.subr.mxu0 0.0
    %v7712 = vand.u32 %v6801, 4294901760
    %7713 = vmatpush1.msra.mxu0 %v7712
    %7714 = vmatprep.subr.mxu0 0.0
    %v7715 = vand.u32 %v6802, 4294901760
    %7716 = vmatpush1.msra.mxu0 %v7715
    %7717 = vmatprep.subr.mxu0 0.0
    %v7718 = vand.u32 %v6803, 4294901760
    %7719 = vmatpush1.msra.mxu0 %v7718
    %7720 = vmatprep.subr.mxu0 0.0
    %v7721 = vand.u32 %v6804, 4294901760
    %7722 = vmatpush1.msra.mxu0 %v7721
    %7723 = vmatprep.subr.mxu0 0.0
    %v7724 = vand.u32 %v6805, 4294901760
    %7725 = vmatpush1.msra.mxu0 %v7724
    %7726 = vmatprep.subr.mxu0 0.0
    %v7727 = vand.u32 %v6806, 4294901760
    %7728 = vmatpush1.msra.mxu0 %v7727
    %7729 = vmatprep.subr.mxu0 0.0
    %v7730 = vand.u32 %v6807, 4294901760
    %7731 = vmatpush1.msra.mxu0 %v7730
    %7732 = vmatprep.subr.mxu0 0.0
    %v7733 = vand.u32 %v6808, 4294901760
    %7734 = vmatpush1.msra.mxu0 %v7733
    %7735 = vmatprep.subr.mxu0 0.0
    %v7736 = vand.u32 %v6809, 4294901760
    %7737 = vmatpush1.msra.mxu0 %v7736
    %7738 = vmatprep.subr.mxu0 0.0
    %v7739 = vand.u32 %v6810, 4294901760
    %7740 = vmatpush1.msra.mxu0 %v7739
    %7741 = vmatprep.subr.mxu0 0.0
    %v7742 = vand.u32 %v6811, 4294901760
    %7743 = vmatpush1.msra.mxu0 %v7742
    %7744 = vmatprep.subr.mxu0 0.0
    %v7745 = vand.u32 %v6812, 4294901760
    %7746 = vmatpush1.msra.mxu0 %v7745
    %7747 = vmatprep.subr.mxu0 0.0
    %v7748 = vand.u32 %v6813, 4294901760
    %7749 = vmatpush1.msra.mxu0 %v7748
    %7750 = vmatprep.subr.mxu0 0.0
    %v7751 = vand.u32 %v6814, 4294901760
    %7752 = vmatpush1.msra.mxu0 %v7751
    %7753 = vmatprep.subr.mxu0 0.0
    %v7754 = vand.u32 %v6815, 4294901760
    %7755 = vmatpush1.msra.mxu0 %v7754
    %7756 = vmatprep.subr.mxu0 0.0
    %v7757 = vand.u32 %v6816, 4294901760
    %7758 = vmatpush1.msra.mxu0 %v7757
    %7759 = vmatprep.subr.mxu0 0.0
    %v7760 = vand.u32 %v6817, 4294901760
    %7761 = vmatpush1.msra.mxu0 %v7760
    %7762 = vmatprep.subr.mxu0 0.0
    %v7763 = vand.u32 %v6818, 4294901760
    %7764 = vmatpush1.msra.mxu0 %v7763
    %7765 = vmatprep.subr.mxu0 0.0
    %v7766 = vand.u32 %v6819, 4294901760
    %7767 = vmatpush1.msra.mxu0 %v7766
    %7768 = vmatprep.subr.mxu0 0.0
    %v7769 = vand.u32 %v6820, 4294901760
    %7770 = vmatpush1.msra.mxu0 %v7769
    %v7771 = vand.u32 %v6782, 4294901760
    %7772 = vmatprep.mubr.f32.mxu0 %v7771
    %v7773 = vand.u32 %v6781, 4294901760
    %7774 = vmatmul.mubr.f32.gmra.mrb[0].mxu0 %v7773
    %v7775 = vpop.f32.mrb[0].mxu0
    %v7776 = vadd.f32 %v7672, %v7775
    %v7777 = vpop.f32.mrb[0].mxu0
    %7778 = vdwg.mxu0
    %7779 = vmatprep.subr.mxu0 0.0
    %v7780 = vand.u32 %v6821, 4294901760
    %7781 = vmatpush1.msra.mxu0 %v7780
    %7782 = vmatprep.subr.mxu0 0.0
    %v7783 = vand.u32 %v6822, 4294901760
    %7784 = vmatpush1.msra.mxu0 %v7783
    %7785 = vmatprep.subr.mxu0 0.0
    %v7786 = vand.u32 %v6823, 4294901760
    %7787 = vmatpush1.msra.mxu0 %v7786
    %7788 = vmatprep.subr.mxu0 0.0
    %v7789 = vand.u32 %v6824, 4294901760
    %7790 = vmatpush1.msra.mxu0 %v7789
    %7791 = vmatprep.subr.mxu0 0.0
    %v7792 = vand.u32 %v6825, 4294901760
    %7793 = vmatpush1.msra.mxu0 %v7792
    %7794 = vmatprep.subr.mxu0 0.0
    %v7795 = vand.u32 %v6826, 4294901760
    %7796 = vmatpush1.msra.mxu0 %v7795
    %7797 = vmatprep.subr.mxu0 0.0
    %v7798 = vand.u32 %v6827, 4294901760
    %7799 = vmatpush1.msra.mxu0 %v7798
    %7800 = vmatprep.subr.mxu0 0.0
    %v7801 = vand.u32 %v6828, 4294901760
    %7802 = vmatpush1.msra.mxu0 %v7801
    %7803 = vmatprep.subr.mxu0 0.0
    %v7804 = vand.u32 %v6829, 4294901760
    %7805 = vmatpush1.msra.mxu0 %v7804
    %7806 = vmatprep.subr.mxu0 0.0
    %v7807 = vand.u32 %v6830, 4294901760
    %7808 = vmatpush1.msra.mxu0 %v7807
    %7809 = vmatprep.subr.mxu0 0.0
    %v7810 = vand.u32 %v6831, 4294901760
    %7811 = vmatpush1.msra.mxu0 %v7810
    %7812 = vmatprep.subr.mxu0 0.0
    %v7813 = vand.u32 %v6832, 4294901760
    %7814 = vmatpush1.msra.mxu0 %v7813
    %7815 = vmatprep.subr.mxu0 0.0
    %v7816 = vand.u32 %v6833, 4294901760
    %7817 = vmatpush1.msra.mxu0 %v7816
    %7818 = vmatprep.subr.mxu0 0.0
    %v7819 = vand.u32 %v6834, 4294901760
    %7820 = vmatpush1.msra.mxu0 %v7819
    %7821 = vmatprep.subr.mxu0 0.0
    %v7822 = vand.u32 %v6835, 4294901760
    %7823 = vmatpush1.msra.mxu0 %v7822
    %7824 = vmatprep.subr.mxu0 0.0
    %v7825 = vand.u32 %v6836, 4294901760
    %7826 = vmatpush1.msra.mxu0 %v7825
    %7827 = vmatprep.subr.mxu0 0.0
    %v7828 = vand.u32 %v6837, 4294901760
    %7829 = vmatpush1.msra.mxu0 %v7828
    %7830 = vmatprep.subr.mxu0 0.0
    %v7831 = vand.u32 %v6838, 4294901760
    %7832 = vmatpush1.msra.mxu0 %v7831
    %7833 = vmatprep.subr.mxu0 0.0
    %v7834 = vand.u32 %v6839, 4294901760
    %7835 = vmatpush1.msra.mxu0 %v7834
    %7836 = vmatprep.subr.mxu0 0.0
    %v7837 = vand.u32 %v6840, 4294901760
    %7838 = vmatpush1.msra.mxu0 %v7837
    %7839 = vmatprep.subr.mxu0 0.0
    %v7840 = vand.u32 %v6841, 4294901760
    %7841 = vmatpush1.msra.mxu0 %v7840
    %7842 = vmatprep.subr.mxu0 0.0
    %v7843 = vand.u32 %v6842, 4294901760
    %7844 = vmatpush1.msra.mxu0 %v7843
    %7845 = vmatprep.subr.mxu0 0.0
    %v7846 = vand.u32 %v6843, 4294901760
    %7847 = vmatpush1.msra.mxu0 %v7846
    %7848 = vmatprep.subr.mxu0 0.0
    %v7849 = vand.u32 %v6844, 4294901760
    %7850 = vmatpush1.msra.mxu0 %v7849
    %7851 = vmatprep.subr.mxu0 0.0
    %v7852 = vand.u32 %v6845, 4294901760
    %7853 = vmatpush1.msra.mxu0 %v7852
    %7854 = vmatprep.subr.mxu0 0.0
    %v7855 = vand.u32 %v6846, 4294901760
    %7856 = vmatpush1.msra.mxu0 %v7855
    %7857 = vmatprep.subr.mxu0 0.0
    %v7858 = vand.u32 %v6847, 4294901760
    %7859 = vmatpush1.msra.mxu0 %v7858
    %7860 = vmatprep.subr.mxu0 0.0
    %v7861 = vand.u32 %v6848, 4294901760
    %7862 = vmatpush1.msra.mxu0 %v7861
    %7863 = vmatprep.subr.mxu0 0.0
    %v7864 = vand.u32 %v6849, 4294901760
    %7865 = vmatpush1.msra.mxu0 %v7864
    %7866 = vmatprep.subr.mxu0 0.0
    %v7867 = vand.u32 %v6850, 4294901760
    %7868 = vmatpush1.msra.mxu0 %v7867
    %7869 = vmatprep.subr.mxu0 0.0
    %v7870 = vand.u32 %v6851, 4294901760
    %7871 = vmatpush1.msra.mxu0 %v7870
    %7872 = vmatprep.subr.mxu0 0.0
    %v7873 = vand.u32 %v6852, 4294901760
    %7874 = vmatpush1.msra.mxu0 %v7873
    %v7875 = vand.u32 %v6784, 4294901760
    %v7876 = vsub.f32 %v6784, %v7875
    %v7877 = vand.u32 %v7876, 4294901760
    %v7878 = vsub.f32 %v7876, %v7877
    %v7879 = vand.u32 %v7878, 4294901760
    %7880 = vmatprep.mubr.f32.mxu0 %v7879
    %v7881 = vand.u32 %v6783, 4294901760
    %v7882 = vsub.f32 %v6783, %v7881
    %v7883 = vand.u32 %v7882, 4294901760
    %v7884 = vsub.f32 %v7882, %v7883
    %v7885 = vand.u32 %v7884, 4294901760
    %7886 = vmatmul.mubr.f32.gmra.mrb[0].mxu0 %v7885
    %v7887 = vpop.f32.mrb[0].mxu0
    %v7888 = vadd.f32 %v7776, %v7887
    %v7889 = vpop.f32.mrb[0].mxu0
    %7890 = vdwg.mxu0
    %7891 = vmatprep.subr.mxu0 0.0
    %v7892 = vand.u32 %v6821, 4294901760
    %v7893 = vsub.f32 %v6821, %v7892
    %v7894 = vand.u32 %v7893, 4294901760
    %v7895 = vsub.f32 %v7893, %v7894
    %v7896 = vand.u32 %v7895, 4294901760
    %7897 = vmatpush1.msra.mxu0 %v7896
    %7898 = vmatprep.subr.mxu0 0.0
    %v7899 = vand.u32 %v6822, 4294901760
    %v7900 = vsub.f32 %v6822, %v7899
    %v7901 = vand.u32 %v7900, 4294901760
    %v7902 = vsub.f32 %v7900, %v7901
    %v7903 = vand.u32 %v7902, 4294901760
    %7904 = vmatpush1.msra.mxu0 %v7903
    %7905 = vmatprep.subr.mxu0 0.0
    %v7906 = vand.u32 %v6823, 4294901760
    %v7907 = vsub.f32 %v6823, %v7906
    %v7908 = vand.u32 %v7907, 4294901760
    %v7909 = vsub.f32 %v7907, %v7908
    %v7910 = vand.u32 %v7909, 4294901760
    %7911 = vmatpush1.msra.mxu0 %v7910
    %7912 = vmatprep.subr.mxu0 0.0
    %v7913 = vand.u32 %v6824, 4294901760
    %v7914 = vsub.f32 %v6824, %v7913
    %v7915 = vand.u32 %v7914, 4294901760
    %v7916 = vsub.f32 %v7914, %v7915
    %v7917 = vand.u32 %v7916, 4294901760
    %7918 = vmatpush1.msra.mxu0 %v7917
    %7919 = vmatprep.subr.mxu0 0.0
    %v7920 = vand.u32 %v6825, 4294901760
    %v7921 = vsub.f32 %v6825, %v7920
    %v7922 = vand.u32 %v7921, 4294901760
    %v7923 = vsub.f32 %v7921, %v7922
    %v7924 = vand.u32 %v7923, 4294901760
    %7925 = vmatpush1.msra.mxu0 %v7924
    %7926 = vmatprep.subr.mxu0 0.0
    %v7927 = vand.u32 %v6826, 4294901760
    %v7928 = vsub.f32 %v6826, %v7927
    %v7929 = vand.u32 %v7928, 4294901760
    %v7930 = vsub.f32 %v7928, %v7929
    %v7931 = vand.u32 %v7930, 4294901760
    %7932 = vmatpush1.msra.mxu0 %v7931
    %7933 = vmatprep.subr.mxu0 0.0
    %v7934 = vand.u32 %v6827, 4294901760
    %v7935 = vsub.f32 %v6827, %v7934
    %v7936 = vand.u32 %v7935, 4294901760
    %v7937 = vsub.f32 %v7935, %v7936
    %v7938 = vand.u32 %v7937, 4294901760
    %7939 = vmatpush1.msra.mxu0 %v7938
    %7940 = vmatprep.subr.mxu0 0.0
    %v7941 = vand.u32 %v6828, 4294901760
    %v7942 = vsub.f32 %v6828, %v7941
    %v7943 = vand.u32 %v7942, 4294901760
    %v7944 = vsub.f32 %v7942, %v7943
    %v7945 = vand.u32 %v7944, 4294901760
    %7946 = vmatpush1.msra.mxu0 %v7945
    %7947 = vmatprep.subr.mxu0 0.0
    %v7948 = vand.u32 %v6829, 4294901760
    %v7949 = vsub.f32 %v6829, %v7948
    %v7950 = vand.u32 %v7949, 4294901760
    %v7951 = vsub.f32 %v7949, %v7950
    %v7952 = vand.u32 %v7951, 4294901760
    %7953 = vmatpush1.msra.mxu0 %v7952
    %7954 = vmatprep.subr.mxu0 0.0
    %v7955 = vand.u32 %v6830, 4294901760
    %v7956 = vsub.f32 %v6830, %v7955
    %v7957 = vand.u32 %v7956, 4294901760
    %v7958 = vsub.f32 %v7956, %v7957
    %v7959 = vand.u32 %v7958, 4294901760
    %7960 = vmatpush1.msra.mxu0 %v7959
    %7961 = vmatprep.subr.mxu0 0.0
    %v7962 = vand.u32 %v6831, 4294901760
    %v7963 = vsub.f32 %v6831, %v7962
    %v7964 = vand.u32 %v7963, 4294901760
    %v7965 = vsub.f32 %v7963, %v7964
    %v7966 = vand.u32 %v7965, 4294901760
    %7967 = vmatpush1.msra.mxu0 %v7966
    %7968 = vmatprep.subr.mxu0 0.0
    %v7969 = vand.u32 %v6832, 4294901760
    %v7970 = vsub.f32 %v6832, %v7969
    %v7971 = vand.u32 %v7970, 4294901760
    %v7972 = vsub.f32 %v7970, %v7971
    %v7973 = vand.u32 %v7972, 4294901760
    %7974 = vmatpush1.msra.mxu0 %v7973
    %7975 = vmatprep.subr.mxu0 0.0
    %v7976 = vand.u32 %v6833, 4294901760
    %v7977 = vsub.f32 %v6833, %v7976
    %v7978 = vand.u32 %v7977, 4294901760
    %v7979 = vsub.f32 %v7977, %v7978
    %v7980 = vand.u32 %v7979, 4294901760
    %7981 = vmatpush1.msra.mxu0 %v7980
    %7982 = vmatprep.subr.mxu0 0.0
    %v7983 = vand.u32 %v6834, 4294901760
    %v7984 = vsub.f32 %v6834, %v7983
    %v7985 = vand.u32 %v7984, 4294901760
    %v7986 = vsub.f32 %v7984, %v7985
    %v7987 = vand.u32 %v7986, 4294901760
    %7988 = vmatpush1.msra.mxu0 %v7987
    %7989 = vmatprep.subr.mxu0 0.0
    %v7990 = vand.u32 %v6835, 4294901760
    %v7991 = vsub.f32 %v6835, %v7990
    %v7992 = vand.u32 %v7991, 4294901760
    %v7993 = vsub.f32 %v7991, %v7992
    %v7994 = vand.u32 %v7993, 4294901760
    %7995 = vmatpush1.msra.mxu0 %v7994
    %7996 = vmatprep.subr.mxu0 0.0
    %v7997 = vand.u32 %v6836, 4294901760
    %v7998 = vsub.f32 %v6836, %v7997
    %v7999 = vand.u32 %v7998, 4294901760
    %v8000 = vsub.f32 %v7998, %v7999
    %v8001 = vand.u32 %v8000, 4294901760
    %8002 = vmatpush1.msra.mxu0 %v8001
    %8003 = vmatprep.subr.mxu0 0.0
    %v8004 = vand.u32 %v6837, 4294901760
    %v8005 = vsub.f32 %v6837, %v8004
    %v8006 = vand.u32 %v8005, 4294901760
    %v8007 = vsub.f32 %v8005, %v8006
    %v8008 = vand.u32 %v8007, 4294901760
    %8009 = vmatpush1.msra.mxu0 %v8008
    %8010 = vmatprep.subr.mxu0 0.0
    %v8011 = vand.u32 %v6838, 4294901760
    %v8012 = vsub.f32 %v6838, %v8011
    %v8013 = vand.u32 %v8012, 4294901760
    %v8014 = vsub.f32 %v8012, %v8013
    %v8015 = vand.u32 %v8014, 4294901760
    %8016 = vmatpush1.msra.mxu0 %v8015
    %8017 = vmatprep.subr.mxu0 0.0
    %v8018 = vand.u32 %v6839, 4294901760
    %v8019 = vsub.f32 %v6839, %v8018
    %v8020 = vand.u32 %v8019, 4294901760
    %v8021 = vsub.f32 %v8019, %v8020
    %v8022 = vand.u32 %v8021, 4294901760
    %8023 = vmatpush1.msra.mxu0 %v8022
    %8024 = vmatprep.subr.mxu0 0.0
    %v8025 = vand.u32 %v6840, 4294901760
    %v8026 = vsub.f32 %v6840, %v8025
    %v8027 = vand.u32 %v8026, 4294901760
    %v8028 = vsub.f32 %v8026, %v8027
    %v8029 = vand.u32 %v8028, 4294901760
    %8030 = vmatpush1.msra.mxu0 %v8029
    %8031 = vmatprep.subr.mxu0 0.0
    %v8032 = vand.u32 %v6841, 4294901760
    %v8033 = vsub.f32 %v6841, %v8032
    %v8034 = vand.u32 %v8033, 4294901760
    %v8035 = vsub.f32 %v8033, %v8034
    %v8036 = vand.u32 %v8035, 4294901760
    %8037 = vmatpush1.msra.mxu0 %v8036
    %8038 = vmatprep.subr.mxu0 0.0
    %v8039 = vand.u32 %v6842, 4294901760
    %v8040 = vsub.f32 %v6842, %v8039
    %v8041 = vand.u32 %v8040, 4294901760
    %v8042 = vsub.f32 %v8040, %v8041
    %v8043 = vand.u32 %v8042, 4294901760
    %8044 = vmatpush1.msra.mxu0 %v8043
    %8045 = vmatprep.subr.mxu0 0.0
    %v8046 = vand.u32 %v6843, 4294901760
    %v8047 = vsub.f32 %v6843, %v8046
    %v8048 = vand.u32 %v8047, 4294901760
    %v8049 = vsub.f32 %v8047, %v8048
    %v8050 = vand.u32 %v8049, 4294901760
    %8051 = vmatpush1.msra.mxu0 %v8050
    %8052 = vmatprep.subr.mxu0 0.0
    %v8053 = vand.u32 %v6844, 4294901760
    %v8054 = vsub.f32 %v6844, %v8053
    %v8055 = vand.u32 %v8054, 4294901760
    %v8056 = vsub.f32 %v8054, %v8055
    %v8057 = vand.u32 %v8056, 4294901760
    %8058 = vmatpush1.msra.mxu0 %v8057
    %8059 = vmatprep.subr.mxu0 0.0
    %v8060 = vand.u32 %v6845, 4294901760
    %v8061 = vsub.f32 %v6845, %v8060
    %v8062 = vand.u32 %v8061, 4294901760
    %v8063 = vsub.f32 %v8061, %v8062
    %v8064 = vand.u32 %v8063, 4294901760
    %8065 = vmatpush1.msra.mxu0 %v8064
    %8066 = vmatprep.subr.mxu0 0.0
    %v8067 = vand.u32 %v6846, 4294901760
    %v8068 = vsub.f32 %v6846, %v8067
    %v8069 = vand.u32 %v8068, 4294901760
    %v8070 = vsub.f32 %v8068, %v8069
    %v8071 = vand.u32 %v8070, 4294901760
    %8072 = vmatpush1.msra.mxu0 %v8071
    %8073 = vmatprep.subr.mxu0 0.0
    %v8074 = vand.u32 %v6847, 4294901760
    %v8075 = vsub.f32 %v6847, %v8074
    %v8076 = vand.u32 %v8075, 4294901760
    %v8077 = vsub.f32 %v8075, %v8076
    %v8078 = vand.u32 %v8077, 4294901760
    %8079 = vmatpush1.msra.mxu0 %v8078
    %8080 = vmatprep.subr.mxu0 0.0
    %v8081 = vand.u32 %v6848, 4294901760
    %v8082 = vsub.f32 %v6848, %v8081
    %v8083 = vand.u32 %v8082, 4294901760
    %v8084 = vsub.f32 %v8082, %v8083
    %v8085 = vand.u32 %v8084, 4294901760
    %8086 = vmatpush1.msra.mxu0 %v8085
    %8087 = vmatprep.subr.mxu0 0.0
    %v8088 = vand.u32 %v6849, 4294901760
    %v8089 = vsub.f32 %v6849, %v8088
    %v8090 = vand.u32 %v8089, 4294901760
    %v8091 = vsub.f32 %v8089, %v8090
    %v8092 = vand.u32 %v8091, 4294901760
    %8093 = vmatpush1.msra.mxu0 %v8092
    %8094 = vmatprep.subr.mxu0 0.0
    %v8095 = vand.u32 %v6850, 4294901760
    %v8096 = vsub.f32 %v6850, %v8095
    %v8097 = vand.u32 %v8096, 4294901760
    %v8098 = vsub.f32 %v8096, %v8097
    %v8099 = vand.u32 %v8098, 4294901760
    %8100 = vmatpush1.msra.mxu0 %v8099
    %8101 = vmatprep.subr.mxu0 0.0
    %v8102 = vand.u32 %v6851, 4294901760
    %v8103 = vsub.f32 %v6851, %v8102
    %v8104 = vand.u32 %v8103, 4294901760
    %v8105 = vsub.f32 %v8103, %v8104
    %v8106 = vand.u32 %v8105, 4294901760
    %8107 = vmatpush1.msra.mxu0 %v8106
    %8108 = vmatprep.subr.mxu0 0.0
    %v8109 = vand.u32 %v6852, 4294901760
    %v8110 = vsub.f32 %v6852, %v8109
    %v8111 = vand.u32 %v8110, 4294901760
    %v8112 = vsub.f32 %v8110, %v8111
    %v8113 = vand.u32 %v8112, 4294901760
    %8114 = vmatpush1.msra.mxu0 %v8113
    %v8115 = vand.u32 %v6784, 4294901760
    %8116 = vmatprep.mubr.f32.mxu0 %v8115
    %v8117 = vand.u32 %v6783, 4294901760
    %8118 = vmatmul.mubr.f32.gmra.mrb[0].mxu0 %v8117
    %v8119 = vpop.f32.mrb[0].mxu0
    %v8120 = vadd.f32 %v7888, %v8119
    %v8121 = vpop.f32.mrb[0].mxu0
    %8122 = vdwg.mxu0
    %8123 = vmatprep.subr.mxu0 0.0
    %v8124 = vand.u32 %v6821, 4294901760
    %v8125 = vsub.f32 %v6821, %v8124
    %8126 = vmatpush1.msra.mxu0 %v8125
    %8127 = vmatprep.subr.mxu0 0.0
    %v8128 = vand.u32 %v6822, 4294901760
    %v8129 = vsub.f32 %v6822, %v8128
    %8130 = vmatpush1.msra.mxu0 %v8129
    %8131 = vmatprep.subr.mxu0 0.0
    %v8132 = vand.u32 %v6823, 4294901760
    %v8133 = vsub.f32 %v6823, %v8132
    %8134 = vmatpush1.msra.mxu0 %v8133
    %8135 = vmatprep.subr.mxu0 0.0
    %v8136 = vand.u32 %v6824, 4294901760
    %v8137 = vsub.f32 %v6824, %v8136
    %8138 = vmatpush1.msra.mxu0 %v8137
    %8139 = vmatprep.subr.mxu0 0.0
    %v8140 = vand.u32 %v6825, 4294901760
    %v8141 = vsub.f32 %v6825, %v8140
    %8142 = vmatpush1.msra.mxu0 %v8141
    %8143 = vmatprep.subr.mxu0 0.0
    %v8144 = vand.u32 %v6826, 4294901760
    %v8145 = vsub.f32 %v6826, %v8144
    %8146 = vmatpush1.msra.mxu0 %v8145
    %8147 = vmatprep.subr.mxu0 0.0
    %v8148 = vand.u32 %v6827, 4294901760
    %v8149 = vsub.f32 %v6827, %v8148
    %8150 = vmatpush1.msra.mxu0 %v8149
    %8151 = vmatprep.subr.mxu0 0.0
    %v8152 = vand.u32 %v6828, 4294901760
    %v8153 = vsub.f32 %v6828, %v8152
    %8154 = vmatpush1.msra.mxu0 %v8153
    %8155 = vmatprep.subr.mxu0 0.0
    %v8156 = vand.u32 %v6829, 4294901760
    %v8157 = vsub.f32 %v6829, %v8156
    %8158 = vmatpush1.msra.mxu0 %v8157
    %8159 = vmatprep.subr.mxu0 0.0
    %v8160 = vand.u32 %v6830, 4294901760
    %v8161 = vsub.f32 %v6830, %v8160
    %8162 = vmatpush1.msra.mxu0 %v8161
    %8163 = vmatprep.subr.mxu0 0.0
    %v8164 = vand.u32 %v6831, 4294901760
    %v8165 = vsub.f32 %v6831, %v8164
    %8166 = vmatpush1.msra.mxu0 %v8165
    %8167 = vmatprep.subr.mxu0 0.0
    %v8168 = vand.u32 %v6832, 4294901760
    %v8169 = vsub.f32 %v6832, %v8168
    %8170 = vmatpush1.msra.mxu0 %v8169
    %8171 = vmatprep.subr.mxu0 0.0
    %v8172 = vand.u32 %v6833, 4294901760
    %v8173 = vsub.f32 %v6833, %v8172
    %8174 = vmatpush1.msra.mxu0 %v8173
    %8175 = vmatprep.subr.mxu0 0.0
    %v8176 = vand.u32 %v6834, 4294901760
    %v8177 = vsub.f32 %v6834, %v8176
    %8178 = vmatpush1.msra.mxu0 %v8177
    %8179 = vmatprep.subr.mxu0 0.0
    %v8180 = vand.u32 %v6835, 4294901760
    %v8181 = vsub.f32 %v6835, %v8180
    %8182 = vmatpush1.msra.mxu0 %v8181
    %8183 = vmatprep.subr.mxu0 0.0
    %v8184 = vand.u32 %v6836, 4294901760
    %v8185 = vsub.f32 %v6836, %v8184
    %8186 = vmatpush1.msra.mxu0 %v8185
    %8187 = vmatprep.subr.mxu0 0.0
    %v8188 = vand.u32 %v6837, 4294901760
    %v8189 = vsub.f32 %v6837, %v8188
    %8190 = vmatpush1.msra.mxu0 %v8189
    %8191 = vmatprep.subr.mxu0 0.0
    %v8192 = vand.u32 %v6838, 4294901760
    %v8193 = vsub.f32 %v6838, %v8192
    %8194 = vmatpush1.msra.mxu0 %v8193
    %8195 = vmatprep.subr.mxu0 0.0
    %v8196 = vand.u32 %v6839, 4294901760
    %v8197 = vsub.f32 %v6839, %v8196
    %8198 = vmatpush1.msra.mxu0 %v8197
    %8199 = vmatprep.subr.mxu0 0.0
    %v8200 = vand.u32 %v6840, 4294901760
    %v8201 = vsub.f32 %v6840, %v8200
    %8202 = vmatpush1.msra.mxu0 %v8201
    %8203 = vmatprep.subr.mxu0 0.0
    %v8204 = vand.u32 %v6841, 4294901760
    %v8205 = vsub.f32 %v6841, %v8204
    %8206 = vmatpush1.msra.mxu0 %v8205
    %8207 = vmatprep.subr.mxu0 0.0
    %v8208 = vand.u32 %v6842, 4294901760
    %v8209 = vsub.f32 %v6842, %v8208
    %8210 = vmatpush1.msra.mxu0 %v8209
    %8211 = vmatprep.subr.mxu0 0.0
    %v8212 = vand.u32 %v6843, 4294901760
    %v8213 = vsub.f32 %v6843, %v8212
    %8214 = vmatpush1.msra.mxu0 %v8213
    %8215 = vmatprep.subr.mxu0 0.0
    %v8216 = vand.u32 %v6844, 4294901760
    %v8217 = vsub.f32 %v6844, %v8216
    %8218 = vmatpush1.msra.mxu0 %v8217
    %8219 = vmatprep.subr.mxu0 0.0
    %v8220 = vand.u32 %v6845, 4294901760
    %v8221 = vsub.f32 %v6845, %v8220
    %8222 = vmatpush1.msra.mxu0 %v8221
    %8223 = vmatprep.subr.mxu0 0.0
    %v8224 = vand.u32 %v6846, 4294901760
    %v8225 = vsub.f32 %v6846, %v8224
    %8226 = vmatpush1.msra.mxu0 %v8225
    %8227 = vmatprep.subr.mxu0 0.0
    %v8228 = vand.u32 %v6847, 4294901760
    %v8229 = vsub.f32 %v6847, %v8228
    %8230 = vmatpush1.msra.mxu0 %v8229
    %8231 = vmatprep.subr.mxu0 0.0
    %v8232 = vand.u32 %v6848, 4294901760
    %v8233 = vsub.f32 %v6848, %v8232
    %8234 = vmatpush1.msra.mxu0 %v8233
    %8235 = vmatprep.subr.mxu0 0.0
    %v8236 = vand.u32 %v6849, 4294901760
    %v8237 = vsub.f32 %v6849, %v8236
    %8238 = vmatpush1.msra.mxu0 %v8237
    %8239 = vmatprep.subr.mxu0 0.0
    %v8240 = vand.u32 %v6850, 4294901760
    %v8241 = vsub.f32 %v6850, %v8240
    %8242 = vmatpush1.msra.mxu0 %v8241
    %8243 = vmatprep.subr.mxu0 0.0
    %v8244 = vand.u32 %v6851, 4294901760
    %v8245 = vsub.f32 %v6851, %v8244
    %8246 = vmatpush1.msra.mxu0 %v8245
    %8247 = vmatprep.subr.mxu0 0.0
    %v8248 = vand.u32 %v6852, 4294901760
    %v8249 = vsub.f32 %v6852, %v8248
    %8250 = vmatpush1.msra.mxu0 %v8249
    %v8251 = vand.u32 %v6784, 4294901760
    %v8252 = vsub.f32 %v6784, %v8251
    %8253 = vmatprep.mubr.f32.mxu0 %v8252
    %v8254 = vand.u32 %v6783, 4294901760
    %v8255 = vsub.f32 %v6783, %v8254
    %8256 = vmatmul.mubr.f32.gmra.mrb[0].mxu0 %v8255
    %v8257 = vpop.f32.mrb[0].mxu0
    %v8258 = vadd.f32 %v8120, %v8257
    %v8259 = vpop.f32.mrb[0].mxu0
    %8260 = vdwg.mxu0
    %8261 = vmatprep.subr.mxu0 0.0
    %v8262 = vand.u32 %v6821, 4294901760
    %8263 = vmatpush1.msra.mxu0 %v8262
    %8264 = vmatprep.subr.mxu0 0.0
    %v8265 = vand.u32 %v6822, 4294901760
    %8266 = vmatpush1.msra.mxu0 %v8265
    %8267 = vmatprep.subr.mxu0 0.0
    %v8268 = vand.u32 %v6823, 4294901760
    %8269 = vmatpush1.msra.mxu0 %v8268
    %8270 = vmatprep.subr.mxu0 0.0
    %v8271 = vand.u32 %v6824, 4294901760
    %8272 = vmatpush1.msra.mxu0 %v8271
    %8273 = vmatprep.subr.mxu0 0.0
    %v8274 = vand.u32 %v6825, 4294901760
    %8275 = vmatpush1.msra.mxu0 %v8274
    %8276 = vmatprep.subr.mxu0 0.0
    %v8277 = vand.u32 %v6826, 4294901760
    %8278 = vmatpush1.msra.mxu0 %v8277
    %8279 = vmatprep.subr.mxu0 0.0
    %v8280 = vand.u32 %v6827, 4294901760
    %8281 = vmatpush1.msra.mxu0 %v8280
    %8282 = vmatprep.subr.mxu0 0.0
    %v8283 = vand.u32 %v6828, 4294901760
    %8284 = vmatpush1.msra.mxu0 %v8283
    %8285 = vmatprep.subr.mxu0 0.0
    %v8286 = vand.u32 %v6829, 4294901760
    %8287 = vmatpush1.msra.mxu0 %v8286
    %8288 = vmatprep.subr.mxu0 0.0
    %v8289 = vand.u32 %v6830, 4294901760
    %8290 = vmatpush1.msra.mxu0 %v8289
    %8291 = vmatprep.subr.mxu0 0.0
    %v8292 = vand.u32 %v6831, 4294901760
    %8293 = vmatpush1.msra.mxu0 %v8292
    %8294 = vmatprep.subr.mxu0 0.0
    %v8295 = vand.u32 %v6832, 4294901760
    %8296 = vmatpush1.msra.mxu0 %v8295
    %8297 = vmatprep.subr.mxu0 0.0
    %v8298 = vand.u32 %v6833, 4294901760
    %8299 = vmatpush1.msra.mxu0 %v8298
    %8300 = vmatprep.subr.mxu0 0.0
    %v8301 = vand.u32 %v6834, 4294901760
    %8302 = vmatpush1.msra.mxu0 %v8301
    %8303 = vmatprep.subr.mxu0 0.0
    %v8304 = vand.u32 %v6835, 4294901760
    %8305 = vmatpush1.msra.mxu0 %v8304
    %8306 = vmatprep.subr.mxu0 0.0
    %v8307 = vand.u32 %v6836, 4294901760
    %8308 = vmatpush1.msra.mxu0 %v8307
    %8309 = vmatprep.subr.mxu0 0.0
    %v8310 = vand.u32 %v6837, 4294901760
    %8311 = vmatpush1.msra.mxu0 %v8310
    %8312 = vmatprep.subr.mxu0 0.0
    %v8313 = vand.u32 %v6838, 4294901760
    %8314 = vmatpush1.msra.mxu0 %v8313
    %8315 = vmatprep.subr.mxu0 0.0
    %v8316 = vand.u32 %v6839, 4294901760
    %8317 = vmatpush1.msra.mxu0 %v8316
    %8318 = vmatprep.subr.mxu0 0.0
    %v8319 = vand.u32 %v6840, 4294901760
    %8320 = vmatpush1.msra.mxu0 %v8319
    %8321 = vmatprep.subr.mxu0 0.0
    %v8322 = vand.u32 %v6841, 4294901760
    %8323 = vmatpush1.msra.mxu0 %v8322
    %8324 = vmatprep.subr.mxu0 0.0
    %v8325 = vand.u32 %v6842, 4294901760
    %8326 = vmatpush1.msra.mxu0 %v8325
    %8327 = vmatprep.subr.mxu0 0.0
    %v8328 = vand.u32 %v6843, 4294901760
    %8329 = vmatpush1.msra.mxu0 %v8328
    %8330 = vmatprep.subr.mxu0 0.0
    %v8331 = vand.u32 %v6844, 4294901760
    %8332 = vmatpush1.msra.mxu0 %v8331
    %8333 = vmatprep.subr.mxu0 0.0
    %v8334 = vand.u32 %v6845, 4294901760
    %8335 = vmatpush1.msra.mxu0 %v8334
    %8336 = vmatprep.subr.mxu0 0.0
    %v8337 = vand.u32 %v6846, 4294901760
    %8338 = vmatpush1.msra.mxu0 %v8337
    %8339 = vmatprep.subr.mxu0 0.0
    %v8340 = vand.u32 %v6847, 4294901760
    %8341 = vmatpush1.msra.mxu0 %v8340
    %8342 = vmatprep.subr.mxu0 0.0
    %v8343 = vand.u32 %v6848, 4294901760
    %8344 = vmatpush1.msra.mxu0 %v8343
    %8345 = vmatprep.subr.mxu0 0.0
    %v8346 = vand.u32 %v6849, 4294901760
    %8347 = vmatpush1.msra.mxu0 %v8346
    %8348 = vmatprep.subr.mxu0 0.0
    %v8349 = vand.u32 %v6850, 4294901760
    %8350 = vmatpush1.msra.mxu0 %v8349
    %8351 = vmatprep.subr.mxu0 0.0
    %v8352 = vand.u32 %v6851, 4294901760
    %8353 = vmatpush1.msra.mxu0 %v8352
    %8354 = vmatprep.subr.mxu0 0.0
    %v8355 = vand.u32 %v6852, 4294901760
    %8356 = vmatpush1.msra.mxu0 %v8355
    %v8357 = vand.u32 %v6784, 4294901760
    %v8358 = vsub.f32 %v6784, %v8357
    %v8359 = vand.u32 %v8358, 4294901760
    %8360 = vmatprep.mubr.f32.mxu0 %v8359
    %v8361 = vand.u32 %v6783, 4294901760
    %v8362 = vsub.f32 %v6783, %v8361
    %v8363 = vand.u32 %v8362, 4294901760
    %8364 = vmatmul.mubr.f32.gmra.mrb[0].mxu0 %v8363
    %v8365 = vpop.f32.mrb[0].mxu0
    %v8366 = vadd.f32 %v8258, %v8365
    %v8367 = vpop.f32.mrb[0].mxu0
    %8368 = vdwg.mxu0
    %8369 = vmatprep.subr.mxu0 0.0
    %v8370 = vand.u32 %v6821, 4294901760
    %v8371 = vsub.f32 %v6821, %v8370
    %v8372 = vand.u32 %v8371, 4294901760
    %8373 = vmatpush1.msra.mxu0 %v8372
    %8374 = vmatprep.subr.mxu0 0.0
    %v8375 = vand.u32 %v6822, 4294901760
    %v8376 = vsub.f32 %v6822, %v8375
    %v8377 = vand.u32 %v8376, 4294901760
    %8378 = vmatpush1.msra.mxu0 %v8377
    %8379 = vmatprep.subr.mxu0 0.0
    %v8380 = vand.u32 %v6823, 4294901760
    %v8381 = vsub.f32 %v6823, %v8380
    %v8382 = vand.u32 %v8381, 4294901760
    %8383 = vmatpush1.msra.mxu0 %v8382
    %8384 = vmatprep.subr.mxu0 0.0
    %v8385 = vand.u32 %v6824, 4294901760
    %v8386 = vsub.f32 %v6824, %v8385
    %v8387 = vand.u32 %v8386, 4294901760
    %8388 = vmatpush1.msra.mxu0 %v8387
    %8389 = vmatprep.subr.mxu0 0.0
    %v8390 = vand.u32 %v6825, 4294901760
    %v8391 = vsub.f32 %v6825, %v8390
    %v8392 = vand.u32 %v8391, 4294901760
    %8393 = vmatpush1.msra.mxu0 %v8392
    %8394 = vmatprep.subr.mxu0 0.0
    %v8395 = vand.u32 %v6826, 4294901760
    %v8396 = vsub.f32 %v6826, %v8395
    %v8397 = vand.u32 %v8396, 4294901760
    %8398 = vmatpush1.msra.mxu0 %v8397
    %8399 = vmatprep.subr.mxu0 0.0
    %v8400 = vand.u32 %v6827, 4294901760
    %v8401 = vsub.f32 %v6827, %v8400
    %v8402 = vand.u32 %v8401, 4294901760
    %8403 = vmatpush1.msra.mxu0 %v8402
    %8404 = vmatprep.subr.mxu0 0.0
    %v8405 = vand.u32 %v6828, 4294901760
    %v8406 = vsub.f32 %v6828, %v8405
    %v8407 = vand.u32 %v8406, 4294901760
    %8408 = vmatpush1.msra.mxu0 %v8407
    %8409 = vmatprep.subr.mxu0 0.0
    %v8410 = vand.u32 %v6829, 4294901760
    %v8411 = vsub.f32 %v6829, %v8410
    %v8412 = vand.u32 %v8411, 4294901760
    %8413 = vmatpush1.msra.mxu0 %v8412
    %8414 = vmatprep.subr.mxu0 0.0
    %v8415 = vand.u32 %v6830, 4294901760
    %v8416 = vsub.f32 %v6830, %v8415
    %v8417 = vand.u32 %v8416, 4294901760
    %8418 = vmatpush1.msra.mxu0 %v8417
    %8419 = vmatprep.subr.mxu0 0.0
    %v8420 = vand.u32 %v6831, 4294901760
    %v8421 = vsub.f32 %v6831, %v8420
    %v8422 = vand.u32 %v8421, 4294901760
    %8423 = vmatpush1.msra.mxu0 %v8422
    %8424 = vmatprep.subr.mxu0 0.0
    %v8425 = vand.u32 %v6832, 4294901760
    %v8426 = vsub.f32 %v6832, %v8425
    %v8427 = vand.u32 %v8426, 4294901760
    %8428 = vmatpush1.msra.mxu0 %v8427
    %8429 = vmatprep.subr.mxu0 0.0
    %v8430 = vand.u32 %v6833, 4294901760
    %v8431 = vsub.f32 %v6833, %v8430
    %v8432 = vand.u32 %v8431, 4294901760
    %8433 = vmatpush1.msra.mxu0 %v8432
    %8434 = vmatprep.subr.mxu0 0.0
    %v8435 = vand.u32 %v6834, 4294901760
    %v8436 = vsub.f32 %v6834, %v8435
    %v8437 = vand.u32 %v8436, 4294901760
    %8438 = vmatpush1.msra.mxu0 %v8437
    %8439 = vmatprep.subr.mxu0 0.0
    %v8440 = vand.u32 %v6835, 4294901760
    %v8441 = vsub.f32 %v6835, %v8440
    %v8442 = vand.u32 %v8441, 4294901760
    %8443 = vmatpush1.msra.mxu0 %v8442
    %8444 = vmatprep.subr.mxu0 0.0
    %v8445 = vand.u32 %v6836, 4294901760
    %v8446 = vsub.f32 %v6836, %v8445
    %v8447 = vand.u32 %v8446, 4294901760
    %8448 = vmatpush1.msra.mxu0 %v8447
    %8449 = vmatprep.subr.mxu0 0.0
    %v8450 = vand.u32 %v6837, 4294901760
    %v8451 = vsub.f32 %v6837, %v8450
    %v8452 = vand.u32 %v8451, 4294901760
    %8453 = vmatpush1.msra.mxu0 %v8452
    %8454 = vmatprep.subr.mxu0 0.0
    %v8455 = vand.u32 %v6838, 4294901760
    %v8456 = vsub.f32 %v6838, %v8455
    %v8457 = vand.u32 %v8456, 4294901760
    %8458 = vmatpush1.msra.mxu0 %v8457
    %8459 = vmatprep.subr.mxu0 0.0
    %v8460 = vand.u32 %v6839, 4294901760
    %v8461 = vsub.f32 %v6839, %v8460
    %v8462 = vand.u32 %v8461, 4294901760
    %8463 = vmatpush1.msra.mxu0 %v8462
    %8464 = vmatprep.subr.mxu0 0.0
    %v8465 = vand.u32 %v6840, 4294901760
    %v8466 = vsub.f32 %v6840, %v8465
    %v8467 = vand.u32 %v8466, 4294901760
    %8468 = vmatpush1.msra.mxu0 %v8467
    %8469 = vmatprep.subr.mxu0 0.0
    %v8470 = vand.u32 %v6841, 4294901760
    %v8471 = vsub.f32 %v6841, %v8470
    %v8472 = vand.u32 %v8471, 4294901760
    %8473 = vmatpush1.msra.mxu0 %v8472
    %8474 = vmatprep.subr.mxu0 0.0
    %v8475 = vand.u32 %v6842, 4294901760
    %v8476 = vsub.f32 %v6842, %v8475
    %v8477 = vand.u32 %v8476, 4294901760
    %8478 = vmatpush1.msra.mxu0 %v8477
    %8479 = vmatprep.subr.mxu0 0.0
    %v8480 = vand.u32 %v6843, 4294901760
    %v8481 = vsub.f32 %v6843, %v8480
    %v8482 = vand.u32 %v8481, 4294901760
    %8483 = vmatpush1.msra.mxu0 %v8482
    %8484 = vmatprep.subr.mxu0 0.0
    %v8485 = vand.u32 %v6844, 4294901760
    %v8486 = vsub.f32 %v6844, %v8485
    %v8487 = vand.u32 %v8486, 4294901760
    %8488 = vmatpush1.msra.mxu0 %v8487
    %8489 = vmatprep.subr.mxu0 0.0
    %v8490 = vand.u32 %v6845, 4294901760
    %v8491 = vsub.f32 %v6845, %v8490
    %v8492 = vand.u32 %v8491, 4294901760
    %8493 = vmatpush1.msra.mxu0 %v8492
    %8494 = vmatprep.subr.mxu0 0.0
    %v8495 = vand.u32 %v6846, 4294901760
    %v8496 = vsub.f32 %v6846, %v8495
    %v8497 = vand.u32 %v8496, 4294901760
    %8498 = vmatpush1.msra.mxu0 %v8497
    %8499 = vmatprep.subr.mxu0 0.0
    %v8500 = vand.u32 %v6847, 4294901760
    %v8501 = vsub.f32 %v6847, %v8500
    %v8502 = vand.u32 %v8501, 4294901760
    %8503 = vmatpush1.msra.mxu0 %v8502
    %8504 = vmatprep.subr.mxu0 0.0
    %v8505 = vand.u32 %v6848, 4294901760
    %v8506 = vsub.f32 %v6848, %v8505
    %v8507 = vand.u32 %v8506, 4294901760
    %8508 = vmatpush1.msra.mxu0 %v8507
    %8509 = vmatprep.subr.mxu0 0.0
    %v8510 = vand.u32 %v6849, 4294901760
    %v8511 = vsub.f32 %v6849, %v8510
    %v8512 = vand.u32 %v8511, 4294901760
    %8513 = vmatpush1.msra.mxu0 %v8512
    %8514 = vmatprep.subr.mxu0 0.0
    %v8515 = vand.u32 %v6850, 4294901760
    %v8516 = vsub.f32 %v6850, %v8515
    %v8517 = vand.u32 %v8516, 4294901760
    %8518 = vmatpush1.msra.mxu0 %v8517
    %8519 = vmatprep.subr.mxu0 0.0
    %v8520 = vand.u32 %v6851, 4294901760
    %v8521 = vsub.f32 %v6851, %v8520
    %v8522 = vand.u32 %v8521, 4294901760
    %8523 = vmatpush1.msra.mxu0 %v8522
    %8524 = vmatprep.subr.mxu0 0.0
    %v8525 = vand.u32 %v6852, 4294901760
    %v8526 = vsub.f32 %v6852, %v8525
    %v8527 = vand.u32 %v8526, 4294901760
    %8528 = vmatpush1.msra.mxu0 %v8527
    %v8529 = vand.u32 %v6784, 4294901760
    %8530 = vmatprep.mubr.f32.mxu0 %v8529
    %v8531 = vand.u32 %v6783, 4294901760
    %8532 = vmatmul.mubr.f32.gmra.mrb[0].mxu0 %v8531
    %v8533 = vpop.f32.mrb[0].mxu0
    %v8534 = vadd.f32 %v8366, %v8533
    %v8535 = vpop.f32.mrb[0].mxu0
    %8536 = vdwg.mxu0
    %8537 = vmatprep.subr.mxu0 0.0
    %v8538 = vand.u32 %v6821, 4294901760
    %8539 = vmatpush1.msra.mxu0 %v8538
    %8540 = vmatprep.subr.mxu0 0.0
    %v8541 = vand.u32 %v6822, 4294901760
    %8542 = vmatpush1.msra.mxu0 %v8541
    %8543 = vmatprep.subr.mxu0 0.0
    %v8544 = vand.u32 %v6823, 4294901760
    %8545 = vmatpush1.msra.mxu0 %v8544
    %8546 = vmatprep.subr.mxu0 0.0
    %v8547 = vand.u32 %v6824, 4294901760
    %8548 = vmatpush1.msra.mxu0 %v8547
    %8549 = vmatprep.subr.mxu0 0.0
    %v8550 = vand.u32 %v6825, 4294901760
    %8551 = vmatpush1.msra.mxu0 %v8550
    %8552 = vmatprep.subr.mxu0 0.0
    %v8553 = vand.u32 %v6826, 4294901760
    %8554 = vmatpush1.msra.mxu0 %v8553
    %8555 = vmatprep.subr.mxu0 0.0
    %v8556 = vand.u32 %v6827, 4294901760
    %8557 = vmatpush1.msra.mxu0 %v8556
    %8558 = vmatprep.subr.mxu0 0.0
    %v8559 = vand.u32 %v6828, 4294901760
    %8560 = vmatpush1.msra.mxu0 %v8559
    %8561 = vmatprep.subr.mxu0 0.0
    %v8562 = vand.u32 %v6829, 4294901760
    %8563 = vmatpush1.msra.mxu0 %v8562
    %8564 = vmatprep.subr.mxu0 0.0
    %v8565 = vand.u32 %v6830, 4294901760
    %8566 = vmatpush1.msra.mxu0 %v8565
    %8567 = vmatprep.subr.mxu0 0.0
    %v8568 = vand.u32 %v6831, 4294901760
    %8569 = vmatpush1.msra.mxu0 %v8568
    %8570 = vmatprep.subr.mxu0 0.0
    %v8571 = vand.u32 %v6832, 4294901760
    %8572 = vmatpush1.msra.mxu0 %v8571
    %8573 = vmatprep.subr.mxu0 0.0
    %v8574 = vand.u32 %v6833, 4294901760
    %8575 = vmatpush1.msra.mxu0 %v8574
    %8576 = vmatprep.subr.mxu0 0.0
    %v8577 = vand.u32 %v6834, 4294901760
    %8578 = vmatpush1.msra.mxu0 %v8577
    %8579 = vmatprep.subr.mxu0 0.0
    %v8580 = vand.u32 %v6835, 4294901760
    %8581 = vmatpush1.msra.mxu0 %v8580
    %8582 = vmatprep.subr.mxu0 0.0
    %v8583 = vand.u32 %v6836, 4294901760
    %8584 = vmatpush1.msra.mxu0 %v8583
    %8585 = vmatprep.subr.mxu0 0.0
    %v8586 = vand.u32 %v6837, 4294901760
    %8587 = vmatpush1.msra.mxu0 %v8586
    %8588 = vmatprep.subr.mxu0 0.0
    %v8589 = vand.u32 %v6838, 4294901760
    %8590 = vmatpush1.msra.mxu0 %v8589
    %8591 = vmatprep.subr.mxu0 0.0
    %v8592 = vand.u32 %v6839, 4294901760
    %8593 = vmatpush1.msra.mxu0 %v8592
    %8594 = vmatprep.subr.mxu0 0.0
    %v8595 = vand.u32 %v6840, 4294901760
    %8596 = vmatpush1.msra.mxu0 %v8595
    %8597 = vmatprep.subr.mxu0 0.0
    %v8598 = vand.u32 %v6841, 4294901760
    %8599 = vmatpush1.msra.mxu0 %v8598
    %8600 = vmatprep.subr.mxu0 0.0
    %v8601 = vand.u32 %v6842, 4294901760
    %8602 = vmatpush1.msra.mxu0 %v8601
    %8603 = vmatprep.subr.mxu0 0.0
    %v8604 = vand.u32 %v6843, 4294901760
    %8605 = vmatpush1.msra.mxu0 %v8604
    %8606 = vmatprep.subr.mxu0 0.0
    %v8607 = vand.u32 %v6844, 4294901760
    %8608 = vmatpush1.msra.mxu0 %v8607
    %8609 = vmatprep.subr.mxu0 0.0
    %v8610 = vand.u32 %v6845, 4294901760
    %8611 = vmatpush1.msra.mxu0 %v8610
    %8612 = vmatprep.subr.mxu0 0.0
    %v8613 = vand.u32 %v6846, 4294901760
    %8614 = vmatpush1.msra.mxu0 %v8613
    %8615 = vmatprep.subr.mxu0 0.0
    %v8616 = vand.u32 %v6847, 4294901760
    %8617 = vmatpush1.msra.mxu0 %v8616
    %8618 = vmatprep.subr.mxu0 0.0
    %v8619 = vand.u32 %v6848, 4294901760
    %8620 = vmatpush1.msra.mxu0 %v8619
    %8621 = vmatprep.subr.mxu0 0.0
    %v8622 = vand.u32 %v6849, 4294901760
    %8623 = vmatpush1.msra.mxu0 %v8622
    %8624 = vmatprep.subr.mxu0 0.0
    %v8625 = vand.u32 %v6850, 4294901760
    %8626 = vmatpush1.msra.mxu0 %v8625
    %8627 = vmatprep.subr.mxu0 0.0
    %v8628 = vand.u32 %v6851, 4294901760
    %8629 = vmatpush1.msra.mxu0 %v8628
    %8630 = vmatprep.subr.mxu0 0.0
    %v8631 = vand.u32 %v6852, 4294901760
    %8632 = vmatpush1.msra.mxu0 %v8631
    %v8633 = vand.u32 %v6784, 4294901760
    %8634 = vmatprep.mubr.f32.mxu0 %v8633
    %v8635 = vand.u32 %v6783, 4294901760
    %8636 = vmatmul.mubr.f32.gmra.mrb[0].mxu0 %v8635
    %v8637 = vpop.f32.mrb[0].mxu0
    %v8638 = vadd.f32 %v8534, %v8637
    %v8639 = vpop.f32.mrb[0].mxu0
    %8640 = vdwg.mxu0
    %8641 = vmatprep.subr.mxu0 0.0
    %v8642 = vand.u32 %v6853, 4294901760
    %8643 = vmatpush1.msra.mxu0 %v8642
    %8644 = vmatprep.subr.mxu0 0.0
    %v8645 = vand.u32 %v6854, 4294901760
    %8646 = vmatpush1.msra.mxu0 %v8645
    %8647 = vmatprep.subr.mxu0 0.0
    %v8648 = vand.u32 %v6855, 4294901760
    %8649 = vmatpush1.msra.mxu0 %v8648
    %8650 = vmatprep.subr.mxu0 0.0
    %v8651 = vand.u32 %v6856, 4294901760
    %8652 = vmatpush1.msra.mxu0 %v8651
    %8653 = vmatprep.subr.mxu0 0.0
    %v8654 = vand.u32 %v6857, 4294901760
    %8655 = vmatpush1.msra.mxu0 %v8654
    %8656 = vmatprep.subr.mxu0 0.0
    %v8657 = vand.u32 %v6858, 4294901760
    %8658 = vmatpush1.msra.mxu0 %v8657
    %8659 = vmatprep.subr.mxu0 0.0
    %v8660 = vand.u32 %v6859, 4294901760
    %8661 = vmatpush1.msra.mxu0 %v8660
    %8662 = vmatprep.subr.mxu0 0.0
    %v8663 = vand.u32 %v6860, 4294901760
    %8664 = vmatpush1.msra.mxu0 %v8663
    %8665 = vmatprep.subr.mxu0 0.0
    %v8666 = vand.u32 %v6861, 4294901760
    %8667 = vmatpush1.msra.mxu0 %v8666
    %8668 = vmatprep.subr.mxu0 0.0
    %v8669 = vand.u32 %v6862, 4294901760
    %8670 = vmatpush1.msra.mxu0 %v8669
    %8671 = vmatprep.subr.mxu0 0.0
    %v8672 = vand.u32 %v6863, 4294901760
    %8673 = vmatpush1.msra.mxu0 %v8672
    %8674 = vmatprep.subr.mxu0 0.0
    %v8675 = vand.u32 %v6864, 4294901760
    %8676 = vmatpush1.msra.mxu0 %v8675
    %8677 = vmatprep.subr.mxu0 0.0
    %v8678 = vand.u32 %v6865, 4294901760
    %8679 = vmatpush1.msra.mxu0 %v8678
    %8680 = vmatprep.subr.mxu0 0.0
    %v8681 = vand.u32 %v6866, 4294901760
    %8682 = vmatpush1.msra.mxu0 %v8681
    %8683 = vmatprep.subr.mxu0 0.0
    %v8684 = vand.u32 %v6867, 4294901760
    %8685 = vmatpush1.msra.mxu0 %v8684
    %8686 = vmatprep.subr.mxu0 0.0
    %v8687 = vand.u32 %v6868, 4294901760
    %8688 = vmatpush1.msra.mxu0 %v8687
    %8689 = vmatprep.subr.mxu0 0.0
    %v8690 = vand.u32 %v6869, 4294901760
    %8691 = vmatpush1.msra.mxu0 %v8690
    %8692 = vmatprep.subr.mxu0 0.0
    %v8693 = vand.u32 %v6870, 4294901760
    %8694 = vmatpush1.msra.mxu0 %v8693
    %8695 = vmatprep.subr.mxu0 0.0
    %v8696 = vand.u32 %v6871, 4294901760
    %8697 = vmatpush1.msra.mxu0 %v8696
    %8698 = vmatprep.subr.mxu0 0.0
    %v8699 = vand.u32 %v6872, 4294901760
    %8700 = vmatpush1.msra.mxu0 %v8699
    %8701 = vmatprep.subr.mxu0 0.0
    %v8702 = vand.u32 %v6873, 4294901760
    %8703 = vmatpush1.msra.mxu0 %v8702
    %8704 = vmatprep.subr.mxu0 0.0
    %v8705 = vand.u32 %v6874, 4294901760
    %8706 = vmatpush1.msra.mxu0 %v8705
    %8707 = vmatprep.subr.mxu0 0.0
    %v8708 = vand.u32 %v6875, 4294901760
    %8709 = vmatpush1.msra.mxu0 %v8708
    %8710 = vmatprep.subr.mxu0 0.0
    %v8711 = vand.u32 %v6876, 4294901760
    %8712 = vmatpush1.msra.mxu0 %v8711
    %8713 = vmatprep.subr.mxu0 0.0
    %v8714 = vand.u32 %v6877, 4294901760
    %8715 = vmatpush1.msra.mxu0 %v8714
    %8716 = vmatprep.subr.mxu0 0.0
    %v8717 = vand.u32 %v6878, 4294901760
    %8718 = vmatpush1.msra.mxu0 %v8717
    %8719 = vmatprep.subr.mxu0 0.0
    %v8720 = vand.u32 %v6879, 4294901760
    %8721 = vmatpush1.msra.mxu0 %v8720
    %8722 = vmatprep.subr.mxu0 0.0
    %v8723 = vand.u32 %v6880, 4294901760
    %8724 = vmatpush1.msra.mxu0 %v8723
    %8725 = vmatprep.subr.mxu0 0.0
    %v8726 = vand.u32 %v6881, 4294901760
    %8727 = vmatpush1.msra.mxu0 %v8726
    %8728 = vmatprep.subr.mxu0 0.0
    %v8729 = vand.u32 %v6882, 4294901760
    %8730 = vmatpush1.msra.mxu0 %v8729
    %8731 = vmatprep.subr.mxu0 0.0
    %v8732 = vand.u32 %v6883, 4294901760
    %8733 = vmatpush1.msra.mxu0 %v8732
    %8734 = vmatprep.subr.mxu0 0.0
    %v8735 = vand.u32 %v6884, 4294901760
    %8736 = vmatpush1.msra.mxu0 %v8735
    %v8737 = vand.u32 %v6786, 4294901760
    %v8738 = vsub.f32 %v6786, %v8737
    %v8739 = vand.u32 %v8738, 4294901760
    %v8740 = vsub.f32 %v8738, %v8739
    %v8741 = vand.u32 %v8740, 4294901760
    %8742 = vmatprep.mubr.f32.mxu0 %v8741
    %v8743 = vand.u32 %v6785, 4294901760
    %v8744 = vsub.f32 %v6785, %v8743
    %v8745 = vand.u32 %v8744, 4294901760
    %v8746 = vsub.f32 %v8744, %v8745
    %v8747 = vand.u32 %v8746, 4294901760
    %8748 = vmatmul.mubr.f32.gmra.mrb[0].mxu0 %v8747
    %v8749 = vpop.f32.mrb[0].mxu0
    %v8750 = vadd.f32 %v8638, %v8749
    %v8751 = vpop.f32.mrb[0].mxu0
    %8752 = vdwg.mxu0
    %8753 = vmatprep.subr.mxu0 0.0
    %v8754 = vand.u32 %v6853, 4294901760
    %v8755 = vsub.f32 %v6853, %v8754
    %v8756 = vand.u32 %v8755, 4294901760
    %v8757 = vsub.f32 %v8755, %v8756
    %v8758 = vand.u32 %v8757, 4294901760
    %8759 = vmatpush1.msra.mxu0 %v8758
    %8760 = vmatprep.subr.mxu0 0.0
    %v8761 = vand.u32 %v6854, 4294901760
    %v8762 = vsub.f32 %v6854, %v8761
    %v8763 = vand.u32 %v8762, 4294901760
    %v8764 = vsub.f32 %v8762, %v8763
    %v8765 = vand.u32 %v8764, 4294901760
    %8766 = vmatpush1.msra.mxu0 %v8765
    %8767 = vmatprep.subr.mxu0 0.0
    %v8768 = vand.u32 %v6855, 4294901760
    %v8769 = vsub.f32 %v6855, %v8768
    %v8770 = vand.u32 %v8769, 4294901760
    %v8771 = vsub.f32 %v8769, %v8770
    %v8772 = vand.u32 %v8771, 4294901760
    %8773 = vmatpush1.msra.mxu0 %v8772
    %8774 = vmatprep.subr.mxu0 0.0
    %v8775 = vand.u32 %v6856, 4294901760
    %v8776 = vsub.f32 %v6856, %v8775
    %v8777 = vand.u32 %v8776, 4294901760
    %v8778 = vsub.f32 %v8776, %v8777
    %v8779 = vand.u32 %v8778, 4294901760
    %8780 = vmatpush1.msra.mxu0 %v8779
    %8781 = vmatprep.subr.mxu0 0.0
    %v8782 = vand.u32 %v6857, 4294901760
    %v8783 = vsub.f32 %v6857, %v8782
    %v8784 = vand.u32 %v8783, 4294901760
    %v8785 = vsub.f32 %v8783, %v8784
    %v8786 = vand.u32 %v8785, 4294901760
    %8787 = vmatpush1.msra.mxu0 %v8786
    %8788 = vmatprep.subr.mxu0 0.0
    %v8789 = vand.u32 %v6858, 4294901760
    %v8790 = vsub.f32 %v6858, %v8789
    %v8791 = vand.u32 %v8790, 4294901760
    %v8792 = vsub.f32 %v8790, %v8791
    %v8793 = vand.u32 %v8792, 4294901760
    %8794 = vmatpush1.msra.mxu0 %v8793
    %8795 = vmatprep.subr.mxu0 0.0
    %v8796 = vand.u32 %v6859, 4294901760
    %v8797 = vsub.f32 %v6859, %v8796
    %v8798 = vand.u32 %v8797, 4294901760
    %v8799 = vsub.f32 %v8797, %v8798
    %v8800 = vand.u32 %v8799, 4294901760
    %8801 = vmatpush1.msra.mxu0 %v8800
    %8802 = vmatprep.subr.mxu0 0.0
    %v8803 = vand.u32 %v6860, 4294901760
    %v8804 = vsub.f32 %v6860, %v8803
    %v8805 = vand.u32 %v8804, 4294901760
    %v8806 = vsub.f32 %v8804, %v8805
    %v8807 = vand.u32 %v8806, 4294901760
    %8808 = vmatpush1.msra.mxu0 %v8807
    %8809 = vmatprep.subr.mxu0 0.0
    %v8810 = vand.u32 %v6861, 4294901760
    %v8811 = vsub.f32 %v6861, %v8810
    %v8812 = vand.u32 %v8811, 4294901760
    %v8813 = vsub.f32 %v8811, %v8812
    %v8814 = vand.u32 %v8813, 4294901760
    %8815 = vmatpush1.msra.mxu0 %v8814
    %8816 = vmatprep.subr.mxu0 0.0
    %v8817 = vand.u32 %v6862, 4294901760
    %v8818 = vsub.f32 %v6862, %v8817
    %v8819 = vand.u32 %v8818, 4294901760
    %v8820 = vsub.f32 %v8818, %v8819
    %v8821 = vand.u32 %v8820, 4294901760
    %8822 = vmatpush1.msra.mxu0 %v8821
    %8823 = vmatprep.subr.mxu0 0.0
    %v8824 = vand.u32 %v6863, 4294901760
    %v8825 = vsub.f32 %v6863, %v8824
    %v8826 = vand.u32 %v8825, 4294901760
    %v8827 = vsub.f32 %v8825, %v8826
    %v8828 = vand.u32 %v8827, 4294901760
    %8829 = vmatpush1.msra.mxu0 %v8828
    %8830 = vmatprep.subr.mxu0 0.0
    %v8831 = vand.u32 %v6864, 4294901760
    %v8832 = vsub.f32 %v6864, %v8831
    %v8833 = vand.u32 %v8832, 4294901760
    %v8834 = vsub.f32 %v8832, %v8833
    %v8835 = vand.u32 %v8834, 4294901760
    %8836 = vmatpush1.msra.mxu0 %v8835
    %8837 = vmatprep.subr.mxu0 0.0
    %v8838 = vand.u32 %v6865, 4294901760
    %v8839 = vsub.f32 %v6865, %v8838
    %v8840 = vand.u32 %v8839, 4294901760
    %v8841 = vsub.f32 %v8839, %v8840
    %v8842 = vand.u32 %v8841, 4294901760
    %8843 = vmatpush1.msra.mxu0 %v8842
    %8844 = vmatprep.subr.mxu0 0.0
    %v8845 = vand.u32 %v6866, 4294901760
    %v8846 = vsub.f32 %v6866, %v8845
    %v8847 = vand.u32 %v8846, 4294901760
    %v8848 = vsub.f32 %v8846, %v8847
    %v8849 = vand.u32 %v8848, 4294901760
    %8850 = vmatpush1.msra.mxu0 %v8849
    %8851 = vmatprep.subr.mxu0 0.0
    %v8852 = vand.u32 %v6867, 4294901760
    %v8853 = vsub.f32 %v6867, %v8852
    %v8854 = vand.u32 %v8853, 4294901760
    %v8855 = vsub.f32 %v8853, %v8854
    %v8856 = vand.u32 %v8855, 4294901760
    %8857 = vmatpush1.msra.mxu0 %v8856
    %8858 = vmatprep.subr.mxu0 0.0
    %v8859 = vand.u32 %v6868, 4294901760
    %v8860 = vsub.f32 %v6868, %v8859
    %v8861 = vand.u32 %v8860, 4294901760
    %v8862 = vsub.f32 %v8860, %v8861
    %v8863 = vand.u32 %v8862, 4294901760
    %8864 = vmatpush1.msra.mxu0 %v8863
    %8865 = vmatprep.subr.mxu0 0.0
    %v8866 = vand.u32 %v6869, 4294901760
    %v8867 = vsub.f32 %v6869, %v8866
    %v8868 = vand.u32 %v8867, 4294901760
    %v8869 = vsub.f32 %v8867, %v8868
    %v8870 = vand.u32 %v8869, 4294901760
    %8871 = vmatpush1.msra.mxu0 %v8870
    %8872 = vmatprep.subr.mxu0 0.0
    %v8873 = vand.u32 %v6870, 4294901760
    %v8874 = vsub.f32 %v6870, %v8873
    %v8875 = vand.u32 %v8874, 4294901760
    %v8876 = vsub.f32 %v8874, %v8875
    %v8877 = vand.u32 %v8876, 4294901760
    %8878 = vmatpush1.msra.mxu0 %v8877
    %8879 = vmatprep.subr.mxu0 0.0
    %v8880 = vand.u32 %v6871, 4294901760
    %v8881 = vsub.f32 %v6871, %v8880
    %v8882 = vand.u32 %v8881, 4294901760
    %v8883 = vsub.f32 %v8881, %v8882
    %v8884 = vand.u32 %v8883, 4294901760
    %8885 = vmatpush1.msra.mxu0 %v8884
    %8886 = vmatprep.subr.mxu0 0.0
    %v8887 = vand.u32 %v6872, 4294901760
    %v8888 = vsub.f32 %v6872, %v8887
    %v8889 = vand.u32 %v8888, 4294901760
    %v8890 = vsub.f32 %v8888, %v8889
    %v8891 = vand.u32 %v8890, 4294901760
    %8892 = vmatpush1.msra.mxu0 %v8891
    %8893 = vmatprep.subr.mxu0 0.0
    %v8894 = vand.u32 %v6873, 4294901760
    %v8895 = vsub.f32 %v6873, %v8894
    %v8896 = vand.u32 %v8895, 4294901760
    %v8897 = vsub.f32 %v8895, %v8896
    %v8898 = vand.u32 %v8897, 4294901760
    %8899 = vmatpush1.msra.mxu0 %v8898
    %8900 = vmatprep.subr.mxu0 0.0
    %v8901 = vand.u32 %v6874, 4294901760
    %v8902 = vsub.f32 %v6874, %v8901
    %v8903 = vand.u32 %v8902, 4294901760
    %v8904 = vsub.f32 %v8902, %v8903
    %v8905 = vand.u32 %v8904, 4294901760
    %8906 = vmatpush1.msra.mxu0 %v8905
    %8907 = vmatprep.subr.mxu0 0.0
    %v8908 = vand.u32 %v6875, 4294901760
    %v8909 = vsub.f32 %v6875, %v8908
    %v8910 = vand.u32 %v8909, 4294901760
    %v8911 = vsub.f32 %v8909, %v8910
    %v8912 = vand.u32 %v8911, 4294901760
    %8913 = vmatpush1.msra.mxu0 %v8912
    %8914 = vmatprep.subr.mxu0 0.0
    %v8915 = vand.u32 %v6876, 4294901760
    %v8916 = vsub.f32 %v6876, %v8915
    %v8917 = vand.u32 %v8916, 4294901760
    %v8918 = vsub.f32 %v8916, %v8917
    %v8919 = vand.u32 %v8918, 4294901760
    %8920 = vmatpush1.msra.mxu0 %v8919
    %8921 = vmatprep.subr.mxu0 0.0
    %v8922 = vand.u32 %v6877, 4294901760
    %v8923 = vsub.f32 %v6877, %v8922
    %v8924 = vand.u32 %v8923, 4294901760
    %v8925 = vsub.f32 %v8923, %v8924
    %v8926 = vand.u32 %v8925, 4294901760
    %8927 = vmatpush1.msra.mxu0 %v8926
    %8928 = vmatprep.subr.mxu0 0.0
    %v8929 = vand.u32 %v6878, 4294901760
    %v8930 = vsub.f32 %v6878, %v8929
    %v8931 = vand.u32 %v8930, 4294901760
    %v8932 = vsub.f32 %v8930, %v8931
    %v8933 = vand.u32 %v8932, 4294901760
    %8934 = vmatpush1.msra.mxu0 %v8933
    %8935 = vmatprep.subr.mxu0 0.0
    %v8936 = vand.u32 %v6879, 4294901760
    %v8937 = vsub.f32 %v6879, %v8936
    %v8938 = vand.u32 %v8937, 4294901760
    %v8939 = vsub.f32 %v8937, %v8938
    %v8940 = vand.u32 %v8939, 4294901760
    %8941 = vmatpush1.msra.mxu0 %v8940
    %8942 = vmatprep.subr.mxu0 0.0
    %v8943 = vand.u32 %v6880, 4294901760
    %v8944 = vsub.f32 %v6880, %v8943
    %v8945 = vand.u32 %v8944, 4294901760
    %v8946 = vsub.f32 %v8944, %v8945
    %v8947 = vand.u32 %v8946, 4294901760
    %8948 = vmatpush1.msra.mxu0 %v8947
    %8949 = vmatprep.subr.mxu0 0.0
    %v8950 = vand.u32 %v6881, 4294901760
    %v8951 = vsub.f32 %v6881, %v8950
    %v8952 = vand.u32 %v8951, 4294901760
    %v8953 = vsub.f32 %v8951, %v8952
    %v8954 = vand.u32 %v8953, 4294901760
    %8955 = vmatpush1.msra.mxu0 %v8954
    %8956 = vmatprep.subr.mxu0 0.0
    %v8957 = vand.u32 %v6882, 4294901760
    %v8958 = vsub.f32 %v6882, %v8957
    %v8959 = vand.u32 %v8958, 4294901760
    %v8960 = vsub.f32 %v8958, %v8959
    %v8961 = vand.u32 %v8960, 4294901760
    %8962 = vmatpush1.msra.mxu0 %v8961
    %8963 = vmatprep.subr.mxu0 0.0
    %v8964 = vand.u32 %v6883, 4294901760
    %v8965 = vsub.f32 %v6883, %v8964
    %v8966 = vand.u32 %v8965, 4294901760
    %v8967 = vsub.f32 %v8965, %v8966
    %v8968 = vand.u32 %v8967, 4294901760
    %8969 = vmatpush1.msra.mxu0 %v8968
    %8970 = vmatprep.subr.mxu0 0.0
    %v8971 = vand.u32 %v6884, 4294901760
    %v8972 = vsub.f32 %v6884, %v8971
    %v8973 = vand.u32 %v8972, 4294901760
    %v8974 = vsub.f32 %v8972, %v8973
    %v8975 = vand.u32 %v8974, 4294901760
    %8976 = vmatpush1.msra.mxu0 %v8975
    %v8977 = vand.u32 %v6786, 4294901760
    %8978 = vmatprep.mubr.f32.mxu0 %v8977
    %v8979 = vand.u32 %v6785, 4294901760
    %8980 = vmatmul.mubr.f32.gmra.mrb[0].mxu0 %v8979
    %v8981 = vpop.f32.mrb[0].mxu0
    %v8982 = vadd.f32 %v8750, %v8981
    %v8983 = vpop.f32.mrb[0].mxu0
    %8984 = vdwg.mxu0
    %8985 = vmatprep.subr.mxu0 0.0
    %v8986 = vand.u32 %v6853, 4294901760
    %v8987 = vsub.f32 %v6853, %v8986
    %8988 = vmatpush1.msra.mxu0 %v8987
    %8989 = vmatprep.subr.mxu0 0.0
    %v8990 = vand.u32 %v6854, 4294901760
    %v8991 = vsub.f32 %v6854, %v8990
    %8992 = vmatpush1.msra.mxu0 %v8991
    %8993 = vmatprep.subr.mxu0 0.0
    %v8994 = vand.u32 %v6855, 4294901760
    %v8995 = vsub.f32 %v6855, %v8994
    %8996 = vmatpush1.msra.mxu0 %v8995
    %8997 = vmatprep.subr.mxu0 0.0
    %v8998 = vand.u32 %v6856, 4294901760
    %v8999 = vsub.f32 %v6856, %v8998
    %9000 = vmatpush1.msra.mxu0 %v8999
    %9001 = vmatprep.subr.mxu0 0.0
    %v9002 = vand.u32 %v6857, 4294901760
    %v9003 = vsub.f32 %v6857, %v9002
    %9004 = vmatpush1.msra.mxu0 %v9003
    %9005 = vmatprep.subr.mxu0 0.0
    %v9006 = vand.u32 %v6858, 4294901760
    %v9007 = vsub.f32 %v6858, %v9006
    %9008 = vmatpush1.msra.mxu0 %v9007
    %9009 = vmatprep.subr.mxu0 0.0
    %v9010 = vand.u32 %v6859, 4294901760
    %v9011 = vsub.f32 %v6859, %v9010
    %9012 = vmatpush1.msra.mxu0 %v9011
    %9013 = vmatprep.subr.mxu0 0.0
    %v9014 = vand.u32 %v6860, 4294901760
    %v9015 = vsub.f32 %v6860, %v9014
    %9016 = vmatpush1.msra.mxu0 %v9015
    %9017 = vmatprep.subr.mxu0 0.0
    %v9018 = vand.u32 %v6861, 4294901760
    %v9019 = vsub.f32 %v6861, %v9018
    %9020 = vmatpush1.msra.mxu0 %v9019
    %9021 = vmatprep.subr.mxu0 0.0
    %v9022 = vand.u32 %v6862, 4294901760
    %v9023 = vsub.f32 %v6862, %v9022
    %9024 = vmatpush1.msra.mxu0 %v9023
    %9025 = vmatprep.subr.mxu0 0.0
    %v9026 = vand.u32 %v6863, 4294901760
    %v9027 = vsub.f32 %v6863, %v9026
    %9028 = vmatpush1.msra.mxu0 %v9027
    %9029 = vmatprep.subr.mxu0 0.0
    %v9030 = vand.u32 %v6864, 4294901760
    %v9031 = vsub.f32 %v6864, %v9030
    %9032 = vmatpush1.msra.mxu0 %v9031
    %9033 = vmatprep.subr.mxu0 0.0
    %v9034 = vand.u32 %v6865, 4294901760
    %v9035 = vsub.f32 %v6865, %v9034
    %9036 = vmatpush1.msra.mxu0 %v9035
    %9037 = vmatprep.subr.mxu0 0.0
    %v9038 = vand.u32 %v6866, 4294901760
    %v9039 = vsub.f32 %v6866, %v9038
    %9040 = vmatpush1.msra.mxu0 %v9039
    %9041 = vmatprep.subr.mxu0 0.0
    %v9042 = vand.u32 %v6867, 4294901760
    %v9043 = vsub.f32 %v6867, %v9042
    %9044 = vmatpush1.msra.mxu0 %v9043
    %9045 = vmatprep.subr.mxu0 0.0
    %v9046 = vand.u32 %v6868, 4294901760
    %v9047 = vsub.f32 %v6868, %v9046
    %9048 = vmatpush1.msra.mxu0 %v9047
    %9049 = vmatprep.subr.mxu0 0.0
    %v9050 = vand.u32 %v6869, 4294901760
    %v9051 = vsub.f32 %v6869, %v9050
    %9052 = vmatpush1.msra.mxu0 %v9051
    %9053 = vmatprep.subr.mxu0 0.0
    %v9054 = vand.u32 %v6870, 4294901760
    %v9055 = vsub.f32 %v6870, %v9054
    %9056 = vmatpush1.msra.mxu0 %v9055
    %9057 = vmatprep.subr.mxu0 0.0
    %v9058 = vand.u32 %v6871, 4294901760
    %v9059 = vsub.f32 %v6871, %v9058
    %9060 = vmatpush1.msra.mxu0 %v9059
    %9061 = vmatprep.subr.mxu0 0.0
    %v9062 = vand.u32 %v6872, 4294901760
    %v9063 = vsub.f32 %v6872, %v9062
    %9064 = vmatpush1.msra.mxu0 %v9063
    %9065 = vmatprep.subr.mxu0 0.0
    %v9066 = vand.u32 %v6873, 4294901760
    %v9067 = vsub.f32 %v6873, %v9066
    %9068 = vmatpush1.msra.mxu0 %v9067
    %9069 = vmatprep.subr.mxu0 0.0
    %v9070 = vand.u32 %v6874, 4294901760
    %v9071 = vsub.f32 %v6874, %v9070
    %9072 = vmatpush1.msra.mxu0 %v9071
    %9073 = vmatprep.subr.mxu0 0.0
    %v9074 = vand.u32 %v6875, 4294901760
    %v9075 = vsub.f32 %v6875, %v9074
    %9076 = vmatpush1.msra.mxu0 %v9075
    %9077 = vmatprep.subr.mxu0 0.0
    %v9078 = vand.u32 %v6876, 4294901760
    %v9079 = vsub.f32 %v6876, %v9078
    %9080 = vmatpush1.msra.mxu0 %v9079
    %9081 = vmatprep.subr.mxu0 0.0
    %v9082 = vand.u32 %v6877, 4294901760
    %v9083 = vsub.f32 %v6877, %v9082
    %9084 = vmatpush1.msra.mxu0 %v9083
    %9085 = vmatprep.subr.mxu0 0.0
    %v9086 = vand.u32 %v6878, 4294901760
    %v9087 = vsub.f32 %v6878, %v9086
    %9088 = vmatpush1.msra.mxu0 %v9087
    %9089 = vmatprep.subr.mxu0 0.0
    %v9090 = vand.u32 %v6879, 4294901760
    %v9091 = vsub.f32 %v6879, %v9090
    %9092 = vmatpush1.msra.mxu0 %v9091
    %9093 = vmatprep.subr.mxu0 0.0
    %v9094 = vand.u32 %v6880, 4294901760
    %v9095 = vsub.f32 %v6880, %v9094
    %9096 = vmatpush1.msra.mxu0 %v9095
    %9097 = vmatprep.subr.mxu0 0.0
    %v9098 = vand.u32 %v6881, 4294901760
    %v9099 = vsub.f32 %v6881, %v9098
    %9100 = vmatpush1.msra.mxu0 %v9099
    %9101 = vmatprep.subr.mxu0 0.0
    %v9102 = vand.u32 %v6882, 4294901760
    %v9103 = vsub.f32 %v6882, %v9102
    %9104 = vmatpush1.msra.mxu0 %v9103
    %9105 = vmatprep.subr.mxu0 0.0
    %v9106 = vand.u32 %v6883, 4294901760
    %v9107 = vsub.f32 %v6883, %v9106
    %9108 = vmatpush1.msra.mxu0 %v9107
    %9109 = vmatprep.subr.mxu0 0.0
    %v9110 = vand.u32 %v6884, 4294901760
    %v9111 = vsub.f32 %v6884, %v9110
    %9112 = vmatpush1.msra.mxu0 %v9111
    %v9113 = vand.u32 %v6786, 4294901760
    %v9114 = vsub.f32 %v6786, %v9113
    %9115 = vmatprep.mubr.f32.mxu0 %v9114
    %v9116 = vand.u32 %v6785, 4294901760
    %v9117 = vsub.f32 %v6785, %v9116
    %9118 = vmatmul.mubr.f32.gmra.mrb[0].mxu0 %v9117
    %v9119 = vpop.f32.mrb[0].mxu0
    %v9120 = vadd.f32 %v8982, %v9119
    %v9121 = vpop.f32.mrb[0].mxu0
    %9122 = vdwg.mxu0
    %9123 = vmatprep.subr.mxu0 0.0
    %v9124 = vand.u32 %v6853, 4294901760
    %9125 = vmatpush1.msra.mxu0 %v9124
    %9126 = vmatprep.subr.mxu0 0.0
    %v9127 = vand.u32 %v6854, 4294901760
    %9128 = vmatpush1.msra.mxu0 %v9127
    %9129 = vmatprep.subr.mxu0 0.0
    %v9130 = vand.u32 %v6855, 4294901760
    %9131 = vmatpush1.msra.mxu0 %v9130
    %9132 = vmatprep.subr.mxu0 0.0
    %v9133 = vand.u32 %v6856, 4294901760
    %9134 = vmatpush1.msra.mxu0 %v9133
    %9135 = vmatprep.subr.mxu0 0.0
    %v9136 = vand.u32 %v6857, 4294901760
    %9137 = vmatpush1.msra.mxu0 %v9136
    %9138 = vmatprep.subr.mxu0 0.0
    %v9139 = vand.u32 %v6858, 4294901760
    %9140 = vmatpush1.msra.mxu0 %v9139
    %9141 = vmatprep.subr.mxu0 0.0
    %v9142 = vand.u32 %v6859, 4294901760
    %9143 = vmatpush1.msra.mxu0 %v9142
    %9144 = vmatprep.subr.mxu0 0.0
    %v9145 = vand.u32 %v6860, 4294901760
    %9146 = vmatpush1.msra.mxu0 %v9145
    %9147 = vmatprep.subr.mxu0 0.0
    %v9148 = vand.u32 %v6861, 4294901760
    %9149 = vmatpush1.msra.mxu0 %v9148
    %9150 = vmatprep.subr.mxu0 0.0
    %v9151 = vand.u32 %v6862, 4294901760
    %9152 = vmatpush1.msra.mxu0 %v9151
    %9153 = vmatprep.subr.mxu0 0.0
    %v9154 = vand.u32 %v6863, 4294901760
    %9155 = vmatpush1.msra.mxu0 %v9154
    %9156 = vmatprep.subr.mxu0 0.0
    %v9157 = vand.u32 %v6864, 4294901760
    %9158 = vmatpush1.msra.mxu0 %v9157
    %9159 = vmatprep.subr.mxu0 0.0
    %v9160 = vand.u32 %v6865, 4294901760
    %9161 = vmatpush1.msra.mxu0 %v9160
    %9162 = vmatprep.subr.mxu0 0.0
    %v9163 = vand.u32 %v6866, 4294901760
    %9164 = vmatpush1.msra.mxu0 %v9163
    %9165 = vmatprep.subr.mxu0 0.0
    %v9166 = vand.u32 %v6867, 4294901760
    %9167 = vmatpush1.msra.mxu0 %v9166
    %9168 = vmatprep.subr.mxu0 0.0
    %v9169 = vand.u32 %v6868, 4294901760
    %9170 = vmatpush1.msra.mxu0 %v9169
    %9171 = vmatprep.subr.mxu0 0.0
    %v9172 = vand.u32 %v6869, 4294901760
    %9173 = vmatpush1.msra.mxu0 %v9172
    %9174 = vmatprep.subr.mxu0 0.0
    %v9175 = vand.u32 %v6870, 4294901760
    %9176 = vmatpush1.msra.mxu0 %v9175
    %9177 = vmatprep.subr.mxu0 0.0
    %v9178 = vand.u32 %v6871, 4294901760
    %9179 = vmatpush1.msra.mxu0 %v9178
    %9180 = vmatprep.subr.mxu0 0.0
    %v9181 = vand.u32 %v6872, 4294901760
    %9182 = vmatpush1.msra.mxu0 %v9181
    %9183 = vmatprep.subr.mxu0 0.0
    %v9184 = vand.u32 %v6873, 4294901760
    %9185 = vmatpush1.msra.mxu0 %v9184
    %9186 = vmatprep.subr.mxu0 0.0
    %v9187 = vand.u32 %v6874, 4294901760
    %9188 = vmatpush1.msra.mxu0 %v9187
    %9189 = vmatprep.subr.mxu0 0.0
    %v9190 = vand.u32 %v6875, 4294901760
    %9191 = vmatpush1.msra.mxu0 %v9190
    %9192 = vmatprep.subr.mxu0 0.0
    %v9193 = vand.u32 %v6876, 4294901760
    %9194 = vmatpush1.msra.mxu0 %v9193
    %9195 = vmatprep.subr.mxu0 0.0
    %v9196 = vand.u32 %v6877, 4294901760
    %9197 = vmatpush1.msra.mxu0 %v9196
    %9198 = vmatprep.subr.mxu0 0.0
    %v9199 = vand.u32 %v6878, 4294901760
    %9200 = vmatpush1.msra.mxu0 %v9199
    %9201 = vmatprep.subr.mxu0 0.0
    %v9202 = vand.u32 %v6879, 4294901760
    %9203 = vmatpush1.msra.mxu0 %v9202
    %9204 = vmatprep.subr.mxu0 0.0
    %v9205 = vand.u32 %v6880, 4294901760
    %9206 = vmatpush1.msra.mxu0 %v9205
    %9207 = vmatprep.subr.mxu0 0.0
    %v9208 = vand.u32 %v6881, 4294901760
    %9209 = vmatpush1.msra.mxu0 %v9208
    %9210 = vmatprep.subr.mxu0 0.0
    %v9211 = vand.u32 %v6882, 4294901760
    %9212 = vmatpush1.msra.mxu0 %v9211
    %9213 = vmatprep.subr.mxu0 0.0
    %v9214 = vand.u32 %v6883, 4294901760
    %9215 = vmatpush1.msra.mxu0 %v9214
    %9216 = vmatprep.subr.mxu0 0.0
    %v9217 = vand.u32 %v6884, 4294901760
    %9218 = vmatpush1.msra.mxu0 %v9217
    %v9219 = vand.u32 %v6786, 4294901760
    %v9220 = vsub.f32 %v6786, %v9219
    %v9221 = vand.u32 %v9220, 4294901760
    %9222 = vmatprep.mubr.f32.mxu0 %v9221
    %v9223 = vand.u32 %v6785, 4294901760
    %v9224 = vsub.f32 %v6785, %v9223
    %v9225 = vand.u32 %v9224, 4294901760
    %9226 = vmatmul.mubr.f32.gmra.mrb[0].mxu0 %v9225
    %v9227 = vpop.f32.mrb[0].mxu0
    %v9228 = vadd.f32 %v9120, %v9227
    %v9229 = vpop.f32.mrb[0].mxu0
    %9230 = vdwg.mxu0
    %9231 = vmatprep.subr.mxu0 0.0
    %v9232 = vand.u32 %v6853, 4294901760
    %v9233 = vsub.f32 %v6853, %v9232
    %v9234 = vand.u32 %v9233, 4294901760
    %9235 = vmatpush1.msra.mxu0 %v9234
    %9236 = vmatprep.subr.mxu0 0.0
    %v9237 = vand.u32 %v6854, 4294901760
    %v9238 = vsub.f32 %v6854, %v9237
    %v9239 = vand.u32 %v9238, 4294901760
    %9240 = vmatpush1.msra.mxu0 %v9239
    %9241 = vmatprep.subr.mxu0 0.0
    %v9242 = vand.u32 %v6855, 4294901760
    %v9243 = vsub.f32 %v6855, %v9242
    %v9244 = vand.u32 %v9243, 4294901760
    %9245 = vmatpush1.msra.mxu0 %v9244
    %9246 = vmatprep.subr.mxu0 0.0
    %v9247 = vand.u32 %v6856, 4294901760
    %v9248 = vsub.f32 %v6856, %v9247
    %v9249 = vand.u32 %v9248, 4294901760
    %9250 = vmatpush1.msra.mxu0 %v9249
    %9251 = vmatprep.subr.mxu0 0.0
    %v9252 = vand.u32 %v6857, 4294901760
    %v9253 = vsub.f32 %v6857, %v9252
    %v9254 = vand.u32 %v9253, 4294901760
    %9255 = vmatpush1.msra.mxu0 %v9254
    %9256 = vmatprep.subr.mxu0 0.0
    %v9257 = vand.u32 %v6858, 4294901760
    %v9258 = vsub.f32 %v6858, %v9257
    %v9259 = vand.u32 %v9258, 4294901760
    %9260 = vmatpush1.msra.mxu0 %v9259
    %9261 = vmatprep.subr.mxu0 0.0
    %v9262 = vand.u32 %v6859, 4294901760
    %v9263 = vsub.f32 %v6859, %v9262
    %v9264 = vand.u32 %v9263, 4294901760
    %9265 = vmatpush1.msra.mxu0 %v9264
    %9266 = vmatprep.subr.mxu0 0.0
    %v9267 = vand.u32 %v6860, 4294901760
    %v9268 = vsub.f32 %v6860, %v9267
    %v9269 = vand.u32 %v9268, 4294901760
    %9270 = vmatpush1.msra.mxu0 %v9269
    %9271 = vmatprep.subr.mxu0 0.0
    %v9272 = vand.u32 %v6861, 4294901760
    %v9273 = vsub.f32 %v6861, %v9272
    %v9274 = vand.u32 %v9273, 4294901760
    %9275 = vmatpush1.msra.mxu0 %v9274
    %9276 = vmatprep.subr.mxu0 0.0
    %v9277 = vand.u32 %v6862, 4294901760
    %v9278 = vsub.f32 %v6862, %v9277
    %v9279 = vand.u32 %v9278, 4294901760
    %9280 = vmatpush1.msra.mxu0 %v9279
    %9281 = vmatprep.subr.mxu0 0.0
    %v9282 = vand.u32 %v6863, 4294901760
    %v9283 = vsub.f32 %v6863, %v9282
    %v9284 = vand.u32 %v9283, 4294901760
    %9285 = vmatpush1.msra.mxu0 %v9284
    %9286 = vmatprep.subr.mxu0 0.0
    %v9287 = vand.u32 %v6864, 4294901760
    %v9288 = vsub.f32 %v6864, %v9287
    %v9289 = vand.u32 %v9288, 4294901760
    %9290 = vmatpush1.msra.mxu0 %v9289
    %9291 = vmatprep.subr.mxu0 0.0
    %v9292 = vand.u32 %v6865, 4294901760
    %v9293 = vsub.f32 %v6865, %v9292
    %v9294 = vand.u32 %v9293, 4294901760
    %9295 = vmatpush1.msra.mxu0 %v9294
    %9296 = vmatprep.subr.mxu0 0.0
    %v9297 = vand.u32 %v6866, 4294901760
    %v9298 = vsub.f32 %v6866, %v9297
    %v9299 = vand.u32 %v9298, 4294901760
    %9300 = vmatpush1.msra.mxu0 %v9299
    %9301 = vmatprep.subr.mxu0 0.0
    %v9302 = vand.u32 %v6867, 4294901760
    %v9303 = vsub.f32 %v6867, %v9302
    %v9304 = vand.u32 %v9303, 4294901760
    %9305 = vmatpush1.msra.mxu0 %v9304
    %9306 = vmatprep.subr.mxu0 0.0
    %v9307 = vand.u32 %v6868, 4294901760
    %v9308 = vsub.f32 %v6868, %v9307
    %v9309 = vand.u32 %v9308, 4294901760
    %9310 = vmatpush1.msra.mxu0 %v9309
    %9311 = vmatprep.subr.mxu0 0.0
    %v9312 = vand.u32 %v6869, 4294901760
    %v9313 = vsub.f32 %v6869, %v9312
    %v9314 = vand.u32 %v9313, 4294901760
    %9315 = vmatpush1.msra.mxu0 %v9314
    %9316 = vmatprep.subr.mxu0 0.0
    %v9317 = vand.u32 %v6870, 4294901760
    %v9318 = vsub.f32 %v6870, %v9317
    %v9319 = vand.u32 %v9318, 4294901760
    %9320 = vmatpush1.msra.mxu0 %v9319
    %9321 = vmatprep.subr.mxu0 0.0
    %v9322 = vand.u32 %v6871, 4294901760
    %v9323 = vsub.f32 %v6871, %v9322
    %v9324 = vand.u32 %v9323, 4294901760
    %9325 = vmatpush1.msra.mxu0 %v9324
    %9326 = vmatprep.subr.mxu0 0.0
    %v9327 = vand.u32 %v6872, 4294901760
    %v9328 = vsub.f32 %v6872, %v9327
    %v9329 = vand.u32 %v9328, 4294901760
    %9330 = vmatpush1.msra.mxu0 %v9329
    %9331 = vmatprep.subr.mxu0 0.0
    %v9332 = vand.u32 %v6873, 4294901760
    %v9333 = vsub.f32 %v6873, %v9332
    %v9334 = vand.u32 %v9333, 4294901760
    %9335 = vmatpush1.msra.mxu0 %v9334
    %9336 = vmatprep.subr.mxu0 0.0
    %v9337 = vand.u32 %v6874, 4294901760
    %v9338 = vsub.f32 %v6874, %v9337
    %v9339 = vand.u32 %v9338, 4294901760
    %9340 = vmatpush1.msra.mxu0 %v9339
    %9341 = vmatprep.subr.mxu0 0.0
    %v9342 = vand.u32 %v6875, 4294901760
    %v9343 = vsub.f32 %v6875, %v9342
    %v9344 = vand.u32 %v9343, 4294901760
    %9345 = vmatpush1.msra.mxu0 %v9344
    %9346 = vmatprep.subr.mxu0 0.0
    %v9347 = vand.u32 %v6876, 4294901760
    %v9348 = vsub.f32 %v6876, %v9347
    %v9349 = vand.u32 %v9348, 4294901760
    %9350 = vmatpush1.msra.mxu0 %v9349
    %9351 = vmatprep.subr.mxu0 0.0
    %v9352 = vand.u32 %v6877, 4294901760
    %v9353 = vsub.f32 %v6877, %v9352
    %v9354 = vand.u32 %v9353, 4294901760
    %9355 = vmatpush1.msra.mxu0 %v9354
    %9356 = vmatprep.subr.mxu0 0.0
    %v9357 = vand.u32 %v6878, 4294901760
    %v9358 = vsub.f32 %v6878, %v9357
    %v9359 = vand.u32 %v9358, 4294901760
    %9360 = vmatpush1.msra.mxu0 %v9359
    %9361 = vmatprep.subr.mxu0 0.0
    %v9362 = vand.u32 %v6879, 4294901760
    %v9363 = vsub.f32 %v6879, %v9362
    %v9364 = vand.u32 %v9363, 4294901760
    %9365 = vmatpush1.msra.mxu0 %v9364
    %9366 = vmatprep.subr.mxu0 0.0
    %v9367 = vand.u32 %v6880, 4294901760
    %v9368 = vsub.f32 %v6880, %v9367
    %v9369 = vand.u32 %v9368, 4294901760
    %9370 = vmatpush1.msra.mxu0 %v9369
    %9371 = vmatprep.subr.mxu0 0.0
    %v9372 = vand.u32 %v6881, 4294901760
    %v9373 = vsub.f32 %v6881, %v9372
    %v9374 = vand.u32 %v9373, 4294901760
    %9375 = vmatpush1.msra.mxu0 %v9374
    %9376 = vmatprep.subr.mxu0 0.0
    %v9377 = vand.u32 %v6882, 4294901760
    %v9378 = vsub.f32 %v6882, %v9377
    %v9379 = vand.u32 %v9378, 4294901760
    %9380 = vmatpush1.msra.mxu0 %v9379
    %9381 = vmatprep.subr.mxu0 0.0
    %v9382 = vand.u32 %v6883, 4294901760
    %v9383 = vsub.f32 %v6883, %v9382
    %v9384 = vand.u32 %v9383, 4294901760
    %9385 = vmatpush1.msra.mxu0 %v9384
    %9386 = vmatprep.subr.mxu0 0.0
    %v9387 = vand.u32 %v6884, 4294901760
    %v9388 = vsub.f32 %v6884, %v9387
    %v9389 = vand.u32 %v9388, 4294901760
    %9390 = vmatpush1.msra.mxu0 %v9389
    %v9391 = vand.u32 %v6786, 4294901760
    %9392 = vmatprep.mubr.f32.mxu0 %v9391
    %v9393 = vand.u32 %v6785, 4294901760
    %9394 = vmatmul.mubr.f32.gmra.mrb[0].mxu0 %v9393
    %v9395 = vpop.f32.mrb[0].mxu0
    %v9396 = vadd.f32 %v9228, %v9395
    %v9397 = vpop.f32.mrb[0].mxu0
    %9398 = vdwg.mxu0
    %9399 = vmatprep.subr.mxu0 0.0
    %v9400 = vand.u32 %v6853, 4294901760
    %9401 = vmatpush1.msra.mxu0 %v9400
    %9402 = vmatprep.subr.mxu0 0.0
    %v9403 = vand.u32 %v6854, 4294901760
    %9404 = vmatpush1.msra.mxu0 %v9403
    %9405 = vmatprep.subr.mxu0 0.0
    %v9406 = vand.u32 %v6855, 4294901760
    %9407 = vmatpush1.msra.mxu0 %v9406
    %9408 = vmatprep.subr.mxu0 0.0
    %v9409 = vand.u32 %v6856, 4294901760
    %9410 = vmatpush1.msra.mxu0 %v9409
    %9411 = vmatprep.subr.mxu0 0.0
    %v9412 = vand.u32 %v6857, 4294901760
    %9413 = vmatpush1.msra.mxu0 %v9412
    %9414 = vmatprep.subr.mxu0 0.0
    %v9415 = vand.u32 %v6858, 4294901760
    %9416 = vmatpush1.msra.mxu0 %v9415
    %9417 = vmatprep.subr.mxu0 0.0
    %v9418 = vand.u32 %v6859, 4294901760
    %9419 = vmatpush1.msra.mxu0 %v9418
    %9420 = vmatprep.subr.mxu0 0.0
    %v9421 = vand.u32 %v6860, 4294901760
    %9422 = vmatpush1.msra.mxu0 %v9421
    %9423 = vmatprep.subr.mxu0 0.0
    %v9424 = vand.u32 %v6861, 4294901760
    %9425 = vmatpush1.msra.mxu0 %v9424
    %9426 = vmatprep.subr.mxu0 0.0
    %v9427 = vand.u32 %v6862, 4294901760
    %9428 = vmatpush1.msra.mxu0 %v9427
    %9429 = vmatprep.subr.mxu0 0.0
    %v9430 = vand.u32 %v6863, 4294901760
    %9431 = vmatpush1.msra.mxu0 %v9430
    %9432 = vmatprep.subr.mxu0 0.0
    %v9433 = vand.u32 %v6864, 4294901760
    %9434 = vmatpush1.msra.mxu0 %v9433
    %9435 = vmatprep.subr.mxu0 0.0
    %v9436 = vand.u32 %v6865, 4294901760
    %9437 = vmatpush1.msra.mxu0 %v9436
    %9438 = vmatprep.subr.mxu0 0.0
    %v9439 = vand.u32 %v6866, 4294901760
    %9440 = vmatpush1.msra.mxu0 %v9439
    %9441 = vmatprep.subr.mxu0 0.0
    %v9442 = vand.u32 %v6867, 4294901760
    %9443 = vmatpush1.msra.mxu0 %v9442
    %9444 = vmatprep.subr.mxu0 0.0
    %v9445 = vand.u32 %v6868, 4294901760
    %9446 = vmatpush1.msra.mxu0 %v9445
    %9447 = vmatprep.subr.mxu0 0.0
    %v9448 = vand.u32 %v6869, 4294901760
    %9449 = vmatpush1.msra.mxu0 %v9448
    %9450 = vmatprep.subr.mxu0 0.0
    %v9451 = vand.u32 %v6870, 4294901760
    %9452 = vmatpush1.msra.mxu0 %v9451
    %9453 = vmatprep.subr.mxu0 0.0
    %v9454 = vand.u32 %v6871, 4294901760
    %9455 = vmatpush1.msra.mxu0 %v9454
    %9456 = vmatprep.subr.mxu0 0.0
    %v9457 = vand.u32 %v6872, 4294901760
    %9458 = vmatpush1.msra.mxu0 %v9457
    %9459 = vmatprep.subr.mxu0 0.0
    %v9460 = vand.u32 %v6873, 4294901760
    %9461 = vmatpush1.msra.mxu0 %v9460
    %9462 = vmatprep.subr.mxu0 0.0
    %v9463 = vand.u32 %v6874, 4294901760
    %9464 = vmatpush1.msra.mxu0 %v9463
    %9465 = vmatprep.subr.mxu0 0.0
    %v9466 = vand.u32 %v6875, 4294901760
    %9467 = vmatpush1.msra.mxu0 %v9466
    %9468 = vmatprep.subr.mxu0 0.0
    %v9469 = vand.u32 %v6876, 4294901760
    %9470 = vmatpush1.msra.mxu0 %v9469
    %9471 = vmatprep.subr.mxu0 0.0
    %v9472 = vand.u32 %v6877, 4294901760
    %9473 = vmatpush1.msra.mxu0 %v9472
    %9474 = vmatprep.subr.mxu0 0.0
    %v9475 = vand.u32 %v6878, 4294901760
    %9476 = vmatpush1.msra.mxu0 %v9475
    %9477 = vmatprep.subr.mxu0 0.0
    %v9478 = vand.u32 %v6879, 4294901760
    %9479 = vmatpush1.msra.mxu0 %v9478
    %9480 = vmatprep.subr.mxu0 0.0
    %v9481 = vand.u32 %v6880, 4294901760
    %9482 = vmatpush1.msra.mxu0 %v9481
    %9483 = vmatprep.subr.mxu0 0.0
    %v9484 = vand.u32 %v6881, 4294901760
    %9485 = vmatpush1.msra.mxu0 %v9484
    %9486 = vmatprep.subr.mxu0 0.0
    %v9487 = vand.u32 %v6882, 4294901760
    %9488 = vmatpush1.msra.mxu0 %v9487
    %9489 = vmatprep.subr.mxu0 0.0
    %v9490 = vand.u32 %v6883, 4294901760
    %9491 = vmatpush1.msra.mxu0 %v9490
    %9492 = vmatprep.subr.mxu0 0.0
    %v9493 = vand.u32 %v6884, 4294901760
    %9494 = vmatpush1.msra.mxu0 %v9493
    %v9495 = vand.u32 %v6786, 4294901760
    %9496 = vmatprep.mubr.f32.mxu0 %v9495
    %v9497 = vand.u32 %v6785, 4294901760
    %9498 = vmatmul.mubr.f32.gmra.mrb[0].mxu0 %v9497
    %v9499 = vpop.f32.mrb[0].mxu0
    %v9500 = vadd.f32 %v9396, %v9499
    %v9501 = vpop.f32.mrb[0].mxu0
    %9502 = vdwg.mxu0
    %9503 = vmatprep.subr.mxu0 0.0
    %v9504 = vand.u32 %v6885, 4294901760
    %9505 = vmatpush1.msra.mxu0 %v9504
    %9506 = vmatprep.subr.mxu0 0.0
    %v9507 = vand.u32 %v6886, 4294901760
    %9508 = vmatpush1.msra.mxu0 %v9507
    %9509 = vmatprep.subr.mxu0 0.0
    %v9510 = vand.u32 %v6887, 4294901760
    %9511 = vmatpush1.msra.mxu0 %v9510
    %9512 = vmatprep.subr.mxu0 0.0
    %v9513 = vand.u32 %v6888, 4294901760
    %9514 = vmatpush1.msra.mxu0 %v9513
    %9515 = vmatprep.subr.mxu0 0.0
    %v9516 = vand.u32 %v6889, 4294901760
    %9517 = vmatpush1.msra.mxu0 %v9516
    %9518 = vmatprep.subr.mxu0 0.0
    %v9519 = vand.u32 %v6890, 4294901760
    %9520 = vmatpush1.msra.mxu0 %v9519
    %9521 = vmatprep.subr.mxu0 0.0
    %v9522 = vand.u32 %v6891, 4294901760
    %9523 = vmatpush1.msra.mxu0 %v9522
    %9524 = vmatprep.subr.mxu0 0.0
    %v9525 = vand.u32 %v6892, 4294901760
    %9526 = vmatpush1.msra.mxu0 %v9525
    %9527 = vmatprep.subr.mxu0 0.0
    %v9528 = vand.u32 %v6893, 4294901760
    %9529 = vmatpush1.msra.mxu0 %v9528
    %9530 = vmatprep.subr.mxu0 0.0
    %v9531 = vand.u32 %v6894, 4294901760
    %9532 = vmatpush1.msra.mxu0 %v9531
    %9533 = vmatprep.subr.mxu0 0.0
    %v9534 = vand.u32 %v6895, 4294901760
    %9535 = vmatpush1.msra.mxu0 %v9534
    %9536 = vmatprep.subr.mxu0 0.0
    %v9537 = vand.u32 %v6896, 4294901760
    %9538 = vmatpush1.msra.mxu0 %v9537
    %9539 = vmatprep.subr.mxu0 0.0
    %v9540 = vand.u32 %v6897, 4294901760
    %9541 = vmatpush1.msra.mxu0 %v9540
    %9542 = vmatprep.subr.mxu0 0.0
    %v9543 = vand.u32 %v6898, 4294901760
    %9544 = vmatpush1.msra.mxu0 %v9543
    %9545 = vmatprep.subr.mxu0 0.0
    %v9546 = vand.u32 %v6899, 4294901760
    %9547 = vmatpush1.msra.mxu0 %v9546
    %9548 = vmatprep.subr.mxu0 0.0
    %v9549 = vand.u32 %v6900, 4294901760
    %9550 = vmatpush1.msra.mxu0 %v9549
    %9551 = vmatprep.subr.mxu0 0.0
    %v9552 = vand.u32 %v6901, 4294901760
    %9553 = vmatpush1.msra.mxu0 %v9552
    %9554 = vmatprep.subr.mxu0 0.0
    %v9555 = vand.u32 %v6902, 4294901760
    %9556 = vmatpush1.msra.mxu0 %v9555
    %9557 = vmatprep.subr.mxu0 0.0
    %v9558 = vand.u32 %v6903, 4294901760
    %9559 = vmatpush1.msra.mxu0 %v9558
    %9560 = vmatprep.subr.mxu0 0.0
    %v9561 = vand.u32 %v6904, 4294901760
    %9562 = vmatpush1.msra.mxu0 %v9561
    %9563 = vmatprep.subr.mxu0 0.0
    %v9564 = vand.u32 %v6905, 4294901760
    %9565 = vmatpush1.msra.mxu0 %v9564
    %9566 = vmatprep.subr.mxu0 0.0
    %v9567 = vand.u32 %v6906, 4294901760
    %9568 = vmatpush1.msra.mxu0 %v9567
    %9569 = vmatprep.subr.mxu0 0.0
    %v9570 = vand.u32 %v6907, 4294901760
    %9571 = vmatpush1.msra.mxu0 %v9570
    %9572 = vmatprep.subr.mxu0 0.0
    %v9573 = vand.u32 %v6908, 4294901760
    %9574 = vmatpush1.msra.mxu0 %v9573
    %9575 = vmatprep.subr.mxu0 0.0
    %v9576 = vand.u32 %v6909, 4294901760
    %9577 = vmatpush1.msra.mxu0 %v9576
    %9578 = vmatprep.subr.mxu0 0.0
    %v9579 = vand.u32 %v6910, 4294901760
    %9580 = vmatpush1.msra.mxu0 %v9579
    %9581 = vmatprep.subr.mxu0 0.0
    %v9582 = vand.u32 %v6911, 4294901760
    %9583 = vmatpush1.msra.mxu0 %v9582
    %9584 = vmatprep.subr.mxu0 0.0
    %v9585 = vand.u32 %v6912, 4294901760
    %9586 = vmatpush1.msra.mxu0 %v9585
    %9587 = vmatprep.subr.mxu0 0.0
    %v9588 = vand.u32 %v6913, 4294901760
    %9589 = vmatpush1.msra.mxu0 %v9588
    %9590 = vmatprep.subr.mxu0 0.0
    %v9591 = vand.u32 %v6914, 4294901760
    %9592 = vmatpush1.msra.mxu0 %v9591
    %9593 = vmatprep.subr.mxu0 0.0
    %v9594 = vand.u32 %v6915, 4294901760
    %9595 = vmatpush1.msra.mxu0 %v9594
    %9596 = vmatprep.subr.mxu0 0.0
    %v9597 = vand.u32 %v6916, 4294901760
    %9598 = vmatpush1.msra.mxu0 %v9597
    %v9599 = vand.u32 %v6788, 4294901760
    %v9600 = vsub.f32 %v6788, %v9599
    %v9601 = vand.u32 %v9600, 4294901760
    %v9602 = vsub.f32 %v9600, %v9601
    %v9603 = vand.u32 %v9602, 4294901760
    %9604 = vmatprep.mubr.f32.mxu0 %v9603
    %v9605 = vand.u32 %v6787, 4294901760
    %v9606 = vsub.f32 %v6787, %v9605
    %v9607 = vand.u32 %v9606, 4294901760
    %v9608 = vsub.f32 %v9606, %v9607
    %v9609 = vand.u32 %v9608, 4294901760
    %9610 = vmatmul.mubr.f32.gmra.mrb[0].mxu0 %v9609
    %v9611 = vpop.f32.mrb[0].mxu0
    %v9612 = vadd.f32 %v9500, %v9611
    %v9613 = vpop.f32.mrb[0].mxu0
    %9614 = vdwg.mxu0
    %9615 = vmatprep.subr.mxu0 0.0
    %v9616 = vand.u32 %v6885, 4294901760
    %v9617 = vsub.f32 %v6885, %v9616
    %v9618 = vand.u32 %v9617, 4294901760
    %v9619 = vsub.f32 %v9617, %v9618
    %v9620 = vand.u32 %v9619, 4294901760
    %9621 = vmatpush1.msra.mxu0 %v9620
    %9622 = vmatprep.subr.mxu0 0.0
    %v9623 = vand.u32 %v6886, 4294901760
    %v9624 = vsub.f32 %v6886, %v9623
    %v9625 = vand.u32 %v9624, 4294901760
    %v9626 = vsub.f32 %v9624, %v9625
    %v9627 = vand.u32 %v9626, 4294901760
    %9628 = vmatpush1.msra.mxu0 %v9627
    %9629 = vmatprep.subr.mxu0 0.0
    %v9630 = vand.u32 %v6887, 4294901760
    %v9631 = vsub.f32 %v6887, %v9630
    %v9632 = vand.u32 %v9631, 4294901760
    %v9633 = vsub.f32 %v9631, %v9632
    %v9634 = vand.u32 %v9633, 4294901760
    %9635 = vmatpush1.msra.mxu0 %v9634
    %9636 = vmatprep.subr.mxu0 0.0
    %v9637 = vand.u32 %v6888, 4294901760
    %v9638 = vsub.f32 %v6888, %v9637
    %v9639 = vand.u32 %v9638, 4294901760
    %v9640 = vsub.f32 %v9638, %v9639
    %v9641 = vand.u32 %v9640, 4294901760
    %9642 = vmatpush1.msra.mxu0 %v9641
    %9643 = vmatprep.subr.mxu0 0.0
    %v9644 = vand.u32 %v6889, 4294901760
    %v9645 = vsub.f32 %v6889, %v9644
    %v9646 = vand.u32 %v9645, 4294901760
    %v9647 = vsub.f32 %v9645, %v9646
    %v9648 = vand.u32 %v9647, 4294901760
    %9649 = vmatpush1.msra.mxu0 %v9648
    %9650 = vmatprep.subr.mxu0 0.0
    %v9651 = vand.u32 %v6890, 4294901760
    %v9652 = vsub.f32 %v6890, %v9651
    %v9653 = vand.u32 %v9652, 4294901760
    %v9654 = vsub.f32 %v9652, %v9653
    %v9655 = vand.u32 %v9654, 4294901760
    %9656 = vmatpush1.msra.mxu0 %v9655
    %9657 = vmatprep.subr.mxu0 0.0
    %v9658 = vand.u32 %v6891, 4294901760
    %v9659 = vsub.f32 %v6891, %v9658
    %v9660 = vand.u32 %v9659, 4294901760
    %v9661 = vsub.f32 %v9659, %v9660
    %v9662 = vand.u32 %v9661, 4294901760
    %9663 = vmatpush1.msra.mxu0 %v9662
    %9664 = vmatprep.subr.mxu0 0.0
    %v9665 = vand.u32 %v6892, 4294901760
    %v9666 = vsub.f32 %v6892, %v9665
    %v9667 = vand.u32 %v9666, 4294901760
    %v9668 = vsub.f32 %v9666, %v9667
    %v9669 = vand.u32 %v9668, 4294901760
    %9670 = vmatpush1.msra.mxu0 %v9669
    %9671 = vmatprep.subr.mxu0 0.0
    %v9672 = vand.u32 %v6893, 4294901760
    %v9673 = vsub.f32 %v6893, %v9672
    %v9674 = vand.u32 %v9673, 4294901760
    %v9675 = vsub.f32 %v9673, %v9674
    %v9676 = vand.u32 %v9675, 4294901760
    %9677 = vmatpush1.msra.mxu0 %v9676
    %9678 = vmatprep.subr.mxu0 0.0
    %v9679 = vand.u32 %v6894, 4294901760
    %v9680 = vsub.f32 %v6894, %v9679
    %v9681 = vand.u32 %v9680, 4294901760
    %v9682 = vsub.f32 %v9680, %v9681
    %v9683 = vand.u32 %v9682, 4294901760
    %9684 = vmatpush1.msra.mxu0 %v9683
    %9685 = vmatprep.subr.mxu0 0.0
    %v9686 = vand.u32 %v6895, 4294901760
    %v9687 = vsub.f32 %v6895, %v9686
    %v9688 = vand.u32 %v9687, 4294901760
    %v9689 = vsub.f32 %v9687, %v9688
    %v9690 = vand.u32 %v9689, 4294901760
    %9691 = vmatpush1.msra.mxu0 %v9690
    %9692 = vmatprep.subr.mxu0 0.0
    %v9693 = vand.u32 %v6896, 4294901760
    %v9694 = vsub.f32 %v6896, %v9693
    %v9695 = vand.u32 %v9694, 4294901760
    %v9696 = vsub.f32 %v9694, %v9695
    %v9697 = vand.u32 %v9696, 4294901760
    %9698 = vmatpush1.msra.mxu0 %v9697
    %9699 = vmatprep.subr.mxu0 0.0
    %v9700 = vand.u32 %v6897, 4294901760
    %v9701 = vsub.f32 %v6897, %v9700
    %v9702 = vand.u32 %v9701, 4294901760
    %v9703 = vsub.f32 %v9701, %v9702
    %v9704 = vand.u32 %v9703, 4294901760
    %9705 = vmatpush1.msra.mxu0 %v9704
    %9706 = vmatprep.subr.mxu0 0.0
    %v9707 = vand.u32 %v6898, 4294901760
    %v9708 = vsub.f32 %v6898, %v9707
    %v9709 = vand.u32 %v9708, 4294901760
    %v9710 = vsub.f32 %v9708, %v9709
    %v9711 = vand.u32 %v9710, 4294901760
    %9712 = vmatpush1.msra.mxu0 %v9711
    %9713 = vmatprep.subr.mxu0 0.0
    %v9714 = vand.u32 %v6899, 4294901760
    %v9715 = vsub.f32 %v6899, %v9714
    %v9716 = vand.u32 %v9715, 4294901760
    %v9717 = vsub.f32 %v9715, %v9716
    %v9718 = vand.u32 %v9717, 4294901760
    %9719 = vmatpush1.msra.mxu0 %v9718
    %9720 = vmatprep.subr.mxu0 0.0
    %v9721 = vand.u32 %v6900, 4294901760
    %v9722 = vsub.f32 %v6900, %v9721
    %v9723 = vand.u32 %v9722, 4294901760
    %v9724 = vsub.f32 %v9722, %v9723
    %v9725 = vand.u32 %v9724, 4294901760
    %9726 = vmatpush1.msra.mxu0 %v9725
    %9727 = vmatprep.subr.mxu0 0.0
    %v9728 = vand.u32 %v6901, 4294901760
    %v9729 = vsub.f32 %v6901, %v9728
    %v9730 = vand.u32 %v9729, 4294901760
    %v9731 = vsub.f32 %v9729, %v9730
    %v9732 = vand.u32 %v9731, 4294901760
    %9733 = vmatpush1.msra.mxu0 %v9732
    %9734 = vmatprep.subr.mxu0 0.0
    %v9735 = vand.u32 %v6902, 4294901760
    %v9736 = vsub.f32 %v6902, %v9735
    %v9737 = vand.u32 %v9736, 4294901760
    %v9738 = vsub.f32 %v9736, %v9737
    %v9739 = vand.u32 %v9738, 4294901760
    %9740 = vmatpush1.msra.mxu0 %v9739
    %9741 = vmatprep.subr.mxu0 0.0
    %v9742 = vand.u32 %v6903, 4294901760
    %v9743 = vsub.f32 %v6903, %v9742
    %v9744 = vand.u32 %v9743, 4294901760
    %v9745 = vsub.f32 %v9743, %v9744
    %v9746 = vand.u32 %v9745, 4294901760
    %9747 = vmatpush1.msra.mxu0 %v9746
    %9748 = vmatprep.subr.mxu0 0.0
    %v9749 = vand.u32 %v6904, 4294901760
    %v9750 = vsub.f32 %v6904, %v9749
    %v9751 = vand.u32 %v9750, 4294901760
    %v9752 = vsub.f32 %v9750, %v9751
    %v9753 = vand.u32 %v9752, 4294901760
    %9754 = vmatpush1.msra.mxu0 %v9753
    %9755 = vmatprep.subr.mxu0 0.0
    %v9756 = vand.u32 %v6905, 4294901760
    %v9757 = vsub.f32 %v6905, %v9756
    %v9758 = vand.u32 %v9757, 4294901760
    %v9759 = vsub.f32 %v9757, %v9758
    %v9760 = vand.u32 %v9759, 4294901760
    %9761 = vmatpush1.msra.mxu0 %v9760
    %9762 = vmatprep.subr.mxu0 0.0
    %v9763 = vand.u32 %v6906, 4294901760
    %v9764 = vsub.f32 %v6906, %v9763
    %v9765 = vand.u32 %v9764, 4294901760
    %v9766 = vsub.f32 %v9764, %v9765
    %v9767 = vand.u32 %v9766, 4294901760
    %9768 = vmatpush1.msra.mxu0 %v9767
    %9769 = vmatprep.subr.mxu0 0.0
    %v9770 = vand.u32 %v6907, 4294901760
    %v9771 = vsub.f32 %v6907, %v9770
    %v9772 = vand.u32 %v9771, 4294901760
    %v9773 = vsub.f32 %v9771, %v9772
    %v9774 = vand.u32 %v9773, 4294901760
    %9775 = vmatpush1.msra.mxu0 %v9774
    %9776 = vmatprep.subr.mxu0 0.0
    %v9777 = vand.u32 %v6908, 4294901760
    %v9778 = vsub.f32 %v6908, %v9777
    %v9779 = vand.u32 %v9778, 4294901760
    %v9780 = vsub.f32 %v9778, %v9779
    %v9781 = vand.u32 %v9780, 4294901760
    %9782 = vmatpush1.msra.mxu0 %v9781
    %9783 = vmatprep.subr.mxu0 0.0
    %v9784 = vand.u32 %v6909, 4294901760
    %v9785 = vsub.f32 %v6909, %v9784
    %v9786 = vand.u32 %v9785, 4294901760
    %v9787 = vsub.f32 %v9785, %v9786
    %v9788 = vand.u32 %v9787, 4294901760
    %9789 = vmatpush1.msra.mxu0 %v9788
    %9790 = vmatprep.subr.mxu0 0.0
    %v9791 = vand.u32 %v6910, 4294901760
    %v9792 = vsub.f32 %v6910, %v9791
    %v9793 = vand.u32 %v9792, 4294901760
    %v9794 = vsub.f32 %v9792, %v9793
    %v9795 = vand.u32 %v9794, 4294901760
    %9796 = vmatpush1.msra.mxu0 %v9795
    %9797 = vmatprep.subr.mxu0 0.0
    %v9798 = vand.u32 %v6911, 4294901760
    %v9799 = vsub.f32 %v6911, %v9798
    %v9800 = vand.u32 %v9799, 4294901760
    %v9801 = vsub.f32 %v9799, %v9800
    %v9802 = vand.u32 %v9801, 4294901760
    %9803 = vmatpush1.msra.mxu0 %v9802
    %9804 = vmatprep.subr.mxu0 0.0
    %v9805 = vand.u32 %v6912, 4294901760
    %v9806 = vsub.f32 %v6912, %v9805
    %v9807 = vand.u32 %v9806, 4294901760
    %v9808 = vsub.f32 %v9806, %v9807
    %v9809 = vand.u32 %v9808, 4294901760
    %9810 = vmatpush1.msra.mxu0 %v9809
    %9811 = vmatprep.subr.mxu0 0.0
    %v9812 = vand.u32 %v6913, 4294901760
    %v9813 = vsub.f32 %v6913, %v9812
    %v9814 = vand.u32 %v9813, 4294901760
    %v9815 = vsub.f32 %v9813, %v9814
    %v9816 = vand.u32 %v9815, 4294901760
    %9817 = vmatpush1.msra.mxu0 %v9816
    %9818 = vmatprep.subr.mxu0 0.0
    %v9819 = vand.u32 %v6914, 4294901760
    %v9820 = vsub.f32 %v6914, %v9819
    %v9821 = vand.u32 %v9820, 4294901760
    %v9822 = vsub.f32 %v9820, %v9821
    %v9823 = vand.u32 %v9822, 4294901760
    %9824 = vmatpush1.msra.mxu0 %v9823
    %9825 = vmatprep.subr.mxu0 0.0
    %v9826 = vand.u32 %v6915, 4294901760
    %v9827 = vsub.f32 %v6915, %v9826
    %v9828 = vand.u32 %v9827, 4294901760
    %v9829 = vsub.f32 %v9827, %v9828
    %v9830 = vand.u32 %v9829, 4294901760
    %9831 = vmatpush1.msra.mxu0 %v9830
    %9832 = vmatprep.subr.mxu0 0.0
    %v9833 = vand.u32 %v6916, 4294901760
    %v9834 = vsub.f32 %v6916, %v9833
    %v9835 = vand.u32 %v9834, 4294901760
    %v9836 = vsub.f32 %v9834, %v9835
    %v9837 = vand.u32 %v9836, 4294901760
    %9838 = vmatpush1.msra.mxu0 %v9837
    %v9839 = vand.u32 %v6788, 4294901760
    %9840 = vmatprep.mubr.f32.mxu0 %v9839
    %v9841 = vand.u32 %v6787, 4294901760
    %9842 = vmatmul.mubr.f32.gmra.mrb[0].mxu0 %v9841
    %v9843 = vpop.f32.mrb[0].mxu0
    %v9844 = vadd.f32 %v9612, %v9843
    %v9845 = vpop.f32.mrb[0].mxu0
    %9846 = vdwg.mxu0
    %9847 = vmatprep.subr.mxu0 0.0
    %v9848 = vand.u32 %v6885, 4294901760
    %v9849 = vsub.f32 %v6885, %v9848
    %9850 = vmatpush1.msra.mxu0 %v9849
    %9851 = vmatprep.subr.mxu0 0.0
    %v9852 = vand.u32 %v6886, 4294901760
    %v9853 = vsub.f32 %v6886, %v9852
    %9854 = vmatpush1.msra.mxu0 %v9853
    %9855 = vmatprep.subr.mxu0 0.0
    %v9856 = vand.u32 %v6887, 4294901760
    %v9857 = vsub.f32 %v6887, %v9856
    %9858 = vmatpush1.msra.mxu0 %v9857
    %9859 = vmatprep.subr.mxu0 0.0
    %v9860 = vand.u32 %v6888, 4294901760
    %v9861 = vsub.f32 %v6888, %v9860
    %9862 = vmatpush1.msra.mxu0 %v9861
    %9863 = vmatprep.subr.mxu0 0.0
    %v9864 = vand.u32 %v6889, 4294901760
    %v9865 = vsub.f32 %v6889, %v9864
    %9866 = vmatpush1.msra.mxu0 %v9865
    %9867 = vmatprep.subr.mxu0 0.0
    %v9868 = vand.u32 %v6890, 4294901760
    %v9869 = vsub.f32 %v6890, %v9868
    %9870 = vmatpush1.msra.mxu0 %v9869
    %9871 = vmatprep.subr.mxu0 0.0
    %v9872 = vand.u32 %v6891, 4294901760
    %v9873 = vsub.f32 %v6891, %v9872
    %9874 = vmatpush1.msra.mxu0 %v9873
    %9875 = vmatprep.subr.mxu0 0.0
    %v9876 = vand.u32 %v6892, 4294901760
    %v9877 = vsub.f32 %v6892, %v9876
    %9878 = vmatpush1.msra.mxu0 %v9877
    %9879 = vmatprep.subr.mxu0 0.0
    %v9880 = vand.u32 %v6893, 4294901760
    %v9881 = vsub.f32 %v6893, %v9880
    %9882 = vmatpush1.msra.mxu0 %v9881
    %9883 = vmatprep.subr.mxu0 0.0
    %v9884 = vand.u32 %v6894, 4294901760
    %v9885 = vsub.f32 %v6894, %v9884
    %9886 = vmatpush1.msra.mxu0 %v9885
    %9887 = vmatprep.subr.mxu0 0.0
    %v9888 = vand.u32 %v6895, 4294901760
    %v9889 = vsub.f32 %v6895, %v9888
    %9890 = vmatpush1.msra.mxu0 %v9889
    %9891 = vmatprep.subr.mxu0 0.0
    %v9892 = vand.u32 %v6896, 4294901760
    %v9893 = vsub.f32 %v6896, %v9892
    %9894 = vmatpush1.msra.mxu0 %v9893
    %9895 = vmatprep.subr.mxu0 0.0
    %v9896 = vand.u32 %v6897, 4294901760
    %v9897 = vsub.f32 %v6897, %v9896
    %9898 = vmatpush1.msra.mxu0 %v9897
    %9899 = vmatprep.subr.mxu0 0.0
    %v9900 = vand.u32 %v6898, 4294901760
    %v9901 = vsub.f32 %v6898, %v9900
    %9902 = vmatpush1.msra.mxu0 %v9901
    %9903 = vmatprep.subr.mxu0 0.0
    %v9904 = vand.u32 %v6899, 4294901760
    %v9905 = vsub.f32 %v6899, %v9904
    %9906 = vmatpush1.msra.mxu0 %v9905
    %9907 = vmatprep.subr.mxu0 0.0
    %v9908 = vand.u32 %v6900, 4294901760
    %v9909 = vsub.f32 %v6900, %v9908
    %9910 = vmatpush1.msra.mxu0 %v9909
    %9911 = vmatprep.subr.mxu0 0.0
    %v9912 = vand.u32 %v6901, 4294901760
    %v9913 = vsub.f32 %v6901, %v9912
    %9914 = vmatpush1.msra.mxu0 %v9913
    %9915 = vmatprep.subr.mxu0 0.0
    %v9916 = vand.u32 %v6902, 4294901760
    %v9917 = vsub.f32 %v6902, %v9916
    %9918 = vmatpush1.msra.mxu0 %v9917
    %9919 = vmatprep.subr.mxu0 0.0
    %v9920 = vand.u32 %v6903, 4294901760
    %v9921 = vsub.f32 %v6903, %v9920
    %9922 = vmatpush1.msra.mxu0 %v9921
    %9923 = vmatprep.subr.mxu0 0.0
    %v9924 = vand.u32 %v6904, 4294901760
    %v9925 = vsub.f32 %v6904, %v9924
    %9926 = vmatpush1.msra.mxu0 %v9925
    %9927 = vmatprep.subr.mxu0 0.0
    %v9928 = vand.u32 %v6905, 4294901760
    %v9929 = vsub.f32 %v6905, %v9928
    %9930 = vmatpush1.msra.mxu0 %v9929
    %9931 = vmatprep.subr.mxu0 0.0
    %v9932 = vand.u32 %v6906, 4294901760
    %v9933 = vsub.f32 %v6906, %v9932
    %9934 = vmatpush1.msra.mxu0 %v9933
    %9935 = vmatprep.subr.mxu0 0.0
    %v9936 = vand.u32 %v6907, 4294901760
    %v9937 = vsub.f32 %v6907, %v9936
    %9938 = vmatpush1.msra.mxu0 %v9937
    %9939 = vmatprep.subr.mxu0 0.0
    %v9940 = vand.u32 %v6908, 4294901760
    %v9941 = vsub.f32 %v6908, %v9940
    %9942 = vmatpush1.msra.mxu0 %v9941
    %9943 = vmatprep.subr.mxu0 0.0
    %v9944 = vand.u32 %v6909, 4294901760
    %v9945 = vsub.f32 %v6909, %v9944
    %9946 = vmatpush1.msra.mxu0 %v9945
    %9947 = vmatprep.subr.mxu0 0.0
    %v9948 = vand.u32 %v6910, 4294901760
    %v9949 = vsub.f32 %v6910, %v9948
    %9950 = vmatpush1.msra.mxu0 %v9949
    %9951 = vmatprep.subr.mxu0 0.0
    %v9952 = vand.u32 %v6911, 4294901760
    %v9953 = vsub.f32 %v6911, %v9952
    %9954 = vmatpush1.msra.mxu0 %v9953
    %9955 = vmatprep.subr.mxu0 0.0
    %v9956 = vand.u32 %v6912, 4294901760
    %v9957 = vsub.f32 %v6912, %v9956
    %9958 = vmatpush1.msra.mxu0 %v9957
    %9959 = vmatprep.subr.mxu0 0.0
    %v9960 = vand.u32 %v6913, 4294901760
    %v9961 = vsub.f32 %v6913, %v9960
    %9962 = vmatpush1.msra.mxu0 %v9961
    %9963 = vmatprep.subr.mxu0 0.0
    %v9964 = vand.u32 %v6914, 4294901760
    %v9965 = vsub.f32 %v6914, %v9964
    %9966 = vmatpush1.msra.mxu0 %v9965
    %9967 = vmatprep.subr.mxu0 0.0
    %v9968 = vand.u32 %v6915, 4294901760
    %v9969 = vsub.f32 %v6915, %v9968
    %9970 = vmatpush1.msra.mxu0 %v9969
    %9971 = vmatprep.subr.mxu0 0.0
    %v9972 = vand.u32 %v6916, 4294901760
    %v9973 = vsub.f32 %v6916, %v9972
    %9974 = vmatpush1.msra.mxu0 %v9973
    %v9975 = vand.u32 %v6788, 4294901760
    %v9976 = vsub.f32 %v6788, %v9975
    %9977 = vmatprep.mubr.f32.mxu0 %v9976
    %v9978 = vand.u32 %v6787, 4294901760
    %v9979 = vsub.f32 %v6787, %v9978
    %9980 = vmatmul.mubr.f32.gmra.mrb[0].mxu0 %v9979
    %v9981 = vpop.f32.mrb[0].mxu0
    %v9982 = vadd.f32 %v9844, %v9981
    %v9983 = vpop.f32.mrb[0].mxu0
    %9984 = vdwg.mxu0
    %9985 = vmatprep.subr.mxu0 0.0
    %v9986 = vand.u32 %v6885, 4294901760
    %9987 = vmatpush1.msra.mxu0 %v9986
    %9988 = vmatprep.subr.mxu0 0.0
    %v9989 = vand.u32 %v6886, 4294901760
    %9990 = vmatpush1.msra.mxu0 %v9989
    %9991 = vmatprep.subr.mxu0 0.0
    %v9992 = vand.u32 %v6887, 4294901760
    %9993 = vmatpush1.msra.mxu0 %v9992
    %9994 = vmatprep.subr.mxu0 0.0
    %v9995 = vand.u32 %v6888, 4294901760
    %9996 = vmatpush1.msra.mxu0 %v9995
    %9997 = vmatprep.subr.mxu0 0.0
    %v9998 = vand.u32 %v6889, 4294901760
    %9999 = vmatpush1.msra.mxu0 %v9998
    %10000 = vmatprep.subr.mxu0 0.0
    %v10001 = vand.u32 %v6890, 4294901760
    %10002 = vmatpush1.msra.mxu0 %v10001
    %10003 = vmatprep.subr.mxu0 0.0
    %v10004 = vand.u32 %v6891, 4294901760
    %10005 = vmatpush1.msra.mxu0 %v10004
    %10006 = vmatprep.subr.mxu0 0.0
    %v10007 = vand.u32 %v6892, 4294901760
    %10008 = vmatpush1.msra.mxu0 %v10007
    %10009 = vmatprep.subr.mxu0 0.0
    %v10010 = vand.u32 %v6893, 4294901760
    %10011 = vmatpush1.msra.mxu0 %v10010
    %10012 = vmatprep.subr.mxu0 0.0
    %v10013 = vand.u32 %v6894, 4294901760
    %10014 = vmatpush1.msra.mxu0 %v10013
    %10015 = vmatprep.subr.mxu0 0.0
    %v10016 = vand.u32 %v6895, 4294901760
    %10017 = vmatpush1.msra.mxu0 %v10016
    %10018 = vmatprep.subr.mxu0 0.0
    %v10019 = vand.u32 %v6896, 4294901760
    %10020 = vmatpush1.msra.mxu0 %v10019
    %10021 = vmatprep.subr.mxu0 0.0
    %v10022 = vand.u32 %v6897, 4294901760
    %10023 = vmatpush1.msra.mxu0 %v10022
    %10024 = vmatprep.subr.mxu0 0.0
    %v10025 = vand.u32 %v6898, 4294901760
    %10026 = vmatpush1.msra.mxu0 %v10025
    %10027 = vmatprep.subr.mxu0 0.0
    %v10028 = vand.u32 %v6899, 4294901760
    %10029 = vmatpush1.msra.mxu0 %v10028
    %10030 = vmatprep.subr.mxu0 0.0
    %v10031 = vand.u32 %v6900, 4294901760
    %10032 = vmatpush1.msra.mxu0 %v10031
    %10033 = vmatprep.subr.mxu0 0.0
    %v10034 = vand.u32 %v6901, 4294901760
    %10035 = vmatpush1.msra.mxu0 %v10034
    %10036 = vmatprep.subr.mxu0 0.0
    %v10037 = vand.u32 %v6902, 4294901760
    %10038 = vmatpush1.msra.mxu0 %v10037
    %10039 = vmatprep.subr.mxu0 0.0
    %v10040 = vand.u32 %v6903, 4294901760
    %10041 = vmatpush1.msra.mxu0 %v10040
    %10042 = vmatprep.subr.mxu0 0.0
    %v10043 = vand.u32 %v6904, 4294901760
    %10044 = vmatpush1.msra.mxu0 %v10043
    %10045 = vmatprep.subr.mxu0 0.0
    %v10046 = vand.u32 %v6905, 4294901760
    %10047 = vmatpush1.msra.mxu0 %v10046
    %10048 = vmatprep.subr.mxu0 0.0
    %v10049 = vand.u32 %v6906, 4294901760
    %10050 = vmatpush1.msra.mxu0 %v10049
    %10051 = vmatprep.subr.mxu0 0.0
    %v10052 = vand.u32 %v6907, 4294901760
    %10053 = vmatpush1.msra.mxu0 %v10052
    %10054 = vmatprep.subr.mxu0 0.0
    %v10055 = vand.u32 %v6908, 4294901760
    %10056 = vmatpush1.msra.mxu0 %v10055
    %10057 = vmatprep.subr.mxu0 0.0
    %v10058 = vand.u32 %v6909, 4294901760
    %10059 = vmatpush1.msra.mxu0 %v10058
    %10060 = vmatprep.subr.mxu0 0.0
    %v10061 = vand.u32 %v6910, 4294901760
    %10062 = vmatpush1.msra.mxu0 %v10061
    %10063 = vmatprep.subr.mxu0 0.0
    %v10064 = vand.u32 %v6911, 4294901760
    %10065 = vmatpush1.msra.mxu0 %v10064
    %10066 = vmatprep.subr.mxu0 0.0
    %v10067 = vand.u32 %v6912, 4294901760
    %10068 = vmatpush1.msra.mxu0 %v10067
    %10069 = vmatprep.subr.mxu0 0.0
    %v10070 = vand.u32 %v6913, 4294901760
    %10071 = vmatpush1.msra.mxu0 %v10070
    %10072 = vmatprep.subr.mxu0 0.0
    %v10073 = vand.u32 %v6914, 4294901760
    %10074 = vmatpush1.msra.mxu0 %v10073
    %10075 = vmatprep.subr.mxu0 0.0
    %v10076 = vand.u32 %v6915, 4294901760
    %10077 = vmatpush1.msra.mxu0 %v10076
    %10078 = vmatprep.subr.mxu0 0.0
    %v10079 = vand.u32 %v6916, 4294901760
    %10080 = vmatpush1.msra.mxu0 %v10079
    %v10081 = vand.u32 %v6788, 4294901760
    %v10082 = vsub.f32 %v6788, %v10081
    %v10083 = vand.u32 %v10082, 4294901760
    %10084 = vmatprep.mubr.f32.mxu0 %v10083
    %v10085 = vand.u32 %v6787, 4294901760
    %v10086 = vsub.f32 %v6787, %v10085
    %v10087 = vand.u32 %v10086, 4294901760
    %10088 = vmatmul.mubr.f32.gmra.mrb[0].mxu0 %v10087
    %v10089 = vpop.f32.mrb[0].mxu0
    %v10090 = vadd.f32 %v9982, %v10089
    %v10091 = vpop.f32.mrb[0].mxu0
    %10092 = vdwg.mxu0
    %10093 = vmatprep.subr.mxu0 0.0
    %v10094 = vand.u32 %v6885, 4294901760
    %v10095 = vsub.f32 %v6885, %v10094
    %v10096 = vand.u32 %v10095, 4294901760
    %10097 = vmatpush1.msra.mxu0 %v10096
    %10098 = vmatprep.subr.mxu0 0.0
    %v10099 = vand.u32 %v6886, 4294901760
    %v10100 = vsub.f32 %v6886, %v10099
    %v10101 = vand.u32 %v10100, 4294901760
    %10102 = vmatpush1.msra.mxu0 %v10101
    %10103 = vmatprep.subr.mxu0 0.0
    %v10104 = vand.u32 %v6887, 4294901760
    %v10105 = vsub.f32 %v6887, %v10104
    %v10106 = vand.u32 %v10105, 4294901760
    %10107 = vmatpush1.msra.mxu0 %v10106
    %10108 = vmatprep.subr.mxu0 0.0
    %v10109 = vand.u32 %v6888, 4294901760
    %v10110 = vsub.f32 %v6888, %v10109
    %v10111 = vand.u32 %v10110, 4294901760
    %10112 = vmatpush1.msra.mxu0 %v10111
    %10113 = vmatprep.subr.mxu0 0.0
    %v10114 = vand.u32 %v6889, 4294901760
    %v10115 = vsub.f32 %v6889, %v10114
    %v10116 = vand.u32 %v10115, 4294901760
    %10117 = vmatpush1.msra.mxu0 %v10116
    %10118 = vmatprep.subr.mxu0 0.0
    %v10119 = vand.u32 %v6890, 4294901760
    %v10120 = vsub.f32 %v6890, %v10119
    %v10121 = vand.u32 %v10120, 4294901760
    %10122 = vmatpush1.msra.mxu0 %v10121
    %10123 = vmatprep.subr.mxu0 0.0
    %v10124 = vand.u32 %v6891, 4294901760
    %v10125 = vsub.f32 %v6891, %v10124
    %v10126 = vand.u32 %v10125, 4294901760
    %10127 = vmatpush1.msra.mxu0 %v10126
    %10128 = vmatprep.subr.mxu0 0.0
    %v10129 = vand.u32 %v6892, 4294901760
    %v10130 = vsub.f32 %v6892, %v10129
    %v10131 = vand.u32 %v10130, 4294901760
    %10132 = vmatpush1.msra.mxu0 %v10131
    %10133 = vmatprep.subr.mxu0 0.0
    %v10134 = vand.u32 %v6893, 4294901760
    %v10135 = vsub.f32 %v6893, %v10134
    %v10136 = vand.u32 %v10135, 4294901760
    %10137 = vmatpush1.msra.mxu0 %v10136
    %10138 = vmatprep.subr.mxu0 0.0
    %v10139 = vand.u32 %v6894, 4294901760
    %v10140 = vsub.f32 %v6894, %v10139
    %v10141 = vand.u32 %v10140, 4294901760
    %10142 = vmatpush1.msra.mxu0 %v10141
    %10143 = vmatprep.subr.mxu0 0.0
    %v10144 = vand.u32 %v6895, 4294901760
    %v10145 = vsub.f32 %v6895, %v10144
    %v10146 = vand.u32 %v10145, 4294901760
    %10147 = vmatpush1.msra.mxu0 %v10146
    %10148 = vmatprep.subr.mxu0 0.0
    %v10149 = vand.u32 %v6896, 4294901760
    %v10150 = vsub.f32 %v6896, %v10149
    %v10151 = vand.u32 %v10150, 4294901760
    %10152 = vmatpush1.msra.mxu0 %v10151
    %10153 = vmatprep.subr.mxu0 0.0
    %v10154 = vand.u32 %v6897, 4294901760
    %v10155 = vsub.f32 %v6897, %v10154
    %v10156 = vand.u32 %v10155, 4294901760
    %10157 = vmatpush1.msra.mxu0 %v10156
    %10158 = vmatprep.subr.mxu0 0.0
    %v10159 = vand.u32 %v6898, 4294901760
    %v10160 = vsub.f32 %v6898, %v10159
    %v10161 = vand.u32 %v10160, 4294901760
    %10162 = vmatpush1.msra.mxu0 %v10161
    %10163 = vmatprep.subr.mxu0 0.0
    %v10164 = vand.u32 %v6899, 4294901760
    %v10165 = vsub.f32 %v6899, %v10164
    %v10166 = vand.u32 %v10165, 4294901760
    %10167 = vmatpush1.msra.mxu0 %v10166
    %10168 = vmatprep.subr.mxu0 0.0
    %v10169 = vand.u32 %v6900, 4294901760
    %v10170 = vsub.f32 %v6900, %v10169
    %v10171 = vand.u32 %v10170, 4294901760
    %10172 = vmatpush1.msra.mxu0 %v10171
    %10173 = vmatprep.subr.mxu0 0.0
    %v10174 = vand.u32 %v6901, 4294901760
    %v10175 = vsub.f32 %v6901, %v10174
    %v10176 = vand.u32 %v10175, 4294901760
    %10177 = vmatpush1.msra.mxu0 %v10176
    %10178 = vmatprep.subr.mxu0 0.0
    %v10179 = vand.u32 %v6902, 4294901760
    %v10180 = vsub.f32 %v6902, %v10179
    %v10181 = vand.u32 %v10180, 4294901760
    %10182 = vmatpush1.msra.mxu0 %v10181
    %10183 = vmatprep.subr.mxu0 0.0
    %v10184 = vand.u32 %v6903, 4294901760
    %v10185 = vsub.f32 %v6903, %v10184
    %v10186 = vand.u32 %v10185, 4294901760
    %10187 = vmatpush1.msra.mxu0 %v10186
    %10188 = vmatprep.subr.mxu0 0.0
    %v10189 = vand.u32 %v6904, 4294901760
    %v10190 = vsub.f32 %v6904, %v10189
    %v10191 = vand.u32 %v10190, 4294901760
    %10192 = vmatpush1.msra.mxu0 %v10191
    %10193 = vmatprep.subr.mxu0 0.0
    %v10194 = vand.u32 %v6905, 4294901760
    %v10195 = vsub.f32 %v6905, %v10194
    %v10196 = vand.u32 %v10195, 4294901760
    %10197 = vmatpush1.msra.mxu0 %v10196
    %10198 = vmatprep.subr.mxu0 0.0
    %v10199 = vand.u32 %v6906, 4294901760
    %v10200 = vsub.f32 %v6906, %v10199
    %v10201 = vand.u32 %v10200, 4294901760
    %10202 = vmatpush1.msra.mxu0 %v10201
    %10203 = vmatprep.subr.mxu0 0.0
    %v10204 = vand.u32 %v6907, 4294901760
    %v10205 = vsub.f32 %v6907, %v10204
    %v10206 = vand.u32 %v10205, 4294901760
    %10207 = vmatpush1.msra.mxu0 %v10206
    %10208 = vmatprep.subr.mxu0 0.0
    %v10209 = vand.u32 %v6908, 4294901760
    %v10210 = vsub.f32 %v6908, %v10209
    %v10211 = vand.u32 %v10210, 4294901760
    %10212 = vmatpush1.msra.mxu0 %v10211
    %10213 = vmatprep.subr.mxu0 0.0
    %v10214 = vand.u32 %v6909, 4294901760
    %v10215 = vsub.f32 %v6909, %v10214
    %v10216 = vand.u32 %v10215, 4294901760
    %10217 = vmatpush1.msra.mxu0 %v10216
    %10218 = vmatprep.subr.mxu0 0.0
    %v10219 = vand.u32 %v6910, 4294901760
    %v10220 = vsub.f32 %v6910, %v10219
    %v10221 = vand.u32 %v10220, 4294901760
    %10222 = vmatpush1.msra.mxu0 %v10221
    %10223 = vmatprep.subr.mxu0 0.0
    %v10224 = vand.u32 %v6911, 4294901760
    %v10225 = vsub.f32 %v6911, %v10224
    %v10226 = vand.u32 %v10225, 4294901760
    %10227 = vmatpush1.msra.mxu0 %v10226
    %10228 = vmatprep.subr.mxu0 0.0
    %v10229 = vand.u32 %v6912, 4294901760
    %v10230 = vsub.f32 %v6912, %v10229
    %v10231 = vand.u32 %v10230, 4294901760
    %10232 = vmatpush1.msra.mxu0 %v10231
    %10233 = vmatprep.subr.mxu0 0.0
    %v10234 = vand.u32 %v6913, 4294901760
    %v10235 = vsub.f32 %v6913, %v10234
    %v10236 = vand.u32 %v10235, 4294901760
    %10237 = vmatpush1.msra.mxu0 %v10236
    %10238 = vmatprep.subr.mxu0 0.0
    %v10239 = vand.u32 %v6914, 4294901760
    %v10240 = vsub.f32 %v6914, %v10239
    %v10241 = vand.u32 %v10240, 4294901760
    %10242 = vmatpush1.msra.mxu0 %v10241
    %10243 = vmatprep.subr.mxu0 0.0
    %v10244 = vand.u32 %v6915, 4294901760
    %v10245 = vsub.f32 %v6915, %v10244
    %v10246 = vand.u32 %v10245, 4294901760
    %10247 = vmatpush1.msra.mxu0 %v10246
    %10248 = vmatprep.subr.mxu0 0.0
    %v10249 = vand.u32 %v6916, 4294901760
    %v10250 = vsub.f32 %v6916, %v10249
    %v10251 = vand.u32 %v10250, 4294901760
    %10252 = vmatpush1.msra.mxu0 %v10251
    %v10253 = vand.u32 %v6788, 4294901760
    %10254 = vmatprep.mubr.f32.mxu0 %v10253
    %v10255 = vand.u32 %v6787, 4294901760
    %10256 = vmatmul.mubr.f32.gmra.mrb[0].mxu0 %v10255
    %v10257 = vpop.f32.mrb[0].mxu0
    %v10258 = vadd.f32 %v10090, %v10257
    %v10259 = vpop.f32.mrb[0].mxu0
    %10260 = vdwg.mxu0
    %10261 = vmatprep.subr.mxu0 0.0
    %v10262 = vand.u32 %v6885, 4294901760
    %10263 = vmatpush1.msra.mxu0 %v10262
    %10264 = vmatprep.subr.mxu0 0.0
    %v10265 = vand.u32 %v6886, 4294901760
    %10266 = vmatpush1.msra.mxu0 %v10265
    %10267 = vmatprep.subr.mxu0 0.0
    %v10268 = vand.u32 %v6887, 4294901760
    %10269 = vmatpush1.msra.mxu0 %v10268
    %10270 = vmatprep.subr.mxu0 0.0
    %v10271 = vand.u32 %v6888, 4294901760
    %10272 = vmatpush1.msra.mxu0 %v10271
    %10273 = vmatprep.subr.mxu0 0.0
    %v10274 = vand.u32 %v6889, 4294901760
    %10275 = vmatpush1.msra.mxu0 %v10274
    %10276 = vmatprep.subr.mxu0 0.0
    %v10277 = vand.u32 %v6890, 4294901760
    %10278 = vmatpush1.msra.mxu0 %v10277
    %10279 = vmatprep.subr.mxu0 0.0
    %v10280 = vand.u32 %v6891, 4294901760
    %10281 = vmatpush1.msra.mxu0 %v10280
    %10282 = vmatprep.subr.mxu0 0.0
    %v10283 = vand.u32 %v6892, 4294901760
    %10284 = vmatpush1.msra.mxu0 %v10283
    %10285 = vmatprep.subr.mxu0 0.0
    %v10286 = vand.u32 %v6893, 4294901760
    %10287 = vmatpush1.msra.mxu0 %v10286
    %10288 = vmatprep.subr.mxu0 0.0
    %v10289 = vand.u32 %v6894, 4294901760
    %10290 = vmatpush1.msra.mxu0 %v10289
    %10291 = vmatprep.subr.mxu0 0.0
    %v10292 = vand.u32 %v6895, 4294901760
    %10293 = vmatpush1.msra.mxu0 %v10292
    %10294 = vmatprep.subr.mxu0 0.0
    %v10295 = vand.u32 %v6896, 4294901760
    %10296 = vmatpush1.msra.mxu0 %v10295
    %10297 = vmatprep.subr.mxu0 0.0
    %v10298 = vand.u32 %v6897, 4294901760
    %10299 = vmatpush1.msra.mxu0 %v10298
    %10300 = vmatprep.subr.mxu0 0.0
    %v10301 = vand.u32 %v6898, 4294901760
    %10302 = vmatpush1.msra.mxu0 %v10301
    %10303 = vmatprep.subr.mxu0 0.0
    %v10304 = vand.u32 %v6899, 4294901760
    %10305 = vmatpush1.msra.mxu0 %v10304
    %10306 = vmatprep.subr.mxu0 0.0
    %v10307 = vand.u32 %v6900, 4294901760
    %10308 = vmatpush1.msra.mxu0 %v10307
    %10309 = vmatprep.subr.mxu0 0.0
    %v10310 = vand.u32 %v6901, 4294901760
    %10311 = vmatpush1.msra.mxu0 %v10310
    %10312 = vmatprep.subr.mxu0 0.0
    %v10313 = vand.u32 %v6902, 4294901760
    %10314 = vmatpush1.msra.mxu0 %v10313
    %10315 = vmatprep.subr.mxu0 0.0
    %v10316 = vand.u32 %v6903, 4294901760
    %10317 = vmatpush1.msra.mxu0 %v10316
    %10318 = vmatprep.subr.mxu0 0.0
    %v10319 = vand.u32 %v6904, 4294901760
    %10320 = vmatpush1.msra.mxu0 %v10319
    %10321 = vmatprep.subr.mxu0 0.0
    %v10322 = vand.u32 %v6905, 4294901760
    %10323 = vmatpush1.msra.mxu0 %v10322
    %10324 = vmatprep.subr.mxu0 0.0
    %v10325 = vand.u32 %v6906, 4294901760
    %10326 = vmatpush1.msra.mxu0 %v10325
    %10327 = vmatprep.subr.mxu0 0.0
    %v10328 = vand.u32 %v6907, 4294901760
    %10329 = vmatpush1.msra.mxu0 %v10328
    %10330 = vmatprep.subr.mxu0 0.0
    %v10331 = vand.u32 %v6908, 4294901760
    %10332 = vmatpush1.msra.mxu0 %v10331
    %10333 = vmatprep.subr.mxu0 0.0
    %v10334 = vand.u32 %v6909, 4294901760
    %10335 = vmatpush1.msra.mxu0 %v10334
    %10336 = vmatprep.subr.mxu0 0.0
    %v10337 = vand.u32 %v6910, 4294901760
    %10338 = vmatpush1.msra.mxu0 %v10337
    %10339 = vmatprep.subr.mxu0 0.0
    %v10340 = vand.u32 %v6911, 4294901760
    %10341 = vmatpush1.msra.mxu0 %v10340
    %10342 = vmatprep.subr.mxu0 0.0
    %v10343 = vand.u32 %v6912, 4294901760
    %10344 = vmatpush1.msra.mxu0 %v10343
    %10345 = vmatprep.subr.mxu0 0.0
    %v10346 = vand.u32 %v6913, 4294901760
    %10347 = vmatpush1.msra.mxu0 %v10346
    %10348 = vmatprep.subr.mxu0 0.0
    %v10349 = vand.u32 %v6914, 4294901760
    %10350 = vmatpush1.msra.mxu0 %v10349
    %10351 = vmatprep.subr.mxu0 0.0
    %v10352 = vand.u32 %v6915, 4294901760
    %10353 = vmatpush1.msra.mxu0 %v10352
    %10354 = vmatprep.subr.mxu0 0.0
    %v10355 = vand.u32 %v6916, 4294901760
    %10356 = vmatpush1.msra.mxu0 %v10355
    %v10357 = vand.u32 %v6788, 4294901760
    %10358 = vmatprep.mubr.f32.mxu0 %v10357
    %v10359 = vand.u32 %v6787, 4294901760
    %10360 = vmatmul.mubr.f32.gmra.mrb[0].mxu0 %v10359
    %v10361 = vpop.f32.mrb[0].mxu0
    %v10362 = vadd.f32 %v10258, %v10361
    %v10363 = vpop.f32.mrb[0].mxu0
    %10364 = vdwg.mxu0
    %v10365 = vmul.f32 %v10362, %v110
    %10366 = vst.msk [vmem:[#allocation9] sm:$0xff] %vm102, %v10365
    // Predicated region
    $region54: #{tpu_custom_call.1} parent=1 // pred_check
      _
    $region55: #{tpu_custom_call.1} parent=1 // pred_check_branch
      %10368 = sbr.rel (0) target = $region57
    $region56: #{tpu_custom_call.1} parent=1 // pred_region
      %s10370 = ssub.s32 128, 128
      %10371 = vsyncadd [#allocation5], %s10370
      %s10373 = sshll.u32 [#allocation9], 4
      %s10374 = int_to_ptr.vmem [resolvable:$true] %s10373
      %10376 = dma.vmem_to_hbm [thread:$0]  %s10374, 128, %s10, [#allocation5]
    $region57: #{tpu_custom_call.1} parent=1 // pred_fallthru
      _
    // Predicated region
    $region58: #{tpu_custom_call.1} parent=1 // pred_check
      _
    $region59: #{tpu_custom_call.1} parent=1 // pred_check_branch
      %10378 = sbr.rel (0) target = $region61
    $region60: #{tpu_custom_call.1} parent=1 // pred_region
      %s10380 = ssub.s32 1024, 1024
      %10381 = vsyncadd [#allocation11], %s10380
      %s10383 = sshll.u32 [#allocation10], 4
      %s10384 = int_to_ptr.vmem [resolvable:$true] %s10383
      %10386 = dma.vmem_to_hbm [thread:$0]  %s10384, 1024, %s11, [#allocation11]
    $region61: #{tpu_custom_call.1} parent=1 // pred_fallthru
      _
    // Predicated region
    $region62: #{tpu_custom_call.1} parent=1 // pred_check
      _
    $region63: #{tpu_custom_call.1} parent=1 // pred_check_branch
      %10388 = sbr.rel (0) target = $region65
    $region64: #{tpu_custom_call.1} parent=1 // pred_region
      %s10390 = ssub.s32 128, 128
      %10391 = vsyncadd [#allocation11], %s10390
      %s10393 = sshll.u32 [#allocation12], 4
      %s10394 = int_to_ptr.vmem [resolvable:$true] %s10393
      %10396 = dma.vmem_to_hbm [thread:$0]  %s10394, 128, %s12, [#allocation11]
    $region65: #{tpu_custom_call.1} parent=1 // pred_fallthru
      _
    // Predicated region
    $region66: #{tpu_custom_call.1} parent=1 // pred_check
      _
    $region67: #{tpu_custom_call.1} parent=1 // pred_check_branch
      %10398 = sbr.rel (0) target = $region69
    $region68: #{tpu_custom_call.1} parent=1 // pred_region
      %s10400 = ssub.s32 1024, 1024
      %10401 = vsyncadd [#allocation14], %s10400
      %s10403 = sshll.u32 [#allocation13], 4
      %s10404 = int_to_ptr.vmem [resolvable:$true] %s10403
      %10406 = dma.vmem_to_hbm [thread:$0]  %s10404, 1024, %s13, [#allocation14]
    $region69: #{tpu_custom_call.1} parent=1 // pred_fallthru
      _
    // Predicated region
    $region70: #{tpu_custom_call.1} parent=1 // pred_check
      _
    $region71: #{tpu_custom_call.1} parent=1 // pred_check_branch
      %10408 = sbr.rel (0) target = $region73
    $region72: #{tpu_custom_call.1} parent=1 // pred_region
      %10409 = dma.done [#allocation5], 128
    $region73: #{tpu_custom_call.1} parent=1 // pred_fallthru
      _
    // Predicated region
    $region74: #{tpu_custom_call.1} parent=1 // pred_check
      _
    $region75: #{tpu_custom_call.1} parent=1 // pred_check_branch
      %10411 = sbr.rel (0) target = $region77
    $region76: #{tpu_custom_call.1} parent=1 // pred_region
      %10412 = dma.done [#allocation11], 1024
    $region77: #{tpu_custom_call.1} parent=1 // pred_fallthru
      _
    // Predicated region
    $region78: #{tpu_custom_call.1} parent=1 // pred_check
      _
    $region79: #{tpu_custom_call.1} parent=1 // pred_check_branch
      %10414 = sbr.rel (0) target = $region81
    $region80: #{tpu_custom_call.1} parent=1 // pred_region
      %10415 = dma.done [#allocation11], 128
    $region81: #{tpu_custom_call.1} parent=1 // pred_fallthru
      _
    // Predicated region
    $region82: #{tpu_custom_call.1} parent=1 // pred_check
      _
    $region83: #{tpu_custom_call.1} parent=1 // pred_check_branch
      %10417 = sbr.rel (0) target = $region85
    $region84: #{tpu_custom_call.1} parent=1 // pred_region
      %10418 = dma.done [#allocation14], 1024
    $region85: #{tpu_custom_call.1} parent=1 // pred_fallthru
      _
    %10419 = vsyncpa [#allocation4], 1
    %10420 = vsyncpa [#allocation7], 1
    %10421 = vsyncpa [#allocation5], 1
    %10422 = vsyncpa [#allocation11], 1
    %10423 = vsyncpa [#allocation14], 1

</llo_original>
